<compile_context>
chip_gen: v7x
topology: tpu7x:2x2x1
jax: 0.10.0
libtpu: 0.0.40
codegen_flags: <defaults>
</compile_context>

<pallas_src>
import math
from functools import partial

import jax
import jax.numpy as jnp
from jax import lax
from jax.experimental import pallas as pl
from jax.experimental.pallas import tpu as pltpu

# ----- model hyper-parameters -----
VOCAB      = 64
HIDDEN     = 32
SEQ_LEN    = 8
NUM_LAYERS = 2
NUM_HEADS  = 4
FFN        = 2048            # nn.TransformerEncoderLayer default dim_feedforward
HEAD_DIM   = HIDDEN // NUM_HEADS
BATCH      = 2
LN_EPS     = 1e-5
FFN_CHUNK  = 512             # K-chunk for the feed-forward matmuls

# rows of the packed per-layer small-vector tile (8 sublanes x 128 lanes, f32)
ROW_BQKV, ROW_BO, ROW_B2, ROW_LN1W, ROW_LN1B, ROW_LN2W, ROW_LN2B = range(7)
VEC_ROWS, VEC_LANES = 8, 128


def _layer_norm(x, w, b):
    mu = jnp.mean(x, axis=-1, keepdims=True)
    var = jnp.mean((x - mu) ** 2, axis=-1, keepdims=True)
    return (x - mu) * lax.rsqrt(var + LN_EPS) * w + b


# --------------------------------------------------------------------------
# Fused kernel: both encoder layers + lm_head, statically unrolled, no grid.
# --------------------------------------------------------------------------
def tiny_gpt_kernel(x_ref, wqkv_ref, wo_ref, w1_ref, w2_ref, b1_ref, vec_ref,
                    wlm_ref, blm_ref, out_ref, *, B, S, H, NH, HD, L):
    scale = 1.0 / math.sqrt(HD)
    x = x_ref[...]                                        # (B*S, H) f32, carried in vregs

    for l in range(L):                                    # static unroll (L = 2)
        # ---- packed small per-layer vectors: one lane-dense (8,128) tile ----
        bqkv = vec_ref[l, ROW_BQKV:ROW_BQKV + 1, :3 * H]  # (1, 3H)
        bo   = vec_ref[l, ROW_BO:ROW_BO + 1, :H]          # (1, H)
        b2   = vec_ref[l, ROW_B2:ROW_B2 + 1, :H]          # (1, H)
        ln1w = vec_ref[l, ROW_LN1W:ROW_LN1W + 1, :H]
        ln1b = vec_ref[l, ROW_LN1B:ROW_LN1B + 1, :H]
        ln2w = vec_ref[l, ROW_LN2W:ROW_LN2W + 1, :H]
        ln2b = vec_ref[l, ROW_LN2B:ROW_LN2B + 1, :H]

        x_bf = x.astype(jnp.bfloat16)

        # ---- QKV projection for all B*S rows (bf16 MXU, f32 accumulate) ----
        qkv = jnp.dot(x_bf, wqkv_ref[l],
                      preferred_element_type=jnp.float32) + bqkv      # (B*S, 3H)
        q = qkv[:, :H] * scale                            # fold 1/sqrt(HD) into Q once
        k = qkv[:, H:2 * H]
        v = qkv[:, 2 * H:3 * H]

        # ---- per (batch, head) attention; everything stays in registers ----
        per_batch = []
        for b in range(B):                                # static: B*NH = 8 tiny dots
            r0 = b * S
            qb = q[r0:r0 + S, :]
            kb = k[r0:r0 + S, :]
            vb = v[r0:r0 + S, :]
            heads = []
            for h in range(NH):
                c0 = h * HD
                qh = qb[:, c0:c0 + HD]                    # (S, HD)
                kh = kb[:, c0:c0 + HD]
                vh = vb[:, c0:c0 + HD]
                s = lax.dot_general(qh, kh, (((1,), (1,)), ((), ())),
                                    preferred_element_type=jnp.float32)   # (S, S)
                s = s - jnp.max(s, axis=-1, keepdims=True)
                p = jnp.exp(s)
                p = p / jnp.sum(p, axis=-1, keepdims=True)    # exact divide
                heads.append(jnp.dot(p, vh, preferred_element_type=jnp.float32))
            per_batch.append(jnp.concatenate(heads, axis=-1))             # (S, H)
        attn_val = jnp.concatenate(per_batch, axis=0)                     # (B*S, H)

        # ---- single out-projection over all heads / batches ----
        attn = jnp.dot(attn_val.astype(jnp.bfloat16), wo_ref[l],
                       preferred_element_type=jnp.float32) + bo           # (B*S, H)

        # ---- residual + LayerNorm1 (dropout == identity in eval) ----
        y1 = _layer_norm(x + attn, ln1w, ln1b)
        y1_bf = y1.astype(jnp.bfloat16)

        # ---- feed-forward (ReLU), K-chunked to keep live vreg state small ----
        ff = jnp.zeros((B * S, H), jnp.float32)
        for c in range(FFN // FFN_CHUNK):                 # 4 static chunks of 512
            c0 = c * FFN_CHUNK
            h1c = jnp.dot(y1_bf, w1_ref[l, :, c0:c0 + FFN_CHUNK],
                          preferred_element_type=jnp.float32)
            h1c = h1c + b1_ref[l, :, c0:c0 + FFN_CHUNK]
            h1c = jnp.maximum(h1c, 0.0).astype(jnp.bfloat16)
            ff = ff + jnp.dot(h1c, w2_ref[l, c0:c0 + FFN_CHUNK, :],
                              preferred_element_type=jnp.float32)
        ff = ff + b2

        # ---- residual + LayerNorm2; activation stays in vregs for next layer ----
        x = _layer_norm(y1 + ff, ln2w, ln2b)

    # ---- lm_head (fused, single write-out) ----
    # NOTE: VOCAB=64 < 128 lanes -> one masked store per call; intentionally left
    # as-is (low priority per review).
    out_ref[...] = jnp.dot(x.astype(jnp.bfloat16), wlm_ref[...],
                           preferred_element_type=jnp.float32) + blm_ref[...]


def tiny_gpt_pallas(x_nh, stacked, lm_w_t, lm_b):
    """x_nh: (B*S, H) f32 embedded input; stacked: layer-stacked weights."""
    N = x_nh.shape[0]
    kernel = partial(tiny_gpt_kernel, B=BATCH, S=SEQ_LEN, H=HIDDEN,
                     NH=NUM_HEADS, HD=HEAD_DIM, L=NUM_LAYERS)
    vmem = lambda: pl.BlockSpec(memory_space=pltpu.MemorySpace.VMEM)
    return pl.pallas_call(
        kernel,
        out_shape=jax.ShapeDtypeStruct((N, VOCAB), jnp.float32),
        in_specs=[vmem() for _ in range(9)],
        out_specs=vmem(),
    )(x_nh, stacked['wqkv_t'], stacked['wo_t'], stacked['w1_t'],
      stacked['w2_t'], stacked['b1'], stacked['vecs'], lm_w_t, lm_b)


# --------------------------------------------------------------------------
# Full TinyGPT forward (embedding gather stays in plain JAX glue)
# --------------------------------------------------------------------------
def tiny_gpt_forward(tokens, params):
    """tokens: (S, B) int32, like the PyTorch forward(x)."""
    S, B = tokens.shape
    tok = params['tok_emb'][tokens]                       # (S, B, H)
    pos = params['pos_emb'][jnp.arange(S)][:, None, :]    # (S, 1, H)
    x = (tok + pos) * (HIDDEN ** 0.5)                     # matches (tok+pos)*sqrt(d)
    x = jnp.transpose(x, (1, 0, 2)).reshape(B * S, HIDDEN).astype(jnp.float32)
    logits = tiny_gpt_pallas(x, params['stacked'], params['lm_w_t'], params['lm_b'])
    return logits.reshape(B, S, VOCAB).transpose(1, 0, 2)  # (S, B, V)


# --------------------------------------------------------------------------
# Pure-JAX reference (same bf16 weight storage + bf16 activation casts)
# --------------------------------------------------------------------------
def tiny_gpt_reference(tokens, params):
    S, B = tokens.shape
    tok = params['tok_emb'][tokens]
    pos = params['pos_emb'][jnp.arange(S)][:, None, :]
    x = ((tok + pos) * (HIDDEN ** 0.5)).astype(jnp.float32)
    x = jnp.transpose(x, (1, 0, 2)).reshape(B * S, HIDDEN)
    st = params['stacked']
    scale = 1.0 / math.sqrt(HEAD_DIM)

    def ln(z, w_, b_):
        mu = z.mean(-1, keepdims=True)
        var = ((z - mu) ** 2).mean(-1, keepdims=True)
        return (z - mu) / jnp.sqrt(var + LN_EPS) * w_ + b_

    def mm(a, w):    # mirror the kernel: bf16 operands, f32 accumulation
        return jnp.dot(a.astype(jnp.bfloat16), w, preferred_element_type=jnp.float32)

    for l in range(NUM_LAYERS):
        vec = st['vecs'][l]
        bqkv = vec[ROW_BQKV, :3 * HIDDEN]
        bo   = vec[ROW_BO, :HIDDEN]
        b2   = vec[ROW_B2, :HIDDEN]
        ln1w = vec[ROW_LN1W, :HIDDEN]; ln1b = vec[ROW_LN1B, :HIDDEN]
        ln2w = vec[ROW_LN2W, :HIDDEN]; ln2b = vec[ROW_LN2B, :HIDDEN]
        b1 = st['b1'][l, 0]

        qkv = mm(x, st['wqkv_t'][l]) + bqkv
        q, k, v = qkv[:, :HIDDEN], qkv[:, HIDDEN:2 * HIDDEN], qkv[:, 2 * HIDDEN:]
        batches = []
        for b in range(B):
            heads = []
            for h in range(NUM_HEADS):
                r = slice(b * S, (b + 1) * S)
                c = slice(h * HEAD_DIM, (h + 1) * HEAD_DIM)
                p = jax.nn.softmax((q[r, c] * scale) @ k[r, c].T, axis=-1)
                heads.append(p @ v[r, c])
            batches.append(jnp.concatenate(heads, axis=-1))
        attn = mm(jnp.concatenate(batches, axis=0), st['wo_t'][l]) + bo
        y1 = ln(x + attn, ln1w, ln1b)
        h1 = jnp.maximum(mm(y1, st['w1_t'][l]) + b1, 0.0)
        ff = mm(h1, st['w2_t'][l]) + b2
        x = ln(y1 + ff, ln2w, ln2b)

    logits = mm(x, params['lm_w_t']) + params['lm_b']
    return logits.reshape(B, S, VOCAB).transpose(1, 0, 2)


# --------------------------------------------------------------------------
# Deterministic parameter init (synthetic; no checkpoint loading)
# --------------------------------------------------------------------------
def init_params(key):
    ks = iter(jax.random.split(key, 64))

    def nrm(shape, scale=0.02):
        return (scale * jax.random.normal(next(ks), shape)).astype(jnp.float32)

    wqkv, wo, w1, w2, b1s, vecs = [], [], [], [], [], []
    for _ in range(NUM_LAYERS):
        wqkv.append(nrm((HIDDEN, 3 * HIDDEN)))        # in_proj_weight.T
        wo.append(nrm((HIDDEN, HIDDEN)))              # out_proj.weight.T
        w1.append(nrm((HIDDEN, FFN)))                 # linear1.weight.T
        w2.append(nrm((FFN, HIDDEN)))                 # linear2.weight.T
        b1s.append(nrm((1, FFN)))                     # linear1.bias
        vec = jnp.zeros((VEC_ROWS, VEC_LANES), jnp.float32)
        vec = vec.at[ROW_BQKV, :3 * HIDDEN].set(nrm((3 * HIDDEN,)))
        vec = vec.at[ROW_BO, :HIDDEN].set(nrm((HIDDEN,)))
        vec = vec.at[ROW_B2, :HIDDEN].set(nrm((HIDDEN,)))
        vec = vec.at[ROW_LN1W, :HIDDEN].set(1.0)      # LN weights = 1, biases = 0
        vec = vec.at[ROW_LN2W, :HIDDEN].set(1.0)
        vecs.append(vec)

    stacked = {
        'wqkv_t': jnp.stack(wqkv).astype(jnp.bfloat16),   # (L, H, 3H)
        'wo_t':   jnp.stack(wo).astype(jnp.bfloat16),     # (L, H, H)
        'w1_t':   jnp.stack(w1).astype(jnp.bfloat16),     # (L, H, FFN)
        'w2_t':   jnp.stack(w2).astype(jnp.bfloat16),     # (L, FFN, H)
        'b1':     jnp.stack(b1s),                         # (L, 1, FFN)  f32
        'vecs':   jnp.stack(vecs),                        # (L, 8, 128)  f32
    }
    return {
        'tok_emb': nrm((VOCAB, HIDDEN)),
        'pos_emb': nrm((SEQ_LEN, HIDDEN)),
        'stacked': stacked,
        'lm_w_t':  nrm((HIDDEN, VOCAB)).astype(jnp.bfloat16),   # lm_head.weight.T
        'lm_b':    nrm((1, VOCAB)),
    }


if __name__ == "__main__":
    key = jax.random.PRNGKey(0)
    pkey, xkey = jax.random.split(key)
    params = init_params(pkey)

    # x: (seq_len, batch) of token ids, like the PyTorch forward.
    tokens = jax.random.randint(xkey, (SEQ_LEN, BATCH), 0, VOCAB, dtype=jnp.int32)

    logits = tiny_gpt_forward(tokens, params)
    jax.block_until_ready(logits)
    assert logits.shape == (SEQ_LEN, BATCH, VOCAB)
    assert bool(jnp.all(jnp.isfinite(logits)))

    # sanity check against a pure-JAX reference using the same bf16 matmul recipe
    ref = tiny_gpt_reference(tokens, params)
    err = float(jnp.max(jnp.abs(logits - ref)))
    assert err < 2e-2, f"max abs err {err}"

    print("KERNEL_OK")
</pallas_src>

<mosaic_0001>
module attributes {stable_mosaic.version = 11 : i64} {
  func.func @tiny_gpt_kernel(%arg0: memref<16x32xf32, #tpu.memory_space<vmem>>, %arg1: memref<2x32x96xbf16, #tpu.memory_space<vmem>>, %arg2: memref<2x32x32xbf16, #tpu.memory_space<vmem>>, %arg3: memref<2x32x2048xbf16, #tpu.memory_space<vmem>>, %arg4: memref<2x2048x32xbf16, #tpu.memory_space<vmem>>, %arg5: memref<2x1x2048xf32, #tpu.memory_space<vmem>>, %arg6: memref<2x8x128xf32, #tpu.memory_space<vmem>>, %arg7: memref<32x64xbf16, #tpu.memory_space<vmem>>, %arg8: memref<1x64xf32, #tpu.memory_space<vmem>>, %arg9: memref<16x64xf32, #tpu.memory_space<vmem>>) attributes {dimension_semantics = [], scalar_prefetch = 0 : i64, scratch_operands = 0 : i64, tpu.core_type = #tpu.core_type<tc>} {
    %c0 = arith.constant 0 : index
    %c0_0 = arith.constant 0 : index
    %0 = vector.load %arg0[%c0, %c0_0] : memref<16x32xf32, #tpu.memory_space<vmem>>, vector<16x32xf32>
    %c0_1 = arith.constant 0 : index
    %c0_2 = arith.constant 0 : index
    %c0_3 = arith.constant 0 : index
    %1 = vector.load %arg6[%c0_1, %c0_2, %c0_3] : memref<2x8x128xf32, #tpu.memory_space<vmem>>, vector<1x1x96xf32>
    %2 = vector.shape_cast %1 : vector<1x1x96xf32> to vector<1x96xf32>
    %c0_4 = arith.constant 0 : index
    %c1 = arith.constant 1 : index
    %c0_5 = arith.constant 0 : index
    %3 = vector.load %arg6[%c0_4, %c1, %c0_5] : memref<2x8x128xf32, #tpu.memory_space<vmem>>, vector<1x1x32xf32>
    %4 = vector.shape_cast %3 : vector<1x1x32xf32> to vector<1x32xf32>
    %c0_6 = arith.constant 0 : index
    %c2 = arith.constant 2 : index
    %c0_7 = arith.constant 0 : index
    %5 = vector.load %arg6[%c0_6, %c2, %c0_7] : memref<2x8x128xf32, #tpu.memory_space<vmem>>, vector<1x1x32xf32>
    %6 = vector.shape_cast %5 : vector<1x1x32xf32> to vector<1x32xf32>
    %c0_8 = arith.constant 0 : index
    %c3 = arith.constant 3 : index
    %c0_9 = arith.constant 0 : index
    %7 = vector.load %arg6[%c0_8, %c3, %c0_9] : memref<2x8x128xf32, #tpu.memory_space<vmem>>, vector<1x1x32xf32>
    %8 = vector.shape_cast %7 : vector<1x1x32xf32> to vector<1x32xf32>
    %c0_10 = arith.constant 0 : index
    %c4 = arith.constant 4 : index
    %c0_11 = arith.constant 0 : index
    %9 = vector.load %arg6[%c0_10, %c4, %c0_11] : memref<2x8x128xf32, #tpu.memory_space<vmem>>, vector<1x1x32xf32>
    %10 = vector.shape_cast %9 : vector<1x1x32xf32> to vector<1x32xf32>
    %c0_12 = arith.constant 0 : index
    %c5 = arith.constant 5 : index
    %c0_13 = arith.constant 0 : index
    %11 = vector.load %arg6[%c0_12, %c5, %c0_13] : memref<2x8x128xf32, #tpu.memory_space<vmem>>, vector<1x1x32xf32>
    %12 = vector.shape_cast %11 : vector<1x1x32xf32> to vector<1x32xf32>
    %c0_14 = arith.constant 0 : index
    %c6 = arith.constant 6 : index
    %c0_15 = arith.constant 0 : index
    %13 = vector.load %arg6[%c0_14, %c6, %c0_15] : memref<2x8x128xf32, #tpu.memory_space<vmem>>, vector<1x1x32xf32>
    %14 = vector.shape_cast %13 : vector<1x1x32xf32> to vector<1x32xf32>
    %15 = arith.truncf %0 : vector<16x32xf32> to vector<16x32xbf16>
    %c0_16 = arith.constant 0 : index
    %c0_17 = arith.constant 0 : index
    %c0_18 = arith.constant 0 : index
    %16 = vector.load %arg1[%c0_16, %c0_17, %c0_18] : memref<2x32x96xbf16, #tpu.memory_space<vmem>>, vector<1x32x96xbf16>
    %17 = vector.shape_cast %16 : vector<1x32x96xbf16> to vector<32x96xbf16>
    %cst = arith.constant dense<0.000000e+00> : vector<16x96xf32>
    %18 = tpu.matmul %15, %17, %cst {dimension_numbers = #tpu.dot_dimension_numbers<[1], [0], [0], [1], [0, 0, 1, 1], [], []>} : vector<16x32xbf16>, vector<32x96xbf16>, vector<16x96xf32> -> vector<16x96xf32>
    %19 = vector.broadcast %2 : vector<1x96xf32> to vector<16x96xf32>
    %20 = arith.addf %18, %19 : vector<16x96xf32>
    %21 = vector.extract_strided_slice %20 {offsets = [0, 0], sizes = [16, 32], strides = [1, 1]} : vector<16x96xf32> to vector<16x32xf32>
    %cst_19 = arith.constant 0.353553385 : f32
    %22 = vector.broadcast %cst_19 : f32 to vector<16x32xf32>
    %23 = arith.mulf %21, %22 : vector<16x32xf32>
    %24 = vector.extract_strided_slice %20 {offsets = [0, 32], sizes = [16, 32], strides = [1, 1]} : vector<16x96xf32> to vector<16x32xf32>
    %25 = vector.extract_strided_slice %20 {offsets = [0, 64], sizes = [16, 32], strides = [1, 1]} : vector<16x96xf32> to vector<16x32xf32>
    %26 = vector.extract_strided_slice %23 {offsets = [0, 0], sizes = [8, 32], strides = [1, 1]} : vector<16x32xf32> to vector<8x32xf32>
    %27 = vector.extract_strided_slice %24 {offsets = [0, 0], sizes = [8, 32], strides = [1, 1]} : vector<16x32xf32> to vector<8x32xf32>
    %28 = vector.extract_strided_slice %25 {offsets = [0, 0], sizes = [8, 32], strides = [1, 1]} : vector<16x32xf32> to vector<8x32xf32>
    %29 = vector.extract_strided_slice %26 {offsets = [0, 0], sizes = [8, 8], strides = [1, 1]} : vector<8x32xf32> to vector<8x8xf32>
    %30 = vector.extract_strided_slice %27 {offsets = [0, 0], sizes = [8, 8], strides = [1, 1]} : vector<8x32xf32> to vector<8x8xf32>
    %31 = vector.extract_strided_slice %28 {offsets = [0, 0], sizes = [8, 8], strides = [1, 1]} : vector<8x32xf32> to vector<8x8xf32>
    %cst_20 = arith.constant dense<0.000000e+00> : vector<8x8xf32>
    %32 = tpu.matmul %29, %30, %cst_20 {dimension_numbers = #tpu.dot_dimension_numbers<[1], [1], [0], [0], [0, 0, 1, 0], [], []>} : vector<8x8xf32>, vector<8x8xf32>, vector<8x8xf32> -> vector<8x8xf32>
    %cst_21 = arith.constant dense<0xFF800000> : vector<8xf32>
    %33 = vector.multi_reduction <maximumf>, %32, %cst_21 [1] : vector<8x8xf32> to vector<8xf32>
    %34 = vector.shape_cast %33 : vector<8xf32> to vector<8x1xf32>
    %35 = vector.broadcast %34 : vector<8x1xf32> to vector<8x8xf32>
    %36 = arith.subf %32, %35 : vector<8x8xf32>
    %37 = math.exp %36 : vector<8x8xf32>
    %cst_22 = arith.constant dense<0.000000e+00> : vector<8xf32>
    %38 = vector.multi_reduction <add>, %37, %cst_22 [1] : vector<8x8xf32> to vector<8xf32>
    %39 = vector.shape_cast %38 : vector<8xf32> to vector<8x1xf32>
    %40 = vector.broadcast %39 : vector<8x1xf32> to vector<8x8xf32>
    %41 = arith.divf %37, %40 : vector<8x8xf32>
    %cst_23 = arith.constant dense<0.000000e+00> : vector<8x8xf32>
    %42 = tpu.matmul %41, %31, %cst_23 {dimension_numbers = #tpu.dot_dimension_numbers<[1], [0], [0], [1], [0, 0, 1, 1], [], []>} : vector<8x8xf32>, vector<8x8xf32>, vector<8x8xf32> -> vector<8x8xf32>
    %43 = vector.extract_strided_slice %26 {offsets = [0, 8], sizes = [8, 8], strides = [1, 1]} : vector<8x32xf32> to vector<8x8xf32>
    %44 = vector.extract_strided_slice %27 {offsets = [0, 8], sizes = [8, 8], strides = [1, 1]} : vector<8x32xf32> to vector<8x8xf32>
    %45 = vector.extract_strided_slice %28 {offsets = [0, 8], sizes = [8, 8], strides = [1, 1]} : vector<8x32xf32> to vector<8x8xf32>
    %cst_24 = arith.constant dense<0.000000e+00> : vector<8x8xf32>
    %46 = tpu.matmul %43, %44, %cst_24 {dimension_numbers = #tpu.dot_dimension_numbers<[1], [1], [0], [0], [0, 0, 1, 0], [], []>} : vector<8x8xf32>, vector<8x8xf32>, vector<8x8xf32> -> vector<8x8xf32>
    %cst_25 = arith.constant dense<0xFF800000> : vector<8xf32>
    %47 = vector.multi_reduction <maximumf>, %46, %cst_25 [1] : vector<8x8xf32> to vector<8xf32>
    %48 = vector.shape_cast %47 : vector<8xf32> to vector<8x1xf32>
    %49 = vector.broadcast %48 : vector<8x1xf32> to vector<8x8xf32>
    %50 = arith.subf %46, %49 : vector<8x8xf32>
    %51 = math.exp %50 : vector<8x8xf32>
    %cst_26 = arith.constant dense<0.000000e+00> : vector<8xf32>
    %52 = vector.multi_reduction <add>, %51, %cst_26 [1] : vector<8x8xf32> to vector<8xf32>
    %53 = vector.shape_cast %52 : vector<8xf32> to vector<8x1xf32>
    %54 = vector.broadcast %53 : vector<8x1xf32> to vector<8x8xf32>
    %55 = arith.divf %51, %54 : vector<8x8xf32>
    %cst_27 = arith.constant dense<0.000000e+00> : vector<8x8xf32>
    %56 = tpu.matmul %55, %45, %cst_27 {dimension_numbers = #tpu.dot_dimension_numbers<[1], [0], [0], [1], [0, 0, 1, 1], [], []>} : vector<8x8xf32>, vector<8x8xf32>, vector<8x8xf32> -> vector<8x8xf32>
    %57 = vector.extract_strided_slice %26 {offsets = [0, 16], sizes = [8, 8], strides = [1, 1]} : vector<8x32xf32> to vector<8x8xf32>
    %58 = vector.extract_strided_slice %27 {offsets = [0, 16], sizes = [8, 8], strides = [1, 1]} : vector<8x32xf32> to vector<8x8xf32>
    %59 = vector.extract_strided_slice %28 {offsets = [0, 16], sizes = [8, 8], strides = [1, 1]} : vector<8x32xf32> to vector<8x8xf32>
    %cst_28 = arith.constant dense<0.000000e+00> : vector<8x8xf32>
    %60 = tpu.matmul %57, %58, %cst_28 {dimension_numbers = #tpu.dot_dimension_numbers<[1], [1], [0], [0], [0, 0, 1, 0], [], []>} : vector<8x8xf32>, vector<8x8xf32>, vector<8x8xf32> -> vector<8x8xf32>
    %cst_29 = arith.constant dense<0xFF800000> : vector<8xf32>
    %61 = vector.multi_reduction <maximumf>, %60, %cst_29 [1] : vector<8x8xf32> to vector<8xf32>
    %62 = vector.shape_cast %61 : vector<8xf32> to vector<8x1xf32>
    %63 = vector.broadcast %62 : vector<8x1xf32> to vector<8x8xf32>
    %64 = arith.subf %60, %63 : vector<8x8xf32>
    %65 = math.exp %64 : vector<8x8xf32>
    %cst_30 = arith.constant dense<0.000000e+00> : vector<8xf32>
    %66 = vector.multi_reduction <add>, %65, %cst_30 [1] : vector<8x8xf32> to vector<8xf32>
    %67 = vector.shape_cast %66 : vector<8xf32> to vector<8x1xf32>
    %68 = vector.broadcast %67 : vector<8x1xf32> to vector<8x8xf32>
    %69 = arith.divf %65, %68 : vector<8x8xf32>
    %cst_31 = arith.constant dense<0.000000e+00> : vector<8x8xf32>
    %70 = tpu.matmul %69, %59, %cst_31 {dimension_numbers = #tpu.dot_dimension_numbers<[1], [0], [0], [1], [0, 0, 1, 1], [], []>} : vector<8x8xf32>, vector<8x8xf32>, vector<8x8xf32> -> vector<8x8xf32>
    %71 = vector.extract_strided_slice %26 {offsets = [0, 24], sizes = [8, 8], strides = [1, 1]} : vector<8x32xf32> to vector<8x8xf32>
    %72 = vector.extract_strided_slice %27 {offsets = [0, 24], sizes = [8, 8], strides = [1, 1]} : vector<8x32xf32> to vector<8x8xf32>
    %73 = vector.extract_strided_slice %28 {offsets = [0, 24], sizes = [8, 8], strides = [1, 1]} : vector<8x32xf32> to vector<8x8xf32>
    %cst_32 = arith.constant dense<0.000000e+00> : vector<8x8xf32>
    %74 = tpu.matmul %71, %72, %cst_32 {dimension_numbers = #tpu.dot_dimension_numbers<[1], [1], [0], [0], [0, 0, 1, 0], [], []>} : vector<8x8xf32>, vector<8x8xf32>, vector<8x8xf32> -> vector<8x8xf32>
    %cst_33 = arith.constant dense<0xFF800000> : vector<8xf32>
    %75 = vector.multi_reduction <maximumf>, %74, %cst_33 [1] : vector<8x8xf32> to vector<8xf32>
    %76 = vector.shape_cast %75 : vector<8xf32> to vector<8x1xf32>
    %77 = vector.broadcast %76 : vector<8x1xf32> to vector<8x8xf32>
    %78 = arith.subf %74, %77 : vector<8x8xf32>
    %79 = math.exp %78 : vector<8x8xf32>
    %cst_34 = arith.constant dense<0.000000e+00> : vector<8xf32>
    %80 = vector.multi_reduction <add>, %79, %cst_34 [1] : vector<8x8xf32> to vector<8xf32>
    %81 = vector.shape_cast %80 : vector<8xf32> to vector<8x1xf32>
    %82 = vector.broadcast %81 : vector<8x1xf32> to vector<8x8xf32>
    %83 = arith.divf %79, %82 : vector<8x8xf32>
    %cst_35 = arith.constant dense<0.000000e+00> : vector<8x8xf32>
    %84 = tpu.matmul %83, %73, %cst_35 {dimension_numbers = #tpu.dot_dimension_numbers<[1], [0], [0], [1], [0, 0, 1, 1], [], []>} : vector<8x8xf32>, vector<8x8xf32>, vector<8x8xf32> -> vector<8x8xf32>
    %85 = tpu.concatenate %42, %56, %70, %84 in 1 : vector<8x8xf32>, vector<8x8xf32>, vector<8x8xf32>, vector<8x8xf32> -> vector<8x32xf32>
    %86 = vector.extract_strided_slice %23 {offsets = [8, 0], sizes = [8, 32], strides = [1, 1]} : vector<16x32xf32> to vector<8x32xf32>
    %87 = vector.extract_strided_slice %24 {offsets = [8, 0], sizes = [8, 32], strides = [1, 1]} : vector<16x32xf32> to vector<8x32xf32>
    %88 = vector.extract_strided_slice %25 {offsets = [8, 0], sizes = [8, 32], strides = [1, 1]} : vector<16x32xf32> to vector<8x32xf32>
    %89 = vector.extract_strided_slice %86 {offsets = [0, 0], sizes = [8, 8], strides = [1, 1]} : vector<8x32xf32> to vector<8x8xf32>
    %90 = vector.extract_strided_slice %87 {offsets = [0, 0], sizes = [8, 8], strides = [1, 1]} : vector<8x32xf32> to vector<8x8xf32>
    %91 = vector.extract_strided_slice %88 {offsets = [0, 0], sizes = [8, 8], strides = [1, 1]} : vector<8x32xf32> to vector<8x8xf32>
    %cst_36 = arith.constant dense<0.000000e+00> : vector<8x8xf32>
    %92 = tpu.matmul %89, %90, %cst_36 {dimension_numbers = #tpu.dot_dimension_numbers<[1], [1], [0], [0], [0, 0, 1, 0], [], []>} : vector<8x8xf32>, vector<8x8xf32>, vector<8x8xf32> -> vector<8x8xf32>
    %cst_37 = arith.constant dense<0xFF800000> : vector<8xf32>
    %93 = vector.multi_reduction <maximumf>, %92, %cst_37 [1] : vector<8x8xf32> to vector<8xf32>
    %94 = vector.shape_cast %93 : vector<8xf32> to vector<8x1xf32>
    %95 = vector.broadcast %94 : vector<8x1xf32> to vector<8x8xf32>
    %96 = arith.subf %92, %95 : vector<8x8xf32>
    %97 = math.exp %96 : vector<8x8xf32>
    %cst_38 = arith.constant dense<0.000000e+00> : vector<8xf32>
    %98 = vector.multi_reduction <add>, %97, %cst_38 [1] : vector<8x8xf32> to vector<8xf32>
    %99 = vector.shape_cast %98 : vector<8xf32> to vector<8x1xf32>
    %100 = vector.broadcast %99 : vector<8x1xf32> to vector<8x8xf32>
    %101 = arith.divf %97, %100 : vector<8x8xf32>
    %cst_39 = arith.constant dense<0.000000e+00> : vector<8x8xf32>
    %102 = tpu.matmul %101, %91, %cst_39 {dimension_numbers = #tpu.dot_dimension_numbers<[1], [0], [0], [1], [0, 0, 1, 1], [], []>} : vector<8x8xf32>, vector<8x8xf32>, vector<8x8xf32> -> vector<8x8xf32>
    %103 = vector.extract_strided_slice %86 {offsets = [0, 8], sizes = [8, 8], strides = [1, 1]} : vector<8x32xf32> to vector<8x8xf32>
    %104 = vector.extract_strided_slice %87 {offsets = [0, 8], sizes = [8, 8], strides = [1, 1]} : vector<8x32xf32> to vector<8x8xf32>
    %105 = vector.extract_strided_slice %88 {offsets = [0, 8], sizes = [8, 8], strides = [1, 1]} : vector<8x32xf32> to vector<8x8xf32>
    %cst_40 = arith.constant dense<0.000000e+00> : vector<8x8xf32>
    %106 = tpu.matmul %103, %104, %cst_40 {dimension_numbers = #tpu.dot_dimension_numbers<[1], [1], [0], [0], [0, 0, 1, 0], [], []>} : vector<8x8xf32>, vector<8x8xf32>, vector<8x8xf32> -> vector<8x8xf32>
    %cst_41 = arith.constant dense<0xFF800000> : vector<8xf32>
    %107 = vector.multi_reduction <maximumf>, %106, %cst_41 [1] : vector<8x8xf32> to vector<8xf32>
    %108 = vector.shape_cast %107 : vector<8xf32> to vector<8x1xf32>
    %109 = vector.broadcast %108 : vector<8x1xf32> to vector<8x8xf32>
    %110 = arith.subf %106, %109 : vector<8x8xf32>
    %111 = math.exp %110 : vector<8x8xf32>
    %cst_42 = arith.constant dense<0.000000e+00> : vector<8xf32>
    %112 = vector.multi_reduction <add>, %111, %cst_42 [1] : vector<8x8xf32> to vector<8xf32>
    %113 = vector.shape_cast %112 : vector<8xf32> to vector<8x1xf32>
    %114 = vector.broadcast %113 : vector<8x1xf32> to vector<8x8xf32>
    %115 = arith.divf %111, %114 : vector<8x8xf32>
    %cst_43 = arith.constant dense<0.000000e+00> : vector<8x8xf32>
    %116 = tpu.matmul %115, %105, %cst_43 {dimension_numbers = #tpu.dot_dimension_numbers<[1], [0], [0], [1], [0, 0, 1, 1], [], []>} : vector<8x8xf32>, vector<8x8xf32>, vector<8x8xf32> -> vector<8x8xf32>
    %117 = vector.extract_strided_slice %86 {offsets = [0, 16], sizes = [8, 8], strides = [1, 1]} : vector<8x32xf32> to vector<8x8xf32>
    %118 = vector.extract_strided_slice %87 {offsets = [0, 16], sizes = [8, 8], strides = [1, 1]} : vector<8x32xf32> to vector<8x8xf32>
    %119 = vector.extract_strided_slice %88 {offsets = [0, 16], sizes = [8, 8], strides = [1, 1]} : vector<8x32xf32> to vector<8x8xf32>
    %cst_44 = arith.constant dense<0.000000e+00> : vector<8x8xf32>
    %120 = tpu.matmul %117, %118, %cst_44 {dimension_numbers = #tpu.dot_dimension_numbers<[1], [1], [0], [0], [0, 0, 1, 0], [], []>} : vector<8x8xf32>, vector<8x8xf32>, vector<8x8xf32> -> vector<8x8xf32>
    %cst_45 = arith.constant dense<0xFF800000> : vector<8xf32>
    %121 = vector.multi_reduction <maximumf>, %120, %cst_45 [1] : vector<8x8xf32> to vector<8xf32>
    %122 = vector.shape_cast %121 : vector<8xf32> to vector<8x1xf32>
    %123 = vector.broadcast %122 : vector<8x1xf32> to vector<8x8xf32>
    %124 = arith.subf %120, %123 : vector<8x8xf32>
    %125 = math.exp %124 : vector<8x8xf32>
    %cst_46 = arith.constant dense<0.000000e+00> : vector<8xf32>
    %126 = vector.multi_reduction <add>, %125, %cst_46 [1] : vector<8x8xf32> to vector<8xf32>
    %127 = vector.shape_cast %126 : vector<8xf32> to vector<8x1xf32>
    %128 = vector.broadcast %127 : vector<8x1xf32> to vector<8x8xf32>
    %129 = arith.divf %125, %128 : vector<8x8xf32>
    %cst_47 = arith.constant dense<0.000000e+00> : vector<8x8xf32>
    %130 = tpu.matmul %129, %119, %cst_47 {dimension_numbers = #tpu.dot_dimension_numbers<[1], [0], [0], [1], [0, 0, 1, 1], [], []>} : vector<8x8xf32>, vector<8x8xf32>, vector<8x8xf32> -> vector<8x8xf32>
    %131 = vector.extract_strided_slice %86 {offsets = [0, 24], sizes = [8, 8], strides = [1, 1]} : vector<8x32xf32> to vector<8x8xf32>
    %132 = vector.extract_strided_slice %87 {offsets = [0, 24], sizes = [8, 8], strides = [1, 1]} : vector<8x32xf32> to vector<8x8xf32>
    %133 = vector.extract_strided_slice %88 {offsets = [0, 24], sizes = [8, 8], strides = [1, 1]} : vector<8x32xf32> to vector<8x8xf32>
    %cst_48 = arith.constant dense<0.000000e+00> : vector<8x8xf32>
    %134 = tpu.matmul %131, %132, %cst_48 {dimension_numbers = #tpu.dot_dimension_numbers<[1], [1], [0], [0], [0, 0, 1, 0], [], []>} : vector<8x8xf32>, vector<8x8xf32>, vector<8x8xf32> -> vector<8x8xf32>
    %cst_49 = arith.constant dense<0xFF800000> : vector<8xf32>
    %135 = vector.multi_reduction <maximumf>, %134, %cst_49 [1] : vector<8x8xf32> to vector<8xf32>
    %136 = vector.shape_cast %135 : vector<8xf32> to vector<8x1xf32>
    %137 = vector.broadcast %136 : vector<8x1xf32> to vector<8x8xf32>
    %138 = arith.subf %134, %137 : vector<8x8xf32>
    %139 = math.exp %138 : vector<8x8xf32>
    %cst_50 = arith.constant dense<0.000000e+00> : vector<8xf32>
    %140 = vector.multi_reduction <add>, %139, %cst_50 [1] : vector<8x8xf32> to vector<8xf32>
    %141 = vector.shape_cast %140 : vector<8xf32> to vector<8x1xf32>
    %142 = vector.broadcast %141 : vector<8x1xf32> to vector<8x8xf32>
    %143 = arith.divf %139, %142 : vector<8x8xf32>
    %cst_51 = arith.constant dense<0.000000e+00> : vector<8x8xf32>
    %144 = tpu.matmul %143, %133, %cst_51 {dimension_numbers = #tpu.dot_dimension_numbers<[1], [0], [0], [1], [0, 0, 1, 1], [], []>} : vector<8x8xf32>, vector<8x8xf32>, vector<8x8xf32> -> vector<8x8xf32>
    %145 = tpu.concatenate %102, %116, %130, %144 in 1 : vector<8x8xf32>, vector<8x8xf32>, vector<8x8xf32>, vector<8x8xf32> -> vector<8x32xf32>
    %146 = tpu.concatenate %85, %145 in 0 : vector<8x32xf32>, vector<8x32xf32> -> vector<16x32xf32>
    %147 = arith.truncf %146 : vector<16x32xf32> to vector<16x32xbf16>
    %c0_52 = arith.constant 0 : index
    %c0_53 = arith.constant 0 : index
    %c0_54 = arith.constant 0 : index
    %148 = vector.load %arg2[%c0_52, %c0_53, %c0_54] : memref<2x32x32xbf16, #tpu.memory_space<vmem>>, vector<1x32x32xbf16>
    %149 = vector.shape_cast %148 : vector<1x32x32xbf16> to vector<32x32xbf16>
    %cst_55 = arith.constant dense<0.000000e+00> : vector<16x32xf32>
    %150 = tpu.matmul %147, %149, %cst_55 {dimension_numbers = #tpu.dot_dimension_numbers<[1], [0], [0], [1], [0, 0, 1, 1], [], []>} : vector<16x32xbf16>, vector<32x32xbf16>, vector<16x32xf32> -> vector<16x32xf32>
    %151 = vector.broadcast %4 : vector<1x32xf32> to vector<16x32xf32>
    %152 = arith.addf %150, %151 : vector<16x32xf32>
    %153 = arith.addf %0, %152 : vector<16x32xf32>
    %cst_56 = arith.constant dense<0.000000e+00> : vector<16xf32>
    %154 = vector.multi_reduction <add>, %153, %cst_56 [1] : vector<16x32xf32> to vector<16xf32>
    %155 = vector.shape_cast %154 : vector<16xf32> to vector<16x1xf32>
    %cst_57 = arith.constant 3.200000e+01 : f32
    %156 = vector.broadcast %cst_57 : f32 to vector<16x1xf32>
    %157 = arith.divf %155, %156 : vector<16x1xf32>
    %158 = vector.broadcast %157 : vector<16x1xf32> to vector<16x32xf32>
    %159 = arith.subf %153, %158 : vector<16x32xf32>
    %160 = arith.mulf %159, %159 : vector<16x32xf32>
    %cst_58 = arith.constant dense<0.000000e+00> : vector<16xf32>
    %161 = vector.multi_reduction <add>, %160, %cst_58 [1] : vector<16x32xf32> to vector<16xf32>
    %162 = vector.shape_cast %161 : vector<16xf32> to vector<16x1xf32>
    %cst_59 = arith.constant 3.200000e+01 : f32
    %163 = vector.broadcast %cst_59 : f32 to vector<16x1xf32>
    %164 = arith.divf %162, %163 : vector<16x1xf32>
    %165 = vector.broadcast %157 : vector<16x1xf32> to vector<16x32xf32>
    %166 = arith.subf %153, %165 : vector<16x32xf32>
    %cst_60 = arith.constant 9.99999974E-6 : f32
    %167 = vector.broadcast %cst_60 : f32 to vector<16x1xf32>
    %168 = arith.addf %164, %167 : vector<16x1xf32>
    %169 = math.rsqrt %168 : vector<16x1xf32>
    %170 = vector.broadcast %169 : vector<16x1xf32> to vector<16x32xf32>
    %171 = arith.mulf %166, %170 : vector<16x32xf32>
    %172 = vector.broadcast %8 : vector<1x32xf32> to vector<16x32xf32>
    %173 = arith.mulf %171, %172 : vector<16x32xf32>
    %174 = vector.broadcast %10 : vector<1x32xf32> to vector<16x32xf32>
    %175 = arith.addf %173, %174 : vector<16x32xf32>
    %176 = arith.truncf %175 : vector<16x32xf32> to vector<16x32xbf16>
    %cst_61 = arith.constant 0.000000e+00 : f32
    %177 = vector.broadcast %cst_61 : f32 to vector<16x32xf32>
    %c0_62 = arith.constant 0 : index
    %c0_63 = arith.constant 0 : index
    %c0_64 = arith.constant 0 : index
    %178 = vector.load %arg3[%c0_62, %c0_63, %c0_64] : memref<2x32x2048xbf16, #tpu.memory_space<vmem>>, vector<1x32x512xbf16>
    %179 = vector.shape_cast %178 : vector<1x32x512xbf16> to vector<32x512xbf16>
    %cst_65 = arith.constant dense<0.000000e+00> : vector<16x512xf32>
    %180 = tpu.matmul %176, %179, %cst_65 {dimension_numbers = #tpu.dot_dimension_numbers<[1], [0], [0], [1], [0, 0, 1, 1], [], []>} : vector<16x32xbf16>, vector<32x512xbf16>, vector<16x512xf32> -> vector<16x512xf32>
    %c0_66 = arith.constant 0 : index
    %c0_67 = arith.constant 0 : index
    %c0_68 = arith.constant 0 : index
    %181 = vector.load %arg5[%c0_66, %c0_67, %c0_68] : memref<2x1x2048xf32, #tpu.memory_space<vmem>>, vector<1x1x512xf32>
    %182 = vector.shape_cast %181 : vector<1x1x512xf32> to vector<1x512xf32>
    %183 = vector.broadcast %182 : vector<1x512xf32> to vector<16x512xf32>
    %184 = arith.addf %180, %183 : vector<16x512xf32>
    %cst_69 = arith.constant 0.000000e+00 : f32
    %185 = vector.broadcast %cst_69 : f32 to vector<16x512xf32>
    %186 = arith.maximumf %184, %185 : vector<16x512xf32>
    %187 = arith.truncf %186 : vector<16x512xf32> to vector<16x512xbf16>
    %c0_70 = arith.constant 0 : index
    %c0_71 = arith.constant 0 : index
    %c0_72 = arith.constant 0 : index
    %188 = vector.load %arg4[%c0_70, %c0_71, %c0_72] : memref<2x2048x32xbf16, #tpu.memory_space<vmem>>, vector<1x512x32xbf16>
    %189 = vector.shape_cast %188 : vector<1x512x32xbf16> to vector<512x32xbf16>
    %cst_73 = arith.constant dense<0.000000e+00> : vector<16x32xf32>
    %190 = tpu.matmul %187, %189, %cst_73 {dimension_numbers = #tpu.dot_dimension_numbers<[1], [0], [0], [1], [0, 0, 1, 1], [], []>} : vector<16x512xbf16>, vector<512x32xbf16>, vector<16x32xf32> -> vector<16x32xf32>
    %191 = arith.addf %177, %190 : vector<16x32xf32>
    %c0_74 = arith.constant 0 : index
    %c0_75 = arith.constant 0 : index
    %c512 = arith.constant 512 : index
    %192 = vector.load %arg3[%c0_74, %c0_75, %c512] : memref<2x32x2048xbf16, #tpu.memory_space<vmem>>, vector<1x32x512xbf16>
    %193 = vector.shape_cast %192 : vector<1x32x512xbf16> to vector<32x512xbf16>
    %cst_76 = arith.constant dense<0.000000e+00> : vector<16x512xf32>
    %194 = tpu.matmul %176, %193, %cst_76 {dimension_numbers = #tpu.dot_dimension_numbers<[1], [0], [0], [1], [0, 0, 1, 1], [], []>} : vector<16x32xbf16>, vector<32x512xbf16>, vector<16x512xf32> -> vector<16x512xf32>
    %c0_77 = arith.constant 0 : index
    %c0_78 = arith.constant 0 : index
    %c512_79 = arith.constant 512 : index
    %195 = vector.load %arg5[%c0_77, %c0_78, %c512_79] : memref<2x1x2048xf32, #tpu.memory_space<vmem>>, vector<1x1x512xf32>
    %196 = vector.shape_cast %195 : vector<1x1x512xf32> to vector<1x512xf32>
    %197 = vector.broadcast %196 : vector<1x512xf32> to vector<16x512xf32>
    %198 = arith.addf %194, %197 : vector<16x512xf32>
    %cst_80 = arith.constant 0.000000e+00 : f32
    %199 = vector.broadcast %cst_80 : f32 to vector<16x512xf32>
    %200 = arith.maximumf %198, %199 : vector<16x512xf32>
    %201 = arith.truncf %200 : vector<16x512xf32> to vector<16x512xbf16>
    %c0_81 = arith.constant 0 : index
    %c512_82 = arith.constant 512 : index
    %c0_83 = arith.constant 0 : index
    %202 = vector.load %arg4[%c0_81, %c512_82, %c0_83] : memref<2x2048x32xbf16, #tpu.memory_space<vmem>>, vector<1x512x32xbf16>
    %203 = vector.shape_cast %202 : vector<1x512x32xbf16> to vector<512x32xbf16>
    %cst_84 = arith.constant dense<0.000000e+00> : vector<16x32xf32>
    %204 = tpu.matmul %201, %203, %cst_84 {dimension_numbers = #tpu.dot_dimension_numbers<[1], [0], [0], [1], [0, 0, 1, 1], [], []>} : vector<16x512xbf16>, vector<512x32xbf16>, vector<16x32xf32> -> vector<16x32xf32>
    %205 = arith.addf %191, %204 : vector<16x32xf32>
    %c0_85 = arith.constant 0 : index
    %c0_86 = arith.constant 0 : index
    %c1024 = arith.constant 1024 : index
    %206 = vector.load %arg3[%c0_85, %c0_86, %c1024] : memref<2x32x2048xbf16, #tpu.memory_space<vmem>>, vector<1x32x512xbf16>
    %207 = vector.shape_cast %206 : vector<1x32x512xbf16> to vector<32x512xbf16>
    %cst_87 = arith.constant dense<0.000000e+00> : vector<16x512xf32>
    %208 = tpu.matmul %176, %207, %cst_87 {dimension_numbers = #tpu.dot_dimension_numbers<[1], [0], [0], [1], [0, 0, 1, 1], [], []>} : vector<16x32xbf16>, vector<32x512xbf16>, vector<16x512xf32> -> vector<16x512xf32>
    %c0_88 = arith.constant 0 : index
    %c0_89 = arith.constant 0 : index
    %c1024_90 = arith.constant 1024 : index
    %209 = vector.load %arg5[%c0_88, %c0_89, %c1024_90] : memref<2x1x2048xf32, #tpu.memory_space<vmem>>, vector<1x1x512xf32>
    %210 = vector.shape_cast %209 : vector<1x1x512xf32> to vector<1x512xf32>
    %211 = vector.broadcast %210 : vector<1x512xf32> to vector<16x512xf32>
    %212 = arith.addf %208, %211 : vector<16x512xf32>
    %cst_91 = arith.constant 0.000000e+00 : f32
    %213 = vector.broadcast %cst_91 : f32 to vector<16x512xf32>
    %214 = arith.maximumf %212, %213 : vector<16x512xf32>
    %215 = arith.truncf %214 : vector<16x512xf32> to vector<16x512xbf16>
    %c0_92 = arith.constant 0 : index
    %c1024_93 = arith.constant 1024 : index
    %c0_94 = arith.constant 0 : index
    %216 = vector.load %arg4[%c0_92, %c1024_93, %c0_94] : memref<2x2048x32xbf16, #tpu.memory_space<vmem>>, vector<1x512x32xbf16>
    %217 = vector.shape_cast %216 : vector<1x512x32xbf16> to vector<512x32xbf16>
    %cst_95 = arith.constant dense<0.000000e+00> : vector<16x32xf32>
    %218 = tpu.matmul %215, %217, %cst_95 {dimension_numbers = #tpu.dot_dimension_numbers<[1], [0], [0], [1], [0, 0, 1, 1], [], []>} : vector<16x512xbf16>, vector<512x32xbf16>, vector<16x32xf32> -> vector<16x32xf32>
    %219 = arith.addf %205, %218 : vector<16x32xf32>
    %c0_96 = arith.constant 0 : index
    %c0_97 = arith.constant 0 : index
    %c1536 = arith.constant 1536 : index
    %220 = vector.load %arg3[%c0_96, %c0_97, %c1536] : memref<2x32x2048xbf16, #tpu.memory_space<vmem>>, vector<1x32x512xbf16>
    %221 = vector.shape_cast %220 : vector<1x32x512xbf16> to vector<32x512xbf16>
    %cst_98 = arith.constant dense<0.000000e+00> : vector<16x512xf32>
    %222 = tpu.matmul %176, %221, %cst_98 {dimension_numbers = #tpu.dot_dimension_numbers<[1], [0], [0], [1], [0, 0, 1, 1], [], []>} : vector<16x32xbf16>, vector<32x512xbf16>, vector<16x512xf32> -> vector<16x512xf32>
    %c0_99 = arith.constant 0 : index
    %c0_100 = arith.constant 0 : index
    %c1536_101 = arith.constant 1536 : index
    %223 = vector.load %arg5[%c0_99, %c0_100, %c1536_101] : memref<2x1x2048xf32, #tpu.memory_space<vmem>>, vector<1x1x512xf32>
    %224 = vector.shape_cast %223 : vector<1x1x512xf32> to vector<1x512xf32>
    %225 = vector.broadcast %224 : vector<1x512xf32> to vector<16x512xf32>
    %226 = arith.addf %222, %225 : vector<16x512xf32>
    %cst_102 = arith.constant 0.000000e+00 : f32
    %227 = vector.broadcast %cst_102 : f32 to vector<16x512xf32>
    %228 = arith.maximumf %226, %227 : vector<16x512xf32>
    %229 = arith.truncf %228 : vector<16x512xf32> to vector<16x512xbf16>
    %c0_103 = arith.constant 0 : index
    %c1536_104 = arith.constant 1536 : index
    %c0_105 = arith.constant 0 : index
    %230 = vector.load %arg4[%c0_103, %c1536_104, %c0_105] : memref<2x2048x32xbf16, #tpu.memory_space<vmem>>, vector<1x512x32xbf16>
    %231 = vector.shape_cast %230 : vector<1x512x32xbf16> to vector<512x32xbf16>
    %cst_106 = arith.constant dense<0.000000e+00> : vector<16x32xf32>
    %232 = tpu.matmul %229, %231, %cst_106 {dimension_numbers = #tpu.dot_dimension_numbers<[1], [0], [0], [1], [0, 0, 1, 1], [], []>} : vector<16x512xbf16>, vector<512x32xbf16>, vector<16x32xf32> -> vector<16x32xf32>
    %233 = arith.addf %219, %232 : vector<16x32xf32>
    %234 = vector.broadcast %6 : vector<1x32xf32> to vector<16x32xf32>
    %235 = arith.addf %233, %234 : vector<16x32xf32>
    %236 = arith.addf %175, %235 : vector<16x32xf32>
    %cst_107 = arith.constant dense<0.000000e+00> : vector<16xf32>
    %237 = vector.multi_reduction <add>, %236, %cst_107 [1] : vector<16x32xf32> to vector<16xf32>
    %238 = vector.shape_cast %237 : vector<16xf32> to vector<16x1xf32>
    %cst_108 = arith.constant 3.200000e+01 : f32
    %239 = vector.broadcast %cst_108 : f32 to vector<16x1xf32>
    %240 = arith.divf %238, %239 : vector<16x1xf32>
    %241 = vector.broadcast %240 : vector<16x1xf32> to vector<16x32xf32>
    %242 = arith.subf %236, %241 : vector<16x32xf32>
    %243 = arith.mulf %242, %242 : vector<16x32xf32>
    %cst_109 = arith.constant dense<0.000000e+00> : vector<16xf32>
    %244 = vector.multi_reduction <add>, %243, %cst_109 [1] : vector<16x32xf32> to vector<16xf32>
    %245 = vector.shape_cast %244 : vector<16xf32> to vector<16x1xf32>
    %cst_110 = arith.constant 3.200000e+01 : f32
    %246 = vector.broadcast %cst_110 : f32 to vector<16x1xf32>
    %247 = arith.divf %245, %246 : vector<16x1xf32>
    %248 = vector.broadcast %240 : vector<16x1xf32> to vector<16x32xf32>
    %249 = arith.subf %236, %248 : vector<16x32xf32>
    %cst_111 = arith.constant 9.99999974E-6 : f32
    %250 = vector.broadcast %cst_111 : f32 to vector<16x1xf32>
    %251 = arith.addf %247, %250 : vector<16x1xf32>
    %252 = math.rsqrt %251 : vector<16x1xf32>
    %253 = vector.broadcast %252 : vector<16x1xf32> to vector<16x32xf32>
    %254 = arith.mulf %249, %253 : vector<16x32xf32>
    %255 = vector.broadcast %12 : vector<1x32xf32> to vector<16x32xf32>
    %256 = arith.mulf %254, %255 : vector<16x32xf32>
    %257 = vector.broadcast %14 : vector<1x32xf32> to vector<16x32xf32>
    %258 = arith.addf %256, %257 : vector<16x32xf32>
    %c1_112 = arith.constant 1 : index
    %c0_113 = arith.constant 0 : index
    %c0_114 = arith.constant 0 : index
    %259 = vector.load %arg6[%c1_112, %c0_113, %c0_114] : memref<2x8x128xf32, #tpu.memory_space<vmem>>, vector<1x1x96xf32>
    %260 = vector.shape_cast %259 : vector<1x1x96xf32> to vector<1x96xf32>
    %c1_115 = arith.constant 1 : index
    %c1_116 = arith.constant 1 : index
    %c0_117 = arith.constant 0 : index
    %261 = vector.load %arg6[%c1_115, %c1_116, %c0_117] : memref<2x8x128xf32, #tpu.memory_space<vmem>>, vector<1x1x32xf32>
    %262 = vector.shape_cast %261 : vector<1x1x32xf32> to vector<1x32xf32>
    %c1_118 = arith.constant 1 : index
    %c2_119 = arith.constant 2 : index
    %c0_120 = arith.constant 0 : index
    %263 = vector.load %arg6[%c1_118, %c2_119, %c0_120] : memref<2x8x128xf32, #tpu.memory_space<vmem>>, vector<1x1x32xf32>
    %264 = vector.shape_cast %263 : vector<1x1x32xf32> to vector<1x32xf32>
    %c1_121 = arith.constant 1 : index
    %c3_122 = arith.constant 3 : index
    %c0_123 = arith.constant 0 : index
    %265 = vector.load %arg6[%c1_121, %c3_122, %c0_123] : memref<2x8x128xf32, #tpu.memory_space<vmem>>, vector<1x1x32xf32>
    %266 = vector.shape_cast %265 : vector<1x1x32xf32> to vector<1x32xf32>
    %c1_124 = arith.constant 1 : index
    %c4_125 = arith.constant 4 : index
    %c0_126 = arith.constant 0 : index
    %267 = vector.load %arg6[%c1_124, %c4_125, %c0_126] : memref<2x8x128xf32, #tpu.memory_space<vmem>>, vector<1x1x32xf32>
    %268 = vector.shape_cast %267 : vector<1x1x32xf32> to vector<1x32xf32>
    %c1_127 = arith.constant 1 : index
    %c5_128 = arith.constant 5 : index
    %c0_129 = arith.constant 0 : index
    %269 = vector.load %arg6[%c1_127, %c5_128, %c0_129] : memref<2x8x128xf32, #tpu.memory_space<vmem>>, vector<1x1x32xf32>
    %270 = vector.shape_cast %269 : vector<1x1x32xf32> to vector<1x32xf32>
    %c1_130 = arith.constant 1 : index
    %c6_131 = arith.constant 6 : index
    %c0_132 = arith.constant 0 : index
    %271 = vector.load %arg6[%c1_130, %c6_131, %c0_132] : memref<2x8x128xf32, #tpu.memory_space<vmem>>, vector<1x1x32xf32>
    %272 = vector.shape_cast %271 : vector<1x1x32xf32> to vector<1x32xf32>
    %273 = arith.truncf %258 : vector<16x32xf32> to vector<16x32xbf16>
    %c1_133 = arith.constant 1 : index
    %c0_134 = arith.constant 0 : index
    %c0_135 = arith.constant 0 : index
    %274 = vector.load %arg1[%c1_133, %c0_134, %c0_135] : memref<2x32x96xbf16, #tpu.memory_space<vmem>>, vector<1x32x96xbf16>
    %275 = vector.shape_cast %274 : vector<1x32x96xbf16> to vector<32x96xbf16>
    %cst_136 = arith.constant dense<0.000000e+00> : vector<16x96xf32>
    %276 = tpu.matmul %273, %275, %cst_136 {dimension_numbers = #tpu.dot_dimension_numbers<[1], [0], [0], [1], [0, 0, 1, 1], [], []>} : vector<16x32xbf16>, vector<32x96xbf16>, vector<16x96xf32> -> vector<16x96xf32>
    %277 = vector.broadcast %260 : vector<1x96xf32> to vector<16x96xf32>
    %278 = arith.addf %276, %277 : vector<16x96xf32>
    %279 = vector.extract_strided_slice %278 {offsets = [0, 0], sizes = [16, 32], strides = [1, 1]} : vector<16x96xf32> to vector<16x32xf32>
    %cst_137 = arith.constant 0.353553385 : f32
    %280 = vector.broadcast %cst_137 : f32 to vector<16x32xf32>
    %281 = arith.mulf %279, %280 : vector<16x32xf32>
    %282 = vector.extract_strided_slice %278 {offsets = [0, 32], sizes = [16, 32], strides = [1, 1]} : vector<16x96xf32> to vector<16x32xf32>
    %283 = vector.extract_strided_slice %278 {offsets = [0, 64], sizes = [16, 32], strides = [1, 1]} : vector<16x96xf32> to vector<16x32xf32>
    %284 = vector.extract_strided_slice %281 {offsets = [0, 0], sizes = [8, 32], strides = [1, 1]} : vector<16x32xf32> to vector<8x32xf32>
    %285 = vector.extract_strided_slice %282 {offsets = [0, 0], sizes = [8, 32], strides = [1, 1]} : vector<16x32xf32> to vector<8x32xf32>
    %286 = vector.extract_strided_slice %283 {offsets = [0, 0], sizes = [8, 32], strides = [1, 1]} : vector<16x32xf32> to vector<8x32xf32>
    %287 = vector.extract_strided_slice %284 {offsets = [0, 0], sizes = [8, 8], strides = [1, 1]} : vector<8x32xf32> to vector<8x8xf32>
    %288 = vector.extract_strided_slice %285 {offsets = [0, 0], sizes = [8, 8], strides = [1, 1]} : vector<8x32xf32> to vector<8x8xf32>
    %289 = vector.extract_strided_slice %286 {offsets = [0, 0], sizes = [8, 8], strides = [1, 1]} : vector<8x32xf32> to vector<8x8xf32>
    %cst_138 = arith.constant dense<0.000000e+00> : vector<8x8xf32>
    %290 = tpu.matmul %287, %288, %cst_138 {dimension_numbers = #tpu.dot_dimension_numbers<[1], [1], [0], [0], [0, 0, 1, 0], [], []>} : vector<8x8xf32>, vector<8x8xf32>, vector<8x8xf32> -> vector<8x8xf32>
    %cst_139 = arith.constant dense<0xFF800000> : vector<8xf32>
    %291 = vector.multi_reduction <maximumf>, %290, %cst_139 [1] : vector<8x8xf32> to vector<8xf32>
    %292 = vector.shape_cast %291 : vector<8xf32> to vector<8x1xf32>
    %293 = vector.broadcast %292 : vector<8x1xf32> to vector<8x8xf32>
    %294 = arith.subf %290, %293 : vector<8x8xf32>
    %295 = math.exp %294 : vector<8x8xf32>
    %cst_140 = arith.constant dense<0.000000e+00> : vector<8xf32>
    %296 = vector.multi_reduction <add>, %295, %cst_140 [1] : vector<8x8xf32> to vector<8xf32>
    %297 = vector.shape_cast %296 : vector<8xf32> to vector<8x1xf32>
    %298 = vector.broadcast %297 : vector<8x1xf32> to vector<8x8xf32>
    %299 = arith.divf %295, %298 : vector<8x8xf32>
    %cst_141 = arith.constant dense<0.000000e+00> : vector<8x8xf32>
    %300 = tpu.matmul %299, %289, %cst_141 {dimension_numbers = #tpu.dot_dimension_numbers<[1], [0], [0], [1], [0, 0, 1, 1], [], []>} : vector<8x8xf32>, vector<8x8xf32>, vector<8x8xf32> -> vector<8x8xf32>
    %301 = vector.extract_strided_slice %284 {offsets = [0, 8], sizes = [8, 8], strides = [1, 1]} : vector<8x32xf32> to vector<8x8xf32>
    %302 = vector.extract_strided_slice %285 {offsets = [0, 8], sizes = [8, 8], strides = [1, 1]} : vector<8x32xf32> to vector<8x8xf32>
    %303 = vector.extract_strided_slice %286 {offsets = [0, 8], sizes = [8, 8], strides = [1, 1]} : vector<8x32xf32> to vector<8x8xf32>
    %cst_142 = arith.constant dense<0.000000e+00> : vector<8x8xf32>
    %304 = tpu.matmul %301, %302, %cst_142 {dimension_numbers = #tpu.dot_dimension_numbers<[1], [1], [0], [0], [0, 0, 1, 0], [], []>} : vector<8x8xf32>, vector<8x8xf32>, vector<8x8xf32> -> vector<8x8xf32>
    %cst_143 = arith.constant dense<0xFF800000> : vector<8xf32>
    %305 = vector.multi_reduction <maximumf>, %304, %cst_143 [1] : vector<8x8xf32> to vector<8xf32>
    %306 = vector.shape_cast %305 : vector<8xf32> to vector<8x1xf32>
    %307 = vector.broadcast %306 : vector<8x1xf32> to vector<8x8xf32>
    %308 = arith.subf %304, %307 : vector<8x8xf32>
    %309 = math.exp %308 : vector<8x8xf32>
    %cst_144 = arith.constant dense<0.000000e+00> : vector<8xf32>
    %310 = vector.multi_reduction <add>, %309, %cst_144 [1] : vector<8x8xf32> to vector<8xf32>
    %311 = vector.shape_cast %310 : vector<8xf32> to vector<8x1xf32>
    %312 = vector.broadcast %311 : vector<8x1xf32> to vector<8x8xf32>
    %313 = arith.divf %309, %312 : vector<8x8xf32>
    %cst_145 = arith.constant dense<0.000000e+00> : vector<8x8xf32>
    %314 = tpu.matmul %313, %303, %cst_145 {dimension_numbers = #tpu.dot_dimension_numbers<[1], [0], [0], [1], [0, 0, 1, 1], [], []>} : vector<8x8xf32>, vector<8x8xf32>, vector<8x8xf32> -> vector<8x8xf32>
    %315 = vector.extract_strided_slice %284 {offsets = [0, 16], sizes = [8, 8], strides = [1, 1]} : vector<8x32xf32> to vector<8x8xf32>
    %316 = vector.extract_strided_slice %285 {offsets = [0, 16], sizes = [8, 8], strides = [1, 1]} : vector<8x32xf32> to vector<8x8xf32>
    %317 = vector.extract_strided_slice %286 {offsets = [0, 16], sizes = [8, 8], strides = [1, 1]} : vector<8x32xf32> to vector<8x8xf32>
    %cst_146 = arith.constant dense<0.000000e+00> : vector<8x8xf32>
    %318 = tpu.matmul %315, %316, %cst_146 {dimension_numbers = #tpu.dot_dimension_numbers<[1], [1], [0], [0], [0, 0, 1, 0], [], []>} : vector<8x8xf32>, vector<8x8xf32>, vector<8x8xf32> -> vector<8x8xf32>
    %cst_147 = arith.constant dense<0xFF800000> : vector<8xf32>
    %319 = vector.multi_reduction <maximumf>, %318, %cst_147 [1] : vector<8x8xf32> to vector<8xf32>
    %320 = vector.shape_cast %319 : vector<8xf32> to vector<8x1xf32>
    %321 = vector.broadcast %320 : vector<8x1xf32> to vector<8x8xf32>
    %322 = arith.subf %318, %321 : vector<8x8xf32>
    %323 = math.exp %322 : vector<8x8xf32>
    %cst_148 = arith.constant dense<0.000000e+00> : vector<8xf32>
    %324 = vector.multi_reduction <add>, %323, %cst_148 [1] : vector<8x8xf32> to vector<8xf32>
    %325 = vector.shape_cast %324 : vector<8xf32> to vector<8x1xf32>
    %326 = vector.broadcast %325 : vector<8x1xf32> to vector<8x8xf32>
    %327 = arith.divf %323, %326 : vector<8x8xf32>
    %cst_149 = arith.constant dense<0.000000e+00> : vector<8x8xf32>
    %328 = tpu.matmul %327, %317, %cst_149 {dimension_numbers = #tpu.dot_dimension_numbers<[1], [0], [0], [1], [0, 0, 1, 1], [], []>} : vector<8x8xf32>, vector<8x8xf32>, vector<8x8xf32> -> vector<8x8xf32>
    %329 = vector.extract_strided_slice %284 {offsets = [0, 24], sizes = [8, 8], strides = [1, 1]} : vector<8x32xf32> to vector<8x8xf32>
    %330 = vector.extract_strided_slice %285 {offsets = [0, 24], sizes = [8, 8], strides = [1, 1]} : vector<8x32xf32> to vector<8x8xf32>
    %331 = vector.extract_strided_slice %286 {offsets = [0, 24], sizes = [8, 8], strides = [1, 1]} : vector<8x32xf32> to vector<8x8xf32>
    %cst_150 = arith.constant dense<0.000000e+00> : vector<8x8xf32>
    %332 = tpu.matmul %329, %330, %cst_150 {dimension_numbers = #tpu.dot_dimension_numbers<[1], [1], [0], [0], [0, 0, 1, 0], [], []>} : vector<8x8xf32>, vector<8x8xf32>, vector<8x8xf32> -> vector<8x8xf32>
    %cst_151 = arith.constant dense<0xFF800000> : vector<8xf32>
    %333 = vector.multi_reduction <maximumf>, %332, %cst_151 [1] : vector<8x8xf32> to vector<8xf32>
    %334 = vector.shape_cast %333 : vector<8xf32> to vector<8x1xf32>
    %335 = vector.broadcast %334 : vector<8x1xf32> to vector<8x8xf32>
    %336 = arith.subf %332, %335 : vector<8x8xf32>
    %337 = math.exp %336 : vector<8x8xf32>
    %cst_152 = arith.constant dense<0.000000e+00> : vector<8xf32>
    %338 = vector.multi_reduction <add>, %337, %cst_152 [1] : vector<8x8xf32> to vector<8xf32>
    %339 = vector.shape_cast %338 : vector<8xf32> to vector<8x1xf32>
    %340 = vector.broadcast %339 : vector<8x1xf32> to vector<8x8xf32>
    %341 = arith.divf %337, %340 : vector<8x8xf32>
    %cst_153 = arith.constant dense<0.000000e+00> : vector<8x8xf32>
    %342 = tpu.matmul %341, %331, %cst_153 {dimension_numbers = #tpu.dot_dimension_numbers<[1], [0], [0], [1], [0, 0, 1, 1], [], []>} : vector<8x8xf32>, vector<8x8xf32>, vector<8x8xf32> -> vector<8x8xf32>
    %343 = tpu.concatenate %300, %314, %328, %342 in 1 : vector<8x8xf32>, vector<8x8xf32>, vector<8x8xf32>, vector<8x8xf32> -> vector<8x32xf32>
    %344 = vector.extract_strided_slice %281 {offsets = [8, 0], sizes = [8, 32], strides = [1, 1]} : vector<16x32xf32> to vector<8x32xf32>
    %345 = vector.extract_strided_slice %282 {offsets = [8, 0], sizes = [8, 32], strides = [1, 1]} : vector<16x32xf32> to vector<8x32xf32>
    %346 = vector.extract_strided_slice %283 {offsets = [8, 0], sizes = [8, 32], strides = [1, 1]} : vector<16x32xf32> to vector<8x32xf32>
    %347 = vector.extract_strided_slice %344 {offsets = [0, 0], sizes = [8, 8], strides = [1, 1]} : vector<8x32xf32> to vector<8x8xf32>
    %348 = vector.extract_strided_slice %345 {offsets = [0, 0], sizes = [8, 8], strides = [1, 1]} : vector<8x32xf32> to vector<8x8xf32>
    %349 = vector.extract_strided_slice %346 {offsets = [0, 0], sizes = [8, 8], strides = [1, 1]} : vector<8x32xf32> to vector<8x8xf32>
    %cst_154 = arith.constant dense<0.000000e+00> : vector<8x8xf32>
    %350 = tpu.matmul %347, %348, %cst_154 {dimension_numbers = #tpu.dot_dimension_numbers<[1], [1], [0], [0], [0, 0, 1, 0], [], []>} : vector<8x8xf32>, vector<8x8xf32>, vector<8x8xf32> -> vector<8x8xf32>
    %cst_155 = arith.constant dense<0xFF800000> : vector<8xf32>
    %351 = vector.multi_reduction <maximumf>, %350, %cst_155 [1] : vector<8x8xf32> to vector<8xf32>
    %352 = vector.shape_cast %351 : vector<8xf32> to vector<8x1xf32>
    %353 = vector.broadcast %352 : vector<8x1xf32> to vector<8x8xf32>
    %354 = arith.subf %350, %353 : vector<8x8xf32>
    %355 = math.exp %354 : vector<8x8xf32>
    %cst_156 = arith.constant dense<0.000000e+00> : vector<8xf32>
    %356 = vector.multi_reduction <add>, %355, %cst_156 [1] : vector<8x8xf32> to vector<8xf32>
    %357 = vector.shape_cast %356 : vector<8xf32> to vector<8x1xf32>
    %358 = vector.broadcast %357 : vector<8x1xf32> to vector<8x8xf32>
    %359 = arith.divf %355, %358 : vector<8x8xf32>
    %cst_157 = arith.constant dense<0.000000e+00> : vector<8x8xf32>
    %360 = tpu.matmul %359, %349, %cst_157 {dimension_numbers = #tpu.dot_dimension_numbers<[1], [0], [0], [1], [0, 0, 1, 1], [], []>} : vector<8x8xf32>, vector<8x8xf32>, vector<8x8xf32> -> vector<8x8xf32>
    %361 = vector.extract_strided_slice %344 {offsets = [0, 8], sizes = [8, 8], strides = [1, 1]} : vector<8x32xf32> to vector<8x8xf32>
    %362 = vector.extract_strided_slice %345 {offsets = [0, 8], sizes = [8, 8], strides = [1, 1]} : vector<8x32xf32> to vector<8x8xf32>
    %363 = vector.extract_strided_slice %346 {offsets = [0, 8], sizes = [8, 8], strides = [1, 1]} : vector<8x32xf32> to vector<8x8xf32>
    %cst_158 = arith.constant dense<0.000000e+00> : vector<8x8xf32>
    %364 = tpu.matmul %361, %362, %cst_158 {dimension_numbers = #tpu.dot_dimension_numbers<[1], [1], [0], [0], [0, 0, 1, 0], [], []>} : vector<8x8xf32>, vector<8x8xf32>, vector<8x8xf32> -> vector<8x8xf32>
    %cst_159 = arith.constant dense<0xFF800000> : vector<8xf32>
    %365 = vector.multi_reduction <maximumf>, %364, %cst_159 [1] : vector<8x8xf32> to vector<8xf32>
    %366 = vector.shape_cast %365 : vector<8xf32> to vector<8x1xf32>
    %367 = vector.broadcast %366 : vector<8x1xf32> to vector<8x8xf32>
    %368 = arith.subf %364, %367 : vector<8x8xf32>
    %369 = math.exp %368 : vector<8x8xf32>
    %cst_160 = arith.constant dense<0.000000e+00> : vector<8xf32>
    %370 = vector.multi_reduction <add>, %369, %cst_160 [1] : vector<8x8xf32> to vector<8xf32>
    %371 = vector.shape_cast %370 : vector<8xf32> to vector<8x1xf32>
    %372 = vector.broadcast %371 : vector<8x1xf32> to vector<8x8xf32>
    %373 = arith.divf %369, %372 : vector<8x8xf32>
    %cst_161 = arith.constant dense<0.000000e+00> : vector<8x8xf32>
    %374 = tpu.matmul %373, %363, %cst_161 {dimension_numbers = #tpu.dot_dimension_numbers<[1], [0], [0], [1], [0, 0, 1, 1], [], []>} : vector<8x8xf32>, vector<8x8xf32>, vector<8x8xf32> -> vector<8x8xf32>
    %375 = vector.extract_strided_slice %344 {offsets = [0, 16], sizes = [8, 8], strides = [1, 1]} : vector<8x32xf32> to vector<8x8xf32>
    %376 = vector.extract_strided_slice %345 {offsets = [0, 16], sizes = [8, 8], strides = [1, 1]} : vector<8x32xf32> to vector<8x8xf32>
    %377 = vector.extract_strided_slice %346 {offsets = [0, 16], sizes = [8, 8], strides = [1, 1]} : vector<8x32xf32> to vector<8x8xf32>
    %cst_162 = arith.constant dense<0.000000e+00> : vector<8x8xf32>
    %378 = tpu.matmul %375, %376, %cst_162 {dimension_numbers = #tpu.dot_dimension_numbers<[1], [1], [0], [0], [0, 0, 1, 0], [], []>} : vector<8x8xf32>, vector<8x8xf32>, vector<8x8xf32> -> vector<8x8xf32>
    %cst_163 = arith.constant dense<0xFF800000> : vector<8xf32>
    %379 = vector.multi_reduction <maximumf>, %378, %cst_163 [1] : vector<8x8xf32> to vector<8xf32>
    %380 = vector.shape_cast %379 : vector<8xf32> to vector<8x1xf32>
    %381 = vector.broadcast %380 : vector<8x1xf32> to vector<8x8xf32>
    %382 = arith.subf %378, %381 : vector<8x8xf32>
    %383 = math.exp %382 : vector<8x8xf32>
    %cst_164 = arith.constant dense<0.000000e+00> : vector<8xf32>
    %384 = vector.multi_reduction <add>, %383, %cst_164 [1] : vector<8x8xf32> to vector<8xf32>
    %385 = vector.shape_cast %384 : vector<8xf32> to vector<8x1xf32>
    %386 = vector.broadcast %385 : vector<8x1xf32> to vector<8x8xf32>
    %387 = arith.divf %383, %386 : vector<8x8xf32>
    %cst_165 = arith.constant dense<0.000000e+00> : vector<8x8xf32>
    %388 = tpu.matmul %387, %377, %cst_165 {dimension_numbers = #tpu.dot_dimension_numbers<[1], [0], [0], [1], [0, 0, 1, 1], [], []>} : vector<8x8xf32>, vector<8x8xf32>, vector<8x8xf32> -> vector<8x8xf32>
    %389 = vector.extract_strided_slice %344 {offsets = [0, 24], sizes = [8, 8], strides = [1, 1]} : vector<8x32xf32> to vector<8x8xf32>
    %390 = vector.extract_strided_slice %345 {offsets = [0, 24], sizes = [8, 8], strides = [1, 1]} : vector<8x32xf32> to vector<8x8xf32>
    %391 = vector.extract_strided_slice %346 {offsets = [0, 24], sizes = [8, 8], strides = [1, 1]} : vector<8x32xf32> to vector<8x8xf32>
    %cst_166 = arith.constant dense<0.000000e+00> : vector<8x8xf32>
    %392 = tpu.matmul %389, %390, %cst_166 {dimension_numbers = #tpu.dot_dimension_numbers<[1], [1], [0], [0], [0, 0, 1, 0], [], []>} : vector<8x8xf32>, vector<8x8xf32>, vector<8x8xf32> -> vector<8x8xf32>
    %cst_167 = arith.constant dense<0xFF800000> : vector<8xf32>
    %393 = vector.multi_reduction <maximumf>, %392, %cst_167 [1] : vector<8x8xf32> to vector<8xf32>
    %394 = vector.shape_cast %393 : vector<8xf32> to vector<8x1xf32>
    %395 = vector.broadcast %394 : vector<8x1xf32> to vector<8x8xf32>
    %396 = arith.subf %392, %395 : vector<8x8xf32>
    %397 = math.exp %396 : vector<8x8xf32>
    %cst_168 = arith.constant dense<0.000000e+00> : vector<8xf32>
    %398 = vector.multi_reduction <add>, %397, %cst_168 [1] : vector<8x8xf32> to vector<8xf32>
    %399 = vector.shape_cast %398 : vector<8xf32> to vector<8x1xf32>
    %400 = vector.broadcast %399 : vector<8x1xf32> to vector<8x8xf32>
    %401 = arith.divf %397, %400 : vector<8x8xf32>
    %cst_169 = arith.constant dense<0.000000e+00> : vector<8x8xf32>
    %402 = tpu.matmul %401, %391, %cst_169 {dimension_numbers = #tpu.dot_dimension_numbers<[1], [0], [0], [1], [0, 0, 1, 1], [], []>} : vector<8x8xf32>, vector<8x8xf32>, vector<8x8xf32> -> vector<8x8xf32>
    %403 = tpu.concatenate %360, %374, %388, %402 in 1 : vector<8x8xf32>, vector<8x8xf32>, vector<8x8xf32>, vector<8x8xf32> -> vector<8x32xf32>
    %404 = tpu.concatenate %343, %403 in 0 : vector<8x32xf32>, vector<8x32xf32> -> vector<16x32xf32>
    %405 = arith.truncf %404 : vector<16x32xf32> to vector<16x32xbf16>
    %c1_170 = arith.constant 1 : index
    %c0_171 = arith.constant 0 : index
    %c0_172 = arith.constant 0 : index
    %406 = vector.load %arg2[%c1_170, %c0_171, %c0_172] : memref<2x32x32xbf16, #tpu.memory_space<vmem>>, vector<1x32x32xbf16>
    %407 = vector.shape_cast %406 : vector<1x32x32xbf16> to vector<32x32xbf16>
    %cst_173 = arith.constant dense<0.000000e+00> : vector<16x32xf32>
    %408 = tpu.matmul %405, %407, %cst_173 {dimension_numbers = #tpu.dot_dimension_numbers<[1], [0], [0], [1], [0, 0, 1, 1], [], []>} : vector<16x32xbf16>, vector<32x32xbf16>, vector<16x32xf32> -> vector<16x32xf32>
    %409 = vector.broadcast %262 : vector<1x32xf32> to vector<16x32xf32>
    %410 = arith.addf %408, %409 : vector<16x32xf32>
    %411 = arith.addf %258, %410 : vector<16x32xf32>
    %cst_174 = arith.constant dense<0.000000e+00> : vector<16xf32>
    %412 = vector.multi_reduction <add>, %411, %cst_174 [1] : vector<16x32xf32> to vector<16xf32>
    %413 = vector.shape_cast %412 : vector<16xf32> to vector<16x1xf32>
    %cst_175 = arith.constant 3.200000e+01 : f32
    %414 = vector.broadcast %cst_175 : f32 to vector<16x1xf32>
    %415 = arith.divf %413, %414 : vector<16x1xf32>
    %416 = vector.broadcast %415 : vector<16x1xf32> to vector<16x32xf32>
    %417 = arith.subf %411, %416 : vector<16x32xf32>
    %418 = arith.mulf %417, %417 : vector<16x32xf32>
    %cst_176 = arith.constant dense<0.000000e+00> : vector<16xf32>
    %419 = vector.multi_reduction <add>, %418, %cst_176 [1] : vector<16x32xf32> to vector<16xf32>
    %420 = vector.shape_cast %419 : vector<16xf32> to vector<16x1xf32>
    %cst_177 = arith.constant 3.200000e+01 : f32
    %421 = vector.broadcast %cst_177 : f32 to vector<16x1xf32>
    %422 = arith.divf %420, %421 : vector<16x1xf32>
    %423 = vector.broadcast %415 : vector<16x1xf32> to vector<16x32xf32>
    %424 = arith.subf %411, %423 : vector<16x32xf32>
    %cst_178 = arith.constant 9.99999974E-6 : f32
    %425 = vector.broadcast %cst_178 : f32 to vector<16x1xf32>
    %426 = arith.addf %422, %425 : vector<16x1xf32>
    %427 = math.rsqrt %426 : vector<16x1xf32>
    %428 = vector.broadcast %427 : vector<16x1xf32> to vector<16x32xf32>
    %429 = arith.mulf %424, %428 : vector<16x32xf32>
    %430 = vector.broadcast %266 : vector<1x32xf32> to vector<16x32xf32>
    %431 = arith.mulf %429, %430 : vector<16x32xf32>
    %432 = vector.broadcast %268 : vector<1x32xf32> to vector<16x32xf32>
    %433 = arith.addf %431, %432 : vector<16x32xf32>
    %434 = arith.truncf %433 : vector<16x32xf32> to vector<16x32xbf16>
    %cst_179 = arith.constant 0.000000e+00 : f32
    %435 = vector.broadcast %cst_179 : f32 to vector<16x32xf32>
    %c1_180 = arith.constant 1 : index
    %c0_181 = arith.constant 0 : index
    %c0_182 = arith.constant 0 : index
    %436 = vector.load %arg3[%c1_180, %c0_181, %c0_182] : memref<2x32x2048xbf16, #tpu.memory_space<vmem>>, vector<1x32x512xbf16>
    %437 = vector.shape_cast %436 : vector<1x32x512xbf16> to vector<32x512xbf16>
    %cst_183 = arith.constant dense<0.000000e+00> : vector<16x512xf32>
    %438 = tpu.matmul %434, %437, %cst_183 {dimension_numbers = #tpu.dot_dimension_numbers<[1], [0], [0], [1], [0, 0, 1, 1], [], []>} : vector<16x32xbf16>, vector<32x512xbf16>, vector<16x512xf32> -> vector<16x512xf32>
    %c1_184 = arith.constant 1 : index
    %c0_185 = arith.constant 0 : index
    %c0_186 = arith.constant 0 : index
    %439 = vector.load %arg5[%c1_184, %c0_185, %c0_186] : memref<2x1x2048xf32, #tpu.memory_space<vmem>>, vector<1x1x512xf32>
    %440 = vector.shape_cast %439 : vector<1x1x512xf32> to vector<1x512xf32>
    %441 = vector.broadcast %440 : vector<1x512xf32> to vector<16x512xf32>
    %442 = arith.addf %438, %441 : vector<16x512xf32>
    %cst_187 = arith.constant 0.000000e+00 : f32
    %443 = vector.broadcast %cst_187 : f32 to vector<16x512xf32>
    %444 = arith.maximumf %442, %443 : vector<16x512xf32>
    %445 = arith.truncf %444 : vector<16x512xf32> to vector<16x512xbf16>
    %c1_188 = arith.constant 1 : index
    %c0_189 = arith.constant 0 : index
    %c0_190 = arith.constant 0 : index
    %446 = vector.load %arg4[%c1_188, %c0_189, %c0_190] : memref<2x2048x32xbf16, #tpu.memory_space<vmem>>, vector<1x512x32xbf16>
    %447 = vector.shape_cast %446 : vector<1x512x32xbf16> to vector<512x32xbf16>
    %cst_191 = arith.constant dense<0.000000e+00> : vector<16x32xf32>
    %448 = tpu.matmul %445, %447, %cst_191 {dimension_numbers = #tpu.dot_dimension_numbers<[1], [0], [0], [1], [0, 0, 1, 1], [], []>} : vector<16x512xbf16>, vector<512x32xbf16>, vector<16x32xf32> -> vector<16x32xf32>
    %449 = arith.addf %435, %448 : vector<16x32xf32>
    %c1_192 = arith.constant 1 : index
    %c0_193 = arith.constant 0 : index
    %c512_194 = arith.constant 512 : index
    %450 = vector.load %arg3[%c1_192, %c0_193, %c512_194] : memref<2x32x2048xbf16, #tpu.memory_space<vmem>>, vector<1x32x512xbf16>
    %451 = vector.shape_cast %450 : vector<1x32x512xbf16> to vector<32x512xbf16>
    %cst_195 = arith.constant dense<0.000000e+00> : vector<16x512xf32>
    %452 = tpu.matmul %434, %451, %cst_195 {dimension_numbers = #tpu.dot_dimension_numbers<[1], [0], [0], [1], [0, 0, 1, 1], [], []>} : vector<16x32xbf16>, vector<32x512xbf16>, vector<16x512xf32> -> vector<16x512xf32>
    %c1_196 = arith.constant 1 : index
    %c0_197 = arith.constant 0 : index
    %c512_198 = arith.constant 512 : index
    %453 = vector.load %arg5[%c1_196, %c0_197, %c512_198] : memref<2x1x2048xf32, #tpu.memory_space<vmem>>, vector<1x1x512xf32>
    %454 = vector.shape_cast %453 : vector<1x1x512xf32> to vector<1x512xf32>
    %455 = vector.broadcast %454 : vector<1x512xf32> to vector<16x512xf32>
    %456 = arith.addf %452, %455 : vector<16x512xf32>
    %cst_199 = arith.constant 0.000000e+00 : f32
    %457 = vector.broadcast %cst_199 : f32 to vector<16x512xf32>
    %458 = arith.maximumf %456, %457 : vector<16x512xf32>
    %459 = arith.truncf %458 : vector<16x512xf32> to vector<16x512xbf16>
    %c1_200 = arith.constant 1 : index
    %c512_201 = arith.constant 512 : index
    %c0_202 = arith.constant 0 : index
    %460 = vector.load %arg4[%c1_200, %c512_201, %c0_202] : memref<2x2048x32xbf16, #tpu.memory_space<vmem>>, vector<1x512x32xbf16>
    %461 = vector.shape_cast %460 : vector<1x512x32xbf16> to vector<512x32xbf16>
    %cst_203 = arith.constant dense<0.000000e+00> : vector<16x32xf32>
    %462 = tpu.matmul %459, %461, %cst_203 {dimension_numbers = #tpu.dot_dimension_numbers<[1], [0], [0], [1], [0, 0, 1, 1], [], []>} : vector<16x512xbf16>, vector<512x32xbf16>, vector<16x32xf32> -> vector<16x32xf32>
    %463 = arith.addf %449, %462 : vector<16x32xf32>
    %c1_204 = arith.constant 1 : index
    %c0_205 = arith.constant 0 : index
    %c1024_206 = arith.constant 1024 : index
    %464 = vector.load %arg3[%c1_204, %c0_205, %c1024_206] : memref<2x32x2048xbf16, #tpu.memory_space<vmem>>, vector<1x32x512xbf16>
    %465 = vector.shape_cast %464 : vector<1x32x512xbf16> to vector<32x512xbf16>
    %cst_207 = arith.constant dense<0.000000e+00> : vector<16x512xf32>
    %466 = tpu.matmul %434, %465, %cst_207 {dimension_numbers = #tpu.dot_dimension_numbers<[1], [0], [0], [1], [0, 0, 1, 1], [], []>} : vector<16x32xbf16>, vector<32x512xbf16>, vector<16x512xf32> -> vector<16x512xf32>
    %c1_208 = arith.constant 1 : index
    %c0_209 = arith.constant 0 : index
    %c1024_210 = arith.constant 1024 : index
    %467 = vector.load %arg5[%c1_208, %c0_209, %c1024_210] : memref<2x1x2048xf32, #tpu.memory_space<vmem>>, vector<1x1x512xf32>
    %468 = vector.shape_cast %467 : vector<1x1x512xf32> to vector<1x512xf32>
    %469 = vector.broadcast %468 : vector<1x512xf32> to vector<16x512xf32>
    %470 = arith.addf %466, %469 : vector<16x512xf32>
    %cst_211 = arith.constant 0.000000e+00 : f32
    %471 = vector.broadcast %cst_211 : f32 to vector<16x512xf32>
    %472 = arith.maximumf %470, %471 : vector<16x512xf32>
    %473 = arith.truncf %472 : vector<16x512xf32> to vector<16x512xbf16>
    %c1_212 = arith.constant 1 : index
    %c1024_213 = arith.constant 1024 : index
    %c0_214 = arith.constant 0 : index
    %474 = vector.load %arg4[%c1_212, %c1024_213, %c0_214] : memref<2x2048x32xbf16, #tpu.memory_space<vmem>>, vector<1x512x32xbf16>
    %475 = vector.shape_cast %474 : vector<1x512x32xbf16> to vector<512x32xbf16>
    %cst_215 = arith.constant dense<0.000000e+00> : vector<16x32xf32>
    %476 = tpu.matmul %473, %475, %cst_215 {dimension_numbers = #tpu.dot_dimension_numbers<[1], [0], [0], [1], [0, 0, 1, 1], [], []>} : vector<16x512xbf16>, vector<512x32xbf16>, vector<16x32xf32> -> vector<16x32xf32>
    %477 = arith.addf %463, %476 : vector<16x32xf32>
    %c1_216 = arith.constant 1 : index
    %c0_217 = arith.constant 0 : index
    %c1536_218 = arith.constant 1536 : index
    %478 = vector.load %arg3[%c1_216, %c0_217, %c1536_218] : memref<2x32x2048xbf16, #tpu.memory_space<vmem>>, vector<1x32x512xbf16>
    %479 = vector.shape_cast %478 : vector<1x32x512xbf16> to vector<32x512xbf16>
    %cst_219 = arith.constant dense<0.000000e+00> : vector<16x512xf32>
    %480 = tpu.matmul %434, %479, %cst_219 {dimension_numbers = #tpu.dot_dimension_numbers<[1], [0], [0], [1], [0, 0, 1, 1], [], []>} : vector<16x32xbf16>, vector<32x512xbf16>, vector<16x512xf32> -> vector<16x512xf32>
    %c1_220 = arith.constant 1 : index
    %c0_221 = arith.constant 0 : index
    %c1536_222 = arith.constant 1536 : index
    %481 = vector.load %arg5[%c1_220, %c0_221, %c1536_222] : memref<2x1x2048xf32, #tpu.memory_space<vmem>>, vector<1x1x512xf32>
    %482 = vector.shape_cast %481 : vector<1x1x512xf32> to vector<1x512xf32>
    %483 = vector.broadcast %482 : vector<1x512xf32> to vector<16x512xf32>
    %484 = arith.addf %480, %483 : vector<16x512xf32>
    %cst_223 = arith.constant 0.000000e+00 : f32
    %485 = vector.broadcast %cst_223 : f32 to vector<16x512xf32>
    %486 = arith.maximumf %484, %485 : vector<16x512xf32>
    %487 = arith.truncf %486 : vector<16x512xf32> to vector<16x512xbf16>
    %c1_224 = arith.constant 1 : index
    %c1536_225 = arith.constant 1536 : index
    %c0_226 = arith.constant 0 : index
    %488 = vector.load %arg4[%c1_224, %c1536_225, %c0_226] : memref<2x2048x32xbf16, #tpu.memory_space<vmem>>, vector<1x512x32xbf16>
    %489 = vector.shape_cast %488 : vector<1x512x32xbf16> to vector<512x32xbf16>
    %cst_227 = arith.constant dense<0.000000e+00> : vector<16x32xf32>
    %490 = tpu.matmul %487, %489, %cst_227 {dimension_numbers = #tpu.dot_dimension_numbers<[1], [0], [0], [1], [0, 0, 1, 1], [], []>} : vector<16x512xbf16>, vector<512x32xbf16>, vector<16x32xf32> -> vector<16x32xf32>
    %491 = arith.addf %477, %490 : vector<16x32xf32>
    %492 = vector.broadcast %264 : vector<1x32xf32> to vector<16x32xf32>
    %493 = arith.addf %491, %492 : vector<16x32xf32>
    %494 = arith.addf %433, %493 : vector<16x32xf32>
    %cst_228 = arith.constant dense<0.000000e+00> : vector<16xf32>
    %495 = vector.multi_reduction <add>, %494, %cst_228 [1] : vector<16x32xf32> to vector<16xf32>
    %496 = vector.shape_cast %495 : vector<16xf32> to vector<16x1xf32>
    %cst_229 = arith.constant 3.200000e+01 : f32
    %497 = vector.broadcast %cst_229 : f32 to vector<16x1xf32>
    %498 = arith.divf %496, %497 : vector<16x1xf32>
    %499 = vector.broadcast %498 : vector<16x1xf32> to vector<16x32xf32>
    %500 = arith.subf %494, %499 : vector<16x32xf32>
    %501 = arith.mulf %500, %500 : vector<16x32xf32>
    %cst_230 = arith.constant dense<0.000000e+00> : vector<16xf32>
    %502 = vector.multi_reduction <add>, %501, %cst_230 [1] : vector<16x32xf32> to vector<16xf32>
    %503 = vector.shape_cast %502 : vector<16xf32> to vector<16x1xf32>
    %cst_231 = arith.constant 3.200000e+01 : f32
    %504 = vector.broadcast %cst_231 : f32 to vector<16x1xf32>
    %505 = arith.divf %503, %504 : vector<16x1xf32>
    %506 = vector.broadcast %498 : vector<16x1xf32> to vector<16x32xf32>
    %507 = arith.subf %494, %506 : vector<16x32xf32>
    %cst_232 = arith.constant 9.99999974E-6 : f32
    %508 = vector.broadcast %cst_232 : f32 to vector<16x1xf32>
    %509 = arith.addf %505, %508 : vector<16x1xf32>
    %510 = math.rsqrt %509 : vector<16x1xf32>
    %511 = vector.broadcast %510 : vector<16x1xf32> to vector<16x32xf32>
    %512 = arith.mulf %507, %511 : vector<16x32xf32>
    %513 = vector.broadcast %270 : vector<1x32xf32> to vector<16x32xf32>
    %514 = arith.mulf %512, %513 : vector<16x32xf32>
    %515 = vector.broadcast %272 : vector<1x32xf32> to vector<16x32xf32>
    %516 = arith.addf %514, %515 : vector<16x32xf32>
    %517 = arith.truncf %516 : vector<16x32xf32> to vector<16x32xbf16>
    %c0_233 = arith.constant 0 : index
    %c0_234 = arith.constant 0 : index
    %518 = vector.load %arg7[%c0_233, %c0_234] : memref<32x64xbf16, #tpu.memory_space<vmem>>, vector<32x64xbf16>
    %cst_235 = arith.constant dense<0.000000e+00> : vector<16x64xf32>
    %519 = tpu.matmul %517, %518, %cst_235 {dimension_numbers = #tpu.dot_dimension_numbers<[1], [0], [0], [1], [0, 0, 1, 1], [], []>} : vector<16x32xbf16>, vector<32x64xbf16>, vector<16x64xf32> -> vector<16x64xf32>
    %c0_236 = arith.constant 0 : index
    %c0_237 = arith.constant 0 : index
    %520 = vector.load %arg8[%c0_236, %c0_237] : memref<1x64xf32, #tpu.memory_space<vmem>>, vector<1x64xf32>
    %521 = vector.broadcast %520 : vector<1x64xf32> to vector<16x64xf32>
    %522 = arith.addf %519, %521 : vector<16x64xf32>
    %c0_238 = arith.constant 0 : index
    %c0_239 = arith.constant 0 : index
    %523 = vector.load %arg9[%c0_238, %c0_239] : memref<16x64xf32, #tpu.memory_space<vmem>>, vector<16x64xf32>
    tpu.vector_store %arg9[%c0_238, %c0_239], %522 {strides = array<i32>} : memref<16x64xf32, #tpu.memory_space<vmem>>, vector<16x64xf32>,
    return
  }
}

</mosaic_0001>

<llo_original>
// kernel: tpu_custom_call.1
$region0: #{tpu_custom_call.1}
  #allocation0 [shape = 'u32[]', space=smem, size = 0x4, offset = 0x4, fixed_abs, tag = 'smem constant byte address 0x4 - core index']
  #allocation1 [shape = 'u32[144,128]{1,0:T(1,128)}', space=vmem, size = 0x12000, scoped, tag = 'internal scratch']
  %s0 = inlined_call_operand.vmem [shape: f32[16,32], index: 0, kind: input, shape index: {}]
  %s1 = inlined_call_operand.vmem [shape: bf16[2,32,96], index: 1, kind: input, shape index: {}]
  %s2 = inlined_call_operand.vmem [shape: bf16[2,32,32], index: 2, kind: input, shape index: {}]
  %s3 = inlined_call_operand.vmem [shape: bf16[2,32,2048], index: 3, kind: input, shape index: {}]
  %s4 = inlined_call_operand.vmem [shape: bf16[2,2048,32], index: 4, kind: input, shape index: {}]
  %s5 = inlined_call_operand.vmem [shape: f32[2,1,2048], index: 5, kind: input, shape index: {}]
  %s6 = inlined_call_operand.vmem [shape: f32[2,8,128], index: 6, kind: input, shape index: {}]
  %s7 = inlined_call_operand.vmem [shape: bf16[32,64], index: 7, kind: input, shape index: {}]
  %s8 = inlined_call_operand.vmem [shape: f32[1,64], index: 8, kind: input, shape index: {}]
  %s9 = inlined_call_operand.hbm [shape: f32[16,64], index: 9, kind: output, shape index: {}]
  %s10 = sld [smem:[#allocation0]]
  $region46: #{tpu_custom_call.1} parent=0
    _
  %s12 = ssub.s32 1, %s10
  %s13 = scalar_select 0, %s12, %s10
  $region1: #{tpu_custom_call.1} parent=0
    #allocation2 [shape = 'u8[8192]{0}', space=vmem, size = 0x2000, scoped, tag = 'output window, operand 0, single buffered']
    #allocation3 [shape = 's32[1]{0}', space=sflag, size = 0x4, scoped, tag = 'scoped memory for tpu_custom_call.1']
    %14 = vsyncpa [#allocation3], 0
    // Predicated region
    $region2: #{tpu_custom_call.1} parent=1 // pred_check
      _
    $region3: #{tpu_custom_call.1} parent=1 // pred_check_branch
      %16 = sbr.rel (0) target = $region5
    $region4: #{tpu_custom_call.1} parent=1 // pred_region
      _
    $region5: #{tpu_custom_call.1} parent=1 // pred_fallthru
      _
    // Predicated region
    $region6: #{tpu_custom_call.1} parent=1 // pred_check
      _
    $region7: #{tpu_custom_call.1} parent=1 // pred_check_branch
      %18 = sbr.rel (0) target = $region9
    $region8: #{tpu_custom_call.1} parent=1 // pred_region
      _
    $region9: #{tpu_custom_call.1} parent=1 // pred_fallthru
      _
    // Predicated region
    $region10: #{tpu_custom_call.1} parent=1 // pred_check
      _
    $region11: #{tpu_custom_call.1} parent=1 // pred_check_branch
      %20 = sbr.rel (0) target = $region13
    $region12: #{tpu_custom_call.1} parent=1 // pred_region
      _
    $region13: #{tpu_custom_call.1} parent=1 // pred_fallthru
      _
    // Predicated region
    $region14: #{tpu_custom_call.1} parent=1 // pred_check
      _
    $region15: #{tpu_custom_call.1} parent=1 // pred_check_branch
      %22 = sbr.rel (0) target = $region17
    $region16: #{tpu_custom_call.1} parent=1 // pred_region
      _
    $region17: #{tpu_custom_call.1} parent=1 // pred_fallthru
      _
    // Predicated region
    $region18: #{tpu_custom_call.1} parent=1 // pred_check
      _
    $region19: #{tpu_custom_call.1} parent=1 // pred_check_branch
      %24 = sbr.rel (0) target = $region21
    $region20: #{tpu_custom_call.1} parent=1 // pred_region
      _
    $region21: #{tpu_custom_call.1} parent=1 // pred_fallthru
      _
    // Predicated region
    $region22: #{tpu_custom_call.1} parent=1 // pred_check
      _
    $region23: #{tpu_custom_call.1} parent=1 // pred_check_branch
      %26 = sbr.rel (0) target = $region25
    $region24: #{tpu_custom_call.1} parent=1 // pred_region
      _
    $region25: #{tpu_custom_call.1} parent=1 // pred_fallthru
      _
    // Predicated region
    $region26: #{tpu_custom_call.1} parent=1 // pred_check
      _
    $region27: #{tpu_custom_call.1} parent=1 // pred_check_branch
      %28 = sbr.rel (0) target = $region29
    $region28: #{tpu_custom_call.1} parent=1 // pred_region
      _
    $region29: #{tpu_custom_call.1} parent=1 // pred_fallthru
      _
    // Predicated region
    $region30: #{tpu_custom_call.1} parent=1 // pred_check
      _
    $region31: #{tpu_custom_call.1} parent=1 // pred_check_branch
      %30 = sbr.rel (0) target = $region33
    $region32: #{tpu_custom_call.1} parent=1 // pred_region
      _
    $region33: #{tpu_custom_call.1} parent=1 // pred_fallthru
      _
    // Predicated region
    $region34: #{tpu_custom_call.1} parent=1 // pred_check
      _
    $region35: #{tpu_custom_call.1} parent=1 // pred_check_branch
      %32 = sbr.rel (0) target = $region37
    $region36: #{tpu_custom_call.1} parent=1 // pred_region
      _
    $region37: #{tpu_custom_call.1} parent=1 // pred_fallthru
      _
    %v34 = vld [vmem:[%s0] sm:$0xff]
    %v35 = vld [vmem:[%s0 + $0x8] sm:$0xff]
    %v36 = vld [vmem:[%s6] sm:$0x1]
    %v37 = vld [vmem:[%s6 + $0x1] sm:$0x1]
    %v38 = vld [vmem:[%s6 + $0x2] sm:$0x1]
    %v39 = vld [vmem:[%s6 + $0x3] sm:$0x1]
    %v40 = vld [vmem:[%s6 + $0x4] sm:$0x1]
    %v41 = vld [vmem:[%s6 + $0x5] sm:$0x1]
    %v42 = vld [vmem:[%s6 + $0x6] sm:$0x1]
    %v43 = vpack.c.bf16 %v35, %v34
    %v44 = vld [vmem:[%s1] sm:$0xf]
    %v45 = vld [vmem:[%s1 + $0x4] sm:$0xf]
    %v46 = vld [vmem:[%s1 + $0x8] sm:$0xf]
    %v47 = vld [vmem:[%s1 + $0xc] sm:$0xf]
    %v48 = vlaneseq
    %v49 = vshrl.u32 %v48, 7
    %v50 = vsub.s32 0, %v49
    %v51 = vrot.slane %v36, %v50
    %v56 = vunpack.c.l.b16 %v44
    %v57 = vunpack.c.l.b16 %v45
    %v58 = vunpack.c.l.b16 %v46
    %v59 = vunpack.c.l.b16 %v47
    %v60 = vpack.c.b16 %v57, %v56
    %v61 = vpack.c.b16 %v59, %v58
    %vm64 = vcmask 261120
    %v66 = vsel %vm64, %v43, 0
    %68 = vmatprep.subr.bf16.mxu0 0
    %69 = vmatpush1.bf16.msra.mxu0 %v60
    %70 = vmatprep.subr.bf16.mxu0 0
    %71 = vmatpush1.bf16.msra.mxu0 %v61
    %72 = vmatprep.subr.bf16.mxu0 0
    %73 = vmatpush1.bf16.msra.mxu0 0
    %74 = vmatprep.subr.bf16.mxu0 0
    %75 = vmatpush1.bf16.msra.mxu0 0
    %76 = vmatprep.subr.bf16.mxu0 0
    %77 = vmatpush1.bf16.msra.mxu0 0
    %78 = vmatprep.subr.bf16.mxu0 0
    %79 = vmatpush1.bf16.msra.mxu0 0
    %80 = vmatprep.subr.bf16.mxu0 0
    %81 = vmatpush1.bf16.msra.mxu0 0
    %82 = vmatprep.subr.bf16.mxu0 0
    %83 = vmatpush1.bf16.msra.mxu0 0
    %84 = vmatprep.subr.bf16.mxu0 0
    %85 = vmatpush1.bf16.msra.mxu0 0
    %86 = vmatprep.subr.bf16.mxu0 0
    %87 = vmatpush1.bf16.msra.mxu0 0
    %88 = vmatprep.subr.bf16.mxu0 0
    %89 = vmatpush1.bf16.msra.mxu0 0
    %90 = vmatprep.subr.bf16.mxu0 0
    %91 = vmatpush1.bf16.msra.mxu0 0
    %92 = vmatprep.subr.bf16.mxu0 0
    %93 = vmatpush1.bf16.msra.mxu0 0
    %94 = vmatprep.subr.bf16.mxu0 0
    %95 = vmatpush1.bf16.msra.mxu0 0
    %96 = vmatprep.subr.bf16.mxu0 0
    %97 = vmatpush1.bf16.msra.mxu0 0
    %98 = vmatprep.subr.bf16.mxu0 0
    %99 = vmatpush1.bf16.msra.mxu0 0
    %100 = vmatprep.mubr.bf16.mxu0 0
    %101 = vmatmul.mubr.bf16.gmra.mrb[0].mxu0 %v66
    %v102 = vpop.f32.mrb[0].mxu0
    %v103 = vadd.f32 %v51, %v102
    %v104 = vpop.f32.mrb[0].mxu0
    %v105 = vpop.f32.mrb[0].mxu0
    %v106 = vadd.f32 %v51, %v105
    %v107 = vpop.f32.mrb[0].mxu0
    %108 = vdwg.mxu0
    %v109 = vmul.f32 %v103, 0.35355338
    %v110 = vmul.f32 %v106, 0.35355338
    %112 = vrot.lane.b32.xlu0 %v103, 96
    %v113 = vpop.permute.xlu0 %112
    %vm114 = vcmask 64512
    %v116 = vsel %vm114, %v109, 0
    %v118 = vsel %vm114, %v113, 0
    %120 = vmatprep.subr.mxu0 0.0
    %121 = vmatpush1.xpose.msra.mxu0 %v118
    %122 = vmatprep.subr.mxu0 0.0
    %123 = vmatpush1.xpose.msra.mxu0 0.0
    %124 = vmatprep.subr.mxu0 0.0
    %125 = vmatpush1.xpose.msra.mxu0 0.0
    %126 = vmatprep.subr.mxu0 0.0
    %127 = vmatpush1.xpose.msra.mxu0 0.0
    %128 = vmatprep.subr.mxu0 0.0
    %129 = vmatpush1.xpose.msra.mxu0 0.0
    %130 = vmatprep.subr.mxu0 0.0
    %131 = vmatpush1.xpose.msra.mxu0 0.0
    %132 = vmatprep.subr.mxu0 0.0
    %133 = vmatpush1.xpose.msra.mxu0 0.0
    %134 = vmatprep.subr.mxu0 0.0
    %135 = vmatpush1.xpose.msra.mxu0 0.0
    %136 = vmatprep.subr.mxu0 0.0
    %137 = vmatpush1.xpose.msra.mxu0 0.0
    %138 = vmatprep.subr.mxu0 0.0
    %139 = vmatpush1.xpose.msra.mxu0 0.0
    %140 = vmatprep.subr.mxu0 0.0
    %141 = vmatpush1.xpose.msra.mxu0 0.0
    %142 = vmatprep.subr.mxu0 0.0
    %143 = vmatpush1.xpose.msra.mxu0 0.0
    %144 = vmatprep.subr.mxu0 0.0
    %145 = vmatpush1.xpose.msra.mxu0 0.0
    %146 = vmatprep.subr.mxu0 0.0
    %147 = vmatpush1.xpose.msra.mxu0 0.0
    %148 = vmatprep.subr.mxu0 0.0
    %149 = vmatpush1.xpose.msra.mxu0 0.0
    %150 = vmatprep.subr.mxu0 0.0
    %151 = vmatpush1.xpose.msra.mxu0 0.0
    %152 = vmatprep.subr.mxu0 0.0
    %153 = vmatpush1.xpose.msra.mxu0 0.0
    %154 = vmatprep.subr.mxu0 0.0
    %155 = vmatpush1.xpose.msra.mxu0 0.0
    %156 = vmatprep.subr.mxu0 0.0
    %157 = vmatpush1.xpose.msra.mxu0 0.0
    %158 = vmatprep.subr.mxu0 0.0
    %159 = vmatpush1.xpose.msra.mxu0 0.0
    %160 = vmatprep.subr.mxu0 0.0
    %161 = vmatpush1.xpose.msra.mxu0 0.0
    %162 = vmatprep.subr.mxu0 0.0
    %163 = vmatpush1.xpose.msra.mxu0 0.0
    %164 = vmatprep.subr.mxu0 0.0
    %165 = vmatpush1.xpose.msra.mxu0 0.0
    %166 = vmatprep.subr.mxu0 0.0
    %167 = vmatpush1.xpose.msra.mxu0 0.0
    %168 = vmatprep.subr.mxu0 0.0
    %169 = vmatpush1.xpose.msra.mxu0 0.0
    %170 = vmatprep.subr.mxu0 0.0
    %171 = vmatpush1.xpose.msra.mxu0 0.0
    %172 = vmatprep.subr.mxu0 0.0
    %173 = vmatpush1.xpose.msra.mxu0 0.0
    %174 = vmatprep.subr.mxu0 0.0
    %175 = vmatpush1.xpose.msra.mxu0 0.0
    %176 = vmatprep.subr.mxu0 0.0
    %177 = vmatpush1.xpose.msra.mxu0 0.0
    %178 = vmatprep.subr.mxu0 0.0
    %179 = vmatpush1.xpose.msra.mxu0 0.0
    %180 = vmatprep.subr.mxu0 0.0
    %181 = vmatpush1.xpose.msra.mxu0 0.0
    %182 = vmatprep.subr.mxu0 0.0
    %183 = vmatpush1.xpose.msra.mxu0 0.0
    %184 = vmatprep.mubr.f32.mxu0 0.0
    %185 = vmatmul.mubr.f32.gmra.mrb[0].mxu0 %v116
    %v186 = vpop.f32.mrb[0].mxu0
    %v187 = vadd.f32 0.0, %v186
    %v188 = vpop.f32.mrb[0].mxu0
    %189 = vdwg.mxu0
    %v190 = vsel %vm114, %v187, -inf
    %191 = vmax.xlane.f32.xlu0 %v190
    %v192 = vpop.xlane.xlu0 %191
    %v193 = vsub.f32 %v187, %v192
    %v194 = vmul.f32 %v193, 1.442695
    %v195 = vpow.pop %v194
    %v196 = vsel %vm114, %v195, 0.0
    %197 = vadd.xlane.f32.xlu0 %v196
    %v198 = vpop.xlane.xlu0 %197
    %v199 = vrcp.pop %v198
    %v200 = vmul.f32 %v195, %v199
    %201 = vrot.lane.b32.xlu0 %v103, 64
    %v202 = vpop.permute.xlu0 %201
    %v205 = vsel %vm114, %v200, 0
    %207 = vmatprep.subr.mxu0 0.0
    %208 = vmatpush1.msra.mxu0 %v202
    %209 = vmatprep.subr.mxu0 0.0
    %210 = vmatpush1.msra.mxu0 0.0
    %211 = vmatprep.subr.mxu0 0.0
    %212 = vmatpush1.msra.mxu0 0.0
    %213 = vmatprep.subr.mxu0 0.0
    %214 = vmatpush1.msra.mxu0 0.0
    %215 = vmatprep.subr.mxu0 0.0
    %216 = vmatpush1.msra.mxu0 0.0
    %217 = vmatprep.subr.mxu0 0.0
    %218 = vmatpush1.msra.mxu0 0.0
    %219 = vmatprep.subr.mxu0 0.0
    %220 = vmatpush1.msra.mxu0 0.0
    %221 = vmatprep.subr.mxu0 0.0
    %222 = vmatpush1.msra.mxu0 0.0
    %223 = vmatprep.subr.mxu0 0.0
    %224 = vmatpush1.msra.mxu0 0.0
    %225 = vmatprep.subr.mxu0 0.0
    %226 = vmatpush1.msra.mxu0 0.0
    %227 = vmatprep.subr.mxu0 0.0
    %228 = vmatpush1.msra.mxu0 0.0
    %229 = vmatprep.subr.mxu0 0.0
    %230 = vmatpush1.msra.mxu0 0.0
    %231 = vmatprep.subr.mxu0 0.0
    %232 = vmatpush1.msra.mxu0 0.0
    %233 = vmatprep.subr.mxu0 0.0
    %234 = vmatpush1.msra.mxu0 0.0
    %235 = vmatprep.subr.mxu0 0.0
    %236 = vmatpush1.msra.mxu0 0.0
    %237 = vmatprep.subr.mxu0 0.0
    %238 = vmatpush1.msra.mxu0 0.0
    %239 = vmatprep.subr.mxu0 0.0
    %240 = vmatpush1.msra.mxu0 0.0
    %241 = vmatprep.subr.mxu0 0.0
    %242 = vmatpush1.msra.mxu0 0.0
    %243 = vmatprep.subr.mxu0 0.0
    %244 = vmatpush1.msra.mxu0 0.0
    %245 = vmatprep.subr.mxu0 0.0
    %246 = vmatpush1.msra.mxu0 0.0
    %247 = vmatprep.subr.mxu0 0.0
    %248 = vmatpush1.msra.mxu0 0.0
    %249 = vmatprep.subr.mxu0 0.0
    %250 = vmatpush1.msra.mxu0 0.0
    %251 = vmatprep.subr.mxu0 0.0
    %252 = vmatpush1.msra.mxu0 0.0
    %253 = vmatprep.subr.mxu0 0.0
    %254 = vmatpush1.msra.mxu0 0.0
    %255 = vmatprep.subr.mxu0 0.0
    %256 = vmatpush1.msra.mxu0 0.0
    %257 = vmatprep.subr.mxu0 0.0
    %258 = vmatpush1.msra.mxu0 0.0
    %259 = vmatprep.subr.mxu0 0.0
    %260 = vmatpush1.msra.mxu0 0.0
    %261 = vmatprep.subr.mxu0 0.0
    %262 = vmatpush1.msra.mxu0 0.0
    %263 = vmatprep.subr.mxu0 0.0
    %264 = vmatpush1.msra.mxu0 0.0
    %265 = vmatprep.subr.mxu0 0.0
    %266 = vmatpush1.msra.mxu0 0.0
    %267 = vmatprep.subr.mxu0 0.0
    %268 = vmatpush1.msra.mxu0 0.0
    %269 = vmatprep.subr.mxu0 0.0
    %270 = vmatpush1.msra.mxu0 0.0
    %271 = vmatprep.mubr.f32.mxu0 0.0
    %272 = vmatmul.mubr.f32.gmra.mrb[0].mxu0 %v205
    %v273 = vpop.f32.mrb[0].mxu0
    %v274 = vadd.f32 0.0, %v273
    %v275 = vpop.f32.mrb[0].mxu0
    %276 = vdwg.mxu0
    %277 = vrot.lane.b32.xlu0 %v109, 120
    %v278 = vpop.permute.xlu0 %277
    %279 = vrot.lane.b32.xlu0 %v103, 88
    %v280 = vpop.permute.xlu0 %279
    %v281 = vsel %vm114, %v278, 0
    %v283 = vsel %vm114, %v280, 0
    %285 = vmatprep.subr.mxu0 0.0
    %286 = vmatpush1.xpose.msra.mxu0 %v283
    %287 = vmatprep.subr.mxu0 0.0
    %288 = vmatpush1.xpose.msra.mxu0 0.0
    %289 = vmatprep.subr.mxu0 0.0
    %290 = vmatpush1.xpose.msra.mxu0 0.0
    %291 = vmatprep.subr.mxu0 0.0
    %292 = vmatpush1.xpose.msra.mxu0 0.0
    %293 = vmatprep.subr.mxu0 0.0
    %294 = vmatpush1.xpose.msra.mxu0 0.0
    %295 = vmatprep.subr.mxu0 0.0
    %296 = vmatpush1.xpose.msra.mxu0 0.0
    %297 = vmatprep.subr.mxu0 0.0
    %298 = vmatpush1.xpose.msra.mxu0 0.0
    %299 = vmatprep.subr.mxu0 0.0
    %300 = vmatpush1.xpose.msra.mxu0 0.0
    %301 = vmatprep.subr.mxu0 0.0
    %302 = vmatpush1.xpose.msra.mxu0 0.0
    %303 = vmatprep.subr.mxu0 0.0
    %304 = vmatpush1.xpose.msra.mxu0 0.0
    %305 = vmatprep.subr.mxu0 0.0
    %306 = vmatpush1.xpose.msra.mxu0 0.0
    %307 = vmatprep.subr.mxu0 0.0
    %308 = vmatpush1.xpose.msra.mxu0 0.0
    %309 = vmatprep.subr.mxu0 0.0
    %310 = vmatpush1.xpose.msra.mxu0 0.0
    %311 = vmatprep.subr.mxu0 0.0
    %312 = vmatpush1.xpose.msra.mxu0 0.0
    %313 = vmatprep.subr.mxu0 0.0
    %314 = vmatpush1.xpose.msra.mxu0 0.0
    %315 = vmatprep.subr.mxu0 0.0
    %316 = vmatpush1.xpose.msra.mxu0 0.0
    %317 = vmatprep.subr.mxu0 0.0
    %318 = vmatpush1.xpose.msra.mxu0 0.0
    %319 = vmatprep.subr.mxu0 0.0
    %320 = vmatpush1.xpose.msra.mxu0 0.0
    %321 = vmatprep.subr.mxu0 0.0
    %322 = vmatpush1.xpose.msra.mxu0 0.0
    %323 = vmatprep.subr.mxu0 0.0
    %324 = vmatpush1.xpose.msra.mxu0 0.0
    %325 = vmatprep.subr.mxu0 0.0
    %326 = vmatpush1.xpose.msra.mxu0 0.0
    %327 = vmatprep.subr.mxu0 0.0
    %328 = vmatpush1.xpose.msra.mxu0 0.0
    %329 = vmatprep.subr.mxu0 0.0
    %330 = vmatpush1.xpose.msra.mxu0 0.0
    %331 = vmatprep.subr.mxu0 0.0
    %332 = vmatpush1.xpose.msra.mxu0 0.0
    %333 = vmatprep.subr.mxu0 0.0
    %334 = vmatpush1.xpose.msra.mxu0 0.0
    %335 = vmatprep.subr.mxu0 0.0
    %336 = vmatpush1.xpose.msra.mxu0 0.0
    %337 = vmatprep.subr.mxu0 0.0
    %338 = vmatpush1.xpose.msra.mxu0 0.0
    %339 = vmatprep.subr.mxu0 0.0
    %340 = vmatpush1.xpose.msra.mxu0 0.0
    %341 = vmatprep.subr.mxu0 0.0
    %342 = vmatpush1.xpose.msra.mxu0 0.0
    %343 = vmatprep.subr.mxu0 0.0
    %344 = vmatpush1.xpose.msra.mxu0 0.0
    %345 = vmatprep.subr.mxu0 0.0
    %346 = vmatpush1.xpose.msra.mxu0 0.0
    %347 = vmatprep.subr.mxu0 0.0
    %348 = vmatpush1.xpose.msra.mxu0 0.0
    %349 = vmatprep.mubr.f32.mxu0 0.0
    %350 = vmatmul.mubr.f32.gmra.mrb[0].mxu0 %v281
    %v351 = vpop.f32.mrb[0].mxu0
    %v352 = vadd.f32 0.0, %v351
    %v353 = vpop.f32.mrb[0].mxu0
    %354 = vdwg.mxu0
    %v355 = vsel %vm114, %v352, -inf
    %356 = vmax.xlane.f32.xlu0 %v355
    %v357 = vpop.xlane.xlu0 %356
    %v358 = vsub.f32 %v352, %v357
    %v359 = vmul.f32 %v358, 1.442695
    %v360 = vpow.pop %v359
    %v361 = vsel %vm114, %v360, 0.0
    %362 = vadd.xlane.f32.xlu0 %v361
    %v363 = vpop.xlane.xlu0 %362
    %v364 = vrcp.pop %v363
    %v365 = vmul.f32 %v360, %v364
    %366 = vrot.lane.b32.xlu0 %v103, 56
    %v367 = vpop.permute.xlu0 %366
    %v370 = vsel %vm114, %v365, 0
    %372 = vmatprep.subr.mxu0 0.0
    %373 = vmatpush1.msra.mxu0 %v367
    %374 = vmatprep.subr.mxu0 0.0
    %375 = vmatpush1.msra.mxu0 0.0
    %376 = vmatprep.subr.mxu0 0.0
    %377 = vmatpush1.msra.mxu0 0.0
    %378 = vmatprep.subr.mxu0 0.0
    %379 = vmatpush1.msra.mxu0 0.0
    %380 = vmatprep.subr.mxu0 0.0
    %381 = vmatpush1.msra.mxu0 0.0
    %382 = vmatprep.subr.mxu0 0.0
    %383 = vmatpush1.msra.mxu0 0.0
    %384 = vmatprep.subr.mxu0 0.0
    %385 = vmatpush1.msra.mxu0 0.0
    %386 = vmatprep.subr.mxu0 0.0
    %387 = vmatpush1.msra.mxu0 0.0
    %388 = vmatprep.subr.mxu0 0.0
    %389 = vmatpush1.msra.mxu0 0.0
    %390 = vmatprep.subr.mxu0 0.0
    %391 = vmatpush1.msra.mxu0 0.0
    %392 = vmatprep.subr.mxu0 0.0
    %393 = vmatpush1.msra.mxu0 0.0
    %394 = vmatprep.subr.mxu0 0.0
    %395 = vmatpush1.msra.mxu0 0.0
    %396 = vmatprep.subr.mxu0 0.0
    %397 = vmatpush1.msra.mxu0 0.0
    %398 = vmatprep.subr.mxu0 0.0
    %399 = vmatpush1.msra.mxu0 0.0
    %400 = vmatprep.subr.mxu0 0.0
    %401 = vmatpush1.msra.mxu0 0.0
    %402 = vmatprep.subr.mxu0 0.0
    %403 = vmatpush1.msra.mxu0 0.0
    %404 = vmatprep.subr.mxu0 0.0
    %405 = vmatpush1.msra.mxu0 0.0
    %406 = vmatprep.subr.mxu0 0.0
    %407 = vmatpush1.msra.mxu0 0.0
    %408 = vmatprep.subr.mxu0 0.0
    %409 = vmatpush1.msra.mxu0 0.0
    %410 = vmatprep.subr.mxu0 0.0
    %411 = vmatpush1.msra.mxu0 0.0
    %412 = vmatprep.subr.mxu0 0.0
    %413 = vmatpush1.msra.mxu0 0.0
    %414 = vmatprep.subr.mxu0 0.0
    %415 = vmatpush1.msra.mxu0 0.0
    %416 = vmatprep.subr.mxu0 0.0
    %417 = vmatpush1.msra.mxu0 0.0
    %418 = vmatprep.subr.mxu0 0.0
    %419 = vmatpush1.msra.mxu0 0.0
    %420 = vmatprep.subr.mxu0 0.0
    %421 = vmatpush1.msra.mxu0 0.0
    %422 = vmatprep.subr.mxu0 0.0
    %423 = vmatpush1.msra.mxu0 0.0
    %424 = vmatprep.subr.mxu0 0.0
    %425 = vmatpush1.msra.mxu0 0.0
    %426 = vmatprep.subr.mxu0 0.0
    %427 = vmatpush1.msra.mxu0 0.0
    %428 = vmatprep.subr.mxu0 0.0
    %429 = vmatpush1.msra.mxu0 0.0
    %430 = vmatprep.subr.mxu0 0.0
    %431 = vmatpush1.msra.mxu0 0.0
    %432 = vmatprep.subr.mxu0 0.0
    %433 = vmatpush1.msra.mxu0 0.0
    %434 = vmatprep.subr.mxu0 0.0
    %435 = vmatpush1.msra.mxu0 0.0
    %436 = vmatprep.mubr.f32.mxu0 0.0
    %437 = vmatmul.mubr.f32.gmra.mrb[0].mxu0 %v370
    %v438 = vpop.f32.mrb[0].mxu0
    %v439 = vadd.f32 0.0, %v438
    %v440 = vpop.f32.mrb[0].mxu0
    %441 = vdwg.mxu0
    %442 = vrot.lane.b32.xlu0 %v109, 112
    %v443 = vpop.permute.xlu0 %442
    %444 = vrot.lane.b32.xlu0 %v103, 80
    %v445 = vpop.permute.xlu0 %444
    %v446 = vsel %vm114, %v443, 0
    %v448 = vsel %vm114, %v445, 0
    %450 = vmatprep.subr.mxu0 0.0
    %451 = vmatpush1.xpose.msra.mxu0 %v448
    %452 = vmatprep.subr.mxu0 0.0
    %453 = vmatpush1.xpose.msra.mxu0 0.0
    %454 = vmatprep.subr.mxu0 0.0
    %455 = vmatpush1.xpose.msra.mxu0 0.0
    %456 = vmatprep.subr.mxu0 0.0
    %457 = vmatpush1.xpose.msra.mxu0 0.0
    %458 = vmatprep.subr.mxu0 0.0
    %459 = vmatpush1.xpose.msra.mxu0 0.0
    %460 = vmatprep.subr.mxu0 0.0
    %461 = vmatpush1.xpose.msra.mxu0 0.0
    %462 = vmatprep.subr.mxu0 0.0
    %463 = vmatpush1.xpose.msra.mxu0 0.0
    %464 = vmatprep.subr.mxu0 0.0
    %465 = vmatpush1.xpose.msra.mxu0 0.0
    %466 = vmatprep.subr.mxu0 0.0
    %467 = vmatpush1.xpose.msra.mxu0 0.0
    %468 = vmatprep.subr.mxu0 0.0
    %469 = vmatpush1.xpose.msra.mxu0 0.0
    %470 = vmatprep.subr.mxu0 0.0
    %471 = vmatpush1.xpose.msra.mxu0 0.0
    %472 = vmatprep.subr.mxu0 0.0
    %473 = vmatpush1.xpose.msra.mxu0 0.0
    %474 = vmatprep.subr.mxu0 0.0
    %475 = vmatpush1.xpose.msra.mxu0 0.0
    %476 = vmatprep.subr.mxu0 0.0
    %477 = vmatpush1.xpose.msra.mxu0 0.0
    %478 = vmatprep.subr.mxu0 0.0
    %479 = vmatpush1.xpose.msra.mxu0 0.0
    %480 = vmatprep.subr.mxu0 0.0
    %481 = vmatpush1.xpose.msra.mxu0 0.0
    %482 = vmatprep.subr.mxu0 0.0
    %483 = vmatpush1.xpose.msra.mxu0 0.0
    %484 = vmatprep.subr.mxu0 0.0
    %485 = vmatpush1.xpose.msra.mxu0 0.0
    %486 = vmatprep.subr.mxu0 0.0
    %487 = vmatpush1.xpose.msra.mxu0 0.0
    %488 = vmatprep.subr.mxu0 0.0
    %489 = vmatpush1.xpose.msra.mxu0 0.0
    %490 = vmatprep.subr.mxu0 0.0
    %491 = vmatpush1.xpose.msra.mxu0 0.0
    %492 = vmatprep.subr.mxu0 0.0
    %493 = vmatpush1.xpose.msra.mxu0 0.0
    %494 = vmatprep.subr.mxu0 0.0
    %495 = vmatpush1.xpose.msra.mxu0 0.0
    %496 = vmatprep.subr.mxu0 0.0
    %497 = vmatpush1.xpose.msra.mxu0 0.0
    %498 = vmatprep.subr.mxu0 0.0
    %499 = vmatpush1.xpose.msra.mxu0 0.0
    %500 = vmatprep.subr.mxu0 0.0
    %501 = vmatpush1.xpose.msra.mxu0 0.0
    %502 = vmatprep.subr.mxu0 0.0
    %503 = vmatpush1.xpose.msra.mxu0 0.0
    %504 = vmatprep.subr.mxu0 0.0
    %505 = vmatpush1.xpose.msra.mxu0 0.0
    %506 = vmatprep.subr.mxu0 0.0
    %507 = vmatpush1.xpose.msra.mxu0 0.0
    %508 = vmatprep.subr.mxu0 0.0
    %509 = vmatpush1.xpose.msra.mxu0 0.0
    %510 = vmatprep.subr.mxu0 0.0
    %511 = vmatpush1.xpose.msra.mxu0 0.0
    %512 = vmatprep.subr.mxu0 0.0
    %513 = vmatpush1.xpose.msra.mxu0 0.0
    %514 = vmatprep.mubr.f32.mxu0 0.0
    %515 = vmatmul.mubr.f32.gmra.mrb[0].mxu0 %v446
    %v516 = vpop.f32.mrb[0].mxu0
    %v517 = vadd.f32 0.0, %v516
    %v518 = vpop.f32.mrb[0].mxu0
    %519 = vdwg.mxu0
    %v520 = vsel %vm114, %v517, -inf
    %521 = vmax.xlane.f32.xlu0 %v520
    %v522 = vpop.xlane.xlu0 %521
    %v523 = vsub.f32 %v517, %v522
    %v524 = vmul.f32 %v523, 1.442695
    %v525 = vpow.pop %v524
    %v526 = vsel %vm114, %v525, 0.0
    %527 = vadd.xlane.f32.xlu0 %v526
    %v528 = vpop.xlane.xlu0 %527
    %v529 = vrcp.pop %v528
    %v530 = vmul.f32 %v525, %v529
    %531 = vrot.lane.b32.xlu0 %v103, 48
    %v532 = vpop.permute.xlu0 %531
    %v535 = vsel %vm114, %v530, 0
    %537 = vmatprep.subr.mxu0 0.0
    %538 = vmatpush1.msra.mxu0 %v532
    %539 = vmatprep.subr.mxu0 0.0
    %540 = vmatpush1.msra.mxu0 0.0
    %541 = vmatprep.subr.mxu0 0.0
    %542 = vmatpush1.msra.mxu0 0.0
    %543 = vmatprep.subr.mxu0 0.0
    %544 = vmatpush1.msra.mxu0 0.0
    %545 = vmatprep.subr.mxu0 0.0
    %546 = vmatpush1.msra.mxu0 0.0
    %547 = vmatprep.subr.mxu0 0.0
    %548 = vmatpush1.msra.mxu0 0.0
    %549 = vmatprep.subr.mxu0 0.0
    %550 = vmatpush1.msra.mxu0 0.0
    %551 = vmatprep.subr.mxu0 0.0
    %552 = vmatpush1.msra.mxu0 0.0
    %553 = vmatprep.subr.mxu0 0.0
    %554 = vmatpush1.msra.mxu0 0.0
    %555 = vmatprep.subr.mxu0 0.0
    %556 = vmatpush1.msra.mxu0 0.0
    %557 = vmatprep.subr.mxu0 0.0
    %558 = vmatpush1.msra.mxu0 0.0
    %559 = vmatprep.subr.mxu0 0.0
    %560 = vmatpush1.msra.mxu0 0.0
    %561 = vmatprep.subr.mxu0 0.0
    %562 = vmatpush1.msra.mxu0 0.0
    %563 = vmatprep.subr.mxu0 0.0
    %564 = vmatpush1.msra.mxu0 0.0
    %565 = vmatprep.subr.mxu0 0.0
    %566 = vmatpush1.msra.mxu0 0.0
    %567 = vmatprep.subr.mxu0 0.0
    %568 = vmatpush1.msra.mxu0 0.0
    %569 = vmatprep.subr.mxu0 0.0
    %570 = vmatpush1.msra.mxu0 0.0
    %571 = vmatprep.subr.mxu0 0.0
    %572 = vmatpush1.msra.mxu0 0.0
    %573 = vmatprep.subr.mxu0 0.0
    %574 = vmatpush1.msra.mxu0 0.0
    %575 = vmatprep.subr.mxu0 0.0
    %576 = vmatpush1.msra.mxu0 0.0
    %577 = vmatprep.subr.mxu0 0.0
    %578 = vmatpush1.msra.mxu0 0.0
    %579 = vmatprep.subr.mxu0 0.0
    %580 = vmatpush1.msra.mxu0 0.0
    %581 = vmatprep.subr.mxu0 0.0
    %582 = vmatpush1.msra.mxu0 0.0
    %583 = vmatprep.subr.mxu0 0.0
    %584 = vmatpush1.msra.mxu0 0.0
    %585 = vmatprep.subr.mxu0 0.0
    %586 = vmatpush1.msra.mxu0 0.0
    %587 = vmatprep.subr.mxu0 0.0
    %588 = vmatpush1.msra.mxu0 0.0
    %589 = vmatprep.subr.mxu0 0.0
    %590 = vmatpush1.msra.mxu0 0.0
    %591 = vmatprep.subr.mxu0 0.0
    %592 = vmatpush1.msra.mxu0 0.0
    %593 = vmatprep.subr.mxu0 0.0
    %594 = vmatpush1.msra.mxu0 0.0
    %595 = vmatprep.subr.mxu0 0.0
    %596 = vmatpush1.msra.mxu0 0.0
    %597 = vmatprep.subr.mxu0 0.0
    %598 = vmatpush1.msra.mxu0 0.0
    %599 = vmatprep.subr.mxu0 0.0
    %600 = vmatpush1.msra.mxu0 0.0
    %601 = vmatprep.mubr.f32.mxu0 0.0
    %602 = vmatmul.mubr.f32.gmra.mrb[0].mxu0 %v535
    %v603 = vpop.f32.mrb[0].mxu0
    %v604 = vadd.f32 0.0, %v603
    %v605 = vpop.f32.mrb[0].mxu0
    %606 = vdwg.mxu0
    %607 = vrot.lane.b32.xlu0 %v109, 104
    %v608 = vpop.permute.xlu0 %607
    %609 = vrot.lane.b32.xlu0 %v103, 72
    %v610 = vpop.permute.xlu0 %609
    %v611 = vsel %vm114, %v608, 0
    %v613 = vsel %vm114, %v610, 0
    %615 = vmatprep.subr.mxu0 0.0
    %616 = vmatpush1.xpose.msra.mxu0 %v613
    %617 = vmatprep.subr.mxu0 0.0
    %618 = vmatpush1.xpose.msra.mxu0 0.0
    %619 = vmatprep.subr.mxu0 0.0
    %620 = vmatpush1.xpose.msra.mxu0 0.0
    %621 = vmatprep.subr.mxu0 0.0
    %622 = vmatpush1.xpose.msra.mxu0 0.0
    %623 = vmatprep.subr.mxu0 0.0
    %624 = vmatpush1.xpose.msra.mxu0 0.0
    %625 = vmatprep.subr.mxu0 0.0
    %626 = vmatpush1.xpose.msra.mxu0 0.0
    %627 = vmatprep.subr.mxu0 0.0
    %628 = vmatpush1.xpose.msra.mxu0 0.0
    %629 = vmatprep.subr.mxu0 0.0
    %630 = vmatpush1.xpose.msra.mxu0 0.0
    %631 = vmatprep.subr.mxu0 0.0
    %632 = vmatpush1.xpose.msra.mxu0 0.0
    %633 = vmatprep.subr.mxu0 0.0
    %634 = vmatpush1.xpose.msra.mxu0 0.0
    %635 = vmatprep.subr.mxu0 0.0
    %636 = vmatpush1.xpose.msra.mxu0 0.0
    %637 = vmatprep.subr.mxu0 0.0
    %638 = vmatpush1.xpose.msra.mxu0 0.0
    %639 = vmatprep.subr.mxu0 0.0
    %640 = vmatpush1.xpose.msra.mxu0 0.0
    %641 = vmatprep.subr.mxu0 0.0
    %642 = vmatpush1.xpose.msra.mxu0 0.0
    %643 = vmatprep.subr.mxu0 0.0
    %644 = vmatpush1.xpose.msra.mxu0 0.0
    %645 = vmatprep.subr.mxu0 0.0
    %646 = vmatpush1.xpose.msra.mxu0 0.0
    %647 = vmatprep.subr.mxu0 0.0
    %648 = vmatpush1.xpose.msra.mxu0 0.0
    %649 = vmatprep.subr.mxu0 0.0
    %650 = vmatpush1.xpose.msra.mxu0 0.0
    %651 = vmatprep.subr.mxu0 0.0
    %652 = vmatpush1.xpose.msra.mxu0 0.0
    %653 = vmatprep.subr.mxu0 0.0
    %654 = vmatpush1.xpose.msra.mxu0 0.0
    %655 = vmatprep.subr.mxu0 0.0
    %656 = vmatpush1.xpose.msra.mxu0 0.0
    %657 = vmatprep.subr.mxu0 0.0
    %658 = vmatpush1.xpose.msra.mxu0 0.0
    %659 = vmatprep.subr.mxu0 0.0
    %660 = vmatpush1.xpose.msra.mxu0 0.0
    %661 = vmatprep.subr.mxu0 0.0
    %662 = vmatpush1.xpose.msra.mxu0 0.0
    %663 = vmatprep.subr.mxu0 0.0
    %664 = vmatpush1.xpose.msra.mxu0 0.0
    %665 = vmatprep.subr.mxu0 0.0
    %666 = vmatpush1.xpose.msra.mxu0 0.0
    %667 = vmatprep.subr.mxu0 0.0
    %668 = vmatpush1.xpose.msra.mxu0 0.0
    %669 = vmatprep.subr.mxu0 0.0
    %670 = vmatpush1.xpose.msra.mxu0 0.0
    %671 = vmatprep.subr.mxu0 0.0
    %672 = vmatpush1.xpose.msra.mxu0 0.0
    %673 = vmatprep.subr.mxu0 0.0
    %674 = vmatpush1.xpose.msra.mxu0 0.0
    %675 = vmatprep.subr.mxu0 0.0
    %676 = vmatpush1.xpose.msra.mxu0 0.0
    %677 = vmatprep.subr.mxu0 0.0
    %678 = vmatpush1.xpose.msra.mxu0 0.0
    %679 = vmatprep.mubr.f32.mxu0 0.0
    %680 = vmatmul.mubr.f32.gmra.mrb[0].mxu0 %v611
    %v681 = vpop.f32.mrb[0].mxu0
    %v682 = vadd.f32 0.0, %v681
    %v683 = vpop.f32.mrb[0].mxu0
    %684 = vdwg.mxu0
    %v685 = vsel %vm114, %v682, -inf
    %686 = vmax.xlane.f32.xlu0 %v685
    %v687 = vpop.xlane.xlu0 %686
    %v688 = vsub.f32 %v682, %v687
    %v689 = vmul.f32 %v688, 1.442695
    %v690 = vpow.pop %v689
    %v691 = vsel %vm114, %v690, 0.0
    %692 = vadd.xlane.f32.xlu0 %v691
    %v693 = vpop.xlane.xlu0 %692
    %v694 = vrcp.pop %v693
    %v695 = vmul.f32 %v690, %v694
    %696 = vrot.lane.b32.xlu0 %v103, 40
    %v697 = vpop.permute.xlu0 %696
    %v700 = vsel %vm114, %v695, 0
    %702 = vmatprep.subr.mxu0 0.0
    %703 = vmatpush1.msra.mxu0 %v697
    %704 = vmatprep.subr.mxu0 0.0
    %705 = vmatpush1.msra.mxu0 0.0
    %706 = vmatprep.subr.mxu0 0.0
    %707 = vmatpush1.msra.mxu0 0.0
    %708 = vmatprep.subr.mxu0 0.0
    %709 = vmatpush1.msra.mxu0 0.0
    %710 = vmatprep.subr.mxu0 0.0
    %711 = vmatpush1.msra.mxu0 0.0
    %712 = vmatprep.subr.mxu0 0.0
    %713 = vmatpush1.msra.mxu0 0.0
    %714 = vmatprep.subr.mxu0 0.0
    %715 = vmatpush1.msra.mxu0 0.0
    %716 = vmatprep.subr.mxu0 0.0
    %717 = vmatpush1.msra.mxu0 0.0
    %718 = vmatprep.subr.mxu0 0.0
    %719 = vmatpush1.msra.mxu0 0.0
    %720 = vmatprep.subr.mxu0 0.0
    %721 = vmatpush1.msra.mxu0 0.0
    %722 = vmatprep.subr.mxu0 0.0
    %723 = vmatpush1.msra.mxu0 0.0
    %724 = vmatprep.subr.mxu0 0.0
    %725 = vmatpush1.msra.mxu0 0.0
    %726 = vmatprep.subr.mxu0 0.0
    %727 = vmatpush1.msra.mxu0 0.0
    %728 = vmatprep.subr.mxu0 0.0
    %729 = vmatpush1.msra.mxu0 0.0
    %730 = vmatprep.subr.mxu0 0.0
    %731 = vmatpush1.msra.mxu0 0.0
    %732 = vmatprep.subr.mxu0 0.0
    %733 = vmatpush1.msra.mxu0 0.0
    %734 = vmatprep.subr.mxu0 0.0
    %735 = vmatpush1.msra.mxu0 0.0
    %736 = vmatprep.subr.mxu0 0.0
    %737 = vmatpush1.msra.mxu0 0.0
    %738 = vmatprep.subr.mxu0 0.0
    %739 = vmatpush1.msra.mxu0 0.0
    %740 = vmatprep.subr.mxu0 0.0
    %741 = vmatpush1.msra.mxu0 0.0
    %742 = vmatprep.subr.mxu0 0.0
    %743 = vmatpush1.msra.mxu0 0.0
    %744 = vmatprep.subr.mxu0 0.0
    %745 = vmatpush1.msra.mxu0 0.0
    %746 = vmatprep.subr.mxu0 0.0
    %747 = vmatpush1.msra.mxu0 0.0
    %748 = vmatprep.subr.mxu0 0.0
    %749 = vmatpush1.msra.mxu0 0.0
    %750 = vmatprep.subr.mxu0 0.0
    %751 = vmatpush1.msra.mxu0 0.0
    %752 = vmatprep.subr.mxu0 0.0
    %753 = vmatpush1.msra.mxu0 0.0
    %754 = vmatprep.subr.mxu0 0.0
    %755 = vmatpush1.msra.mxu0 0.0
    %756 = vmatprep.subr.mxu0 0.0
    %757 = vmatpush1.msra.mxu0 0.0
    %758 = vmatprep.subr.mxu0 0.0
    %759 = vmatpush1.msra.mxu0 0.0
    %760 = vmatprep.subr.mxu0 0.0
    %761 = vmatpush1.msra.mxu0 0.0
    %762 = vmatprep.subr.mxu0 0.0
    %763 = vmatpush1.msra.mxu0 0.0
    %764 = vmatprep.subr.mxu0 0.0
    %765 = vmatpush1.msra.mxu0 0.0
    %766 = vmatprep.mubr.f32.mxu0 0.0
    %767 = vmatmul.mubr.f32.gmra.mrb[0].mxu0 %v700
    %v768 = vpop.f32.mrb[0].mxu0
    %v769 = vadd.f32 0.0, %v768
    %v770 = vpop.f32.mrb[0].mxu0
    %771 = vdwg.mxu0
    %773 = vrot.lane.b32.xlu0 %v439, 8
    %v774 = vpop.permute.xlu0 %773
    %777 = vrot.lane.b32.xlu0 %v604, 16
    %v778 = vpop.permute.xlu0 %777
    %781 = vrot.lane.b32.xlu0 %v769, 24
    %v782 = vpop.permute.xlu0 %781
    %v784 = vsel %vm114, %v274, %v774
    %vm785 = vcmask 130048
    %v786 = vsel %vm785, %v784, %v778
    %vm787 = vcmask 195584
    %v788 = vsel %vm787, %v786, %v782
    %790 = vrot.lane.b32.xlu0 %v106, 96
    %v791 = vpop.permute.xlu0 %790
    %v793 = vsel %vm114, %v110, 0
    %v795 = vsel %vm114, %v791, 0
    %797 = vmatprep.subr.mxu0 0.0
    %798 = vmatpush1.xpose.msra.mxu0 %v795
    %799 = vmatprep.subr.mxu0 0.0
    %800 = vmatpush1.xpose.msra.mxu0 0.0
    %801 = vmatprep.subr.mxu0 0.0
    %802 = vmatpush1.xpose.msra.mxu0 0.0
    %803 = vmatprep.subr.mxu0 0.0
    %804 = vmatpush1.xpose.msra.mxu0 0.0
    %805 = vmatprep.subr.mxu0 0.0
    %806 = vmatpush1.xpose.msra.mxu0 0.0
    %807 = vmatprep.subr.mxu0 0.0
    %808 = vmatpush1.xpose.msra.mxu0 0.0
    %809 = vmatprep.subr.mxu0 0.0
    %810 = vmatpush1.xpose.msra.mxu0 0.0
    %811 = vmatprep.subr.mxu0 0.0
    %812 = vmatpush1.xpose.msra.mxu0 0.0
    %813 = vmatprep.subr.mxu0 0.0
    %814 = vmatpush1.xpose.msra.mxu0 0.0
    %815 = vmatprep.subr.mxu0 0.0
    %816 = vmatpush1.xpose.msra.mxu0 0.0
    %817 = vmatprep.subr.mxu0 0.0
    %818 = vmatpush1.xpose.msra.mxu0 0.0
    %819 = vmatprep.subr.mxu0 0.0
    %820 = vmatpush1.xpose.msra.mxu0 0.0
    %821 = vmatprep.subr.mxu0 0.0
    %822 = vmatpush1.xpose.msra.mxu0 0.0
    %823 = vmatprep.subr.mxu0 0.0
    %824 = vmatpush1.xpose.msra.mxu0 0.0
    %825 = vmatprep.subr.mxu0 0.0
    %826 = vmatpush1.xpose.msra.mxu0 0.0
    %827 = vmatprep.subr.mxu0 0.0
    %828 = vmatpush1.xpose.msra.mxu0 0.0
    %829 = vmatprep.subr.mxu0 0.0
    %830 = vmatpush1.xpose.msra.mxu0 0.0
    %831 = vmatprep.subr.mxu0 0.0
    %832 = vmatpush1.xpose.msra.mxu0 0.0
    %833 = vmatprep.subr.mxu0 0.0
    %834 = vmatpush1.xpose.msra.mxu0 0.0
    %835 = vmatprep.subr.mxu0 0.0
    %836 = vmatpush1.xpose.msra.mxu0 0.0
    %837 = vmatprep.subr.mxu0 0.0
    %838 = vmatpush1.xpose.msra.mxu0 0.0
    %839 = vmatprep.subr.mxu0 0.0
    %840 = vmatpush1.xpose.msra.mxu0 0.0
    %841 = vmatprep.subr.mxu0 0.0
    %842 = vmatpush1.xpose.msra.mxu0 0.0
    %843 = vmatprep.subr.mxu0 0.0
    %844 = vmatpush1.xpose.msra.mxu0 0.0
    %845 = vmatprep.subr.mxu0 0.0
    %846 = vmatpush1.xpose.msra.mxu0 0.0
    %847 = vmatprep.subr.mxu0 0.0
    %848 = vmatpush1.xpose.msra.mxu0 0.0
    %849 = vmatprep.subr.mxu0 0.0
    %850 = vmatpush1.xpose.msra.mxu0 0.0
    %851 = vmatprep.subr.mxu0 0.0
    %852 = vmatpush1.xpose.msra.mxu0 0.0
    %853 = vmatprep.subr.mxu0 0.0
    %854 = vmatpush1.xpose.msra.mxu0 0.0
    %855 = vmatprep.subr.mxu0 0.0
    %856 = vmatpush1.xpose.msra.mxu0 0.0
    %857 = vmatprep.subr.mxu0 0.0
    %858 = vmatpush1.xpose.msra.mxu0 0.0
    %859 = vmatprep.subr.mxu0 0.0
    %860 = vmatpush1.xpose.msra.mxu0 0.0
    %861 = vmatprep.mubr.f32.mxu0 0.0
    %862 = vmatmul.mubr.f32.gmra.mrb[0].mxu0 %v793
    %v863 = vpop.f32.mrb[0].mxu0
    %v864 = vadd.f32 0.0, %v863
    %v865 = vpop.f32.mrb[0].mxu0
    %866 = vdwg.mxu0
    %v867 = vsel %vm114, %v864, -inf
    %868 = vmax.xlane.f32.xlu0 %v867
    %v869 = vpop.xlane.xlu0 %868
    %v870 = vsub.f32 %v864, %v869
    %v871 = vmul.f32 %v870, 1.442695
    %v872 = vpow.pop %v871
    %v873 = vsel %vm114, %v872, 0.0
    %874 = vadd.xlane.f32.xlu0 %v873
    %v875 = vpop.xlane.xlu0 %874
    %v876 = vrcp.pop %v875
    %v877 = vmul.f32 %v872, %v876
    %878 = vrot.lane.b32.xlu0 %v106, 64
    %v879 = vpop.permute.xlu0 %878
    %v882 = vsel %vm114, %v877, 0
    %884 = vmatprep.subr.mxu0 0.0
    %885 = vmatpush1.msra.mxu0 %v879
    %886 = vmatprep.subr.mxu0 0.0
    %887 = vmatpush1.msra.mxu0 0.0
    %888 = vmatprep.subr.mxu0 0.0
    %889 = vmatpush1.msra.mxu0 0.0
    %890 = vmatprep.subr.mxu0 0.0
    %891 = vmatpush1.msra.mxu0 0.0
    %892 = vmatprep.subr.mxu0 0.0
    %893 = vmatpush1.msra.mxu0 0.0
    %894 = vmatprep.subr.mxu0 0.0
    %895 = vmatpush1.msra.mxu0 0.0
    %896 = vmatprep.subr.mxu0 0.0
    %897 = vmatpush1.msra.mxu0 0.0
    %898 = vmatprep.subr.mxu0 0.0
    %899 = vmatpush1.msra.mxu0 0.0
    %900 = vmatprep.subr.mxu0 0.0
    %901 = vmatpush1.msra.mxu0 0.0
    %902 = vmatprep.subr.mxu0 0.0
    %903 = vmatpush1.msra.mxu0 0.0
    %904 = vmatprep.subr.mxu0 0.0
    %905 = vmatpush1.msra.mxu0 0.0
    %906 = vmatprep.subr.mxu0 0.0
    %907 = vmatpush1.msra.mxu0 0.0
    %908 = vmatprep.subr.mxu0 0.0
    %909 = vmatpush1.msra.mxu0 0.0
    %910 = vmatprep.subr.mxu0 0.0
    %911 = vmatpush1.msra.mxu0 0.0
    %912 = vmatprep.subr.mxu0 0.0
    %913 = vmatpush1.msra.mxu0 0.0
    %914 = vmatprep.subr.mxu0 0.0
    %915 = vmatpush1.msra.mxu0 0.0
    %916 = vmatprep.subr.mxu0 0.0
    %917 = vmatpush1.msra.mxu0 0.0
    %918 = vmatprep.subr.mxu0 0.0
    %919 = vmatpush1.msra.mxu0 0.0
    %920 = vmatprep.subr.mxu0 0.0
    %921 = vmatpush1.msra.mxu0 0.0
    %922 = vmatprep.subr.mxu0 0.0
    %923 = vmatpush1.msra.mxu0 0.0
    %924 = vmatprep.subr.mxu0 0.0
    %925 = vmatpush1.msra.mxu0 0.0
    %926 = vmatprep.subr.mxu0 0.0
    %927 = vmatpush1.msra.mxu0 0.0
    %928 = vmatprep.subr.mxu0 0.0
    %929 = vmatpush1.msra.mxu0 0.0
    %930 = vmatprep.subr.mxu0 0.0
    %931 = vmatpush1.msra.mxu0 0.0
    %932 = vmatprep.subr.mxu0 0.0
    %933 = vmatpush1.msra.mxu0 0.0
    %934 = vmatprep.subr.mxu0 0.0
    %935 = vmatpush1.msra.mxu0 0.0
    %936 = vmatprep.subr.mxu0 0.0
    %937 = vmatpush1.msra.mxu0 0.0
    %938 = vmatprep.subr.mxu0 0.0
    %939 = vmatpush1.msra.mxu0 0.0
    %940 = vmatprep.subr.mxu0 0.0
    %941 = vmatpush1.msra.mxu0 0.0
    %942 = vmatprep.subr.mxu0 0.0
    %943 = vmatpush1.msra.mxu0 0.0
    %944 = vmatprep.subr.mxu0 0.0
    %945 = vmatpush1.msra.mxu0 0.0
    %946 = vmatprep.subr.mxu0 0.0
    %947 = vmatpush1.msra.mxu0 0.0
    %948 = vmatprep.mubr.f32.mxu0 0.0
    %949 = vmatmul.mubr.f32.gmra.mrb[0].mxu0 %v882
    %v950 = vpop.f32.mrb[0].mxu0
    %v951 = vadd.f32 0.0, %v950
    %v952 = vpop.f32.mrb[0].mxu0
    %953 = vdwg.mxu0
    %954 = vrot.lane.b32.xlu0 %v110, 120
    %v955 = vpop.permute.xlu0 %954
    %956 = vrot.lane.b32.xlu0 %v106, 88
    %v957 = vpop.permute.xlu0 %956
    %v958 = vsel %vm114, %v955, 0
    %v960 = vsel %vm114, %v957, 0
    %962 = vmatprep.subr.mxu0 0.0
    %963 = vmatpush1.xpose.msra.mxu0 %v960
    %964 = vmatprep.subr.mxu0 0.0
    %965 = vmatpush1.xpose.msra.mxu0 0.0
    %966 = vmatprep.subr.mxu0 0.0
    %967 = vmatpush1.xpose.msra.mxu0 0.0
    %968 = vmatprep.subr.mxu0 0.0
    %969 = vmatpush1.xpose.msra.mxu0 0.0
    %970 = vmatprep.subr.mxu0 0.0
    %971 = vmatpush1.xpose.msra.mxu0 0.0
    %972 = vmatprep.subr.mxu0 0.0
    %973 = vmatpush1.xpose.msra.mxu0 0.0
    %974 = vmatprep.subr.mxu0 0.0
    %975 = vmatpush1.xpose.msra.mxu0 0.0
    %976 = vmatprep.subr.mxu0 0.0
    %977 = vmatpush1.xpose.msra.mxu0 0.0
    %978 = vmatprep.subr.mxu0 0.0
    %979 = vmatpush1.xpose.msra.mxu0 0.0
    %980 = vmatprep.subr.mxu0 0.0
    %981 = vmatpush1.xpose.msra.mxu0 0.0
    %982 = vmatprep.subr.mxu0 0.0
    %983 = vmatpush1.xpose.msra.mxu0 0.0
    %984 = vmatprep.subr.mxu0 0.0
    %985 = vmatpush1.xpose.msra.mxu0 0.0
    %986 = vmatprep.subr.mxu0 0.0
    %987 = vmatpush1.xpose.msra.mxu0 0.0
    %988 = vmatprep.subr.mxu0 0.0
    %989 = vmatpush1.xpose.msra.mxu0 0.0
    %990 = vmatprep.subr.mxu0 0.0
    %991 = vmatpush1.xpose.msra.mxu0 0.0
    %992 = vmatprep.subr.mxu0 0.0
    %993 = vmatpush1.xpose.msra.mxu0 0.0
    %994 = vmatprep.subr.mxu0 0.0
    %995 = vmatpush1.xpose.msra.mxu0 0.0
    %996 = vmatprep.subr.mxu0 0.0
    %997 = vmatpush1.xpose.msra.mxu0 0.0
    %998 = vmatprep.subr.mxu0 0.0
    %999 = vmatpush1.xpose.msra.mxu0 0.0
    %1000 = vmatprep.subr.mxu0 0.0
    %1001 = vmatpush1.xpose.msra.mxu0 0.0
    %1002 = vmatprep.subr.mxu0 0.0
    %1003 = vmatpush1.xpose.msra.mxu0 0.0
    %1004 = vmatprep.subr.mxu0 0.0
    %1005 = vmatpush1.xpose.msra.mxu0 0.0
    %1006 = vmatprep.subr.mxu0 0.0
    %1007 = vmatpush1.xpose.msra.mxu0 0.0
    %1008 = vmatprep.subr.mxu0 0.0
    %1009 = vmatpush1.xpose.msra.mxu0 0.0
    %1010 = vmatprep.subr.mxu0 0.0
    %1011 = vmatpush1.xpose.msra.mxu0 0.0
    %1012 = vmatprep.subr.mxu0 0.0
    %1013 = vmatpush1.xpose.msra.mxu0 0.0
    %1014 = vmatprep.subr.mxu0 0.0
    %1015 = vmatpush1.xpose.msra.mxu0 0.0
    %1016 = vmatprep.subr.mxu0 0.0
    %1017 = vmatpush1.xpose.msra.mxu0 0.0
    %1018 = vmatprep.subr.mxu0 0.0
    %1019 = vmatpush1.xpose.msra.mxu0 0.0
    %1020 = vmatprep.subr.mxu0 0.0
    %1021 = vmatpush1.xpose.msra.mxu0 0.0
    %1022 = vmatprep.subr.mxu0 0.0
    %1023 = vmatpush1.xpose.msra.mxu0 0.0
    %1024 = vmatprep.subr.mxu0 0.0
    %1025 = vmatpush1.xpose.msra.mxu0 0.0
    %1026 = vmatprep.mubr.f32.mxu0 0.0
    %1027 = vmatmul.mubr.f32.gmra.mrb[0].mxu0 %v958
    %v1028 = vpop.f32.mrb[0].mxu0
    %v1029 = vadd.f32 0.0, %v1028
    %v1030 = vpop.f32.mrb[0].mxu0
    %1031 = vdwg.mxu0
    %v1032 = vsel %vm114, %v1029, -inf
    %1033 = vmax.xlane.f32.xlu0 %v1032
    %v1034 = vpop.xlane.xlu0 %1033
    %v1035 = vsub.f32 %v1029, %v1034
    %v1036 = vmul.f32 %v1035, 1.442695
    %v1037 = vpow.pop %v1036
    %v1038 = vsel %vm114, %v1037, 0.0
    %1039 = vadd.xlane.f32.xlu0 %v1038
    %v1040 = vpop.xlane.xlu0 %1039
    %v1041 = vrcp.pop %v1040
    %v1042 = vmul.f32 %v1037, %v1041
    %1043 = vrot.lane.b32.xlu0 %v106, 56
    %v1044 = vpop.permute.xlu0 %1043
    %v1047 = vsel %vm114, %v1042, 0
    %1049 = vmatprep.subr.mxu0 0.0
    %1050 = vmatpush1.msra.mxu0 %v1044
    %1051 = vmatprep.subr.mxu0 0.0
    %1052 = vmatpush1.msra.mxu0 0.0
    %1053 = vmatprep.subr.mxu0 0.0
    %1054 = vmatpush1.msra.mxu0 0.0
    %1055 = vmatprep.subr.mxu0 0.0
    %1056 = vmatpush1.msra.mxu0 0.0
    %1057 = vmatprep.subr.mxu0 0.0
    %1058 = vmatpush1.msra.mxu0 0.0
    %1059 = vmatprep.subr.mxu0 0.0
    %1060 = vmatpush1.msra.mxu0 0.0
    %1061 = vmatprep.subr.mxu0 0.0
    %1062 = vmatpush1.msra.mxu0 0.0
    %1063 = vmatprep.subr.mxu0 0.0
    %1064 = vmatpush1.msra.mxu0 0.0
    %1065 = vmatprep.subr.mxu0 0.0
    %1066 = vmatpush1.msra.mxu0 0.0
    %1067 = vmatprep.subr.mxu0 0.0
    %1068 = vmatpush1.msra.mxu0 0.0
    %1069 = vmatprep.subr.mxu0 0.0
    %1070 = vmatpush1.msra.mxu0 0.0
    %1071 = vmatprep.subr.mxu0 0.0
    %1072 = vmatpush1.msra.mxu0 0.0
    %1073 = vmatprep.subr.mxu0 0.0
    %1074 = vmatpush1.msra.mxu0 0.0
    %1075 = vmatprep.subr.mxu0 0.0
    %1076 = vmatpush1.msra.mxu0 0.0
    %1077 = vmatprep.subr.mxu0 0.0
    %1078 = vmatpush1.msra.mxu0 0.0
    %1079 = vmatprep.subr.mxu0 0.0
    %1080 = vmatpush1.msra.mxu0 0.0
    %1081 = vmatprep.subr.mxu0 0.0
    %1082 = vmatpush1.msra.mxu0 0.0
    %1083 = vmatprep.subr.mxu0 0.0
    %1084 = vmatpush1.msra.mxu0 0.0
    %1085 = vmatprep.subr.mxu0 0.0
    %1086 = vmatpush1.msra.mxu0 0.0
    %1087 = vmatprep.subr.mxu0 0.0
    %1088 = vmatpush1.msra.mxu0 0.0
    %1089 = vmatprep.subr.mxu0 0.0
    %1090 = vmatpush1.msra.mxu0 0.0
    %1091 = vmatprep.subr.mxu0 0.0
    %1092 = vmatpush1.msra.mxu0 0.0
    %1093 = vmatprep.subr.mxu0 0.0
    %1094 = vmatpush1.msra.mxu0 0.0
    %1095 = vmatprep.subr.mxu0 0.0
    %1096 = vmatpush1.msra.mxu0 0.0
    %1097 = vmatprep.subr.mxu0 0.0
    %1098 = vmatpush1.msra.mxu0 0.0
    %1099 = vmatprep.subr.mxu0 0.0
    %1100 = vmatpush1.msra.mxu0 0.0
    %1101 = vmatprep.subr.mxu0 0.0
    %1102 = vmatpush1.msra.mxu0 0.0
    %1103 = vmatprep.subr.mxu0 0.0
    %1104 = vmatpush1.msra.mxu0 0.0
    %1105 = vmatprep.subr.mxu0 0.0
    %1106 = vmatpush1.msra.mxu0 0.0
    %1107 = vmatprep.subr.mxu0 0.0
    %1108 = vmatpush1.msra.mxu0 0.0
    %1109 = vmatprep.subr.mxu0 0.0
    %1110 = vmatpush1.msra.mxu0 0.0
    %1111 = vmatprep.subr.mxu0 0.0
    %1112 = vmatpush1.msra.mxu0 0.0
    %1113 = vmatprep.mubr.f32.mxu0 0.0
    %1114 = vmatmul.mubr.f32.gmra.mrb[0].mxu0 %v1047
    %v1115 = vpop.f32.mrb[0].mxu0
    %v1116 = vadd.f32 0.0, %v1115
    %v1117 = vpop.f32.mrb[0].mxu0
    %1118 = vdwg.mxu0
    %1119 = vrot.lane.b32.xlu0 %v110, 112
    %v1120 = vpop.permute.xlu0 %1119
    %1121 = vrot.lane.b32.xlu0 %v106, 80
    %v1122 = vpop.permute.xlu0 %1121
    %v1123 = vsel %vm114, %v1120, 0
    %v1125 = vsel %vm114, %v1122, 0
    %1127 = vmatprep.subr.mxu0 0.0
    %1128 = vmatpush1.xpose.msra.mxu0 %v1125
    %1129 = vmatprep.subr.mxu0 0.0
    %1130 = vmatpush1.xpose.msra.mxu0 0.0
    %1131 = vmatprep.subr.mxu0 0.0
    %1132 = vmatpush1.xpose.msra.mxu0 0.0
    %1133 = vmatprep.subr.mxu0 0.0
    %1134 = vmatpush1.xpose.msra.mxu0 0.0
    %1135 = vmatprep.subr.mxu0 0.0
    %1136 = vmatpush1.xpose.msra.mxu0 0.0
    %1137 = vmatprep.subr.mxu0 0.0
    %1138 = vmatpush1.xpose.msra.mxu0 0.0
    %1139 = vmatprep.subr.mxu0 0.0
    %1140 = vmatpush1.xpose.msra.mxu0 0.0
    %1141 = vmatprep.subr.mxu0 0.0
    %1142 = vmatpush1.xpose.msra.mxu0 0.0
    %1143 = vmatprep.subr.mxu0 0.0
    %1144 = vmatpush1.xpose.msra.mxu0 0.0
    %1145 = vmatprep.subr.mxu0 0.0
    %1146 = vmatpush1.xpose.msra.mxu0 0.0
    %1147 = vmatprep.subr.mxu0 0.0
    %1148 = vmatpush1.xpose.msra.mxu0 0.0
    %1149 = vmatprep.subr.mxu0 0.0
    %1150 = vmatpush1.xpose.msra.mxu0 0.0
    %1151 = vmatprep.subr.mxu0 0.0
    %1152 = vmatpush1.xpose.msra.mxu0 0.0
    %1153 = vmatprep.subr.mxu0 0.0
    %1154 = vmatpush1.xpose.msra.mxu0 0.0
    %1155 = vmatprep.subr.mxu0 0.0
    %1156 = vmatpush1.xpose.msra.mxu0 0.0
    %1157 = vmatprep.subr.mxu0 0.0
    %1158 = vmatpush1.xpose.msra.mxu0 0.0
    %1159 = vmatprep.subr.mxu0 0.0
    %1160 = vmatpush1.xpose.msra.mxu0 0.0
    %1161 = vmatprep.subr.mxu0 0.0
    %1162 = vmatpush1.xpose.msra.mxu0 0.0
    %1163 = vmatprep.subr.mxu0 0.0
    %1164 = vmatpush1.xpose.msra.mxu0 0.0
    %1165 = vmatprep.subr.mxu0 0.0
    %1166 = vmatpush1.xpose.msra.mxu0 0.0
    %1167 = vmatprep.subr.mxu0 0.0
    %1168 = vmatpush1.xpose.msra.mxu0 0.0
    %1169 = vmatprep.subr.mxu0 0.0
    %1170 = vmatpush1.xpose.msra.mxu0 0.0
    %1171 = vmatprep.subr.mxu0 0.0
    %1172 = vmatpush1.xpose.msra.mxu0 0.0
    %1173 = vmatprep.subr.mxu0 0.0
    %1174 = vmatpush1.xpose.msra.mxu0 0.0
    %1175 = vmatprep.subr.mxu0 0.0
    %1176 = vmatpush1.xpose.msra.mxu0 0.0
    %1177 = vmatprep.subr.mxu0 0.0
    %1178 = vmatpush1.xpose.msra.mxu0 0.0
    %1179 = vmatprep.subr.mxu0 0.0
    %1180 = vmatpush1.xpose.msra.mxu0 0.0
    %1181 = vmatprep.subr.mxu0 0.0
    %1182 = vmatpush1.xpose.msra.mxu0 0.0
    %1183 = vmatprep.subr.mxu0 0.0
    %1184 = vmatpush1.xpose.msra.mxu0 0.0
    %1185 = vmatprep.subr.mxu0 0.0
    %1186 = vmatpush1.xpose.msra.mxu0 0.0
    %1187 = vmatprep.subr.mxu0 0.0
    %1188 = vmatpush1.xpose.msra.mxu0 0.0
    %1189 = vmatprep.subr.mxu0 0.0
    %1190 = vmatpush1.xpose.msra.mxu0 0.0
    %1191 = vmatprep.mubr.f32.mxu0 0.0
    %1192 = vmatmul.mubr.f32.gmra.mrb[0].mxu0 %v1123
    %v1193 = vpop.f32.mrb[0].mxu0
    %v1194 = vadd.f32 0.0, %v1193
    %v1195 = vpop.f32.mrb[0].mxu0
    %1196 = vdwg.mxu0
    %v1197 = vsel %vm114, %v1194, -inf
    %1198 = vmax.xlane.f32.xlu0 %v1197
    %v1199 = vpop.xlane.xlu0 %1198
    %v1200 = vsub.f32 %v1194, %v1199
    %v1201 = vmul.f32 %v1200, 1.442695
    %v1202 = vpow.pop %v1201
    %v1203 = vsel %vm114, %v1202, 0.0
    %1204 = vadd.xlane.f32.xlu0 %v1203
    %v1205 = vpop.xlane.xlu0 %1204
    %v1206 = vrcp.pop %v1205
    %v1207 = vmul.f32 %v1202, %v1206
    %1208 = vrot.lane.b32.xlu0 %v106, 48
    %v1209 = vpop.permute.xlu0 %1208
    %v1212 = vsel %vm114, %v1207, 0
    %1214 = vmatprep.subr.mxu0 0.0
    %1215 = vmatpush1.msra.mxu0 %v1209
    %1216 = vmatprep.subr.mxu0 0.0
    %1217 = vmatpush1.msra.mxu0 0.0
    %1218 = vmatprep.subr.mxu0 0.0
    %1219 = vmatpush1.msra.mxu0 0.0
    %1220 = vmatprep.subr.mxu0 0.0
    %1221 = vmatpush1.msra.mxu0 0.0
    %1222 = vmatprep.subr.mxu0 0.0
    %1223 = vmatpush1.msra.mxu0 0.0
    %1224 = vmatprep.subr.mxu0 0.0
    %1225 = vmatpush1.msra.mxu0 0.0
    %1226 = vmatprep.subr.mxu0 0.0
    %1227 = vmatpush1.msra.mxu0 0.0
    %1228 = vmatprep.subr.mxu0 0.0
    %1229 = vmatpush1.msra.mxu0 0.0
    %1230 = vmatprep.subr.mxu0 0.0
    %1231 = vmatpush1.msra.mxu0 0.0
    %1232 = vmatprep.subr.mxu0 0.0
    %1233 = vmatpush1.msra.mxu0 0.0
    %1234 = vmatprep.subr.mxu0 0.0
    %1235 = vmatpush1.msra.mxu0 0.0
    %1236 = vmatprep.subr.mxu0 0.0
    %1237 = vmatpush1.msra.mxu0 0.0
    %1238 = vmatprep.subr.mxu0 0.0
    %1239 = vmatpush1.msra.mxu0 0.0
    %1240 = vmatprep.subr.mxu0 0.0
    %1241 = vmatpush1.msra.mxu0 0.0
    %1242 = vmatprep.subr.mxu0 0.0
    %1243 = vmatpush1.msra.mxu0 0.0
    %1244 = vmatprep.subr.mxu0 0.0
    %1245 = vmatpush1.msra.mxu0 0.0
    %1246 = vmatprep.subr.mxu0 0.0
    %1247 = vmatpush1.msra.mxu0 0.0
    %1248 = vmatprep.subr.mxu0 0.0
    %1249 = vmatpush1.msra.mxu0 0.0
    %1250 = vmatprep.subr.mxu0 0.0
    %1251 = vmatpush1.msra.mxu0 0.0
    %1252 = vmatprep.subr.mxu0 0.0
    %1253 = vmatpush1.msra.mxu0 0.0
    %1254 = vmatprep.subr.mxu0 0.0
    %1255 = vmatpush1.msra.mxu0 0.0
    %1256 = vmatprep.subr.mxu0 0.0
    %1257 = vmatpush1.msra.mxu0 0.0
    %1258 = vmatprep.subr.mxu0 0.0
    %1259 = vmatpush1.msra.mxu0 0.0
    %1260 = vmatprep.subr.mxu0 0.0
    %1261 = vmatpush1.msra.mxu0 0.0
    %1262 = vmatprep.subr.mxu0 0.0
    %1263 = vmatpush1.msra.mxu0 0.0
    %1264 = vmatprep.subr.mxu0 0.0
    %1265 = vmatpush1.msra.mxu0 0.0
    %1266 = vmatprep.subr.mxu0 0.0
    %1267 = vmatpush1.msra.mxu0 0.0
    %1268 = vmatprep.subr.mxu0 0.0
    %1269 = vmatpush1.msra.mxu0 0.0
    %1270 = vmatprep.subr.mxu0 0.0
    %1271 = vmatpush1.msra.mxu0 0.0
    %1272 = vmatprep.subr.mxu0 0.0
    %1273 = vmatpush1.msra.mxu0 0.0
    %1274 = vmatprep.subr.mxu0 0.0
    %1275 = vmatpush1.msra.mxu0 0.0
    %1276 = vmatprep.subr.mxu0 0.0
    %1277 = vmatpush1.msra.mxu0 0.0
    %1278 = vmatprep.mubr.f32.mxu0 0.0
    %1279 = vmatmul.mubr.f32.gmra.mrb[0].mxu0 %v1212
    %v1280 = vpop.f32.mrb[0].mxu0
    %v1281 = vadd.f32 0.0, %v1280
    %v1282 = vpop.f32.mrb[0].mxu0
    %1283 = vdwg.mxu0
    %1284 = vrot.lane.b32.xlu0 %v110, 104
    %v1285 = vpop.permute.xlu0 %1284
    %1286 = vrot.lane.b32.xlu0 %v106, 72
    %v1287 = vpop.permute.xlu0 %1286
    %v1288 = vsel %vm114, %v1285, 0
    %v1290 = vsel %vm114, %v1287, 0
    %1292 = vmatprep.subr.mxu0 0.0
    %1293 = vmatpush1.xpose.msra.mxu0 %v1290
    %1294 = vmatprep.subr.mxu0 0.0
    %1295 = vmatpush1.xpose.msra.mxu0 0.0
    %1296 = vmatprep.subr.mxu0 0.0
    %1297 = vmatpush1.xpose.msra.mxu0 0.0
    %1298 = vmatprep.subr.mxu0 0.0
    %1299 = vmatpush1.xpose.msra.mxu0 0.0
    %1300 = vmatprep.subr.mxu0 0.0
    %1301 = vmatpush1.xpose.msra.mxu0 0.0
    %1302 = vmatprep.subr.mxu0 0.0
    %1303 = vmatpush1.xpose.msra.mxu0 0.0
    %1304 = vmatprep.subr.mxu0 0.0
    %1305 = vmatpush1.xpose.msra.mxu0 0.0
    %1306 = vmatprep.subr.mxu0 0.0
    %1307 = vmatpush1.xpose.msra.mxu0 0.0
    %1308 = vmatprep.subr.mxu0 0.0
    %1309 = vmatpush1.xpose.msra.mxu0 0.0
    %1310 = vmatprep.subr.mxu0 0.0
    %1311 = vmatpush1.xpose.msra.mxu0 0.0
    %1312 = vmatprep.subr.mxu0 0.0
    %1313 = vmatpush1.xpose.msra.mxu0 0.0
    %1314 = vmatprep.subr.mxu0 0.0
    %1315 = vmatpush1.xpose.msra.mxu0 0.0
    %1316 = vmatprep.subr.mxu0 0.0
    %1317 = vmatpush1.xpose.msra.mxu0 0.0
    %1318 = vmatprep.subr.mxu0 0.0
    %1319 = vmatpush1.xpose.msra.mxu0 0.0
    %1320 = vmatprep.subr.mxu0 0.0
    %1321 = vmatpush1.xpose.msra.mxu0 0.0
    %1322 = vmatprep.subr.mxu0 0.0
    %1323 = vmatpush1.xpose.msra.mxu0 0.0
    %1324 = vmatprep.subr.mxu0 0.0
    %1325 = vmatpush1.xpose.msra.mxu0 0.0
    %1326 = vmatprep.subr.mxu0 0.0
    %1327 = vmatpush1.xpose.msra.mxu0 0.0
    %1328 = vmatprep.subr.mxu0 0.0
    %1329 = vmatpush1.xpose.msra.mxu0 0.0
    %1330 = vmatprep.subr.mxu0 0.0
    %1331 = vmatpush1.xpose.msra.mxu0 0.0
    %1332 = vmatprep.subr.mxu0 0.0
    %1333 = vmatpush1.xpose.msra.mxu0 0.0
    %1334 = vmatprep.subr.mxu0 0.0
    %1335 = vmatpush1.xpose.msra.mxu0 0.0
    %1336 = vmatprep.subr.mxu0 0.0
    %1337 = vmatpush1.xpose.msra.mxu0 0.0
    %1338 = vmatprep.subr.mxu0 0.0
    %1339 = vmatpush1.xpose.msra.mxu0 0.0
    %1340 = vmatprep.subr.mxu0 0.0
    %1341 = vmatpush1.xpose.msra.mxu0 0.0
    %1342 = vmatprep.subr.mxu0 0.0
    %1343 = vmatpush1.xpose.msra.mxu0 0.0
    %1344 = vmatprep.subr.mxu0 0.0
    %1345 = vmatpush1.xpose.msra.mxu0 0.0
    %1346 = vmatprep.subr.mxu0 0.0
    %1347 = vmatpush1.xpose.msra.mxu0 0.0
    %1348 = vmatprep.subr.mxu0 0.0
    %1349 = vmatpush1.xpose.msra.mxu0 0.0
    %1350 = vmatprep.subr.mxu0 0.0
    %1351 = vmatpush1.xpose.msra.mxu0 0.0
    %1352 = vmatprep.subr.mxu0 0.0
    %1353 = vmatpush1.xpose.msra.mxu0 0.0
    %1354 = vmatprep.subr.mxu0 0.0
    %1355 = vmatpush1.xpose.msra.mxu0 0.0
    %1356 = vmatprep.mubr.f32.mxu0 0.0
    %1357 = vmatmul.mubr.f32.gmra.mrb[0].mxu0 %v1288
    %v1358 = vpop.f32.mrb[0].mxu0
    %v1359 = vadd.f32 0.0, %v1358
    %v1360 = vpop.f32.mrb[0].mxu0
    %1361 = vdwg.mxu0
    %v1362 = vsel %vm114, %v1359, -inf
    %1363 = vmax.xlane.f32.xlu0 %v1362
    %v1364 = vpop.xlane.xlu0 %1363
    %v1365 = vsub.f32 %v1359, %v1364
    %v1366 = vmul.f32 %v1365, 1.442695
    %v1367 = vpow.pop %v1366
    %v1368 = vsel %vm114, %v1367, 0.0
    %1369 = vadd.xlane.f32.xlu0 %v1368
    %v1370 = vpop.xlane.xlu0 %1369
    %v1371 = vrcp.pop %v1370
    %v1372 = vmul.f32 %v1367, %v1371
    %1373 = vrot.lane.b32.xlu0 %v106, 40
    %v1374 = vpop.permute.xlu0 %1373
    %v1377 = vsel %vm114, %v1372, 0
    %1379 = vmatprep.subr.mxu0 0.0
    %1380 = vmatpush1.msra.mxu0 %v1374
    %1381 = vmatprep.subr.mxu0 0.0
    %1382 = vmatpush1.msra.mxu0 0.0
    %1383 = vmatprep.subr.mxu0 0.0
    %1384 = vmatpush1.msra.mxu0 0.0
    %1385 = vmatprep.subr.mxu0 0.0
    %1386 = vmatpush1.msra.mxu0 0.0
    %1387 = vmatprep.subr.mxu0 0.0
    %1388 = vmatpush1.msra.mxu0 0.0
    %1389 = vmatprep.subr.mxu0 0.0
    %1390 = vmatpush1.msra.mxu0 0.0
    %1391 = vmatprep.subr.mxu0 0.0
    %1392 = vmatpush1.msra.mxu0 0.0
    %1393 = vmatprep.subr.mxu0 0.0
    %1394 = vmatpush1.msra.mxu0 0.0
    %1395 = vmatprep.subr.mxu0 0.0
    %1396 = vmatpush1.msra.mxu0 0.0
    %1397 = vmatprep.subr.mxu0 0.0
    %1398 = vmatpush1.msra.mxu0 0.0
    %1399 = vmatprep.subr.mxu0 0.0
    %1400 = vmatpush1.msra.mxu0 0.0
    %1401 = vmatprep.subr.mxu0 0.0
    %1402 = vmatpush1.msra.mxu0 0.0
    %1403 = vmatprep.subr.mxu0 0.0
    %1404 = vmatpush1.msra.mxu0 0.0
    %1405 = vmatprep.subr.mxu0 0.0
    %1406 = vmatpush1.msra.mxu0 0.0
    %1407 = vmatprep.subr.mxu0 0.0
    %1408 = vmatpush1.msra.mxu0 0.0
    %1409 = vmatprep.subr.mxu0 0.0
    %1410 = vmatpush1.msra.mxu0 0.0
    %1411 = vmatprep.subr.mxu0 0.0
    %1412 = vmatpush1.msra.mxu0 0.0
    %1413 = vmatprep.subr.mxu0 0.0
    %1414 = vmatpush1.msra.mxu0 0.0
    %1415 = vmatprep.subr.mxu0 0.0
    %1416 = vmatpush1.msra.mxu0 0.0
    %1417 = vmatprep.subr.mxu0 0.0
    %1418 = vmatpush1.msra.mxu0 0.0
    %1419 = vmatprep.subr.mxu0 0.0
    %1420 = vmatpush1.msra.mxu0 0.0
    %1421 = vmatprep.subr.mxu0 0.0
    %1422 = vmatpush1.msra.mxu0 0.0
    %1423 = vmatprep.subr.mxu0 0.0
    %1424 = vmatpush1.msra.mxu0 0.0
    %1425 = vmatprep.subr.mxu0 0.0
    %1426 = vmatpush1.msra.mxu0 0.0
    %1427 = vmatprep.subr.mxu0 0.0
    %1428 = vmatpush1.msra.mxu0 0.0
    %1429 = vmatprep.subr.mxu0 0.0
    %1430 = vmatpush1.msra.mxu0 0.0
    %1431 = vmatprep.subr.mxu0 0.0
    %1432 = vmatpush1.msra.mxu0 0.0
    %1433 = vmatprep.subr.mxu0 0.0
    %1434 = vmatpush1.msra.mxu0 0.0
    %1435 = vmatprep.subr.mxu0 0.0
    %1436 = vmatpush1.msra.mxu0 0.0
    %1437 = vmatprep.subr.mxu0 0.0
    %1438 = vmatpush1.msra.mxu0 0.0
    %1439 = vmatprep.subr.mxu0 0.0
    %1440 = vmatpush1.msra.mxu0 0.0
    %1441 = vmatprep.subr.mxu0 0.0
    %1442 = vmatpush1.msra.mxu0 0.0
    %1443 = vmatprep.mubr.f32.mxu0 0.0
    %1444 = vmatmul.mubr.f32.gmra.mrb[0].mxu0 %v1377
    %v1445 = vpop.f32.mrb[0].mxu0
    %v1446 = vadd.f32 0.0, %v1445
    %v1447 = vpop.f32.mrb[0].mxu0
    %1448 = vdwg.mxu0
    %1450 = vrot.lane.b32.xlu0 %v1116, 8
    %v1451 = vpop.permute.xlu0 %1450
    %1454 = vrot.lane.b32.xlu0 %v1281, 16
    %v1455 = vpop.permute.xlu0 %1454
    %1458 = vrot.lane.b32.xlu0 %v1446, 24
    %v1459 = vpop.permute.xlu0 %1458
    %v1461 = vsel %vm114, %v951, %v1451
    %v1462 = vsel %vm785, %v1461, %v1455
    %v1463 = vsel %vm787, %v1462, %v1459
    %v1464 = vpack.c.bf16 %v1463, %v788
    %v1465 = vld [vmem:[%s2] sm:$0xf]
    %v1466 = vld [vmem:[%s2 + $0x4] sm:$0xf]
    %v1467 = vld [vmem:[%s2 + $0x8] sm:$0xf]
    %v1468 = vld [vmem:[%s2 + $0xc] sm:$0xf]
    %v1469 = vlaneseq
    %v1470 = vshrl.u32 %v1469, 7
    %v1471 = vsub.s32 0, %v1470
    %v1472 = vrot.slane %v37, %v1471
    %v1477 = vunpack.c.l.b16 %v1465
    %v1478 = vunpack.c.l.b16 %v1466
    %v1479 = vunpack.c.l.b16 %v1467
    %v1480 = vunpack.c.l.b16 %v1468
    %v1481 = vpack.c.b16 %v1478, %v1477
    %v1482 = vpack.c.b16 %v1480, %v1479
    %v1486 = vsel %vm64, %v1464, 0
    %1488 = vmatprep.subr.bf16.mxu0 0
    %1489 = vmatpush1.bf16.msra.mxu0 %v1481
    %1490 = vmatprep.subr.bf16.mxu0 0
    %1491 = vmatpush1.bf16.msra.mxu0 %v1482
    %1492 = vmatprep.subr.bf16.mxu0 0
    %1493 = vmatpush1.bf16.msra.mxu0 0
    %1494 = vmatprep.subr.bf16.mxu0 0
    %1495 = vmatpush1.bf16.msra.mxu0 0
    %1496 = vmatprep.subr.bf16.mxu0 0
    %1497 = vmatpush1.bf16.msra.mxu0 0
    %1498 = vmatprep.subr.bf16.mxu0 0
    %1499 = vmatpush1.bf16.msra.mxu0 0
    %1500 = vmatprep.subr.bf16.mxu0 0
    %1501 = vmatpush1.bf16.msra.mxu0 0
    %1502 = vmatprep.subr.bf16.mxu0 0
    %1503 = vmatpush1.bf16.msra.mxu0 0
    %1504 = vmatprep.subr.bf16.mxu0 0
    %1505 = vmatpush1.bf16.msra.mxu0 0
    %1506 = vmatprep.subr.bf16.mxu0 0
    %1507 = vmatpush1.bf16.msra.mxu0 0
    %1508 = vmatprep.subr.bf16.mxu0 0
    %1509 = vmatpush1.bf16.msra.mxu0 0
    %1510 = vmatprep.subr.bf16.mxu0 0
    %1511 = vmatpush1.bf16.msra.mxu0 0
    %1512 = vmatprep.subr.bf16.mxu0 0
    %1513 = vmatpush1.bf16.msra.mxu0 0
    %1514 = vmatprep.subr.bf16.mxu0 0
    %1515 = vmatpush1.bf16.msra.mxu0 0
    %1516 = vmatprep.subr.bf16.mxu0 0
    %1517 = vmatpush1.bf16.msra.mxu0 0
    %1518 = vmatprep.subr.bf16.mxu0 0
    %1519 = vmatpush1.bf16.msra.mxu0 0
    %1520 = vmatprep.mubr.bf16.mxu0 0
    %1521 = vmatmul.mubr.bf16.gmra.mrb[0].mxu0 %v1486
    %v1522 = vpop.f32.mrb[0].mxu0
    %v1523 = vadd.f32 %v1472, %v1522
    %v1524 = vpop.f32.mrb[0].mxu0
    %v1525 = vpop.f32.mrb[0].mxu0
    %v1526 = vadd.f32 %v1472, %v1525
    %v1527 = vpop.f32.mrb[0].mxu0
    %1528 = vdwg.mxu0
    %v1529 = vadd.f32 %v34, %v1523
    %v1530 = vadd.f32 %v35, %v1526
    %v1531 = vsel %vm64, %v1529, 0.0
    %1532 = vadd.xlane.f32.xlu0 %v1531
    %v1533 = vpop.xlane.xlu0 %1532
    %v1534 = vsel %vm64, %v1530, 0.0
    %1535 = vadd.xlane.f32.xlu0 %v1534
    %v1536 = vpop.xlane.xlu0 %1535
    %v1537 = vrcp.pop 32.0
    %v1538 = vmul.f32 %v1533, %v1537
    %v1539 = vmul.f32 %v1536, %v1537
    %v1540 = vsub.f32 %v1529, %v1538
    %v1541 = vsub.f32 %v1530, %v1539
    %v1542 = vmul.f32 %v1540, %v1540
    %v1543 = vmul.f32 %v1541, %v1541
    %v1544 = vsel %vm64, %v1542, 0.0
    %1545 = vadd.xlane.f32.xlu0 %v1544
    %v1546 = vpop.xlane.xlu0 %1545
    %v1547 = vsel %vm64, %v1543, 0.0
    %1548 = vadd.xlane.f32.xlu0 %v1547
    %v1549 = vpop.xlane.xlu0 %1548
    %v1550 = vmul.f32 %v1546, %v1537
    %v1551 = vmul.f32 %v1549, %v1537
    %v1552 = vadd.f32 %v1550, 1e-05
    %v1553 = vadd.f32 %v1551, 1e-05
    %v1554 = vrsqrt.pop %v1552
    %v1555 = vrsqrt.pop %v1553
    %v1556 = vmul.f32 %v1540, %v1554
    %v1557 = vmul.f32 %v1541, %v1555
    %v1558 = vlaneseq
    %v1559 = vshrl.u32 %v1558, 7
    %v1560 = vsub.s32 0, %v1559
    %v1561 = vrot.slane %v39, %v1560
    %v1562 = vmul.f32 %v1556, %v1561
    %v1563 = vmul.f32 %v1557, %v1561
    %v1564 = vlaneseq
    %v1565 = vshrl.u32 %v1564, 7
    %v1566 = vsub.s32 0, %v1565
    %v1567 = vrot.slane %v40, %v1566
    %v1568 = vadd.f32 %v1562, %v1567
    %v1569 = vadd.f32 %v1563, %v1567
    %v1570 = vpack.c.bf16 %v1569, %v1568
    %v1571 = vld [vmem:[%s3] sm:$0xff]
    %v1572 = vld [vmem:[%s3 + $0x8] sm:$0xff]
    %v1573 = vld [vmem:[%s3 + $0x40] sm:$0xff]
    %v1574 = vld [vmem:[%s3 + $0x48] sm:$0xff]
    %v1575 = vld [vmem:[%s3 + $0x80] sm:$0xff]
    %v1576 = vld [vmem:[%s3 + $0x88] sm:$0xff]
    %v1577 = vld [vmem:[%s3 + $0xc0] sm:$0xff]
    %v1578 = vld [vmem:[%s3 + $0xc8] sm:$0xff]
    %v1579 = vld [vmem:[%s5] sm:$0xf]
    %v1581 = vlaneseq
    %v1582 = vshrl.u32 %v1581, 7
    %v1583 = vsub.s32 0, %v1582
    %v1584 = vrot.slane %v1579, %v1583
    %v1585 = vlaneseq
    %v1586 = vshrl.u32 %v1585, 7
    %v1587 = vsub.s32 1, %v1586
    %v1588 = vrot.slane %v1579, %v1587
    %v1589 = vlaneseq
    %v1590 = vshrl.u32 %v1589, 7
    %v1591 = vsub.s32 2, %v1590
    %v1592 = vrot.slane %v1579, %v1591
    %v1593 = vlaneseq
    %v1594 = vshrl.u32 %v1593, 7
    %v1595 = vsub.s32 3, %v1594
    %v1596 = vrot.slane %v1579, %v1595
    %v1609 = vunpack.c.l.b16 %v1571
    %v1610 = vunpack.c.h.b16 %v1571
    %v1611 = vunpack.c.l.b16 %v1572
    %v1612 = vunpack.c.h.b16 %v1572
    %v1613 = vunpack.c.l.b16 %v1573
    %v1614 = vunpack.c.h.b16 %v1573
    %v1615 = vunpack.c.l.b16 %v1574
    %v1616 = vunpack.c.h.b16 %v1574
    %v1617 = vunpack.c.l.b16 %v1575
    %v1618 = vunpack.c.h.b16 %v1575
    %v1619 = vunpack.c.l.b16 %v1576
    %v1620 = vunpack.c.h.b16 %v1576
    %v1621 = vunpack.c.l.b16 %v1577
    %v1622 = vunpack.c.h.b16 %v1577
    %v1623 = vunpack.c.l.b16 %v1578
    %v1624 = vunpack.c.h.b16 %v1578
    %v1625 = vpack.c.b16 %v1613, %v1609
    %v1626 = vpack.c.b16 %v1614, %v1610
    %v1627 = vpack.c.b16 %v1615, %v1611
    %v1628 = vpack.c.b16 %v1616, %v1612
    %v1629 = vpack.c.b16 %v1621, %v1617
    %v1630 = vpack.c.b16 %v1622, %v1618
    %v1631 = vpack.c.b16 %v1623, %v1619
    %v1632 = vpack.c.b16 %v1624, %v1620
    %v1642 = vsel %vm64, %v1570, 0
    %1644 = vmatprep.subr.bf16.mxu0 %v1626
    %1645 = vmatpush1.bf16.msra.mxu0 %v1625
    %1646 = vmatprep.subr.bf16.mxu0 %v1630
    %1647 = vmatpush1.bf16.msra.mxu0 %v1629
    %1648 = vmatprep.subr.bf16.mxu0 0
    %1649 = vmatpush1.bf16.msra.mxu0 0
    %1650 = vmatprep.subr.bf16.mxu0 0
    %1651 = vmatpush1.bf16.msra.mxu0 0
    %1652 = vmatprep.subr.bf16.mxu0 0
    %1653 = vmatpush1.bf16.msra.mxu0 0
    %1654 = vmatprep.subr.bf16.mxu0 0
    %1655 = vmatpush1.bf16.msra.mxu0 0
    %1656 = vmatprep.subr.bf16.mxu0 0
    %1657 = vmatpush1.bf16.msra.mxu0 0
    %1658 = vmatprep.subr.bf16.mxu0 0
    %1659 = vmatpush1.bf16.msra.mxu0 0
    %1660 = vmatprep.subr.bf16.mxu0 0
    %1661 = vmatpush1.bf16.msra.mxu0 0
    %1662 = vmatprep.subr.bf16.mxu0 0
    %1663 = vmatpush1.bf16.msra.mxu0 0
    %1664 = vmatprep.subr.bf16.mxu0 0
    %1665 = vmatpush1.bf16.msra.mxu0 0
    %1666 = vmatprep.subr.bf16.mxu0 0
    %1667 = vmatpush1.bf16.msra.mxu0 0
    %1668 = vmatprep.subr.bf16.mxu0 0
    %1669 = vmatpush1.bf16.msra.mxu0 0
    %1670 = vmatprep.subr.bf16.mxu0 0
    %1671 = vmatpush1.bf16.msra.mxu0 0
    %1672 = vmatprep.subr.bf16.mxu0 0
    %1673 = vmatpush1.bf16.msra.mxu0 0
    %1674 = vmatprep.subr.bf16.mxu0 0
    %1675 = vmatpush1.bf16.msra.mxu0 0
    %1676 = vmatprep.mubr.bf16.mxu0 0
    %1677 = vmatmul.mubr.bf16.gmra.mrb[0].mxu0 %v1642
    %v1678 = vpop.f32.mrb[0].mxu0
    %v1679 = vadd.f32 %v1584, %v1678
    %v1680 = vpop.f32.mrb[0].mxu0
    %v1681 = vadd.f32 %v1588, %v1680
    %v1682 = vpop.f32.mrb[0].mxu0
    %v1683 = vadd.f32 %v1584, %v1682
    %v1684 = vpop.f32.mrb[0].mxu0
    %v1685 = vadd.f32 %v1588, %v1684
    %1686 = vdwg.mxu0
    %1687 = vmatprep.subr.bf16.mxu0 %v1628
    %1688 = vmatpush1.bf16.msra.mxu0 %v1627
    %1689 = vmatprep.subr.bf16.mxu0 %v1632
    %1690 = vmatpush1.bf16.msra.mxu0 %v1631
    %1691 = vmatprep.subr.bf16.mxu0 0
    %1692 = vmatpush1.bf16.msra.mxu0 0
    %1693 = vmatprep.subr.bf16.mxu0 0
    %1694 = vmatpush1.bf16.msra.mxu0 0
    %1695 = vmatprep.subr.bf16.mxu0 0
    %1696 = vmatpush1.bf16.msra.mxu0 0
    %1697 = vmatprep.subr.bf16.mxu0 0
    %1698 = vmatpush1.bf16.msra.mxu0 0
    %1699 = vmatprep.subr.bf16.mxu0 0
    %1700 = vmatpush1.bf16.msra.mxu0 0
    %1701 = vmatprep.subr.bf16.mxu0 0
    %1702 = vmatpush1.bf16.msra.mxu0 0
    %1703 = vmatprep.subr.bf16.mxu0 0
    %1704 = vmatpush1.bf16.msra.mxu0 0
    %1705 = vmatprep.subr.bf16.mxu0 0
    %1706 = vmatpush1.bf16.msra.mxu0 0
    %1707 = vmatprep.subr.bf16.mxu0 0
    %1708 = vmatpush1.bf16.msra.mxu0 0
    %1709 = vmatprep.subr.bf16.mxu0 0
    %1710 = vmatpush1.bf16.msra.mxu0 0
    %1711 = vmatprep.subr.bf16.mxu0 0
    %1712 = vmatpush1.bf16.msra.mxu0 0
    %1713 = vmatprep.subr.bf16.mxu0 0
    %1714 = vmatpush1.bf16.msra.mxu0 0
    %1715 = vmatprep.subr.bf16.mxu0 0
    %1716 = vmatpush1.bf16.msra.mxu0 0
    %1717 = vmatprep.subr.bf16.mxu0 0
    %1718 = vmatpush1.bf16.msra.mxu0 0
    %1719 = vmatprep.mubr.bf16.mxu0 0
    %1720 = vmatmul.mubr.bf16.gmra.mrb[0].mxu0 %v1642
    %v1721 = vpop.f32.mrb[0].mxu0
    %v1722 = vadd.f32 %v1592, %v1721
    %v1723 = vpop.f32.mrb[0].mxu0
    %v1724 = vadd.f32 %v1596, %v1723
    %v1725 = vpop.f32.mrb[0].mxu0
    %v1726 = vadd.f32 %v1592, %v1725
    %v1727 = vpop.f32.mrb[0].mxu0
    %v1728 = vadd.f32 %v1596, %v1727
    %1729 = vdwg.mxu0
    %v1730 = vmax.f32 %v1679, 0.0
    %v1731 = vmax.f32 %v1681, 0.0
    %v1732 = vmax.f32 %v1722, 0.0
    %v1733 = vmax.f32 %v1724, 0.0
    %v1734 = vmax.f32 %v1683, 0.0
    %v1735 = vmax.f32 %v1685, 0.0
    %v1736 = vmax.f32 %v1726, 0.0
    %v1737 = vmax.f32 %v1728, 0.0
    %v1738 = vpack.c.bf16 %v1734, %v1730
    %v1739 = vpack.c.bf16 %v1735, %v1731
    %v1740 = vpack.c.bf16 %v1736, %v1732
    %v1741 = vpack.c.bf16 %v1737, %v1733
    %v1742 = vld [vmem:[%s4] sm:$0xf]
    %v1743 = vld [vmem:[%s4 + $0x4] sm:$0xf]
    %v1744 = vld [vmem:[%s4 + $0x8] sm:$0xf]
    %v1745 = vld [vmem:[%s4 + $0xc] sm:$0xf]
    %v1746 = vld [vmem:[%s4 + $0x10] sm:$0xf]
    %v1747 = vld [vmem:[%s4 + $0x14] sm:$0xf]
    %v1748 = vld [vmem:[%s4 + $0x18] sm:$0xf]
    %v1749 = vld [vmem:[%s4 + $0x1c] sm:$0xf]
    %v1750 = vld [vmem:[%s4 + $0x20] sm:$0xf]
    %v1751 = vld [vmem:[%s4 + $0x24] sm:$0xf]
    %v1752 = vld [vmem:[%s4 + $0x28] sm:$0xf]
    %v1753 = vld [vmem:[%s4 + $0x2c] sm:$0xf]
    %v1754 = vld [vmem:[%s4 + $0x30] sm:$0xf]
    %v1755 = vld [vmem:[%s4 + $0x34] sm:$0xf]
    %v1756 = vld [vmem:[%s4 + $0x38] sm:$0xf]
    %v1757 = vld [vmem:[%s4 + $0x3c] sm:$0xf]
    %v1758 = vld [vmem:[%s4 + $0x40] sm:$0xf]
    %v1759 = vld [vmem:[%s4 + $0x44] sm:$0xf]
    %v1760 = vld [vmem:[%s4 + $0x48] sm:$0xf]
    %v1761 = vld [vmem:[%s4 + $0x4c] sm:$0xf]
    %v1762 = vld [vmem:[%s4 + $0x50] sm:$0xf]
    %v1763 = vld [vmem:[%s4 + $0x54] sm:$0xf]
    %v1764 = vld [vmem:[%s4 + $0x58] sm:$0xf]
    %v1765 = vld [vmem:[%s4 + $0x5c] sm:$0xf]
    %v1766 = vld [vmem:[%s4 + $0x60] sm:$0xf]
    %v1767 = vld [vmem:[%s4 + $0x64] sm:$0xf]
    %v1768 = vld [vmem:[%s4 + $0x68] sm:$0xf]
    %v1769 = vld [vmem:[%s4 + $0x6c] sm:$0xf]
    %v1770 = vld [vmem:[%s4 + $0x70] sm:$0xf]
    %v1771 = vld [vmem:[%s4 + $0x74] sm:$0xf]
    %v1772 = vld [vmem:[%s4 + $0x78] sm:$0xf]
    %v1773 = vld [vmem:[%s4 + $0x7c] sm:$0xf]
    %v1774 = vld [vmem:[%s4 + $0x80] sm:$0xf]
    %v1775 = vld [vmem:[%s4 + $0x84] sm:$0xf]
    %v1776 = vld [vmem:[%s4 + $0x88] sm:$0xf]
    %v1777 = vld [vmem:[%s4 + $0x8c] sm:$0xf]
    %v1778 = vld [vmem:[%s4 + $0x90] sm:$0xf]
    %v1779 = vld [vmem:[%s4 + $0x94] sm:$0xf]
    %v1780 = vld [vmem:[%s4 + $0x98] sm:$0xf]
    %v1781 = vld [vmem:[%s4 + $0x9c] sm:$0xf]
    %v1782 = vld [vmem:[%s4 + $0xa0] sm:$0xf]
    %v1783 = vld [vmem:[%s4 + $0xa4] sm:$0xf]
    %v1784 = vld [vmem:[%s4 + $0xa8] sm:$0xf]
    %v1785 = vld [vmem:[%s4 + $0xac] sm:$0xf]
    %v1786 = vld [vmem:[%s4 + $0xb0] sm:$0xf]
    %v1787 = vld [vmem:[%s4 + $0xb4] sm:$0xf]
    %v1788 = vld [vmem:[%s4 + $0xb8] sm:$0xf]
    %v1789 = vld [vmem:[%s4 + $0xbc] sm:$0xf]
    %v1790 = vld [vmem:[%s4 + $0xc0] sm:$0xf]
    %v1791 = vld [vmem:[%s4 + $0xc4] sm:$0xf]
    %v1792 = vld [vmem:[%s4 + $0xc8] sm:$0xf]
    %v1793 = vld [vmem:[%s4 + $0xcc] sm:$0xf]
    %v1794 = vld [vmem:[%s4 + $0xd0] sm:$0xf]
    %v1795 = vld [vmem:[%s4 + $0xd4] sm:$0xf]
    %v1796 = vld [vmem:[%s4 + $0xd8] sm:$0xf]
    %v1797 = vld [vmem:[%s4 + $0xdc] sm:$0xf]
    %v1798 = vld [vmem:[%s4 + $0xe0] sm:$0xf]
    %v1799 = vld [vmem:[%s4 + $0xe4] sm:$0xf]
    %v1800 = vld [vmem:[%s4 + $0xe8] sm:$0xf]
    %v1801 = vld [vmem:[%s4 + $0xec] sm:$0xf]
    %v1802 = vld [vmem:[%s4 + $0xf0] sm:$0xf]
    %v1803 = vld [vmem:[%s4 + $0xf4] sm:$0xf]
    %v1804 = vld [vmem:[%s4 + $0xf8] sm:$0xf]
    %v1805 = vld [vmem:[%s4 + $0xfc] sm:$0xf]
    %v1806 = vld [vmem:[%s3 + $0x10] sm:$0xff]
    %v1807 = vld [vmem:[%s3 + $0x18] sm:$0xff]
    %v1808 = vld [vmem:[%s3 + $0x50] sm:$0xff]
    %v1809 = vld [vmem:[%s3 + $0x58] sm:$0xff]
    %v1810 = vld [vmem:[%s3 + $0x90] sm:$0xff]
    %v1811 = vld [vmem:[%s3 + $0x98] sm:$0xff]
    %v1812 = vld [vmem:[%s3 + $0xd0] sm:$0xff]
    %v1813 = vld [vmem:[%s3 + $0xd8] sm:$0xff]
    %v1814 = vld [vmem:[%s5 + $0x4] sm:$0xf]
    %v1816 = vlaneseq
    %v1817 = vshrl.u32 %v1816, 7
    %v1818 = vsub.s32 0, %v1817
    %v1819 = vrot.slane %v1814, %v1818
    %v1820 = vlaneseq
    %v1821 = vshrl.u32 %v1820, 7
    %v1822 = vsub.s32 1, %v1821
    %v1823 = vrot.slane %v1814, %v1822
    %v1824 = vlaneseq
    %v1825 = vshrl.u32 %v1824, 7
    %v1826 = vsub.s32 2, %v1825
    %v1827 = vrot.slane %v1814, %v1826
    %v1828 = vlaneseq
    %v1829 = vshrl.u32 %v1828, 7
    %v1830 = vsub.s32 3, %v1829
    %v1831 = vrot.slane %v1814, %v1830
    %v1844 = vunpack.c.l.b16 %v1806
    %v1845 = vunpack.c.h.b16 %v1806
    %v1846 = vunpack.c.l.b16 %v1807
    %v1847 = vunpack.c.h.b16 %v1807
    %v1848 = vunpack.c.l.b16 %v1808
    %v1849 = vunpack.c.h.b16 %v1808
    %v1850 = vunpack.c.l.b16 %v1809
    %v1851 = vunpack.c.h.b16 %v1809
    %v1852 = vunpack.c.l.b16 %v1810
    %v1853 = vunpack.c.h.b16 %v1810
    %v1854 = vunpack.c.l.b16 %v1811
    %v1855 = vunpack.c.h.b16 %v1811
    %v1856 = vunpack.c.l.b16 %v1812
    %v1857 = vunpack.c.h.b16 %v1812
    %v1858 = vunpack.c.l.b16 %v1813
    %v1859 = vunpack.c.h.b16 %v1813
    %v1860 = vpack.c.b16 %v1848, %v1844
    %v1861 = vpack.c.b16 %v1849, %v1845
    %v1862 = vpack.c.b16 %v1850, %v1846
    %v1863 = vpack.c.b16 %v1851, %v1847
    %v1864 = vpack.c.b16 %v1856, %v1852
    %v1865 = vpack.c.b16 %v1857, %v1853
    %v1866 = vpack.c.b16 %v1858, %v1854
    %v1867 = vpack.c.b16 %v1859, %v1855
    %1876 = vmatprep.subr.bf16.mxu0 %v1861
    %1877 = vmatpush1.bf16.msra.mxu0 %v1860
    %1878 = vmatprep.subr.bf16.mxu0 %v1865
    %1879 = vmatpush1.bf16.msra.mxu0 %v1864
    %1880 = vmatprep.subr.bf16.mxu0 0
    %1881 = vmatpush1.bf16.msra.mxu0 0
    %1882 = vmatprep.subr.bf16.mxu0 0
    %1883 = vmatpush1.bf16.msra.mxu0 0
    %1884 = vmatprep.subr.bf16.mxu0 0
    %1885 = vmatpush1.bf16.msra.mxu0 0
    %1886 = vmatprep.subr.bf16.mxu0 0
    %1887 = vmatpush1.bf16.msra.mxu0 0
    %1888 = vmatprep.subr.bf16.mxu0 0
    %1889 = vmatpush1.bf16.msra.mxu0 0
    %1890 = vmatprep.subr.bf16.mxu0 0
    %1891 = vmatpush1.bf16.msra.mxu0 0
    %1892 = vmatprep.subr.bf16.mxu0 0
    %1893 = vmatpush1.bf16.msra.mxu0 0
    %1894 = vmatprep.subr.bf16.mxu0 0
    %1895 = vmatpush1.bf16.msra.mxu0 0
    %1896 = vmatprep.subr.bf16.mxu0 0
    %1897 = vmatpush1.bf16.msra.mxu0 0
    %1898 = vmatprep.subr.bf16.mxu0 0
    %1899 = vmatpush1.bf16.msra.mxu0 0
    %1900 = vmatprep.subr.bf16.mxu0 0
    %1901 = vmatpush1.bf16.msra.mxu0 0
    %1902 = vmatprep.subr.bf16.mxu0 0
    %1903 = vmatpush1.bf16.msra.mxu0 0
    %1904 = vmatprep.subr.bf16.mxu0 0
    %1905 = vmatpush1.bf16.msra.mxu0 0
    %1906 = vmatprep.subr.bf16.mxu0 0
    %1907 = vmatpush1.bf16.msra.mxu0 0
    %1908 = vmatprep.mubr.bf16.mxu0 0
    %1909 = vmatmul.mubr.bf16.gmra.mrb[0].mxu0 %v1642
    %v1910 = vpop.f32.mrb[0].mxu0
    %v1911 = vadd.f32 %v1819, %v1910
    %v1912 = vpop.f32.mrb[0].mxu0
    %v1913 = vadd.f32 %v1823, %v1912
    %v1914 = vpop.f32.mrb[0].mxu0
    %v1915 = vadd.f32 %v1819, %v1914
    %v1916 = vpop.f32.mrb[0].mxu0
    %v1917 = vadd.f32 %v1823, %v1916
    %1918 = vdwg.mxu0
    %1919 = vmatprep.subr.bf16.mxu0 %v1863
    %1920 = vmatpush1.bf16.msra.mxu0 %v1862
    %1921 = vmatprep.subr.bf16.mxu0 %v1867
    %1922 = vmatpush1.bf16.msra.mxu0 %v1866
    %1923 = vmatprep.subr.bf16.mxu0 0
    %1924 = vmatpush1.bf16.msra.mxu0 0
    %1925 = vmatprep.subr.bf16.mxu0 0
    %1926 = vmatpush1.bf16.msra.mxu0 0
    %1927 = vmatprep.subr.bf16.mxu0 0
    %1928 = vmatpush1.bf16.msra.mxu0 0
    %1929 = vmatprep.subr.bf16.mxu0 0
    %1930 = vmatpush1.bf16.msra.mxu0 0
    %1931 = vmatprep.subr.bf16.mxu0 0
    %1932 = vmatpush1.bf16.msra.mxu0 0
    %1933 = vmatprep.subr.bf16.mxu0 0
    %1934 = vmatpush1.bf16.msra.mxu0 0
    %1935 = vmatprep.subr.bf16.mxu0 0
    %1936 = vmatpush1.bf16.msra.mxu0 0
    %1937 = vmatprep.subr.bf16.mxu0 0
    %1938 = vmatpush1.bf16.msra.mxu0 0
    %1939 = vmatprep.subr.bf16.mxu0 0
    %1940 = vmatpush1.bf16.msra.mxu0 0
    %1941 = vmatprep.subr.bf16.mxu0 0
    %1942 = vmatpush1.bf16.msra.mxu0 0
    %1943 = vmatprep.subr.bf16.mxu0 0
    %1944 = vmatpush1.bf16.msra.mxu0 0
    %1945 = vmatprep.subr.bf16.mxu0 0
    %1946 = vmatpush1.bf16.msra.mxu0 0
    %1947 = vmatprep.subr.bf16.mxu0 0
    %1948 = vmatpush1.bf16.msra.mxu0 0
    %1949 = vmatprep.subr.bf16.mxu0 0
    %1950 = vmatpush1.bf16.msra.mxu0 0
    %1951 = vmatprep.mubr.bf16.mxu0 0
    %1952 = vmatmul.mubr.bf16.gmra.mrb[0].mxu0 %v1642
    %v1953 = vpop.f32.mrb[0].mxu0
    %v1954 = vadd.f32 %v1827, %v1953
    %v1955 = vpop.f32.mrb[0].mxu0
    %v1956 = vadd.f32 %v1831, %v1955
    %v1957 = vpop.f32.mrb[0].mxu0
    %v1958 = vadd.f32 %v1827, %v1957
    %v1959 = vpop.f32.mrb[0].mxu0
    %v1960 = vadd.f32 %v1831, %v1959
    %1961 = vdwg.mxu0
    %v1962 = vmax.f32 %v1911, 0.0
    %v1963 = vmax.f32 %v1913, 0.0
    %v1964 = vmax.f32 %v1954, 0.0
    %v1965 = vmax.f32 %v1956, 0.0
    %v1966 = vmax.f32 %v1915, 0.0
    %v1967 = vmax.f32 %v1917, 0.0
    %v1968 = vmax.f32 %v1958, 0.0
    %v1969 = vmax.f32 %v1960, 0.0
    %v1970 = vpack.c.bf16 %v1966, %v1962
    %v1971 = vpack.c.bf16 %v1967, %v1963
    %v1972 = vpack.c.bf16 %v1968, %v1964
    %v1973 = vpack.c.bf16 %v1969, %v1965
    %v1974 = vld [vmem:[%s4 + $0x100] sm:$0xf]
    %v1975 = vld [vmem:[%s4 + $0x104] sm:$0xf]
    %v1976 = vld [vmem:[%s4 + $0x108] sm:$0xf]
    %v1977 = vld [vmem:[%s4 + $0x10c] sm:$0xf]
    %v1978 = vld [vmem:[%s4 + $0x110] sm:$0xf]
    %v1979 = vld [vmem:[%s4 + $0x114] sm:$0xf]
    %v1980 = vld [vmem:[%s4 + $0x118] sm:$0xf]
    %v1981 = vld [vmem:[%s4 + $0x11c] sm:$0xf]
    %v1982 = vld [vmem:[%s4 + $0x120] sm:$0xf]
    %v1983 = vld [vmem:[%s4 + $0x124] sm:$0xf]
    %v1984 = vld [vmem:[%s4 + $0x128] sm:$0xf]
    %v1985 = vld [vmem:[%s4 + $0x12c] sm:$0xf]
    %v1986 = vld [vmem:[%s4 + $0x130] sm:$0xf]
    %v1987 = vld [vmem:[%s4 + $0x134] sm:$0xf]
    %v1988 = vld [vmem:[%s4 + $0x138] sm:$0xf]
    %v1989 = vld [vmem:[%s4 + $0x13c] sm:$0xf]
    %v1990 = vld [vmem:[%s4 + $0x140] sm:$0xf]
    %v1991 = vld [vmem:[%s4 + $0x144] sm:$0xf]
    %v1992 = vld [vmem:[%s4 + $0x148] sm:$0xf]
    %v1993 = vld [vmem:[%s4 + $0x14c] sm:$0xf]
    %v1994 = vld [vmem:[%s4 + $0x150] sm:$0xf]
    %v1995 = vld [vmem:[%s4 + $0x154] sm:$0xf]
    %v1996 = vld [vmem:[%s4 + $0x158] sm:$0xf]
    %v1997 = vld [vmem:[%s4 + $0x15c] sm:$0xf]
    %v1998 = vld [vmem:[%s4 + $0x160] sm:$0xf]
    %v1999 = vld [vmem:[%s4 + $0x164] sm:$0xf]
    %v2000 = vld [vmem:[%s4 + $0x168] sm:$0xf]
    %v2001 = vld [vmem:[%s4 + $0x16c] sm:$0xf]
    %v2002 = vld [vmem:[%s4 + $0x170] sm:$0xf]
    %v2003 = vld [vmem:[%s4 + $0x174] sm:$0xf]
    %v2004 = vld [vmem:[%s4 + $0x178] sm:$0xf]
    %v2005 = vld [vmem:[%s4 + $0x17c] sm:$0xf]
    %v2006 = vld [vmem:[%s4 + $0x180] sm:$0xf]
    %v2007 = vld [vmem:[%s4 + $0x184] sm:$0xf]
    %v2008 = vld [vmem:[%s4 + $0x188] sm:$0xf]
    %v2009 = vld [vmem:[%s4 + $0x18c] sm:$0xf]
    %v2010 = vld [vmem:[%s4 + $0x190] sm:$0xf]
    %v2011 = vld [vmem:[%s4 + $0x194] sm:$0xf]
    %v2012 = vld [vmem:[%s4 + $0x198] sm:$0xf]
    %v2013 = vld [vmem:[%s4 + $0x19c] sm:$0xf]
    %v2014 = vld [vmem:[%s4 + $0x1a0] sm:$0xf]
    %v2015 = vld [vmem:[%s4 + $0x1a4] sm:$0xf]
    %v2016 = vld [vmem:[%s4 + $0x1a8] sm:$0xf]
    %v2017 = vld [vmem:[%s4 + $0x1ac] sm:$0xf]
    %v2018 = vld [vmem:[%s4 + $0x1b0] sm:$0xf]
    %v2019 = vld [vmem:[%s4 + $0x1b4] sm:$0xf]
    %v2020 = vld [vmem:[%s4 + $0x1b8] sm:$0xf]
    %v2021 = vld [vmem:[%s4 + $0x1bc] sm:$0xf]
    %v2022 = vld [vmem:[%s4 + $0x1c0] sm:$0xf]
    %v2023 = vld [vmem:[%s4 + $0x1c4] sm:$0xf]
    %v2024 = vld [vmem:[%s4 + $0x1c8] sm:$0xf]
    %v2025 = vld [vmem:[%s4 + $0x1cc] sm:$0xf]
    %v2026 = vld [vmem:[%s4 + $0x1d0] sm:$0xf]
    %v2027 = vld [vmem:[%s4 + $0x1d4] sm:$0xf]
    %v2028 = vld [vmem:[%s4 + $0x1d8] sm:$0xf]
    %v2029 = vld [vmem:[%s4 + $0x1dc] sm:$0xf]
    %v2030 = vld [vmem:[%s4 + $0x1e0] sm:$0xf]
    %v2031 = vld [vmem:[%s4 + $0x1e4] sm:$0xf]
    %v2032 = vld [vmem:[%s4 + $0x1e8] sm:$0xf]
    %v2033 = vld [vmem:[%s4 + $0x1ec] sm:$0xf]
    %v2034 = vld [vmem:[%s4 + $0x1f0] sm:$0xf]
    %v2035 = vld [vmem:[%s4 + $0x1f4] sm:$0xf]
    %v2036 = vld [vmem:[%s4 + $0x1f8] sm:$0xf]
    %v2037 = vld [vmem:[%s4 + $0x1fc] sm:$0xf]
    %v2102 = vunpack.c.l.b16 %v1974
    %v2103 = vunpack.c.l.b16 %v1975
    %v2104 = vunpack.c.l.b16 %v1976
    %v2105 = vunpack.c.l.b16 %v1977
    %v2106 = vunpack.c.l.b16 %v1978
    %v2107 = vunpack.c.l.b16 %v1979
    %v2108 = vunpack.c.l.b16 %v1980
    %v2109 = vunpack.c.l.b16 %v1981
    %v2110 = vunpack.c.l.b16 %v1982
    %v2111 = vunpack.c.l.b16 %v1983
    %v2112 = vunpack.c.l.b16 %v1984
    %v2113 = vunpack.c.l.b16 %v1985
    %v2114 = vunpack.c.l.b16 %v1986
    %v2115 = vunpack.c.l.b16 %v1987
    %v2116 = vunpack.c.l.b16 %v1988
    %v2117 = vunpack.c.l.b16 %v1989
    %v2118 = vunpack.c.l.b16 %v1990
    %v2119 = vunpack.c.l.b16 %v1991
    %v2120 = vunpack.c.l.b16 %v1992
    %v2121 = vunpack.c.l.b16 %v1993
    %v2122 = vunpack.c.l.b16 %v1994
    %v2123 = vunpack.c.l.b16 %v1995
    %v2124 = vunpack.c.l.b16 %v1996
    %v2125 = vunpack.c.l.b16 %v1997
    %v2126 = vunpack.c.l.b16 %v1998
    %v2127 = vunpack.c.l.b16 %v1999
    %v2128 = vunpack.c.l.b16 %v2000
    %v2129 = vunpack.c.l.b16 %v2001
    %v2130 = vunpack.c.l.b16 %v2002
    %v2131 = vunpack.c.l.b16 %v2003
    %v2132 = vunpack.c.l.b16 %v2004
    %v2133 = vunpack.c.l.b16 %v2005
    %v2134 = vunpack.c.l.b16 %v2006
    %v2135 = vunpack.c.l.b16 %v2007
    %v2136 = vunpack.c.l.b16 %v2008
    %v2137 = vunpack.c.l.b16 %v2009
    %v2138 = vunpack.c.l.b16 %v2010
    %v2139 = vunpack.c.l.b16 %v2011
    %v2140 = vunpack.c.l.b16 %v2012
    %v2141 = vunpack.c.l.b16 %v2013
    %v2142 = vunpack.c.l.b16 %v2014
    %v2143 = vunpack.c.l.b16 %v2015
    %v2144 = vunpack.c.l.b16 %v2016
    %v2145 = vunpack.c.l.b16 %v2017
    %v2146 = vunpack.c.l.b16 %v2018
    %v2147 = vunpack.c.l.b16 %v2019
    %v2148 = vunpack.c.l.b16 %v2020
    %v2149 = vunpack.c.l.b16 %v2021
    %v2150 = vunpack.c.l.b16 %v2022
    %v2151 = vunpack.c.l.b16 %v2023
    %v2152 = vunpack.c.l.b16 %v2024
    %v2153 = vunpack.c.l.b16 %v2025
    %v2154 = vunpack.c.l.b16 %v2026
    %v2155 = vunpack.c.l.b16 %v2027
    %v2156 = vunpack.c.l.b16 %v2028
    %v2157 = vunpack.c.l.b16 %v2029
    %v2158 = vunpack.c.l.b16 %v2030
    %v2159 = vunpack.c.l.b16 %v2031
    %v2160 = vunpack.c.l.b16 %v2032
    %v2161 = vunpack.c.l.b16 %v2033
    %v2162 = vunpack.c.l.b16 %v2034
    %v2163 = vunpack.c.l.b16 %v2035
    %v2164 = vunpack.c.l.b16 %v2036
    %v2165 = vunpack.c.l.b16 %v2037
    %v2166 = vpack.c.b16 %v2103, %v2102
    %v2167 = vpack.c.b16 %v2105, %v2104
    %v2168 = vpack.c.b16 %v2107, %v2106
    %v2169 = vpack.c.b16 %v2109, %v2108
    %v2170 = vpack.c.b16 %v2111, %v2110
    %v2171 = vpack.c.b16 %v2113, %v2112
    %v2172 = vpack.c.b16 %v2115, %v2114
    %v2173 = vpack.c.b16 %v2117, %v2116
    %v2174 = vpack.c.b16 %v2119, %v2118
    %v2175 = vpack.c.b16 %v2121, %v2120
    %v2176 = vpack.c.b16 %v2123, %v2122
    %v2177 = vpack.c.b16 %v2125, %v2124
    %v2178 = vpack.c.b16 %v2127, %v2126
    %v2179 = vpack.c.b16 %v2129, %v2128
    %v2180 = vpack.c.b16 %v2131, %v2130
    %v2181 = vpack.c.b16 %v2133, %v2132
    %v2182 = vpack.c.b16 %v2135, %v2134
    %v2183 = vpack.c.b16 %v2137, %v2136
    %v2184 = vpack.c.b16 %v2139, %v2138
    %v2185 = vpack.c.b16 %v2141, %v2140
    %v2186 = vpack.c.b16 %v2143, %v2142
    %v2187 = vpack.c.b16 %v2145, %v2144
    %v2188 = vpack.c.b16 %v2147, %v2146
    %v2189 = vpack.c.b16 %v2149, %v2148
    %v2190 = vpack.c.b16 %v2151, %v2150
    %v2191 = vpack.c.b16 %v2153, %v2152
    %v2192 = vpack.c.b16 %v2155, %v2154
    %v2193 = vpack.c.b16 %v2157, %v2156
    %v2194 = vpack.c.b16 %v2159, %v2158
    %v2195 = vpack.c.b16 %v2161, %v2160
    %v2196 = vpack.c.b16 %v2163, %v2162
    %v2197 = vpack.c.b16 %v2165, %v2164
    %2230 = vmatprep.subr.bf16.mxu0 0
    %2231 = vmatpush1.bf16.msra.mxu0 %v2166
    %2232 = vmatprep.subr.bf16.mxu0 0
    %2233 = vmatpush1.bf16.msra.mxu0 %v2167
    %2234 = vmatprep.subr.bf16.mxu0 0
    %2235 = vmatpush1.bf16.msra.mxu0 %v2168
    %2236 = vmatprep.subr.bf16.mxu0 0
    %2237 = vmatpush1.bf16.msra.mxu0 %v2169
    %2238 = vmatprep.subr.bf16.mxu0 0
    %2239 = vmatpush1.bf16.msra.mxu0 %v2170
    %2240 = vmatprep.subr.bf16.mxu0 0
    %2241 = vmatpush1.bf16.msra.mxu0 %v2171
    %2242 = vmatprep.subr.bf16.mxu0 0
    %2243 = vmatpush1.bf16.msra.mxu0 %v2172
    %2244 = vmatprep.subr.bf16.mxu0 0
    %2245 = vmatpush1.bf16.msra.mxu0 %v2173
    %2246 = vmatprep.subr.bf16.mxu0 0
    %2247 = vmatpush1.bf16.msra.mxu0 %v2174
    %2248 = vmatprep.subr.bf16.mxu0 0
    %2249 = vmatpush1.bf16.msra.mxu0 %v2175
    %2250 = vmatprep.subr.bf16.mxu0 0
    %2251 = vmatpush1.bf16.msra.mxu0 %v2176
    %2252 = vmatprep.subr.bf16.mxu0 0
    %2253 = vmatpush1.bf16.msra.mxu0 %v2177
    %2254 = vmatprep.subr.bf16.mxu0 0
    %2255 = vmatpush1.bf16.msra.mxu0 %v2178
    %2256 = vmatprep.subr.bf16.mxu0 0
    %2257 = vmatpush1.bf16.msra.mxu0 %v2179
    %2258 = vmatprep.subr.bf16.mxu0 0
    %2259 = vmatpush1.bf16.msra.mxu0 %v2180
    %2260 = vmatprep.subr.bf16.mxu0 0
    %2261 = vmatpush1.bf16.msra.mxu0 %v2181
    %2262 = vmatprep.mubr.bf16.mxu0 %v1971
    %2263 = vmatmul.mubr.bf16.gmra.mrb[0].mxu0 %v1970
    %v2264 = vpop.f32.mrb[0].mxu0
    %v2265 = vadd.f32 0.0, %v2264
    %v2266 = vpop.f32.mrb[0].mxu0
    %v2267 = vpop.f32.mrb[0].mxu0
    %v2268 = vadd.f32 0.0, %v2267
    %v2269 = vpop.f32.mrb[0].mxu0
    %2270 = vdwg.mxu0
    %2271 = vmatprep.subr.bf16.mxu0 0
    %2272 = vmatpush1.bf16.msra.mxu0 %v2182
    %2273 = vmatprep.subr.bf16.mxu0 0
    %2274 = vmatpush1.bf16.msra.mxu0 %v2183
    %2275 = vmatprep.subr.bf16.mxu0 0
    %2276 = vmatpush1.bf16.msra.mxu0 %v2184
    %2277 = vmatprep.subr.bf16.mxu0 0
    %2278 = vmatpush1.bf16.msra.mxu0 %v2185
    %2279 = vmatprep.subr.bf16.mxu0 0
    %2280 = vmatpush1.bf16.msra.mxu0 %v2186
    %2281 = vmatprep.subr.bf16.mxu0 0
    %2282 = vmatpush1.bf16.msra.mxu0 %v2187
    %2283 = vmatprep.subr.bf16.mxu0 0
    %2284 = vmatpush1.bf16.msra.mxu0 %v2188
    %2285 = vmatprep.subr.bf16.mxu0 0
    %2286 = vmatpush1.bf16.msra.mxu0 %v2189
    %2287 = vmatprep.subr.bf16.mxu0 0
    %2288 = vmatpush1.bf16.msra.mxu0 %v2190
    %2289 = vmatprep.subr.bf16.mxu0 0
    %2290 = vmatpush1.bf16.msra.mxu0 %v2191
    %2291 = vmatprep.subr.bf16.mxu0 0
    %2292 = vmatpush1.bf16.msra.mxu0 %v2192
    %2293 = vmatprep.subr.bf16.mxu0 0
    %2294 = vmatpush1.bf16.msra.mxu0 %v2193
    %2295 = vmatprep.subr.bf16.mxu0 0
    %2296 = vmatpush1.bf16.msra.mxu0 %v2194
    %2297 = vmatprep.subr.bf16.mxu0 0
    %2298 = vmatpush1.bf16.msra.mxu0 %v2195
    %2299 = vmatprep.subr.bf16.mxu0 0
    %2300 = vmatpush1.bf16.msra.mxu0 %v2196
    %2301 = vmatprep.subr.bf16.mxu0 0
    %2302 = vmatpush1.bf16.msra.mxu0 %v2197
    %2303 = vmatprep.mubr.bf16.mxu0 %v1973
    %2304 = vmatmul.mubr.bf16.gmra.mrb[0].mxu0 %v1972
    %v2305 = vpop.f32.mrb[0].mxu0
    %v2306 = vadd.f32 %v2265, %v2305
    %v2307 = vpop.f32.mrb[0].mxu0
    %v2308 = vpop.f32.mrb[0].mxu0
    %v2309 = vadd.f32 %v2268, %v2308
    %v2310 = vpop.f32.mrb[0].mxu0
    %2311 = vdwg.mxu0
    %v2376 = vunpack.c.l.b16 %v1742
    %v2377 = vunpack.c.l.b16 %v1743
    %v2378 = vunpack.c.l.b16 %v1744
    %v2379 = vunpack.c.l.b16 %v1745
    %v2380 = vunpack.c.l.b16 %v1746
    %v2381 = vunpack.c.l.b16 %v1747
    %v2382 = vunpack.c.l.b16 %v1748
    %v2383 = vunpack.c.l.b16 %v1749
    %v2384 = vunpack.c.l.b16 %v1750
    %v2385 = vunpack.c.l.b16 %v1751
    %v2386 = vunpack.c.l.b16 %v1752
    %v2387 = vunpack.c.l.b16 %v1753
    %v2388 = vunpack.c.l.b16 %v1754
    %v2389 = vunpack.c.l.b16 %v1755
    %v2390 = vunpack.c.l.b16 %v1756
    %v2391 = vunpack.c.l.b16 %v1757
    %v2392 = vunpack.c.l.b16 %v1758
    %v2393 = vunpack.c.l.b16 %v1759
    %v2394 = vunpack.c.l.b16 %v1760
    %v2395 = vunpack.c.l.b16 %v1761
    %v2396 = vunpack.c.l.b16 %v1762
    %v2397 = vunpack.c.l.b16 %v1763
    %v2398 = vunpack.c.l.b16 %v1764
    %v2399 = vunpack.c.l.b16 %v1765
    %v2400 = vunpack.c.l.b16 %v1766
    %v2401 = vunpack.c.l.b16 %v1767
    %v2402 = vunpack.c.l.b16 %v1768
    %v2403 = vunpack.c.l.b16 %v1769
    %v2404 = vunpack.c.l.b16 %v1770
    %v2405 = vunpack.c.l.b16 %v1771
    %v2406 = vunpack.c.l.b16 %v1772
    %v2407 = vunpack.c.l.b16 %v1773
    %v2408 = vunpack.c.l.b16 %v1774
    %v2409 = vunpack.c.l.b16 %v1775
    %v2410 = vunpack.c.l.b16 %v1776
    %v2411 = vunpack.c.l.b16 %v1777
    %v2412 = vunpack.c.l.b16 %v1778
    %v2413 = vunpack.c.l.b16 %v1779
    %v2414 = vunpack.c.l.b16 %v1780
    %v2415 = vunpack.c.l.b16 %v1781
    %v2416 = vunpack.c.l.b16 %v1782
    %v2417 = vunpack.c.l.b16 %v1783
    %v2418 = vunpack.c.l.b16 %v1784
    %v2419 = vunpack.c.l.b16 %v1785
    %v2420 = vunpack.c.l.b16 %v1786
    %v2421 = vunpack.c.l.b16 %v1787
    %v2422 = vunpack.c.l.b16 %v1788
    %v2423 = vunpack.c.l.b16 %v1789
    %v2424 = vunpack.c.l.b16 %v1790
    %v2425 = vunpack.c.l.b16 %v1791
    %v2426 = vunpack.c.l.b16 %v1792
    %v2427 = vunpack.c.l.b16 %v1793
    %v2428 = vunpack.c.l.b16 %v1794
    %v2429 = vunpack.c.l.b16 %v1795
    %v2430 = vunpack.c.l.b16 %v1796
    %v2431 = vunpack.c.l.b16 %v1797
    %v2432 = vunpack.c.l.b16 %v1798
    %v2433 = vunpack.c.l.b16 %v1799
    %v2434 = vunpack.c.l.b16 %v1800
    %v2435 = vunpack.c.l.b16 %v1801
    %v2436 = vunpack.c.l.b16 %v1802
    %v2437 = vunpack.c.l.b16 %v1803
    %v2438 = vunpack.c.l.b16 %v1804
    %v2439 = vunpack.c.l.b16 %v1805
    %v2440 = vpack.c.b16 %v2377, %v2376
    %v2441 = vpack.c.b16 %v2379, %v2378
    %v2442 = vpack.c.b16 %v2381, %v2380
    %v2443 = vpack.c.b16 %v2383, %v2382
    %v2444 = vpack.c.b16 %v2385, %v2384
    %v2445 = vpack.c.b16 %v2387, %v2386
    %v2446 = vpack.c.b16 %v2389, %v2388
    %v2447 = vpack.c.b16 %v2391, %v2390
    %v2448 = vpack.c.b16 %v2393, %v2392
    %v2449 = vpack.c.b16 %v2395, %v2394
    %v2450 = vpack.c.b16 %v2397, %v2396
    %v2451 = vpack.c.b16 %v2399, %v2398
    %v2452 = vpack.c.b16 %v2401, %v2400
    %v2453 = vpack.c.b16 %v2403, %v2402
    %v2454 = vpack.c.b16 %v2405, %v2404
    %v2455 = vpack.c.b16 %v2407, %v2406
    %v2456 = vpack.c.b16 %v2409, %v2408
    %v2457 = vpack.c.b16 %v2411, %v2410
    %v2458 = vpack.c.b16 %v2413, %v2412
    %v2459 = vpack.c.b16 %v2415, %v2414
    %v2460 = vpack.c.b16 %v2417, %v2416
    %v2461 = vpack.c.b16 %v2419, %v2418
    %v2462 = vpack.c.b16 %v2421, %v2420
    %v2463 = vpack.c.b16 %v2423, %v2422
    %v2464 = vpack.c.b16 %v2425, %v2424
    %v2465 = vpack.c.b16 %v2427, %v2426
    %v2466 = vpack.c.b16 %v2429, %v2428
    %v2467 = vpack.c.b16 %v2431, %v2430
    %v2468 = vpack.c.b16 %v2433, %v2432
    %v2469 = vpack.c.b16 %v2435, %v2434
    %v2470 = vpack.c.b16 %v2437, %v2436
    %v2471 = vpack.c.b16 %v2439, %v2438
    %2504 = vmatprep.subr.bf16.mxu0 0
    %2505 = vmatpush1.bf16.msra.mxu0 %v2440
    %2506 = vmatprep.subr.bf16.mxu0 0
    %2507 = vmatpush1.bf16.msra.mxu0 %v2441
    %2508 = vmatprep.subr.bf16.mxu0 0
    %2509 = vmatpush1.bf16.msra.mxu0 %v2442
    %2510 = vmatprep.subr.bf16.mxu0 0
    %2511 = vmatpush1.bf16.msra.mxu0 %v2443
    %2512 = vmatprep.subr.bf16.mxu0 0
    %2513 = vmatpush1.bf16.msra.mxu0 %v2444
    %2514 = vmatprep.subr.bf16.mxu0 0
    %2515 = vmatpush1.bf16.msra.mxu0 %v2445
    %2516 = vmatprep.subr.bf16.mxu0 0
    %2517 = vmatpush1.bf16.msra.mxu0 %v2446
    %2518 = vmatprep.subr.bf16.mxu0 0
    %2519 = vmatpush1.bf16.msra.mxu0 %v2447
    %2520 = vmatprep.subr.bf16.mxu0 0
    %2521 = vmatpush1.bf16.msra.mxu0 %v2448
    %2522 = vmatprep.subr.bf16.mxu0 0
    %2523 = vmatpush1.bf16.msra.mxu0 %v2449
    %2524 = vmatprep.subr.bf16.mxu0 0
    %2525 = vmatpush1.bf16.msra.mxu0 %v2450
    %2526 = vmatprep.subr.bf16.mxu0 0
    %2527 = vmatpush1.bf16.msra.mxu0 %v2451
    %2528 = vmatprep.subr.bf16.mxu0 0
    %2529 = vmatpush1.bf16.msra.mxu0 %v2452
    %2530 = vmatprep.subr.bf16.mxu0 0
    %2531 = vmatpush1.bf16.msra.mxu0 %v2453
    %2532 = vmatprep.subr.bf16.mxu0 0
    %2533 = vmatpush1.bf16.msra.mxu0 %v2454
    %2534 = vmatprep.subr.bf16.mxu0 0
    %2535 = vmatpush1.bf16.msra.mxu0 %v2455
    %2536 = vmatprep.mubr.bf16.mxu0 %v1739
    %2537 = vmatmul.mubr.bf16.gmra.mrb[0].mxu0 %v1738
    %v2538 = vpop.f32.mrb[0].mxu0
    %v2539 = vadd.f32 %v2306, %v2538
    %v2540 = vpop.f32.mrb[0].mxu0
    %v2541 = vpop.f32.mrb[0].mxu0
    %v2542 = vadd.f32 %v2309, %v2541
    %v2543 = vpop.f32.mrb[0].mxu0
    %2544 = vdwg.mxu0
    %2545 = vmatprep.subr.bf16.mxu0 0
    %2546 = vmatpush1.bf16.msra.mxu0 %v2456
    %2547 = vmatprep.subr.bf16.mxu0 0
    %2548 = vmatpush1.bf16.msra.mxu0 %v2457
    %2549 = vmatprep.subr.bf16.mxu0 0
    %2550 = vmatpush1.bf16.msra.mxu0 %v2458
    %2551 = vmatprep.subr.bf16.mxu0 0
    %2552 = vmatpush1.bf16.msra.mxu0 %v2459
    %2553 = vmatprep.subr.bf16.mxu0 0
    %2554 = vmatpush1.bf16.msra.mxu0 %v2460
    %2555 = vmatprep.subr.bf16.mxu0 0
    %2556 = vmatpush1.bf16.msra.mxu0 %v2461
    %2557 = vmatprep.subr.bf16.mxu0 0
    %2558 = vmatpush1.bf16.msra.mxu0 %v2462
    %2559 = vmatprep.subr.bf16.mxu0 0
    %2560 = vmatpush1.bf16.msra.mxu0 %v2463
    %2561 = vmatprep.subr.bf16.mxu0 0
    %2562 = vmatpush1.bf16.msra.mxu0 %v2464
    %2563 = vmatprep.subr.bf16.mxu0 0
    %2564 = vmatpush1.bf16.msra.mxu0 %v2465
    %2565 = vmatprep.subr.bf16.mxu0 0
    %2566 = vmatpush1.bf16.msra.mxu0 %v2466
    %2567 = vmatprep.subr.bf16.mxu0 0
    %2568 = vmatpush1.bf16.msra.mxu0 %v2467
    %2569 = vmatprep.subr.bf16.mxu0 0
    %2570 = vmatpush1.bf16.msra.mxu0 %v2468
    %2571 = vmatprep.subr.bf16.mxu0 0
    %2572 = vmatpush1.bf16.msra.mxu0 %v2469
    %2573 = vmatprep.subr.bf16.mxu0 0
    %2574 = vmatpush1.bf16.msra.mxu0 %v2470
    %2575 = vmatprep.subr.bf16.mxu0 0
    %2576 = vmatpush1.bf16.msra.mxu0 %v2471
    %2577 = vmatprep.mubr.bf16.mxu0 %v1741
    %2578 = vmatmul.mubr.bf16.gmra.mrb[0].mxu0 %v1740
    %v2579 = vpop.f32.mrb[0].mxu0
    %v2580 = vadd.f32 %v2539, %v2579
    %v2581 = vpop.f32.mrb[0].mxu0
    %v2582 = vpop.f32.mrb[0].mxu0
    %v2583 = vadd.f32 %v2542, %v2582
    %v2584 = vpop.f32.mrb[0].mxu0
    %2585 = vdwg.mxu0
    %v2586 = vld [vmem:[%s3 + $0x20] sm:$0xff]
    %v2587 = vld [vmem:[%s3 + $0x28] sm:$0xff]
    %v2588 = vld [vmem:[%s3 + $0x60] sm:$0xff]
    %v2589 = vld [vmem:[%s3 + $0x68] sm:$0xff]
    %v2590 = vld [vmem:[%s3 + $0xa0] sm:$0xff]
    %v2591 = vld [vmem:[%s3 + $0xa8] sm:$0xff]
    %v2592 = vld [vmem:[%s3 + $0xe0] sm:$0xff]
    %v2593 = vld [vmem:[%s3 + $0xe8] sm:$0xff]
    %v2594 = vld [vmem:[%s5 + $0x8] sm:$0xf]
    %v2596 = vlaneseq
    %v2597 = vshrl.u32 %v2596, 7
    %v2598 = vsub.s32 0, %v2597
    %v2599 = vrot.slane %v2594, %v2598
    %v2600 = vlaneseq
    %v2601 = vshrl.u32 %v2600, 7
    %v2602 = vsub.s32 1, %v2601
    %v2603 = vrot.slane %v2594, %v2602
    %v2604 = vlaneseq
    %v2605 = vshrl.u32 %v2604, 7
    %v2606 = vsub.s32 2, %v2605
    %v2607 = vrot.slane %v2594, %v2606
    %v2608 = vlaneseq
    %v2609 = vshrl.u32 %v2608, 7
    %v2610 = vsub.s32 3, %v2609
    %v2611 = vrot.slane %v2594, %v2610
    %v2624 = vunpack.c.l.b16 %v2586
    %v2625 = vunpack.c.h.b16 %v2586
    %v2626 = vunpack.c.l.b16 %v2587
    %v2627 = vunpack.c.h.b16 %v2587
    %v2628 = vunpack.c.l.b16 %v2588
    %v2629 = vunpack.c.h.b16 %v2588
    %v2630 = vunpack.c.l.b16 %v2589
    %v2631 = vunpack.c.h.b16 %v2589
    %v2632 = vunpack.c.l.b16 %v2590
    %v2633 = vunpack.c.h.b16 %v2590
    %v2634 = vunpack.c.l.b16 %v2591
    %v2635 = vunpack.c.h.b16 %v2591
    %v2636 = vunpack.c.l.b16 %v2592
    %v2637 = vunpack.c.h.b16 %v2592
    %v2638 = vunpack.c.l.b16 %v2593
    %v2639 = vunpack.c.h.b16 %v2593
    %v2640 = vpack.c.b16 %v2628, %v2624
    %v2641 = vpack.c.b16 %v2629, %v2625
    %v2642 = vpack.c.b16 %v2630, %v2626
    %v2643 = vpack.c.b16 %v2631, %v2627
    %v2644 = vpack.c.b16 %v2636, %v2632
    %v2645 = vpack.c.b16 %v2637, %v2633
    %v2646 = vpack.c.b16 %v2638, %v2634
    %v2647 = vpack.c.b16 %v2639, %v2635
    %2656 = vmatprep.subr.bf16.mxu0 %v2641
    %2657 = vmatpush1.bf16.msra.mxu0 %v2640
    %2658 = vmatprep.subr.bf16.mxu0 %v2645
    %2659 = vmatpush1.bf16.msra.mxu0 %v2644
    %2660 = vmatprep.subr.bf16.mxu0 0
    %2661 = vmatpush1.bf16.msra.mxu0 0
    %2662 = vmatprep.subr.bf16.mxu0 0
    %2663 = vmatpush1.bf16.msra.mxu0 0
    %2664 = vmatprep.subr.bf16.mxu0 0
    %2665 = vmatpush1.bf16.msra.mxu0 0
    %2666 = vmatprep.subr.bf16.mxu0 0
    %2667 = vmatpush1.bf16.msra.mxu0 0
    %2668 = vmatprep.subr.bf16.mxu0 0
    %2669 = vmatpush1.bf16.msra.mxu0 0
    %2670 = vmatprep.subr.bf16.mxu0 0
    %2671 = vmatpush1.bf16.msra.mxu0 0
    %2672 = vmatprep.subr.bf16.mxu0 0
    %2673 = vmatpush1.bf16.msra.mxu0 0
    %2674 = vmatprep.subr.bf16.mxu0 0
    %2675 = vmatpush1.bf16.msra.mxu0 0
    %2676 = vmatprep.subr.bf16.mxu0 0
    %2677 = vmatpush1.bf16.msra.mxu0 0
    %2678 = vmatprep.subr.bf16.mxu0 0
    %2679 = vmatpush1.bf16.msra.mxu0 0
    %2680 = vmatprep.subr.bf16.mxu0 0
    %2681 = vmatpush1.bf16.msra.mxu0 0
    %2682 = vmatprep.subr.bf16.mxu0 0
    %2683 = vmatpush1.bf16.msra.mxu0 0
    %2684 = vmatprep.subr.bf16.mxu0 0
    %2685 = vmatpush1.bf16.msra.mxu0 0
    %2686 = vmatprep.subr.bf16.mxu0 0
    %2687 = vmatpush1.bf16.msra.mxu0 0
    %2688 = vmatprep.mubr.bf16.mxu0 0
    %2689 = vmatmul.mubr.bf16.gmra.mrb[0].mxu0 %v1642
    %v2690 = vpop.f32.mrb[0].mxu0
    %v2691 = vadd.f32 %v2599, %v2690
    %v2692 = vpop.f32.mrb[0].mxu0
    %v2693 = vadd.f32 %v2603, %v2692
    %v2694 = vpop.f32.mrb[0].mxu0
    %v2695 = vadd.f32 %v2599, %v2694
    %v2696 = vpop.f32.mrb[0].mxu0
    %v2697 = vadd.f32 %v2603, %v2696
    %2698 = vdwg.mxu0
    %2699 = vmatprep.subr.bf16.mxu0 %v2643
    %2700 = vmatpush1.bf16.msra.mxu0 %v2642
    %2701 = vmatprep.subr.bf16.mxu0 %v2647
    %2702 = vmatpush1.bf16.msra.mxu0 %v2646
    %2703 = vmatprep.subr.bf16.mxu0 0
    %2704 = vmatpush1.bf16.msra.mxu0 0
    %2705 = vmatprep.subr.bf16.mxu0 0
    %2706 = vmatpush1.bf16.msra.mxu0 0
    %2707 = vmatprep.subr.bf16.mxu0 0
    %2708 = vmatpush1.bf16.msra.mxu0 0
    %2709 = vmatprep.subr.bf16.mxu0 0
    %2710 = vmatpush1.bf16.msra.mxu0 0
    %2711 = vmatprep.subr.bf16.mxu0 0
    %2712 = vmatpush1.bf16.msra.mxu0 0
    %2713 = vmatprep.subr.bf16.mxu0 0
    %2714 = vmatpush1.bf16.msra.mxu0 0
    %2715 = vmatprep.subr.bf16.mxu0 0
    %2716 = vmatpush1.bf16.msra.mxu0 0
    %2717 = vmatprep.subr.bf16.mxu0 0
    %2718 = vmatpush1.bf16.msra.mxu0 0
    %2719 = vmatprep.subr.bf16.mxu0 0
    %2720 = vmatpush1.bf16.msra.mxu0 0
    %2721 = vmatprep.subr.bf16.mxu0 0
    %2722 = vmatpush1.bf16.msra.mxu0 0
    %2723 = vmatprep.subr.bf16.mxu0 0
    %2724 = vmatpush1.bf16.msra.mxu0 0
    %2725 = vmatprep.subr.bf16.mxu0 0
    %2726 = vmatpush1.bf16.msra.mxu0 0
    %2727 = vmatprep.subr.bf16.mxu0 0
    %2728 = vmatpush1.bf16.msra.mxu0 0
    %2729 = vmatprep.subr.bf16.mxu0 0
    %2730 = vmatpush1.bf16.msra.mxu0 0
    %2731 = vmatprep.mubr.bf16.mxu0 0
    %2732 = vmatmul.mubr.bf16.gmra.mrb[0].mxu0 %v1642
    %v2733 = vpop.f32.mrb[0].mxu0
    %v2734 = vadd.f32 %v2607, %v2733
    %v2735 = vpop.f32.mrb[0].mxu0
    %v2736 = vadd.f32 %v2611, %v2735
    %v2737 = vpop.f32.mrb[0].mxu0
    %v2738 = vadd.f32 %v2607, %v2737
    %v2739 = vpop.f32.mrb[0].mxu0
    %v2740 = vadd.f32 %v2611, %v2739
    %2741 = vdwg.mxu0
    %v2742 = vmax.f32 %v2691, 0.0
    %v2743 = vmax.f32 %v2693, 0.0
    %v2744 = vmax.f32 %v2734, 0.0
    %v2745 = vmax.f32 %v2736, 0.0
    %v2746 = vmax.f32 %v2695, 0.0
    %v2747 = vmax.f32 %v2697, 0.0
    %v2748 = vmax.f32 %v2738, 0.0
    %v2749 = vmax.f32 %v2740, 0.0
    %v2750 = vpack.c.bf16 %v2746, %v2742
    %v2751 = vpack.c.bf16 %v2747, %v2743
    %v2752 = vpack.c.bf16 %v2748, %v2744
    %v2753 = vpack.c.bf16 %v2749, %v2745
    %v2754 = vld [vmem:[%s4 + $0x200] sm:$0xf]
    %v2755 = vld [vmem:[%s4 + $0x204] sm:$0xf]
    %v2756 = vld [vmem:[%s4 + $0x208] sm:$0xf]
    %v2757 = vld [vmem:[%s4 + $0x20c] sm:$0xf]
    %v2758 = vld [vmem:[%s4 + $0x210] sm:$0xf]
    %v2759 = vld [vmem:[%s4 + $0x214] sm:$0xf]
    %v2760 = vld [vmem:[%s4 + $0x218] sm:$0xf]
    %v2761 = vld [vmem:[%s4 + $0x21c] sm:$0xf]
    %v2762 = vld [vmem:[%s4 + $0x220] sm:$0xf]
    %v2763 = vld [vmem:[%s4 + $0x224] sm:$0xf]
    %v2764 = vld [vmem:[%s4 + $0x228] sm:$0xf]
    %v2765 = vld [vmem:[%s4 + $0x22c] sm:$0xf]
    %v2766 = vld [vmem:[%s4 + $0x230] sm:$0xf]
    %v2767 = vld [vmem:[%s4 + $0x234] sm:$0xf]
    %v2768 = vld [vmem:[%s4 + $0x238] sm:$0xf]
    %v2769 = vld [vmem:[%s4 + $0x23c] sm:$0xf]
    %v2770 = vld [vmem:[%s4 + $0x240] sm:$0xf]
    %v2771 = vld [vmem:[%s4 + $0x244] sm:$0xf]
    %v2772 = vld [vmem:[%s4 + $0x248] sm:$0xf]
    %v2773 = vld [vmem:[%s4 + $0x24c] sm:$0xf]
    %v2774 = vld [vmem:[%s4 + $0x250] sm:$0xf]
    %v2775 = vld [vmem:[%s4 + $0x254] sm:$0xf]
    %v2776 = vld [vmem:[%s4 + $0x258] sm:$0xf]
    %v2777 = vld [vmem:[%s4 + $0x25c] sm:$0xf]
    %v2778 = vld [vmem:[%s4 + $0x260] sm:$0xf]
    %v2779 = vld [vmem:[%s4 + $0x264] sm:$0xf]
    %v2780 = vld [vmem:[%s4 + $0x268] sm:$0xf]
    %v2781 = vld [vmem:[%s4 + $0x26c] sm:$0xf]
    %v2782 = vld [vmem:[%s4 + $0x270] sm:$0xf]
    %v2783 = vld [vmem:[%s4 + $0x274] sm:$0xf]
    %v2784 = vld [vmem:[%s4 + $0x278] sm:$0xf]
    %v2785 = vld [vmem:[%s4 + $0x27c] sm:$0xf]
    %v2786 = vld [vmem:[%s4 + $0x280] sm:$0xf]
    %v2787 = vld [vmem:[%s4 + $0x284] sm:$0xf]
    %v2788 = vld [vmem:[%s4 + $0x288] sm:$0xf]
    %v2789 = vld [vmem:[%s4 + $0x28c] sm:$0xf]
    %v2790 = vld [vmem:[%s4 + $0x290] sm:$0xf]
    %v2791 = vld [vmem:[%s4 + $0x294] sm:$0xf]
    %v2792 = vld [vmem:[%s4 + $0x298] sm:$0xf]
    %v2793 = vld [vmem:[%s4 + $0x29c] sm:$0xf]
    %v2794 = vld [vmem:[%s4 + $0x2a0] sm:$0xf]
    %v2795 = vld [vmem:[%s4 + $0x2a4] sm:$0xf]
    %v2796 = vld [vmem:[%s4 + $0x2a8] sm:$0xf]
    %v2797 = vld [vmem:[%s4 + $0x2ac] sm:$0xf]
    %v2798 = vld [vmem:[%s4 + $0x2b0] sm:$0xf]
    %v2799 = vld [vmem:[%s4 + $0x2b4] sm:$0xf]
    %v2800 = vld [vmem:[%s4 + $0x2b8] sm:$0xf]
    %v2801 = vld [vmem:[%s4 + $0x2bc] sm:$0xf]
    %v2802 = vld [vmem:[%s4 + $0x2c0] sm:$0xf]
    %v2803 = vld [vmem:[%s4 + $0x2c4] sm:$0xf]
    %v2804 = vld [vmem:[%s4 + $0x2c8] sm:$0xf]
    %v2805 = vld [vmem:[%s4 + $0x2cc] sm:$0xf]
    %v2806 = vld [vmem:[%s4 + $0x2d0] sm:$0xf]
    %v2807 = vld [vmem:[%s4 + $0x2d4] sm:$0xf]
    %v2808 = vld [vmem:[%s4 + $0x2d8] sm:$0xf]
    %v2809 = vld [vmem:[%s4 + $0x2dc] sm:$0xf]
    %v2810 = vld [vmem:[%s4 + $0x2e0] sm:$0xf]
    %v2811 = vld [vmem:[%s4 + $0x2e4] sm:$0xf]
    %v2812 = vld [vmem:[%s4 + $0x2e8] sm:$0xf]
    %v2813 = vld [vmem:[%s4 + $0x2ec] sm:$0xf]
    %v2814 = vld [vmem:[%s4 + $0x2f0] sm:$0xf]
    %v2815 = vld [vmem:[%s4 + $0x2f4] sm:$0xf]
    %v2816 = vld [vmem:[%s4 + $0x2f8] sm:$0xf]
    %v2817 = vld [vmem:[%s4 + $0x2fc] sm:$0xf]
    %v2882 = vunpack.c.l.b16 %v2754
    %v2883 = vunpack.c.l.b16 %v2755
    %v2884 = vunpack.c.l.b16 %v2756
    %v2885 = vunpack.c.l.b16 %v2757
    %v2886 = vunpack.c.l.b16 %v2758
    %v2887 = vunpack.c.l.b16 %v2759
    %v2888 = vunpack.c.l.b16 %v2760
    %v2889 = vunpack.c.l.b16 %v2761
    %v2890 = vunpack.c.l.b16 %v2762
    %v2891 = vunpack.c.l.b16 %v2763
    %v2892 = vunpack.c.l.b16 %v2764
    %v2893 = vunpack.c.l.b16 %v2765
    %v2894 = vunpack.c.l.b16 %v2766
    %v2895 = vunpack.c.l.b16 %v2767
    %v2896 = vunpack.c.l.b16 %v2768
    %v2897 = vunpack.c.l.b16 %v2769
    %v2898 = vunpack.c.l.b16 %v2770
    %v2899 = vunpack.c.l.b16 %v2771
    %v2900 = vunpack.c.l.b16 %v2772
    %v2901 = vunpack.c.l.b16 %v2773
    %v2902 = vunpack.c.l.b16 %v2774
    %v2903 = vunpack.c.l.b16 %v2775
    %v2904 = vunpack.c.l.b16 %v2776
    %v2905 = vunpack.c.l.b16 %v2777
    %v2906 = vunpack.c.l.b16 %v2778
    %v2907 = vunpack.c.l.b16 %v2779
    %v2908 = vunpack.c.l.b16 %v2780
    %v2909 = vunpack.c.l.b16 %v2781
    %v2910 = vunpack.c.l.b16 %v2782
    %v2911 = vunpack.c.l.b16 %v2783
    %v2912 = vunpack.c.l.b16 %v2784
    %v2913 = vunpack.c.l.b16 %v2785
    %v2914 = vunpack.c.l.b16 %v2786
    %v2915 = vunpack.c.l.b16 %v2787
    %v2916 = vunpack.c.l.b16 %v2788
    %v2917 = vunpack.c.l.b16 %v2789
    %v2918 = vunpack.c.l.b16 %v2790
    %v2919 = vunpack.c.l.b16 %v2791
    %v2920 = vunpack.c.l.b16 %v2792
    %v2921 = vunpack.c.l.b16 %v2793
    %v2922 = vunpack.c.l.b16 %v2794
    %v2923 = vunpack.c.l.b16 %v2795
    %v2924 = vunpack.c.l.b16 %v2796
    %v2925 = vunpack.c.l.b16 %v2797
    %v2926 = vunpack.c.l.b16 %v2798
    %v2927 = vunpack.c.l.b16 %v2799
    %v2928 = vunpack.c.l.b16 %v2800
    %v2929 = vunpack.c.l.b16 %v2801
    %v2930 = vunpack.c.l.b16 %v2802
    %v2931 = vunpack.c.l.b16 %v2803
    %v2932 = vunpack.c.l.b16 %v2804
    %v2933 = vunpack.c.l.b16 %v2805
    %v2934 = vunpack.c.l.b16 %v2806
    %v2935 = vunpack.c.l.b16 %v2807
    %v2936 = vunpack.c.l.b16 %v2808
    %v2937 = vunpack.c.l.b16 %v2809
    %v2938 = vunpack.c.l.b16 %v2810
    %v2939 = vunpack.c.l.b16 %v2811
    %v2940 = vunpack.c.l.b16 %v2812
    %v2941 = vunpack.c.l.b16 %v2813
    %v2942 = vunpack.c.l.b16 %v2814
    %v2943 = vunpack.c.l.b16 %v2815
    %v2944 = vunpack.c.l.b16 %v2816
    %v2945 = vunpack.c.l.b16 %v2817
    %v2946 = vpack.c.b16 %v2883, %v2882
    %v2947 = vpack.c.b16 %v2885, %v2884
    %v2948 = vpack.c.b16 %v2887, %v2886
    %v2949 = vpack.c.b16 %v2889, %v2888
    %v2950 = vpack.c.b16 %v2891, %v2890
    %v2951 = vpack.c.b16 %v2893, %v2892
    %v2952 = vpack.c.b16 %v2895, %v2894
    %v2953 = vpack.c.b16 %v2897, %v2896
    %v2954 = vpack.c.b16 %v2899, %v2898
    %v2955 = vpack.c.b16 %v2901, %v2900
    %v2956 = vpack.c.b16 %v2903, %v2902
    %v2957 = vpack.c.b16 %v2905, %v2904
    %v2958 = vpack.c.b16 %v2907, %v2906
    %v2959 = vpack.c.b16 %v2909, %v2908
    %v2960 = vpack.c.b16 %v2911, %v2910
    %v2961 = vpack.c.b16 %v2913, %v2912
    %v2962 = vpack.c.b16 %v2915, %v2914
    %v2963 = vpack.c.b16 %v2917, %v2916
    %v2964 = vpack.c.b16 %v2919, %v2918
    %v2965 = vpack.c.b16 %v2921, %v2920
    %v2966 = vpack.c.b16 %v2923, %v2922
    %v2967 = vpack.c.b16 %v2925, %v2924
    %v2968 = vpack.c.b16 %v2927, %v2926
    %v2969 = vpack.c.b16 %v2929, %v2928
    %v2970 = vpack.c.b16 %v2931, %v2930
    %v2971 = vpack.c.b16 %v2933, %v2932
    %v2972 = vpack.c.b16 %v2935, %v2934
    %v2973 = vpack.c.b16 %v2937, %v2936
    %v2974 = vpack.c.b16 %v2939, %v2938
    %v2975 = vpack.c.b16 %v2941, %v2940
    %v2976 = vpack.c.b16 %v2943, %v2942
    %v2977 = vpack.c.b16 %v2945, %v2944
    %3010 = vmatprep.subr.bf16.mxu0 0
    %3011 = vmatpush1.bf16.msra.mxu0 %v2946
    %3012 = vmatprep.subr.bf16.mxu0 0
    %3013 = vmatpush1.bf16.msra.mxu0 %v2947
    %3014 = vmatprep.subr.bf16.mxu0 0
    %3015 = vmatpush1.bf16.msra.mxu0 %v2948
    %3016 = vmatprep.subr.bf16.mxu0 0
    %3017 = vmatpush1.bf16.msra.mxu0 %v2949
    %3018 = vmatprep.subr.bf16.mxu0 0
    %3019 = vmatpush1.bf16.msra.mxu0 %v2950
    %3020 = vmatprep.subr.bf16.mxu0 0
    %3021 = vmatpush1.bf16.msra.mxu0 %v2951
    %3022 = vmatprep.subr.bf16.mxu0 0
    %3023 = vmatpush1.bf16.msra.mxu0 %v2952
    %3024 = vmatprep.subr.bf16.mxu0 0
    %3025 = vmatpush1.bf16.msra.mxu0 %v2953
    %3026 = vmatprep.subr.bf16.mxu0 0
    %3027 = vmatpush1.bf16.msra.mxu0 %v2954
    %3028 = vmatprep.subr.bf16.mxu0 0
    %3029 = vmatpush1.bf16.msra.mxu0 %v2955
    %3030 = vmatprep.subr.bf16.mxu0 0
    %3031 = vmatpush1.bf16.msra.mxu0 %v2956
    %3032 = vmatprep.subr.bf16.mxu0 0
    %3033 = vmatpush1.bf16.msra.mxu0 %v2957
    %3034 = vmatprep.subr.bf16.mxu0 0
    %3035 = vmatpush1.bf16.msra.mxu0 %v2958
    %3036 = vmatprep.subr.bf16.mxu0 0
    %3037 = vmatpush1.bf16.msra.mxu0 %v2959
    %3038 = vmatprep.subr.bf16.mxu0 0
    %3039 = vmatpush1.bf16.msra.mxu0 %v2960
    %3040 = vmatprep.subr.bf16.mxu0 0
    %3041 = vmatpush1.bf16.msra.mxu0 %v2961
    %3042 = vmatprep.mubr.bf16.mxu0 %v2751
    %3043 = vmatmul.mubr.bf16.gmra.mrb[0].mxu0 %v2750
    %v3044 = vpop.f32.mrb[0].mxu0
    %v3045 = vadd.f32 0.0, %v3044
    %v3046 = vpop.f32.mrb[0].mxu0
    %v3047 = vpop.f32.mrb[0].mxu0
    %v3048 = vadd.f32 0.0, %v3047
    %v3049 = vpop.f32.mrb[0].mxu0
    %3050 = vdwg.mxu0
    %3051 = vmatprep.subr.bf16.mxu0 0
    %3052 = vmatpush1.bf16.msra.mxu0 %v2962
    %3053 = vmatprep.subr.bf16.mxu0 0
    %3054 = vmatpush1.bf16.msra.mxu0 %v2963
    %3055 = vmatprep.subr.bf16.mxu0 0
    %3056 = vmatpush1.bf16.msra.mxu0 %v2964
    %3057 = vmatprep.subr.bf16.mxu0 0
    %3058 = vmatpush1.bf16.msra.mxu0 %v2965
    %3059 = vmatprep.subr.bf16.mxu0 0
    %3060 = vmatpush1.bf16.msra.mxu0 %v2966
    %3061 = vmatprep.subr.bf16.mxu0 0
    %3062 = vmatpush1.bf16.msra.mxu0 %v2967
    %3063 = vmatprep.subr.bf16.mxu0 0
    %3064 = vmatpush1.bf16.msra.mxu0 %v2968
    %3065 = vmatprep.subr.bf16.mxu0 0
    %3066 = vmatpush1.bf16.msra.mxu0 %v2969
    %3067 = vmatprep.subr.bf16.mxu0 0
    %3068 = vmatpush1.bf16.msra.mxu0 %v2970
    %3069 = vmatprep.subr.bf16.mxu0 0
    %3070 = vmatpush1.bf16.msra.mxu0 %v2971
    %3071 = vmatprep.subr.bf16.mxu0 0
    %3072 = vmatpush1.bf16.msra.mxu0 %v2972
    %3073 = vmatprep.subr.bf16.mxu0 0
    %3074 = vmatpush1.bf16.msra.mxu0 %v2973
    %3075 = vmatprep.subr.bf16.mxu0 0
    %3076 = vmatpush1.bf16.msra.mxu0 %v2974
    %3077 = vmatprep.subr.bf16.mxu0 0
    %3078 = vmatpush1.bf16.msra.mxu0 %v2975
    %3079 = vmatprep.subr.bf16.mxu0 0
    %3080 = vmatpush1.bf16.msra.mxu0 %v2976
    %3081 = vmatprep.subr.bf16.mxu0 0
    %3082 = vmatpush1.bf16.msra.mxu0 %v2977
    %3083 = vmatprep.mubr.bf16.mxu0 %v2753
    %3084 = vmatmul.mubr.bf16.gmra.mrb[0].mxu0 %v2752
    %v3085 = vpop.f32.mrb[0].mxu0
    %v3086 = vadd.f32 %v3045, %v3085
    %v3087 = vpop.f32.mrb[0].mxu0
    %v3088 = vpop.f32.mrb[0].mxu0
    %v3089 = vadd.f32 %v3048, %v3088
    %v3090 = vpop.f32.mrb[0].mxu0
    %3091 = vdwg.mxu0
    %v3092 = vadd.f32 %v2580, %v3086
    %v3093 = vadd.f32 %v2583, %v3089
    %v3094 = vld [vmem:[%s3 + $0x30] sm:$0xff]
    %v3095 = vld [vmem:[%s3 + $0x38] sm:$0xff]
    %v3096 = vld [vmem:[%s3 + $0x70] sm:$0xff]
    %v3097 = vld [vmem:[%s3 + $0x78] sm:$0xff]
    %v3098 = vld [vmem:[%s3 + $0xb0] sm:$0xff]
    %v3099 = vld [vmem:[%s3 + $0xb8] sm:$0xff]
    %v3100 = vld [vmem:[%s3 + $0xf0] sm:$0xff]
    %v3101 = vld [vmem:[%s3 + $0xf8] sm:$0xff]
    %v3102 = vld [vmem:[%s5 + $0xc] sm:$0xf]
    %v3104 = vlaneseq
    %v3105 = vshrl.u32 %v3104, 7
    %v3106 = vsub.s32 0, %v3105
    %v3107 = vrot.slane %v3102, %v3106
    %v3108 = vlaneseq
    %v3109 = vshrl.u32 %v3108, 7
    %v3110 = vsub.s32 1, %v3109
    %v3111 = vrot.slane %v3102, %v3110
    %v3112 = vlaneseq
    %v3113 = vshrl.u32 %v3112, 7
    %v3114 = vsub.s32 2, %v3113
    %v3115 = vrot.slane %v3102, %v3114
    %v3116 = vlaneseq
    %v3117 = vshrl.u32 %v3116, 7
    %v3118 = vsub.s32 3, %v3117
    %v3119 = vrot.slane %v3102, %v3118
    %v3132 = vunpack.c.l.b16 %v3094
    %v3133 = vunpack.c.h.b16 %v3094
    %v3134 = vunpack.c.l.b16 %v3095
    %v3135 = vunpack.c.h.b16 %v3095
    %v3136 = vunpack.c.l.b16 %v3096
    %v3137 = vunpack.c.h.b16 %v3096
    %v3138 = vunpack.c.l.b16 %v3097
    %v3139 = vunpack.c.h.b16 %v3097
    %v3140 = vunpack.c.l.b16 %v3098
    %v3141 = vunpack.c.h.b16 %v3098
    %v3142 = vunpack.c.l.b16 %v3099
    %v3143 = vunpack.c.h.b16 %v3099
    %v3144 = vunpack.c.l.b16 %v3100
    %v3145 = vunpack.c.h.b16 %v3100
    %v3146 = vunpack.c.l.b16 %v3101
    %v3147 = vunpack.c.h.b16 %v3101
    %v3148 = vpack.c.b16 %v3136, %v3132
    %v3149 = vpack.c.b16 %v3137, %v3133
    %v3150 = vpack.c.b16 %v3138, %v3134
    %v3151 = vpack.c.b16 %v3139, %v3135
    %v3152 = vpack.c.b16 %v3144, %v3140
    %v3153 = vpack.c.b16 %v3145, %v3141
    %v3154 = vpack.c.b16 %v3146, %v3142
    %v3155 = vpack.c.b16 %v3147, %v3143
    %3164 = vmatprep.subr.bf16.mxu0 %v3149
    %3165 = vmatpush1.bf16.msra.mxu0 %v3148
    %3166 = vmatprep.subr.bf16.mxu0 %v3153
    %3167 = vmatpush1.bf16.msra.mxu0 %v3152
    %3168 = vmatprep.subr.bf16.mxu0 0
    %3169 = vmatpush1.bf16.msra.mxu0 0
    %3170 = vmatprep.subr.bf16.mxu0 0
    %3171 = vmatpush1.bf16.msra.mxu0 0
    %3172 = vmatprep.subr.bf16.mxu0 0
    %3173 = vmatpush1.bf16.msra.mxu0 0
    %3174 = vmatprep.subr.bf16.mxu0 0
    %3175 = vmatpush1.bf16.msra.mxu0 0
    %3176 = vmatprep.subr.bf16.mxu0 0
    %3177 = vmatpush1.bf16.msra.mxu0 0
    %3178 = vmatprep.subr.bf16.mxu0 0
    %3179 = vmatpush1.bf16.msra.mxu0 0
    %3180 = vmatprep.subr.bf16.mxu0 0
    %3181 = vmatpush1.bf16.msra.mxu0 0
    %3182 = vmatprep.subr.bf16.mxu0 0
    %3183 = vmatpush1.bf16.msra.mxu0 0
    %3184 = vmatprep.subr.bf16.mxu0 0
    %3185 = vmatpush1.bf16.msra.mxu0 0
    %3186 = vmatprep.subr.bf16.mxu0 0
    %3187 = vmatpush1.bf16.msra.mxu0 0
    %3188 = vmatprep.subr.bf16.mxu0 0
    %3189 = vmatpush1.bf16.msra.mxu0 0
    %3190 = vmatprep.subr.bf16.mxu0 0
    %3191 = vmatpush1.bf16.msra.mxu0 0
    %3192 = vmatprep.subr.bf16.mxu0 0
    %3193 = vmatpush1.bf16.msra.mxu0 0
    %3194 = vmatprep.subr.bf16.mxu0 0
    %3195 = vmatpush1.bf16.msra.mxu0 0
    %3196 = vmatprep.mubr.bf16.mxu0 0
    %3197 = vmatmul.mubr.bf16.gmra.mrb[0].mxu0 %v1642
    %v3198 = vpop.f32.mrb[0].mxu0
    %v3199 = vadd.f32 %v3107, %v3198
    %v3200 = vpop.f32.mrb[0].mxu0
    %v3201 = vadd.f32 %v3111, %v3200
    %v3202 = vpop.f32.mrb[0].mxu0
    %v3203 = vadd.f32 %v3107, %v3202
    %v3204 = vpop.f32.mrb[0].mxu0
    %v3205 = vadd.f32 %v3111, %v3204
    %3206 = vdwg.mxu0
    %3207 = vmatprep.subr.bf16.mxu0 %v3151
    %3208 = vmatpush1.bf16.msra.mxu0 %v3150
    %3209 = vmatprep.subr.bf16.mxu0 %v3155
    %3210 = vmatpush1.bf16.msra.mxu0 %v3154
    %3211 = vmatprep.subr.bf16.mxu0 0
    %3212 = vmatpush1.bf16.msra.mxu0 0
    %3213 = vmatprep.subr.bf16.mxu0 0
    %3214 = vmatpush1.bf16.msra.mxu0 0
    %3215 = vmatprep.subr.bf16.mxu0 0
    %3216 = vmatpush1.bf16.msra.mxu0 0
    %3217 = vmatprep.subr.bf16.mxu0 0
    %3218 = vmatpush1.bf16.msra.mxu0 0
    %3219 = vmatprep.subr.bf16.mxu0 0
    %3220 = vmatpush1.bf16.msra.mxu0 0
    %3221 = vmatprep.subr.bf16.mxu0 0
    %3222 = vmatpush1.bf16.msra.mxu0 0
    %3223 = vmatprep.subr.bf16.mxu0 0
    %3224 = vmatpush1.bf16.msra.mxu0 0
    %3225 = vmatprep.subr.bf16.mxu0 0
    %3226 = vmatpush1.bf16.msra.mxu0 0
    %3227 = vmatprep.subr.bf16.mxu0 0
    %3228 = vmatpush1.bf16.msra.mxu0 0
    %3229 = vmatprep.subr.bf16.mxu0 0
    %3230 = vmatpush1.bf16.msra.mxu0 0
    %3231 = vmatprep.subr.bf16.mxu0 0
    %3232 = vmatpush1.bf16.msra.mxu0 0
    %3233 = vmatprep.subr.bf16.mxu0 0
    %3234 = vmatpush1.bf16.msra.mxu0 0
    %3235 = vmatprep.subr.bf16.mxu0 0
    %3236 = vmatpush1.bf16.msra.mxu0 0
    %3237 = vmatprep.subr.bf16.mxu0 0
    %3238 = vmatpush1.bf16.msra.mxu0 0
    %3239 = vmatprep.mubr.bf16.mxu0 0
    %3240 = vmatmul.mubr.bf16.gmra.mrb[0].mxu0 %v1642
    %v3241 = vpop.f32.mrb[0].mxu0
    %v3242 = vadd.f32 %v3115, %v3241
    %v3243 = vpop.f32.mrb[0].mxu0
    %v3244 = vadd.f32 %v3119, %v3243
    %v3245 = vpop.f32.mrb[0].mxu0
    %v3246 = vadd.f32 %v3115, %v3245
    %v3247 = vpop.f32.mrb[0].mxu0
    %v3248 = vadd.f32 %v3119, %v3247
    %3249 = vdwg.mxu0
    %v3250 = vmax.f32 %v3199, 0.0
    %v3251 = vmax.f32 %v3201, 0.0
    %v3252 = vmax.f32 %v3242, 0.0
    %v3253 = vmax.f32 %v3244, 0.0
    %v3254 = vmax.f32 %v3203, 0.0
    %v3255 = vmax.f32 %v3205, 0.0
    %v3256 = vmax.f32 %v3246, 0.0
    %v3257 = vmax.f32 %v3248, 0.0
    %v3258 = vpack.c.bf16 %v3254, %v3250
    %v3259 = vpack.c.bf16 %v3255, %v3251
    %v3260 = vpack.c.bf16 %v3256, %v3252
    %v3261 = vpack.c.bf16 %v3257, %v3253
    %v3262 = vld [vmem:[%s4 + $0x300] sm:$0xf]
    %v3263 = vld [vmem:[%s4 + $0x304] sm:$0xf]
    %v3264 = vld [vmem:[%s4 + $0x308] sm:$0xf]
    %v3265 = vld [vmem:[%s4 + $0x30c] sm:$0xf]
    %v3266 = vld [vmem:[%s4 + $0x310] sm:$0xf]
    %v3267 = vld [vmem:[%s4 + $0x314] sm:$0xf]
    %v3268 = vld [vmem:[%s4 + $0x318] sm:$0xf]
    %v3269 = vld [vmem:[%s4 + $0x31c] sm:$0xf]
    %v3270 = vld [vmem:[%s4 + $0x320] sm:$0xf]
    %v3271 = vld [vmem:[%s4 + $0x324] sm:$0xf]
    %v3272 = vld [vmem:[%s4 + $0x328] sm:$0xf]
    %v3273 = vld [vmem:[%s4 + $0x32c] sm:$0xf]
    %v3274 = vld [vmem:[%s4 + $0x330] sm:$0xf]
    %v3275 = vld [vmem:[%s4 + $0x334] sm:$0xf]
    %v3276 = vld [vmem:[%s4 + $0x338] sm:$0xf]
    %v3277 = vld [vmem:[%s4 + $0x33c] sm:$0xf]
    %v3278 = vld [vmem:[%s4 + $0x340] sm:$0xf]
    %v3279 = vld [vmem:[%s4 + $0x344] sm:$0xf]
    %v3280 = vld [vmem:[%s4 + $0x348] sm:$0xf]
    %v3281 = vld [vmem:[%s4 + $0x34c] sm:$0xf]
    %v3282 = vld [vmem:[%s4 + $0x350] sm:$0xf]
    %v3283 = vld [vmem:[%s4 + $0x354] sm:$0xf]
    %v3284 = vld [vmem:[%s4 + $0x358] sm:$0xf]
    %v3285 = vld [vmem:[%s4 + $0x35c] sm:$0xf]
    %v3286 = vld [vmem:[%s4 + $0x360] sm:$0xf]
    %v3287 = vld [vmem:[%s4 + $0x364] sm:$0xf]
    %v3288 = vld [vmem:[%s4 + $0x368] sm:$0xf]
    %v3289 = vld [vmem:[%s4 + $0x36c] sm:$0xf]
    %v3290 = vld [vmem:[%s4 + $0x370] sm:$0xf]
    %v3291 = vld [vmem:[%s4 + $0x374] sm:$0xf]
    %v3292 = vld [vmem:[%s4 + $0x378] sm:$0xf]
    %v3293 = vld [vmem:[%s4 + $0x37c] sm:$0xf]
    %v3294 = vld [vmem:[%s4 + $0x380] sm:$0xf]
    %v3295 = vld [vmem:[%s4 + $0x384] sm:$0xf]
    %v3296 = vld [vmem:[%s4 + $0x388] sm:$0xf]
    %v3297 = vld [vmem:[%s4 + $0x38c] sm:$0xf]
    %v3298 = vld [vmem:[%s4 + $0x390] sm:$0xf]
    %v3299 = vld [vmem:[%s4 + $0x394] sm:$0xf]
    %v3300 = vld [vmem:[%s4 + $0x398] sm:$0xf]
    %v3301 = vld [vmem:[%s4 + $0x39c] sm:$0xf]
    %v3302 = vld [vmem:[%s4 + $0x3a0] sm:$0xf]
    %v3303 = vld [vmem:[%s4 + $0x3a4] sm:$0xf]
    %v3304 = vld [vmem:[%s4 + $0x3a8] sm:$0xf]
    %v3305 = vld [vmem:[%s4 + $0x3ac] sm:$0xf]
    %v3306 = vld [vmem:[%s4 + $0x3b0] sm:$0xf]
    %v3307 = vld [vmem:[%s4 + $0x3b4] sm:$0xf]
    %v3308 = vld [vmem:[%s4 + $0x3b8] sm:$0xf]
    %v3309 = vld [vmem:[%s4 + $0x3bc] sm:$0xf]
    %v3310 = vld [vmem:[%s4 + $0x3c0] sm:$0xf]
    %v3311 = vld [vmem:[%s4 + $0x3c4] sm:$0xf]
    %v3312 = vld [vmem:[%s4 + $0x3c8] sm:$0xf]
    %v3313 = vld [vmem:[%s4 + $0x3cc] sm:$0xf]
    %v3314 = vld [vmem:[%s4 + $0x3d0] sm:$0xf]
    %v3315 = vld [vmem:[%s4 + $0x3d4] sm:$0xf]
    %v3316 = vld [vmem:[%s4 + $0x3d8] sm:$0xf]
    %v3317 = vld [vmem:[%s4 + $0x3dc] sm:$0xf]
    %v3318 = vld [vmem:[%s4 + $0x3e0] sm:$0xf]
    %v3319 = vld [vmem:[%s4 + $0x3e4] sm:$0xf]
    %v3320 = vld [vmem:[%s4 + $0x3e8] sm:$0xf]
    %v3321 = vld [vmem:[%s4 + $0x3ec] sm:$0xf]
    %v3322 = vld [vmem:[%s4 + $0x3f0] sm:$0xf]
    %v3323 = vld [vmem:[%s4 + $0x3f4] sm:$0xf]
    %v3324 = vld [vmem:[%s4 + $0x3f8] sm:$0xf]
    %v3325 = vld [vmem:[%s4 + $0x3fc] sm:$0xf]
    %v3390 = vunpack.c.l.b16 %v3262
    %v3391 = vunpack.c.l.b16 %v3263
    %v3392 = vunpack.c.l.b16 %v3264
    %v3393 = vunpack.c.l.b16 %v3265
    %v3394 = vunpack.c.l.b16 %v3266
    %v3395 = vunpack.c.l.b16 %v3267
    %v3396 = vunpack.c.l.b16 %v3268
    %v3397 = vunpack.c.l.b16 %v3269
    %v3398 = vunpack.c.l.b16 %v3270
    %v3399 = vunpack.c.l.b16 %v3271
    %v3400 = vunpack.c.l.b16 %v3272
    %v3401 = vunpack.c.l.b16 %v3273
    %v3402 = vunpack.c.l.b16 %v3274
    %v3403 = vunpack.c.l.b16 %v3275
    %v3404 = vunpack.c.l.b16 %v3276
    %v3405 = vunpack.c.l.b16 %v3277
    %v3406 = vunpack.c.l.b16 %v3278
    %v3407 = vunpack.c.l.b16 %v3279
    %v3408 = vunpack.c.l.b16 %v3280
    %v3409 = vunpack.c.l.b16 %v3281
    %v3410 = vunpack.c.l.b16 %v3282
    %v3411 = vunpack.c.l.b16 %v3283
    %v3412 = vunpack.c.l.b16 %v3284
    %v3413 = vunpack.c.l.b16 %v3285
    %v3414 = vunpack.c.l.b16 %v3286
    %v3415 = vunpack.c.l.b16 %v3287
    %v3416 = vunpack.c.l.b16 %v3288
    %v3417 = vunpack.c.l.b16 %v3289
    %v3418 = vunpack.c.l.b16 %v3290
    %v3419 = vunpack.c.l.b16 %v3291
    %v3420 = vunpack.c.l.b16 %v3292
    %v3421 = vunpack.c.l.b16 %v3293
    %v3422 = vunpack.c.l.b16 %v3294
    %v3423 = vunpack.c.l.b16 %v3295
    %v3424 = vunpack.c.l.b16 %v3296
    %v3425 = vunpack.c.l.b16 %v3297
    %v3426 = vunpack.c.l.b16 %v3298
    %v3427 = vunpack.c.l.b16 %v3299
    %v3428 = vunpack.c.l.b16 %v3300
    %v3429 = vunpack.c.l.b16 %v3301
    %v3430 = vunpack.c.l.b16 %v3302
    %v3431 = vunpack.c.l.b16 %v3303
    %v3432 = vunpack.c.l.b16 %v3304
    %v3433 = vunpack.c.l.b16 %v3305
    %v3434 = vunpack.c.l.b16 %v3306
    %v3435 = vunpack.c.l.b16 %v3307
    %v3436 = vunpack.c.l.b16 %v3308
    %v3437 = vunpack.c.l.b16 %v3309
    %v3438 = vunpack.c.l.b16 %v3310
    %v3439 = vunpack.c.l.b16 %v3311
    %v3440 = vunpack.c.l.b16 %v3312
    %v3441 = vunpack.c.l.b16 %v3313
    %v3442 = vunpack.c.l.b16 %v3314
    %v3443 = vunpack.c.l.b16 %v3315
    %v3444 = vunpack.c.l.b16 %v3316
    %v3445 = vunpack.c.l.b16 %v3317
    %v3446 = vunpack.c.l.b16 %v3318
    %v3447 = vunpack.c.l.b16 %v3319
    %v3448 = vunpack.c.l.b16 %v3320
    %v3449 = vunpack.c.l.b16 %v3321
    %v3450 = vunpack.c.l.b16 %v3322
    %v3451 = vunpack.c.l.b16 %v3323
    %v3452 = vunpack.c.l.b16 %v3324
    %v3453 = vunpack.c.l.b16 %v3325
    %v3454 = vpack.c.b16 %v3391, %v3390
    %v3455 = vpack.c.b16 %v3393, %v3392
    %v3456 = vpack.c.b16 %v3395, %v3394
    %v3457 = vpack.c.b16 %v3397, %v3396
    %v3458 = vpack.c.b16 %v3399, %v3398
    %v3459 = vpack.c.b16 %v3401, %v3400
    %v3460 = vpack.c.b16 %v3403, %v3402
    %v3461 = vpack.c.b16 %v3405, %v3404
    %v3462 = vpack.c.b16 %v3407, %v3406
    %v3463 = vpack.c.b16 %v3409, %v3408
    %v3464 = vpack.c.b16 %v3411, %v3410
    %v3465 = vpack.c.b16 %v3413, %v3412
    %v3466 = vpack.c.b16 %v3415, %v3414
    %v3467 = vpack.c.b16 %v3417, %v3416
    %v3468 = vpack.c.b16 %v3419, %v3418
    %v3469 = vpack.c.b16 %v3421, %v3420
    %v3470 = vpack.c.b16 %v3423, %v3422
    %v3471 = vpack.c.b16 %v3425, %v3424
    %v3472 = vpack.c.b16 %v3427, %v3426
    %v3473 = vpack.c.b16 %v3429, %v3428
    %v3474 = vpack.c.b16 %v3431, %v3430
    %v3475 = vpack.c.b16 %v3433, %v3432
    %v3476 = vpack.c.b16 %v3435, %v3434
    %v3477 = vpack.c.b16 %v3437, %v3436
    %v3478 = vpack.c.b16 %v3439, %v3438
    %v3479 = vpack.c.b16 %v3441, %v3440
    %v3480 = vpack.c.b16 %v3443, %v3442
    %v3481 = vpack.c.b16 %v3445, %v3444
    %v3482 = vpack.c.b16 %v3447, %v3446
    %v3483 = vpack.c.b16 %v3449, %v3448
    %v3484 = vpack.c.b16 %v3451, %v3450
    %v3485 = vpack.c.b16 %v3453, %v3452
    %3518 = vmatprep.subr.bf16.mxu0 0
    %3519 = vmatpush1.bf16.msra.mxu0 %v3454
    %3520 = vmatprep.subr.bf16.mxu0 0
    %3521 = vmatpush1.bf16.msra.mxu0 %v3455
    %3522 = vmatprep.subr.bf16.mxu0 0
    %3523 = vmatpush1.bf16.msra.mxu0 %v3456
    %3524 = vmatprep.subr.bf16.mxu0 0
    %3525 = vmatpush1.bf16.msra.mxu0 %v3457
    %3526 = vmatprep.subr.bf16.mxu0 0
    %3527 = vmatpush1.bf16.msra.mxu0 %v3458
    %3528 = vmatprep.subr.bf16.mxu0 0
    %3529 = vmatpush1.bf16.msra.mxu0 %v3459
    %3530 = vmatprep.subr.bf16.mxu0 0
    %3531 = vmatpush1.bf16.msra.mxu0 %v3460
    %3532 = vmatprep.subr.bf16.mxu0 0
    %3533 = vmatpush1.bf16.msra.mxu0 %v3461
    %3534 = vmatprep.subr.bf16.mxu0 0
    %3535 = vmatpush1.bf16.msra.mxu0 %v3462
    %3536 = vmatprep.subr.bf16.mxu0 0
    %3537 = vmatpush1.bf16.msra.mxu0 %v3463
    %3538 = vmatprep.subr.bf16.mxu0 0
    %3539 = vmatpush1.bf16.msra.mxu0 %v3464
    %3540 = vmatprep.subr.bf16.mxu0 0
    %3541 = vmatpush1.bf16.msra.mxu0 %v3465
    %3542 = vmatprep.subr.bf16.mxu0 0
    %3543 = vmatpush1.bf16.msra.mxu0 %v3466
    %3544 = vmatprep.subr.bf16.mxu0 0
    %3545 = vmatpush1.bf16.msra.mxu0 %v3467
    %3546 = vmatprep.subr.bf16.mxu0 0
    %3547 = vmatpush1.bf16.msra.mxu0 %v3468
    %3548 = vmatprep.subr.bf16.mxu0 0
    %3549 = vmatpush1.bf16.msra.mxu0 %v3469
    %3550 = vmatprep.mubr.bf16.mxu0 %v3259
    %3551 = vmatmul.mubr.bf16.gmra.mrb[0].mxu0 %v3258
    %v3552 = vpop.f32.mrb[0].mxu0
    %v3553 = vadd.f32 0.0, %v3552
    %v3554 = vpop.f32.mrb[0].mxu0
    %v3555 = vpop.f32.mrb[0].mxu0
    %v3556 = vadd.f32 0.0, %v3555
    %v3557 = vpop.f32.mrb[0].mxu0
    %3558 = vdwg.mxu0
    %3559 = vmatprep.subr.bf16.mxu0 0
    %3560 = vmatpush1.bf16.msra.mxu0 %v3470
    %3561 = vmatprep.subr.bf16.mxu0 0
    %3562 = vmatpush1.bf16.msra.mxu0 %v3471
    %3563 = vmatprep.subr.bf16.mxu0 0
    %3564 = vmatpush1.bf16.msra.mxu0 %v3472
    %3565 = vmatprep.subr.bf16.mxu0 0
    %3566 = vmatpush1.bf16.msra.mxu0 %v3473
    %3567 = vmatprep.subr.bf16.mxu0 0
    %3568 = vmatpush1.bf16.msra.mxu0 %v3474
    %3569 = vmatprep.subr.bf16.mxu0 0
    %3570 = vmatpush1.bf16.msra.mxu0 %v3475
    %3571 = vmatprep.subr.bf16.mxu0 0
    %3572 = vmatpush1.bf16.msra.mxu0 %v3476
    %3573 = vmatprep.subr.bf16.mxu0 0
    %3574 = vmatpush1.bf16.msra.mxu0 %v3477
    %3575 = vmatprep.subr.bf16.mxu0 0
    %3576 = vmatpush1.bf16.msra.mxu0 %v3478
    %3577 = vmatprep.subr.bf16.mxu0 0
    %3578 = vmatpush1.bf16.msra.mxu0 %v3479
    %3579 = vmatprep.subr.bf16.mxu0 0
    %3580 = vmatpush1.bf16.msra.mxu0 %v3480
    %3581 = vmatprep.subr.bf16.mxu0 0
    %3582 = vmatpush1.bf16.msra.mxu0 %v3481
    %3583 = vmatprep.subr.bf16.mxu0 0
    %3584 = vmatpush1.bf16.msra.mxu0 %v3482
    %3585 = vmatprep.subr.bf16.mxu0 0
    %3586 = vmatpush1.bf16.msra.mxu0 %v3483
    %3587 = vmatprep.subr.bf16.mxu0 0
    %3588 = vmatpush1.bf16.msra.mxu0 %v3484
    %3589 = vmatprep.subr.bf16.mxu0 0
    %3590 = vmatpush1.bf16.msra.mxu0 %v3485
    %3591 = vmatprep.mubr.bf16.mxu0 %v3261
    %3592 = vmatmul.mubr.bf16.gmra.mrb[0].mxu0 %v3260
    %v3593 = vpop.f32.mrb[0].mxu0
    %v3594 = vadd.f32 %v3553, %v3593
    %v3595 = vpop.f32.mrb[0].mxu0
    %v3596 = vpop.f32.mrb[0].mxu0
    %v3597 = vadd.f32 %v3556, %v3596
    %v3598 = vpop.f32.mrb[0].mxu0
    %3599 = vdwg.mxu0
    %v3600 = vadd.f32 %v3092, %v3594
    %v3601 = vadd.f32 %v3093, %v3597
    %v3602 = vlaneseq
    %v3603 = vshrl.u32 %v3602, 7
    %v3604 = vsub.s32 0, %v3603
    %v3605 = vrot.slane %v38, %v3604
    %v3606 = vadd.f32 %v3600, %v3605
    %v3607 = vadd.f32 %v3601, %v3605
    %v3608 = vadd.f32 %v1568, %v3606
    %v3609 = vadd.f32 %v1569, %v3607
    %v3610 = vsel %vm64, %v3608, 0.0
    %3611 = vadd.xlane.f32.xlu0 %v3610
    %v3612 = vpop.xlane.xlu0 %3611
    %v3613 = vsel %vm64, %v3609, 0.0
    %3614 = vadd.xlane.f32.xlu0 %v3613
    %v3615 = vpop.xlane.xlu0 %3614
    %v3616 = vmul.f32 %v3612, %v1537
    %v3617 = vmul.f32 %v3615, %v1537
    %v3618 = vsub.f32 %v3608, %v3616
    %v3619 = vsub.f32 %v3609, %v3617
    %v3620 = vmul.f32 %v3618, %v3618
    %v3621 = vmul.f32 %v3619, %v3619
    %v3622 = vsel %vm64, %v3620, 0.0
    %3623 = vadd.xlane.f32.xlu0 %v3622
    %v3624 = vpop.xlane.xlu0 %3623
    %v3625 = vsel %vm64, %v3621, 0.0
    %3626 = vadd.xlane.f32.xlu0 %v3625
    %v3627 = vpop.xlane.xlu0 %3626
    %v3628 = vmul.f32 %v3624, %v1537
    %v3629 = vmul.f32 %v3627, %v1537
    %v3630 = vadd.f32 %v3628, 1e-05
    %v3631 = vadd.f32 %v3629, 1e-05
    %v3632 = vrsqrt.pop %v3630
    %v3633 = vrsqrt.pop %v3631
    %v3634 = vmul.f32 %v3618, %v3632
    %v3635 = vmul.f32 %v3619, %v3633
    %v3636 = vlaneseq
    %v3637 = vshrl.u32 %v3636, 7
    %v3638 = vsub.s32 0, %v3637
    %v3639 = vrot.slane %v41, %v3638
    %v3640 = vmul.f32 %v3634, %v3639
    %v3641 = vmul.f32 %v3635, %v3639
    %v3642 = vlaneseq
    %v3643 = vshrl.u32 %v3642, 7
    %v3644 = vsub.s32 0, %v3643
    %v3645 = vrot.slane %v42, %v3644
    %v3646 = vadd.f32 %v3640, %v3645
    %v3647 = vadd.f32 %v3641, %v3645
    %s3648 = scalar_lea.vmem %s6, 8
    %v3649 = vld [vmem:[%s3648] sm:$0x1]
    %v3650 = vld [vmem:[%s3648 + $0x1] sm:$0x1]
    %v3651 = vld [vmem:[%s3648 + $0x2] sm:$0x1]
    %v3652 = vld [vmem:[%s3648 + $0x3] sm:$0x1]
    %v3653 = vld [vmem:[%s3648 + $0x4] sm:$0x1]
    %v3654 = vld [vmem:[%s3648 + $0x5] sm:$0x1]
    %v3655 = vld [vmem:[%s3648 + $0x6] sm:$0x1]
    %v3656 = vpack.c.bf16 %v3647, %v3646
    %s3657 = scalar_lea.vmem %s1, 16
    %v3658 = vld [vmem:[%s3657] sm:$0xf]
    %v3659 = vld [vmem:[%s3657 + $0x4] sm:$0xf]
    %v3660 = vld [vmem:[%s3657 + $0x8] sm:$0xf]
    %v3661 = vld [vmem:[%s3657 + $0xc] sm:$0xf]
    %v3662 = vlaneseq
    %v3663 = vshrl.u32 %v3662, 7
    %v3664 = vsub.s32 0, %v3663
    %v3665 = vrot.slane %v3649, %v3664
    %v3670 = vunpack.c.l.b16 %v3658
    %v3671 = vunpack.c.l.b16 %v3659
    %v3672 = vunpack.c.l.b16 %v3660
    %v3673 = vunpack.c.l.b16 %v3661
    %v3674 = vpack.c.b16 %v3671, %v3670
    %v3675 = vpack.c.b16 %v3673, %v3672
    %v3679 = vsel %vm64, %v3656, 0
    %3681 = vmatprep.subr.bf16.mxu0 0
    %3682 = vmatpush1.bf16.msra.mxu0 %v3674
    %3683 = vmatprep.subr.bf16.mxu0 0
    %3684 = vmatpush1.bf16.msra.mxu0 %v3675
    %3685 = vmatprep.subr.bf16.mxu0 0
    %3686 = vmatpush1.bf16.msra.mxu0 0
    %3687 = vmatprep.subr.bf16.mxu0 0
    %3688 = vmatpush1.bf16.msra.mxu0 0
    %3689 = vmatprep.subr.bf16.mxu0 0
    %3690 = vmatpush1.bf16.msra.mxu0 0
    %3691 = vmatprep.subr.bf16.mxu0 0
    %3692 = vmatpush1.bf16.msra.mxu0 0
    %3693 = vmatprep.subr.bf16.mxu0 0
    %3694 = vmatpush1.bf16.msra.mxu0 0
    %3695 = vmatprep.subr.bf16.mxu0 0
    %3696 = vmatpush1.bf16.msra.mxu0 0
    %3697 = vmatprep.subr.bf16.mxu0 0
    %3698 = vmatpush1.bf16.msra.mxu0 0
    %3699 = vmatprep.subr.bf16.mxu0 0
    %3700 = vmatpush1.bf16.msra.mxu0 0
    %3701 = vmatprep.subr.bf16.mxu0 0
    %3702 = vmatpush1.bf16.msra.mxu0 0
    %3703 = vmatprep.subr.bf16.mxu0 0
    %3704 = vmatpush1.bf16.msra.mxu0 0
    %3705 = vmatprep.subr.bf16.mxu0 0
    %3706 = vmatpush1.bf16.msra.mxu0 0
    %3707 = vmatprep.subr.bf16.mxu0 0
    %3708 = vmatpush1.bf16.msra.mxu0 0
    %3709 = vmatprep.subr.bf16.mxu0 0
    %3710 = vmatpush1.bf16.msra.mxu0 0
    %3711 = vmatprep.subr.bf16.mxu0 0
    %3712 = vmatpush1.bf16.msra.mxu0 0
    %3713 = vmatprep.mubr.bf16.mxu0 0
    %3714 = vmatmul.mubr.bf16.gmra.mrb[0].mxu0 %v3679
    %v3715 = vpop.f32.mrb[0].mxu0
    %v3716 = vadd.f32 %v3665, %v3715
    %v3717 = vpop.f32.mrb[0].mxu0
    %v3718 = vpop.f32.mrb[0].mxu0
    %v3719 = vadd.f32 %v3665, %v3718
    %v3720 = vpop.f32.mrb[0].mxu0
    %3721 = vdwg.mxu0
    %v3722 = vmul.f32 %v3716, 0.35355338
    %v3723 = vmul.f32 %v3719, 0.35355338
    %3725 = vrot.lane.b32.xlu0 %v3716, 96
    %v3726 = vpop.permute.xlu0 %3725
    %v3728 = vsel %vm114, %v3722, 0
    %v3730 = vsel %vm114, %v3726, 0
    %3732 = vmatprep.subr.mxu0 0.0
    %3733 = vmatpush1.xpose.msra.mxu0 %v3730
    %3734 = vmatprep.subr.mxu0 0.0
    %3735 = vmatpush1.xpose.msra.mxu0 0.0
    %3736 = vmatprep.subr.mxu0 0.0
    %3737 = vmatpush1.xpose.msra.mxu0 0.0
    %3738 = vmatprep.subr.mxu0 0.0
    %3739 = vmatpush1.xpose.msra.mxu0 0.0
    %3740 = vmatprep.subr.mxu0 0.0
    %3741 = vmatpush1.xpose.msra.mxu0 0.0
    %3742 = vmatprep.subr.mxu0 0.0
    %3743 = vmatpush1.xpose.msra.mxu0 0.0
    %3744 = vmatprep.subr.mxu0 0.0
    %3745 = vmatpush1.xpose.msra.mxu0 0.0
    %3746 = vmatprep.subr.mxu0 0.0
    %3747 = vmatpush1.xpose.msra.mxu0 0.0
    %3748 = vmatprep.subr.mxu0 0.0
    %3749 = vmatpush1.xpose.msra.mxu0 0.0
    %3750 = vmatprep.subr.mxu0 0.0
    %3751 = vmatpush1.xpose.msra.mxu0 0.0
    %3752 = vmatprep.subr.mxu0 0.0
    %3753 = vmatpush1.xpose.msra.mxu0 0.0
    %3754 = vmatprep.subr.mxu0 0.0
    %3755 = vmatpush1.xpose.msra.mxu0 0.0
    %3756 = vmatprep.subr.mxu0 0.0
    %3757 = vmatpush1.xpose.msra.mxu0 0.0
    %3758 = vmatprep.subr.mxu0 0.0
    %3759 = vmatpush1.xpose.msra.mxu0 0.0
    %3760 = vmatprep.subr.mxu0 0.0
    %3761 = vmatpush1.xpose.msra.mxu0 0.0
    %3762 = vmatprep.subr.mxu0 0.0
    %3763 = vmatpush1.xpose.msra.mxu0 0.0
    %3764 = vmatprep.subr.mxu0 0.0
    %3765 = vmatpush1.xpose.msra.mxu0 0.0
    %3766 = vmatprep.subr.mxu0 0.0
    %3767 = vmatpush1.xpose.msra.mxu0 0.0
    %3768 = vmatprep.subr.mxu0 0.0
    %3769 = vmatpush1.xpose.msra.mxu0 0.0
    %3770 = vmatprep.subr.mxu0 0.0
    %3771 = vmatpush1.xpose.msra.mxu0 0.0
    %3772 = vmatprep.subr.mxu0 0.0
    %3773 = vmatpush1.xpose.msra.mxu0 0.0
    %3774 = vmatprep.subr.mxu0 0.0
    %3775 = vmatpush1.xpose.msra.mxu0 0.0
    %3776 = vmatprep.subr.mxu0 0.0
    %3777 = vmatpush1.xpose.msra.mxu0 0.0
    %3778 = vmatprep.subr.mxu0 0.0
    %3779 = vmatpush1.xpose.msra.mxu0 0.0
    %3780 = vmatprep.subr.mxu0 0.0
    %3781 = vmatpush1.xpose.msra.mxu0 0.0
    %3782 = vmatprep.subr.mxu0 0.0
    %3783 = vmatpush1.xpose.msra.mxu0 0.0
    %3784 = vmatprep.subr.mxu0 0.0
    %3785 = vmatpush1.xpose.msra.mxu0 0.0
    %3786 = vmatprep.subr.mxu0 0.0
    %3787 = vmatpush1.xpose.msra.mxu0 0.0
    %3788 = vmatprep.subr.mxu0 0.0
    %3789 = vmatpush1.xpose.msra.mxu0 0.0
    %3790 = vmatprep.subr.mxu0 0.0
    %3791 = vmatpush1.xpose.msra.mxu0 0.0
    %3792 = vmatprep.subr.mxu0 0.0
    %3793 = vmatpush1.xpose.msra.mxu0 0.0
    %3794 = vmatprep.subr.mxu0 0.0
    %3795 = vmatpush1.xpose.msra.mxu0 0.0
    %3796 = vmatprep.mubr.f32.mxu0 0.0
    %3797 = vmatmul.mubr.f32.gmra.mrb[0].mxu0 %v3728
    %v3798 = vpop.f32.mrb[0].mxu0
    %v3799 = vadd.f32 0.0, %v3798
    %v3800 = vpop.f32.mrb[0].mxu0
    %3801 = vdwg.mxu0
    %v3802 = vsel %vm114, %v3799, -inf
    %3803 = vmax.xlane.f32.xlu0 %v3802
    %v3804 = vpop.xlane.xlu0 %3803
    %v3805 = vsub.f32 %v3799, %v3804
    %v3806 = vmul.f32 %v3805, 1.442695
    %v3807 = vpow.pop %v3806
    %v3808 = vsel %vm114, %v3807, 0.0
    %3809 = vadd.xlane.f32.xlu0 %v3808
    %v3810 = vpop.xlane.xlu0 %3809
    %v3811 = vrcp.pop %v3810
    %v3812 = vmul.f32 %v3807, %v3811
    %3813 = vrot.lane.b32.xlu0 %v3716, 64
    %v3814 = vpop.permute.xlu0 %3813
    %v3817 = vsel %vm114, %v3812, 0
    %3819 = vmatprep.subr.mxu0 0.0
    %3820 = vmatpush1.msra.mxu0 %v3814
    %3821 = vmatprep.subr.mxu0 0.0
    %3822 = vmatpush1.msra.mxu0 0.0
    %3823 = vmatprep.subr.mxu0 0.0
    %3824 = vmatpush1.msra.mxu0 0.0
    %3825 = vmatprep.subr.mxu0 0.0
    %3826 = vmatpush1.msra.mxu0 0.0
    %3827 = vmatprep.subr.mxu0 0.0
    %3828 = vmatpush1.msra.mxu0 0.0
    %3829 = vmatprep.subr.mxu0 0.0
    %3830 = vmatpush1.msra.mxu0 0.0
    %3831 = vmatprep.subr.mxu0 0.0
    %3832 = vmatpush1.msra.mxu0 0.0
    %3833 = vmatprep.subr.mxu0 0.0
    %3834 = vmatpush1.msra.mxu0 0.0
    %3835 = vmatprep.subr.mxu0 0.0
    %3836 = vmatpush1.msra.mxu0 0.0
    %3837 = vmatprep.subr.mxu0 0.0
    %3838 = vmatpush1.msra.mxu0 0.0
    %3839 = vmatprep.subr.mxu0 0.0
    %3840 = vmatpush1.msra.mxu0 0.0
    %3841 = vmatprep.subr.mxu0 0.0
    %3842 = vmatpush1.msra.mxu0 0.0
    %3843 = vmatprep.subr.mxu0 0.0
    %3844 = vmatpush1.msra.mxu0 0.0
    %3845 = vmatprep.subr.mxu0 0.0
    %3846 = vmatpush1.msra.mxu0 0.0
    %3847 = vmatprep.subr.mxu0 0.0
    %3848 = vmatpush1.msra.mxu0 0.0
    %3849 = vmatprep.subr.mxu0 0.0
    %3850 = vmatpush1.msra.mxu0 0.0
    %3851 = vmatprep.subr.mxu0 0.0
    %3852 = vmatpush1.msra.mxu0 0.0
    %3853 = vmatprep.subr.mxu0 0.0
    %3854 = vmatpush1.msra.mxu0 0.0
    %3855 = vmatprep.subr.mxu0 0.0
    %3856 = vmatpush1.msra.mxu0 0.0
    %3857 = vmatprep.subr.mxu0 0.0
    %3858 = vmatpush1.msra.mxu0 0.0
    %3859 = vmatprep.subr.mxu0 0.0
    %3860 = vmatpush1.msra.mxu0 0.0
    %3861 = vmatprep.subr.mxu0 0.0
    %3862 = vmatpush1.msra.mxu0 0.0
    %3863 = vmatprep.subr.mxu0 0.0
    %3864 = vmatpush1.msra.mxu0 0.0
    %3865 = vmatprep.subr.mxu0 0.0
    %3866 = vmatpush1.msra.mxu0 0.0
    %3867 = vmatprep.subr.mxu0 0.0
    %3868 = vmatpush1.msra.mxu0 0.0
    %3869 = vmatprep.subr.mxu0 0.0
    %3870 = vmatpush1.msra.mxu0 0.0
    %3871 = vmatprep.subr.mxu0 0.0
    %3872 = vmatpush1.msra.mxu0 0.0
    %3873 = vmatprep.subr.mxu0 0.0
    %3874 = vmatpush1.msra.mxu0 0.0
    %3875 = vmatprep.subr.mxu0 0.0
    %3876 = vmatpush1.msra.mxu0 0.0
    %3877 = vmatprep.subr.mxu0 0.0
    %3878 = vmatpush1.msra.mxu0 0.0
    %3879 = vmatprep.subr.mxu0 0.0
    %3880 = vmatpush1.msra.mxu0 0.0
    %3881 = vmatprep.subr.mxu0 0.0
    %3882 = vmatpush1.msra.mxu0 0.0
    %3883 = vmatprep.mubr.f32.mxu0 0.0
    %3884 = vmatmul.mubr.f32.gmra.mrb[0].mxu0 %v3817
    %v3885 = vpop.f32.mrb[0].mxu0
    %v3886 = vadd.f32 0.0, %v3885
    %v3887 = vpop.f32.mrb[0].mxu0
    %3888 = vdwg.mxu0
    %3889 = vrot.lane.b32.xlu0 %v3722, 120
    %v3890 = vpop.permute.xlu0 %3889
    %3891 = vrot.lane.b32.xlu0 %v3716, 88
    %v3892 = vpop.permute.xlu0 %3891
    %v3893 = vsel %vm114, %v3890, 0
    %v3895 = vsel %vm114, %v3892, 0
    %3897 = vmatprep.subr.mxu0 0.0
    %3898 = vmatpush1.xpose.msra.mxu0 %v3895
    %3899 = vmatprep.subr.mxu0 0.0
    %3900 = vmatpush1.xpose.msra.mxu0 0.0
    %3901 = vmatprep.subr.mxu0 0.0
    %3902 = vmatpush1.xpose.msra.mxu0 0.0
    %3903 = vmatprep.subr.mxu0 0.0
    %3904 = vmatpush1.xpose.msra.mxu0 0.0
    %3905 = vmatprep.subr.mxu0 0.0
    %3906 = vmatpush1.xpose.msra.mxu0 0.0
    %3907 = vmatprep.subr.mxu0 0.0
    %3908 = vmatpush1.xpose.msra.mxu0 0.0
    %3909 = vmatprep.subr.mxu0 0.0
    %3910 = vmatpush1.xpose.msra.mxu0 0.0
    %3911 = vmatprep.subr.mxu0 0.0
    %3912 = vmatpush1.xpose.msra.mxu0 0.0
    %3913 = vmatprep.subr.mxu0 0.0
    %3914 = vmatpush1.xpose.msra.mxu0 0.0
    %3915 = vmatprep.subr.mxu0 0.0
    %3916 = vmatpush1.xpose.msra.mxu0 0.0
    %3917 = vmatprep.subr.mxu0 0.0
    %3918 = vmatpush1.xpose.msra.mxu0 0.0
    %3919 = vmatprep.subr.mxu0 0.0
    %3920 = vmatpush1.xpose.msra.mxu0 0.0
    %3921 = vmatprep.subr.mxu0 0.0
    %3922 = vmatpush1.xpose.msra.mxu0 0.0
    %3923 = vmatprep.subr.mxu0 0.0
    %3924 = vmatpush1.xpose.msra.mxu0 0.0
    %3925 = vmatprep.subr.mxu0 0.0
    %3926 = vmatpush1.xpose.msra.mxu0 0.0
    %3927 = vmatprep.subr.mxu0 0.0
    %3928 = vmatpush1.xpose.msra.mxu0 0.0
    %3929 = vmatprep.subr.mxu0 0.0
    %3930 = vmatpush1.xpose.msra.mxu0 0.0
    %3931 = vmatprep.subr.mxu0 0.0
    %3932 = vmatpush1.xpose.msra.mxu0 0.0
    %3933 = vmatprep.subr.mxu0 0.0
    %3934 = vmatpush1.xpose.msra.mxu0 0.0
    %3935 = vmatprep.subr.mxu0 0.0
    %3936 = vmatpush1.xpose.msra.mxu0 0.0
    %3937 = vmatprep.subr.mxu0 0.0
    %3938 = vmatpush1.xpose.msra.mxu0 0.0
    %3939 = vmatprep.subr.mxu0 0.0
    %3940 = vmatpush1.xpose.msra.mxu0 0.0
    %3941 = vmatprep.subr.mxu0 0.0
    %3942 = vmatpush1.xpose.msra.mxu0 0.0
    %3943 = vmatprep.subr.mxu0 0.0
    %3944 = vmatpush1.xpose.msra.mxu0 0.0
    %3945 = vmatprep.subr.mxu0 0.0
    %3946 = vmatpush1.xpose.msra.mxu0 0.0
    %3947 = vmatprep.subr.mxu0 0.0
    %3948 = vmatpush1.xpose.msra.mxu0 0.0
    %3949 = vmatprep.subr.mxu0 0.0
    %3950 = vmatpush1.xpose.msra.mxu0 0.0
    %3951 = vmatprep.subr.mxu0 0.0
    %3952 = vmatpush1.xpose.msra.mxu0 0.0
    %3953 = vmatprep.subr.mxu0 0.0
    %3954 = vmatpush1.xpose.msra.mxu0 0.0
    %3955 = vmatprep.subr.mxu0 0.0
    %3956 = vmatpush1.xpose.msra.mxu0 0.0
    %3957 = vmatprep.subr.mxu0 0.0
    %3958 = vmatpush1.xpose.msra.mxu0 0.0
    %3959 = vmatprep.subr.mxu0 0.0
    %3960 = vmatpush1.xpose.msra.mxu0 0.0
    %3961 = vmatprep.mubr.f32.mxu0 0.0
    %3962 = vmatmul.mubr.f32.gmra.mrb[0].mxu0 %v3893
    %v3963 = vpop.f32.mrb[0].mxu0
    %v3964 = vadd.f32 0.0, %v3963
    %v3965 = vpop.f32.mrb[0].mxu0
    %3966 = vdwg.mxu0
    %v3967 = vsel %vm114, %v3964, -inf
    %3968 = vmax.xlane.f32.xlu0 %v3967
    %v3969 = vpop.xlane.xlu0 %3968
    %v3970 = vsub.f32 %v3964, %v3969
    %v3971 = vmul.f32 %v3970, 1.442695
    %v3972 = vpow.pop %v3971
    %v3973 = vsel %vm114, %v3972, 0.0
    %3974 = vadd.xlane.f32.xlu0 %v3973
    %v3975 = vpop.xlane.xlu0 %3974
    %v3976 = vrcp.pop %v3975
    %v3977 = vmul.f32 %v3972, %v3976
    %3978 = vrot.lane.b32.xlu0 %v3716, 56
    %v3979 = vpop.permute.xlu0 %3978
    %v3982 = vsel %vm114, %v3977, 0
    %3984 = vmatprep.subr.mxu0 0.0
    %3985 = vmatpush1.msra.mxu0 %v3979
    %3986 = vmatprep.subr.mxu0 0.0
    %3987 = vmatpush1.msra.mxu0 0.0
    %3988 = vmatprep.subr.mxu0 0.0
    %3989 = vmatpush1.msra.mxu0 0.0
    %3990 = vmatprep.subr.mxu0 0.0
    %3991 = vmatpush1.msra.mxu0 0.0
    %3992 = vmatprep.subr.mxu0 0.0
    %3993 = vmatpush1.msra.mxu0 0.0
    %3994 = vmatprep.subr.mxu0 0.0
    %3995 = vmatpush1.msra.mxu0 0.0
    %3996 = vmatprep.subr.mxu0 0.0
    %3997 = vmatpush1.msra.mxu0 0.0
    %3998 = vmatprep.subr.mxu0 0.0
    %3999 = vmatpush1.msra.mxu0 0.0
    %4000 = vmatprep.subr.mxu0 0.0
    %4001 = vmatpush1.msra.mxu0 0.0
    %4002 = vmatprep.subr.mxu0 0.0
    %4003 = vmatpush1.msra.mxu0 0.0
    %4004 = vmatprep.subr.mxu0 0.0
    %4005 = vmatpush1.msra.mxu0 0.0
    %4006 = vmatprep.subr.mxu0 0.0
    %4007 = vmatpush1.msra.mxu0 0.0
    %4008 = vmatprep.subr.mxu0 0.0
    %4009 = vmatpush1.msra.mxu0 0.0
    %4010 = vmatprep.subr.mxu0 0.0
    %4011 = vmatpush1.msra.mxu0 0.0
    %4012 = vmatprep.subr.mxu0 0.0
    %4013 = vmatpush1.msra.mxu0 0.0
    %4014 = vmatprep.subr.mxu0 0.0
    %4015 = vmatpush1.msra.mxu0 0.0
    %4016 = vmatprep.subr.mxu0 0.0
    %4017 = vmatpush1.msra.mxu0 0.0
    %4018 = vmatprep.subr.mxu0 0.0
    %4019 = vmatpush1.msra.mxu0 0.0
    %4020 = vmatprep.subr.mxu0 0.0
    %4021 = vmatpush1.msra.mxu0 0.0
    %4022 = vmatprep.subr.mxu0 0.0
    %4023 = vmatpush1.msra.mxu0 0.0
    %4024 = vmatprep.subr.mxu0 0.0
    %4025 = vmatpush1.msra.mxu0 0.0
    %4026 = vmatprep.subr.mxu0 0.0
    %4027 = vmatpush1.msra.mxu0 0.0
    %4028 = vmatprep.subr.mxu0 0.0
    %4029 = vmatpush1.msra.mxu0 0.0
    %4030 = vmatprep.subr.mxu0 0.0
    %4031 = vmatpush1.msra.mxu0 0.0
    %4032 = vmatprep.subr.mxu0 0.0
    %4033 = vmatpush1.msra.mxu0 0.0
    %4034 = vmatprep.subr.mxu0 0.0
    %4035 = vmatpush1.msra.mxu0 0.0
    %4036 = vmatprep.subr.mxu0 0.0
    %4037 = vmatpush1.msra.mxu0 0.0
    %4038 = vmatprep.subr.mxu0 0.0
    %4039 = vmatpush1.msra.mxu0 0.0
    %4040 = vmatprep.subr.mxu0 0.0
    %4041 = vmatpush1.msra.mxu0 0.0
    %4042 = vmatprep.subr.mxu0 0.0
    %4043 = vmatpush1.msra.mxu0 0.0
    %4044 = vmatprep.subr.mxu0 0.0
    %4045 = vmatpush1.msra.mxu0 0.0
    %4046 = vmatprep.subr.mxu0 0.0
    %4047 = vmatpush1.msra.mxu0 0.0
    %4048 = vmatprep.mubr.f32.mxu0 0.0
    %4049 = vmatmul.mubr.f32.gmra.mrb[0].mxu0 %v3982
    %v4050 = vpop.f32.mrb[0].mxu0
    %v4051 = vadd.f32 0.0, %v4050
    %v4052 = vpop.f32.mrb[0].mxu0
    %4053 = vdwg.mxu0
    %4054 = vrot.lane.b32.xlu0 %v3722, 112
    %v4055 = vpop.permute.xlu0 %4054
    %4056 = vrot.lane.b32.xlu0 %v3716, 80
    %v4057 = vpop.permute.xlu0 %4056
    %v4058 = vsel %vm114, %v4055, 0
    %v4060 = vsel %vm114, %v4057, 0
    %4062 = vmatprep.subr.mxu0 0.0
    %4063 = vmatpush1.xpose.msra.mxu0 %v4060
    %4064 = vmatprep.subr.mxu0 0.0
    %4065 = vmatpush1.xpose.msra.mxu0 0.0
    %4066 = vmatprep.subr.mxu0 0.0
    %4067 = vmatpush1.xpose.msra.mxu0 0.0
    %4068 = vmatprep.subr.mxu0 0.0
    %4069 = vmatpush1.xpose.msra.mxu0 0.0
    %4070 = vmatprep.subr.mxu0 0.0
    %4071 = vmatpush1.xpose.msra.mxu0 0.0
    %4072 = vmatprep.subr.mxu0 0.0
    %4073 = vmatpush1.xpose.msra.mxu0 0.0
    %4074 = vmatprep.subr.mxu0 0.0
    %4075 = vmatpush1.xpose.msra.mxu0 0.0
    %4076 = vmatprep.subr.mxu0 0.0
    %4077 = vmatpush1.xpose.msra.mxu0 0.0
    %4078 = vmatprep.subr.mxu0 0.0
    %4079 = vmatpush1.xpose.msra.mxu0 0.0
    %4080 = vmatprep.subr.mxu0 0.0
    %4081 = vmatpush1.xpose.msra.mxu0 0.0
    %4082 = vmatprep.subr.mxu0 0.0
    %4083 = vmatpush1.xpose.msra.mxu0 0.0
    %4084 = vmatprep.subr.mxu0 0.0
    %4085 = vmatpush1.xpose.msra.mxu0 0.0
    %4086 = vmatprep.subr.mxu0 0.0
    %4087 = vmatpush1.xpose.msra.mxu0 0.0
    %4088 = vmatprep.subr.mxu0 0.0
    %4089 = vmatpush1.xpose.msra.mxu0 0.0
    %4090 = vmatprep.subr.mxu0 0.0
    %4091 = vmatpush1.xpose.msra.mxu0 0.0
    %4092 = vmatprep.subr.mxu0 0.0
    %4093 = vmatpush1.xpose.msra.mxu0 0.0
    %4094 = vmatprep.subr.mxu0 0.0
    %4095 = vmatpush1.xpose.msra.mxu0 0.0
    %4096 = vmatprep.subr.mxu0 0.0
    %4097 = vmatpush1.xpose.msra.mxu0 0.0
    %4098 = vmatprep.subr.mxu0 0.0
    %4099 = vmatpush1.xpose.msra.mxu0 0.0
    %4100 = vmatprep.subr.mxu0 0.0
    %4101 = vmatpush1.xpose.msra.mxu0 0.0
    %4102 = vmatprep.subr.mxu0 0.0
    %4103 = vmatpush1.xpose.msra.mxu0 0.0
    %4104 = vmatprep.subr.mxu0 0.0
    %4105 = vmatpush1.xpose.msra.mxu0 0.0
    %4106 = vmatprep.subr.mxu0 0.0
    %4107 = vmatpush1.xpose.msra.mxu0 0.0
    %4108 = vmatprep.subr.mxu0 0.0
    %4109 = vmatpush1.xpose.msra.mxu0 0.0
    %4110 = vmatprep.subr.mxu0 0.0
    %4111 = vmatpush1.xpose.msra.mxu0 0.0
    %4112 = vmatprep.subr.mxu0 0.0
    %4113 = vmatpush1.xpose.msra.mxu0 0.0
    %4114 = vmatprep.subr.mxu0 0.0
    %4115 = vmatpush1.xpose.msra.mxu0 0.0
    %4116 = vmatprep.subr.mxu0 0.0
    %4117 = vmatpush1.xpose.msra.mxu0 0.0
    %4118 = vmatprep.subr.mxu0 0.0
    %4119 = vmatpush1.xpose.msra.mxu0 0.0
    %4120 = vmatprep.subr.mxu0 0.0
    %4121 = vmatpush1.xpose.msra.mxu0 0.0
    %4122 = vmatprep.subr.mxu0 0.0
    %4123 = vmatpush1.xpose.msra.mxu0 0.0
    %4124 = vmatprep.subr.mxu0 0.0
    %4125 = vmatpush1.xpose.msra.mxu0 0.0
    %4126 = vmatprep.mubr.f32.mxu0 0.0
    %4127 = vmatmul.mubr.f32.gmra.mrb[0].mxu0 %v4058
    %v4128 = vpop.f32.mrb[0].mxu0
    %v4129 = vadd.f32 0.0, %v4128
    %v4130 = vpop.f32.mrb[0].mxu0
    %4131 = vdwg.mxu0
    %v4132 = vsel %vm114, %v4129, -inf
    %4133 = vmax.xlane.f32.xlu0 %v4132
    %v4134 = vpop.xlane.xlu0 %4133
    %v4135 = vsub.f32 %v4129, %v4134
    %v4136 = vmul.f32 %v4135, 1.442695
    %v4137 = vpow.pop %v4136
    %v4138 = vsel %vm114, %v4137, 0.0
    %4139 = vadd.xlane.f32.xlu0 %v4138
    %v4140 = vpop.xlane.xlu0 %4139
    %v4141 = vrcp.pop %v4140
    %v4142 = vmul.f32 %v4137, %v4141
    %4143 = vrot.lane.b32.xlu0 %v3716, 48
    %v4144 = vpop.permute.xlu0 %4143
    %v4147 = vsel %vm114, %v4142, 0
    %4149 = vmatprep.subr.mxu0 0.0
    %4150 = vmatpush1.msra.mxu0 %v4144
    %4151 = vmatprep.subr.mxu0 0.0
    %4152 = vmatpush1.msra.mxu0 0.0
    %4153 = vmatprep.subr.mxu0 0.0
    %4154 = vmatpush1.msra.mxu0 0.0
    %4155 = vmatprep.subr.mxu0 0.0
    %4156 = vmatpush1.msra.mxu0 0.0
    %4157 = vmatprep.subr.mxu0 0.0
    %4158 = vmatpush1.msra.mxu0 0.0
    %4159 = vmatprep.subr.mxu0 0.0
    %4160 = vmatpush1.msra.mxu0 0.0
    %4161 = vmatprep.subr.mxu0 0.0
    %4162 = vmatpush1.msra.mxu0 0.0
    %4163 = vmatprep.subr.mxu0 0.0
    %4164 = vmatpush1.msra.mxu0 0.0
    %4165 = vmatprep.subr.mxu0 0.0
    %4166 = vmatpush1.msra.mxu0 0.0
    %4167 = vmatprep.subr.mxu0 0.0
    %4168 = vmatpush1.msra.mxu0 0.0
    %4169 = vmatprep.subr.mxu0 0.0
    %4170 = vmatpush1.msra.mxu0 0.0
    %4171 = vmatprep.subr.mxu0 0.0
    %4172 = vmatpush1.msra.mxu0 0.0
    %4173 = vmatprep.subr.mxu0 0.0
    %4174 = vmatpush1.msra.mxu0 0.0
    %4175 = vmatprep.subr.mxu0 0.0
    %4176 = vmatpush1.msra.mxu0 0.0
    %4177 = vmatprep.subr.mxu0 0.0
    %4178 = vmatpush1.msra.mxu0 0.0
    %4179 = vmatprep.subr.mxu0 0.0
    %4180 = vmatpush1.msra.mxu0 0.0
    %4181 = vmatprep.subr.mxu0 0.0
    %4182 = vmatpush1.msra.mxu0 0.0
    %4183 = vmatprep.subr.mxu0 0.0
    %4184 = vmatpush1.msra.mxu0 0.0
    %4185 = vmatprep.subr.mxu0 0.0
    %4186 = vmatpush1.msra.mxu0 0.0
    %4187 = vmatprep.subr.mxu0 0.0
    %4188 = vmatpush1.msra.mxu0 0.0
    %4189 = vmatprep.subr.mxu0 0.0
    %4190 = vmatpush1.msra.mxu0 0.0
    %4191 = vmatprep.subr.mxu0 0.0
    %4192 = vmatpush1.msra.mxu0 0.0
    %4193 = vmatprep.subr.mxu0 0.0
    %4194 = vmatpush1.msra.mxu0 0.0
    %4195 = vmatprep.subr.mxu0 0.0
    %4196 = vmatpush1.msra.mxu0 0.0
    %4197 = vmatprep.subr.mxu0 0.0
    %4198 = vmatpush1.msra.mxu0 0.0
    %4199 = vmatprep.subr.mxu0 0.0
    %4200 = vmatpush1.msra.mxu0 0.0
    %4201 = vmatprep.subr.mxu0 0.0
    %4202 = vmatpush1.msra.mxu0 0.0
    %4203 = vmatprep.subr.mxu0 0.0
    %4204 = vmatpush1.msra.mxu0 0.0
    %4205 = vmatprep.subr.mxu0 0.0
    %4206 = vmatpush1.msra.mxu0 0.0
    %4207 = vmatprep.subr.mxu0 0.0
    %4208 = vmatpush1.msra.mxu0 0.0
    %4209 = vmatprep.subr.mxu0 0.0
    %4210 = vmatpush1.msra.mxu0 0.0
    %4211 = vmatprep.subr.mxu0 0.0
    %4212 = vmatpush1.msra.mxu0 0.0
    %4213 = vmatprep.mubr.f32.mxu0 0.0
    %4214 = vmatmul.mubr.f32.gmra.mrb[0].mxu0 %v4147
    %v4215 = vpop.f32.mrb[0].mxu0
    %v4216 = vadd.f32 0.0, %v4215
    %v4217 = vpop.f32.mrb[0].mxu0
    %4218 = vdwg.mxu0
    %4219 = vrot.lane.b32.xlu0 %v3722, 104
    %v4220 = vpop.permute.xlu0 %4219
    %4221 = vrot.lane.b32.xlu0 %v3716, 72
    %v4222 = vpop.permute.xlu0 %4221
    %v4223 = vsel %vm114, %v4220, 0
    %v4225 = vsel %vm114, %v4222, 0
    %4227 = vmatprep.subr.mxu0 0.0
    %4228 = vmatpush1.xpose.msra.mxu0 %v4225
    %4229 = vmatprep.subr.mxu0 0.0
    %4230 = vmatpush1.xpose.msra.mxu0 0.0
    %4231 = vmatprep.subr.mxu0 0.0
    %4232 = vmatpush1.xpose.msra.mxu0 0.0
    %4233 = vmatprep.subr.mxu0 0.0
    %4234 = vmatpush1.xpose.msra.mxu0 0.0
    %4235 = vmatprep.subr.mxu0 0.0
    %4236 = vmatpush1.xpose.msra.mxu0 0.0
    %4237 = vmatprep.subr.mxu0 0.0
    %4238 = vmatpush1.xpose.msra.mxu0 0.0
    %4239 = vmatprep.subr.mxu0 0.0
    %4240 = vmatpush1.xpose.msra.mxu0 0.0
    %4241 = vmatprep.subr.mxu0 0.0
    %4242 = vmatpush1.xpose.msra.mxu0 0.0
    %4243 = vmatprep.subr.mxu0 0.0
    %4244 = vmatpush1.xpose.msra.mxu0 0.0
    %4245 = vmatprep.subr.mxu0 0.0
    %4246 = vmatpush1.xpose.msra.mxu0 0.0
    %4247 = vmatprep.subr.mxu0 0.0
    %4248 = vmatpush1.xpose.msra.mxu0 0.0
    %4249 = vmatprep.subr.mxu0 0.0
    %4250 = vmatpush1.xpose.msra.mxu0 0.0
    %4251 = vmatprep.subr.mxu0 0.0
    %4252 = vmatpush1.xpose.msra.mxu0 0.0
    %4253 = vmatprep.subr.mxu0 0.0
    %4254 = vmatpush1.xpose.msra.mxu0 0.0
    %4255 = vmatprep.subr.mxu0 0.0
    %4256 = vmatpush1.xpose.msra.mxu0 0.0
    %4257 = vmatprep.subr.mxu0 0.0
    %4258 = vmatpush1.xpose.msra.mxu0 0.0
    %4259 = vmatprep.subr.mxu0 0.0
    %4260 = vmatpush1.xpose.msra.mxu0 0.0
    %4261 = vmatprep.subr.mxu0 0.0
    %4262 = vmatpush1.xpose.msra.mxu0 0.0
    %4263 = vmatprep.subr.mxu0 0.0
    %4264 = vmatpush1.xpose.msra.mxu0 0.0
    %4265 = vmatprep.subr.mxu0 0.0
    %4266 = vmatpush1.xpose.msra.mxu0 0.0
    %4267 = vmatprep.subr.mxu0 0.0
    %4268 = vmatpush1.xpose.msra.mxu0 0.0
    %4269 = vmatprep.subr.mxu0 0.0
    %4270 = vmatpush1.xpose.msra.mxu0 0.0
    %4271 = vmatprep.subr.mxu0 0.0
    %4272 = vmatpush1.xpose.msra.mxu0 0.0
    %4273 = vmatprep.subr.mxu0 0.0
    %4274 = vmatpush1.xpose.msra.mxu0 0.0
    %4275 = vmatprep.subr.mxu0 0.0
    %4276 = vmatpush1.xpose.msra.mxu0 0.0
    %4277 = vmatprep.subr.mxu0 0.0
    %4278 = vmatpush1.xpose.msra.mxu0 0.0
    %4279 = vmatprep.subr.mxu0 0.0
    %4280 = vmatpush1.xpose.msra.mxu0 0.0
    %4281 = vmatprep.subr.mxu0 0.0
    %4282 = vmatpush1.xpose.msra.mxu0 0.0
    %4283 = vmatprep.subr.mxu0 0.0
    %4284 = vmatpush1.xpose.msra.mxu0 0.0
    %4285 = vmatprep.subr.mxu0 0.0
    %4286 = vmatpush1.xpose.msra.mxu0 0.0
    %4287 = vmatprep.subr.mxu0 0.0
    %4288 = vmatpush1.xpose.msra.mxu0 0.0
    %4289 = vmatprep.subr.mxu0 0.0
    %4290 = vmatpush1.xpose.msra.mxu0 0.0
    %4291 = vmatprep.mubr.f32.mxu0 0.0
    %4292 = vmatmul.mubr.f32.gmra.mrb[0].mxu0 %v4223
    %v4293 = vpop.f32.mrb[0].mxu0
    %v4294 = vadd.f32 0.0, %v4293
    %v4295 = vpop.f32.mrb[0].mxu0
    %4296 = vdwg.mxu0
    %v4297 = vsel %vm114, %v4294, -inf
    %4298 = vmax.xlane.f32.xlu0 %v4297
    %v4299 = vpop.xlane.xlu0 %4298
    %v4300 = vsub.f32 %v4294, %v4299
    %v4301 = vmul.f32 %v4300, 1.442695
    %v4302 = vpow.pop %v4301
    %v4303 = vsel %vm114, %v4302, 0.0
    %4304 = vadd.xlane.f32.xlu0 %v4303
    %v4305 = vpop.xlane.xlu0 %4304
    %v4306 = vrcp.pop %v4305
    %v4307 = vmul.f32 %v4302, %v4306
    %4308 = vrot.lane.b32.xlu0 %v3716, 40
    %v4309 = vpop.permute.xlu0 %4308
    %v4312 = vsel %vm114, %v4307, 0
    %4314 = vmatprep.subr.mxu0 0.0
    %4315 = vmatpush1.msra.mxu0 %v4309
    %4316 = vmatprep.subr.mxu0 0.0
    %4317 = vmatpush1.msra.mxu0 0.0
    %4318 = vmatprep.subr.mxu0 0.0
    %4319 = vmatpush1.msra.mxu0 0.0
    %4320 = vmatprep.subr.mxu0 0.0
    %4321 = vmatpush1.msra.mxu0 0.0
    %4322 = vmatprep.subr.mxu0 0.0
    %4323 = vmatpush1.msra.mxu0 0.0
    %4324 = vmatprep.subr.mxu0 0.0
    %4325 = vmatpush1.msra.mxu0 0.0
    %4326 = vmatprep.subr.mxu0 0.0
    %4327 = vmatpush1.msra.mxu0 0.0
    %4328 = vmatprep.subr.mxu0 0.0
    %4329 = vmatpush1.msra.mxu0 0.0
    %4330 = vmatprep.subr.mxu0 0.0
    %4331 = vmatpush1.msra.mxu0 0.0
    %4332 = vmatprep.subr.mxu0 0.0
    %4333 = vmatpush1.msra.mxu0 0.0
    %4334 = vmatprep.subr.mxu0 0.0
    %4335 = vmatpush1.msra.mxu0 0.0
    %4336 = vmatprep.subr.mxu0 0.0
    %4337 = vmatpush1.msra.mxu0 0.0
    %4338 = vmatprep.subr.mxu0 0.0
    %4339 = vmatpush1.msra.mxu0 0.0
    %4340 = vmatprep.subr.mxu0 0.0
    %4341 = vmatpush1.msra.mxu0 0.0
    %4342 = vmatprep.subr.mxu0 0.0
    %4343 = vmatpush1.msra.mxu0 0.0
    %4344 = vmatprep.subr.mxu0 0.0
    %4345 = vmatpush1.msra.mxu0 0.0
    %4346 = vmatprep.subr.mxu0 0.0
    %4347 = vmatpush1.msra.mxu0 0.0
    %4348 = vmatprep.subr.mxu0 0.0
    %4349 = vmatpush1.msra.mxu0 0.0
    %4350 = vmatprep.subr.mxu0 0.0
    %4351 = vmatpush1.msra.mxu0 0.0
    %4352 = vmatprep.subr.mxu0 0.0
    %4353 = vmatpush1.msra.mxu0 0.0
    %4354 = vmatprep.subr.mxu0 0.0
    %4355 = vmatpush1.msra.mxu0 0.0
    %4356 = vmatprep.subr.mxu0 0.0
    %4357 = vmatpush1.msra.mxu0 0.0
    %4358 = vmatprep.subr.mxu0 0.0
    %4359 = vmatpush1.msra.mxu0 0.0
    %4360 = vmatprep.subr.mxu0 0.0
    %4361 = vmatpush1.msra.mxu0 0.0
    %4362 = vmatprep.subr.mxu0 0.0
    %4363 = vmatpush1.msra.mxu0 0.0
    %4364 = vmatprep.subr.mxu0 0.0
    %4365 = vmatpush1.msra.mxu0 0.0
    %4366 = vmatprep.subr.mxu0 0.0
    %4367 = vmatpush1.msra.mxu0 0.0
    %4368 = vmatprep.subr.mxu0 0.0
    %4369 = vmatpush1.msra.mxu0 0.0
    %4370 = vmatprep.subr.mxu0 0.0
    %4371 = vmatpush1.msra.mxu0 0.0
    %4372 = vmatprep.subr.mxu0 0.0
    %4373 = vmatpush1.msra.mxu0 0.0
    %4374 = vmatprep.subr.mxu0 0.0
    %4375 = vmatpush1.msra.mxu0 0.0
    %4376 = vmatprep.subr.mxu0 0.0
    %4377 = vmatpush1.msra.mxu0 0.0
    %4378 = vmatprep.mubr.f32.mxu0 0.0
    %4379 = vmatmul.mubr.f32.gmra.mrb[0].mxu0 %v4312
    %v4380 = vpop.f32.mrb[0].mxu0
    %v4381 = vadd.f32 0.0, %v4380
    %v4382 = vpop.f32.mrb[0].mxu0
    %4383 = vdwg.mxu0
    %4385 = vrot.lane.b32.xlu0 %v4051, 8
    %v4386 = vpop.permute.xlu0 %4385
    %4389 = vrot.lane.b32.xlu0 %v4216, 16
    %v4390 = vpop.permute.xlu0 %4389
    %4393 = vrot.lane.b32.xlu0 %v4381, 24
    %v4394 = vpop.permute.xlu0 %4393
    %v4396 = vsel %vm114, %v3886, %v4386
    %v4397 = vsel %vm785, %v4396, %v4390
    %v4398 = vsel %vm787, %v4397, %v4394
    %4400 = vrot.lane.b32.xlu0 %v3719, 96
    %v4401 = vpop.permute.xlu0 %4400
    %v4403 = vsel %vm114, %v3723, 0
    %v4405 = vsel %vm114, %v4401, 0
    %4407 = vmatprep.subr.mxu0 0.0
    %4408 = vmatpush1.xpose.msra.mxu0 %v4405
    %4409 = vmatprep.subr.mxu0 0.0
    %4410 = vmatpush1.xpose.msra.mxu0 0.0
    %4411 = vmatprep.subr.mxu0 0.0
    %4412 = vmatpush1.xpose.msra.mxu0 0.0
    %4413 = vmatprep.subr.mxu0 0.0
    %4414 = vmatpush1.xpose.msra.mxu0 0.0
    %4415 = vmatprep.subr.mxu0 0.0
    %4416 = vmatpush1.xpose.msra.mxu0 0.0
    %4417 = vmatprep.subr.mxu0 0.0
    %4418 = vmatpush1.xpose.msra.mxu0 0.0
    %4419 = vmatprep.subr.mxu0 0.0
    %4420 = vmatpush1.xpose.msra.mxu0 0.0
    %4421 = vmatprep.subr.mxu0 0.0
    %4422 = vmatpush1.xpose.msra.mxu0 0.0
    %4423 = vmatprep.subr.mxu0 0.0
    %4424 = vmatpush1.xpose.msra.mxu0 0.0
    %4425 = vmatprep.subr.mxu0 0.0
    %4426 = vmatpush1.xpose.msra.mxu0 0.0
    %4427 = vmatprep.subr.mxu0 0.0
    %4428 = vmatpush1.xpose.msra.mxu0 0.0
    %4429 = vmatprep.subr.mxu0 0.0
    %4430 = vmatpush1.xpose.msra.mxu0 0.0
    %4431 = vmatprep.subr.mxu0 0.0
    %4432 = vmatpush1.xpose.msra.mxu0 0.0
    %4433 = vmatprep.subr.mxu0 0.0
    %4434 = vmatpush1.xpose.msra.mxu0 0.0
    %4435 = vmatprep.subr.mxu0 0.0
    %4436 = vmatpush1.xpose.msra.mxu0 0.0
    %4437 = vmatprep.subr.mxu0 0.0
    %4438 = vmatpush1.xpose.msra.mxu0 0.0
    %4439 = vmatprep.subr.mxu0 0.0
    %4440 = vmatpush1.xpose.msra.mxu0 0.0
    %4441 = vmatprep.subr.mxu0 0.0
    %4442 = vmatpush1.xpose.msra.mxu0 0.0
    %4443 = vmatprep.subr.mxu0 0.0
    %4444 = vmatpush1.xpose.msra.mxu0 0.0
    %4445 = vmatprep.subr.mxu0 0.0
    %4446 = vmatpush1.xpose.msra.mxu0 0.0
    %4447 = vmatprep.subr.mxu0 0.0
    %4448 = vmatpush1.xpose.msra.mxu0 0.0
    %4449 = vmatprep.subr.mxu0 0.0
    %4450 = vmatpush1.xpose.msra.mxu0 0.0
    %4451 = vmatprep.subr.mxu0 0.0
    %4452 = vmatpush1.xpose.msra.mxu0 0.0
    %4453 = vmatprep.subr.mxu0 0.0
    %4454 = vmatpush1.xpose.msra.mxu0 0.0
    %4455 = vmatprep.subr.mxu0 0.0
    %4456 = vmatpush1.xpose.msra.mxu0 0.0
    %4457 = vmatprep.subr.mxu0 0.0
    %4458 = vmatpush1.xpose.msra.mxu0 0.0
    %4459 = vmatprep.subr.mxu0 0.0
    %4460 = vmatpush1.xpose.msra.mxu0 0.0
    %4461 = vmatprep.subr.mxu0 0.0
    %4462 = vmatpush1.xpose.msra.mxu0 0.0
    %4463 = vmatprep.subr.mxu0 0.0
    %4464 = vmatpush1.xpose.msra.mxu0 0.0
    %4465 = vmatprep.subr.mxu0 0.0
    %4466 = vmatpush1.xpose.msra.mxu0 0.0
    %4467 = vmatprep.subr.mxu0 0.0
    %4468 = vmatpush1.xpose.msra.mxu0 0.0
    %4469 = vmatprep.subr.mxu0 0.0
    %4470 = vmatpush1.xpose.msra.mxu0 0.0
    %4471 = vmatprep.mubr.f32.mxu0 0.0
    %4472 = vmatmul.mubr.f32.gmra.mrb[0].mxu0 %v4403
    %v4473 = vpop.f32.mrb[0].mxu0
    %v4474 = vadd.f32 0.0, %v4473
    %v4475 = vpop.f32.mrb[0].mxu0
    %4476 = vdwg.mxu0
    %v4477 = vsel %vm114, %v4474, -inf
    %4478 = vmax.xlane.f32.xlu0 %v4477
    %v4479 = vpop.xlane.xlu0 %4478
    %v4480 = vsub.f32 %v4474, %v4479
    %v4481 = vmul.f32 %v4480, 1.442695
    %v4482 = vpow.pop %v4481
    %v4483 = vsel %vm114, %v4482, 0.0
    %4484 = vadd.xlane.f32.xlu0 %v4483
    %v4485 = vpop.xlane.xlu0 %4484
    %v4486 = vrcp.pop %v4485
    %v4487 = vmul.f32 %v4482, %v4486
    %4488 = vrot.lane.b32.xlu0 %v3719, 64
    %v4489 = vpop.permute.xlu0 %4488
    %v4492 = vsel %vm114, %v4487, 0
    %4494 = vmatprep.subr.mxu0 0.0
    %4495 = vmatpush1.msra.mxu0 %v4489
    %4496 = vmatprep.subr.mxu0 0.0
    %4497 = vmatpush1.msra.mxu0 0.0
    %4498 = vmatprep.subr.mxu0 0.0
    %4499 = vmatpush1.msra.mxu0 0.0
    %4500 = vmatprep.subr.mxu0 0.0
    %4501 = vmatpush1.msra.mxu0 0.0
    %4502 = vmatprep.subr.mxu0 0.0
    %4503 = vmatpush1.msra.mxu0 0.0
    %4504 = vmatprep.subr.mxu0 0.0
    %4505 = vmatpush1.msra.mxu0 0.0
    %4506 = vmatprep.subr.mxu0 0.0
    %4507 = vmatpush1.msra.mxu0 0.0
    %4508 = vmatprep.subr.mxu0 0.0
    %4509 = vmatpush1.msra.mxu0 0.0
    %4510 = vmatprep.subr.mxu0 0.0
    %4511 = vmatpush1.msra.mxu0 0.0
    %4512 = vmatprep.subr.mxu0 0.0
    %4513 = vmatpush1.msra.mxu0 0.0
    %4514 = vmatprep.subr.mxu0 0.0
    %4515 = vmatpush1.msra.mxu0 0.0
    %4516 = vmatprep.subr.mxu0 0.0
    %4517 = vmatpush1.msra.mxu0 0.0
    %4518 = vmatprep.subr.mxu0 0.0
    %4519 = vmatpush1.msra.mxu0 0.0
    %4520 = vmatprep.subr.mxu0 0.0
    %4521 = vmatpush1.msra.mxu0 0.0
    %4522 = vmatprep.subr.mxu0 0.0
    %4523 = vmatpush1.msra.mxu0 0.0
    %4524 = vmatprep.subr.mxu0 0.0
    %4525 = vmatpush1.msra.mxu0 0.0
    %4526 = vmatprep.subr.mxu0 0.0
    %4527 = vmatpush1.msra.mxu0 0.0
    %4528 = vmatprep.subr.mxu0 0.0
    %4529 = vmatpush1.msra.mxu0 0.0
    %4530 = vmatprep.subr.mxu0 0.0
    %4531 = vmatpush1.msra.mxu0 0.0
    %4532 = vmatprep.subr.mxu0 0.0
    %4533 = vmatpush1.msra.mxu0 0.0
    %4534 = vmatprep.subr.mxu0 0.0
    %4535 = vmatpush1.msra.mxu0 0.0
    %4536 = vmatprep.subr.mxu0 0.0
    %4537 = vmatpush1.msra.mxu0 0.0
    %4538 = vmatprep.subr.mxu0 0.0
    %4539 = vmatpush1.msra.mxu0 0.0
    %4540 = vmatprep.subr.mxu0 0.0
    %4541 = vmatpush1.msra.mxu0 0.0
    %4542 = vmatprep.subr.mxu0 0.0
    %4543 = vmatpush1.msra.mxu0 0.0
    %4544 = vmatprep.subr.mxu0 0.0
    %4545 = vmatpush1.msra.mxu0 0.0
    %4546 = vmatprep.subr.mxu0 0.0
    %4547 = vmatpush1.msra.mxu0 0.0
    %4548 = vmatprep.subr.mxu0 0.0
    %4549 = vmatpush1.msra.mxu0 0.0
    %4550 = vmatprep.subr.mxu0 0.0
    %4551 = vmatpush1.msra.mxu0 0.0
    %4552 = vmatprep.subr.mxu0 0.0
    %4553 = vmatpush1.msra.mxu0 0.0
    %4554 = vmatprep.subr.mxu0 0.0
    %4555 = vmatpush1.msra.mxu0 0.0
    %4556 = vmatprep.subr.mxu0 0.0
    %4557 = vmatpush1.msra.mxu0 0.0
    %4558 = vmatprep.mubr.f32.mxu0 0.0
    %4559 = vmatmul.mubr.f32.gmra.mrb[0].mxu0 %v4492
    %v4560 = vpop.f32.mrb[0].mxu0
    %v4561 = vadd.f32 0.0, %v4560
    %v4562 = vpop.f32.mrb[0].mxu0
    %4563 = vdwg.mxu0
    %4564 = vrot.lane.b32.xlu0 %v3723, 120
    %v4565 = vpop.permute.xlu0 %4564
    %4566 = vrot.lane.b32.xlu0 %v3719, 88
    %v4567 = vpop.permute.xlu0 %4566
    %v4568 = vsel %vm114, %v4565, 0
    %v4570 = vsel %vm114, %v4567, 0
    %4572 = vmatprep.subr.mxu0 0.0
    %4573 = vmatpush1.xpose.msra.mxu0 %v4570
    %4574 = vmatprep.subr.mxu0 0.0
    %4575 = vmatpush1.xpose.msra.mxu0 0.0
    %4576 = vmatprep.subr.mxu0 0.0
    %4577 = vmatpush1.xpose.msra.mxu0 0.0
    %4578 = vmatprep.subr.mxu0 0.0
    %4579 = vmatpush1.xpose.msra.mxu0 0.0
    %4580 = vmatprep.subr.mxu0 0.0
    %4581 = vmatpush1.xpose.msra.mxu0 0.0
    %4582 = vmatprep.subr.mxu0 0.0
    %4583 = vmatpush1.xpose.msra.mxu0 0.0
    %4584 = vmatprep.subr.mxu0 0.0
    %4585 = vmatpush1.xpose.msra.mxu0 0.0
    %4586 = vmatprep.subr.mxu0 0.0
    %4587 = vmatpush1.xpose.msra.mxu0 0.0
    %4588 = vmatprep.subr.mxu0 0.0
    %4589 = vmatpush1.xpose.msra.mxu0 0.0
    %4590 = vmatprep.subr.mxu0 0.0
    %4591 = vmatpush1.xpose.msra.mxu0 0.0
    %4592 = vmatprep.subr.mxu0 0.0
    %4593 = vmatpush1.xpose.msra.mxu0 0.0
    %4594 = vmatprep.subr.mxu0 0.0
    %4595 = vmatpush1.xpose.msra.mxu0 0.0
    %4596 = vmatprep.subr.mxu0 0.0
    %4597 = vmatpush1.xpose.msra.mxu0 0.0
    %4598 = vmatprep.subr.mxu0 0.0
    %4599 = vmatpush1.xpose.msra.mxu0 0.0
    %4600 = vmatprep.subr.mxu0 0.0
    %4601 = vmatpush1.xpose.msra.mxu0 0.0
    %4602 = vmatprep.subr.mxu0 0.0
    %4603 = vmatpush1.xpose.msra.mxu0 0.0
    %4604 = vmatprep.subr.mxu0 0.0
    %4605 = vmatpush1.xpose.msra.mxu0 0.0
    %4606 = vmatprep.subr.mxu0 0.0
    %4607 = vmatpush1.xpose.msra.mxu0 0.0
    %4608 = vmatprep.subr.mxu0 0.0
    %4609 = vmatpush1.xpose.msra.mxu0 0.0
    %4610 = vmatprep.subr.mxu0 0.0
    %4611 = vmatpush1.xpose.msra.mxu0 0.0
    %4612 = vmatprep.subr.mxu0 0.0
    %4613 = vmatpush1.xpose.msra.mxu0 0.0
    %4614 = vmatprep.subr.mxu0 0.0
    %4615 = vmatpush1.xpose.msra.mxu0 0.0
    %4616 = vmatprep.subr.mxu0 0.0
    %4617 = vmatpush1.xpose.msra.mxu0 0.0
    %4618 = vmatprep.subr.mxu0 0.0
    %4619 = vmatpush1.xpose.msra.mxu0 0.0
    %4620 = vmatprep.subr.mxu0 0.0
    %4621 = vmatpush1.xpose.msra.mxu0 0.0
    %4622 = vmatprep.subr.mxu0 0.0
    %4623 = vmatpush1.xpose.msra.mxu0 0.0
    %4624 = vmatprep.subr.mxu0 0.0
    %4625 = vmatpush1.xpose.msra.mxu0 0.0
    %4626 = vmatprep.subr.mxu0 0.0
    %4627 = vmatpush1.xpose.msra.mxu0 0.0
    %4628 = vmatprep.subr.mxu0 0.0
    %4629 = vmatpush1.xpose.msra.mxu0 0.0
    %4630 = vmatprep.subr.mxu0 0.0
    %4631 = vmatpush1.xpose.msra.mxu0 0.0
    %4632 = vmatprep.subr.mxu0 0.0
    %4633 = vmatpush1.xpose.msra.mxu0 0.0
    %4634 = vmatprep.subr.mxu0 0.0
    %4635 = vmatpush1.xpose.msra.mxu0 0.0
    %4636 = vmatprep.mubr.f32.mxu0 0.0
    %4637 = vmatmul.mubr.f32.gmra.mrb[0].mxu0 %v4568
    %v4638 = vpop.f32.mrb[0].mxu0
    %v4639 = vadd.f32 0.0, %v4638
    %v4640 = vpop.f32.mrb[0].mxu0
    %4641 = vdwg.mxu0
    %v4642 = vsel %vm114, %v4639, -inf
    %4643 = vmax.xlane.f32.xlu0 %v4642
    %v4644 = vpop.xlane.xlu0 %4643
    %v4645 = vsub.f32 %v4639, %v4644
    %v4646 = vmul.f32 %v4645, 1.442695
    %v4647 = vpow.pop %v4646
    %v4648 = vsel %vm114, %v4647, 0.0
    %4649 = vadd.xlane.f32.xlu0 %v4648
    %v4650 = vpop.xlane.xlu0 %4649
    %v4651 = vrcp.pop %v4650
    %v4652 = vmul.f32 %v4647, %v4651
    %4653 = vrot.lane.b32.xlu0 %v3719, 56
    %v4654 = vpop.permute.xlu0 %4653
    %v4657 = vsel %vm114, %v4652, 0
    %4659 = vmatprep.subr.mxu0 0.0
    %4660 = vmatpush1.msra.mxu0 %v4654
    %4661 = vmatprep.subr.mxu0 0.0
    %4662 = vmatpush1.msra.mxu0 0.0
    %4663 = vmatprep.subr.mxu0 0.0
    %4664 = vmatpush1.msra.mxu0 0.0
    %4665 = vmatprep.subr.mxu0 0.0
    %4666 = vmatpush1.msra.mxu0 0.0
    %4667 = vmatprep.subr.mxu0 0.0
    %4668 = vmatpush1.msra.mxu0 0.0
    %4669 = vmatprep.subr.mxu0 0.0
    %4670 = vmatpush1.msra.mxu0 0.0
    %4671 = vmatprep.subr.mxu0 0.0
    %4672 = vmatpush1.msra.mxu0 0.0
    %4673 = vmatprep.subr.mxu0 0.0
    %4674 = vmatpush1.msra.mxu0 0.0
    %4675 = vmatprep.subr.mxu0 0.0
    %4676 = vmatpush1.msra.mxu0 0.0
    %4677 = vmatprep.subr.mxu0 0.0
    %4678 = vmatpush1.msra.mxu0 0.0
    %4679 = vmatprep.subr.mxu0 0.0
    %4680 = vmatpush1.msra.mxu0 0.0
    %4681 = vmatprep.subr.mxu0 0.0
    %4682 = vmatpush1.msra.mxu0 0.0
    %4683 = vmatprep.subr.mxu0 0.0
    %4684 = vmatpush1.msra.mxu0 0.0
    %4685 = vmatprep.subr.mxu0 0.0
    %4686 = vmatpush1.msra.mxu0 0.0
    %4687 = vmatprep.subr.mxu0 0.0
    %4688 = vmatpush1.msra.mxu0 0.0
    %4689 = vmatprep.subr.mxu0 0.0
    %4690 = vmatpush1.msra.mxu0 0.0
    %4691 = vmatprep.subr.mxu0 0.0
    %4692 = vmatpush1.msra.mxu0 0.0
    %4693 = vmatprep.subr.mxu0 0.0
    %4694 = vmatpush1.msra.mxu0 0.0
    %4695 = vmatprep.subr.mxu0 0.0
    %4696 = vmatpush1.msra.mxu0 0.0
    %4697 = vmatprep.subr.mxu0 0.0
    %4698 = vmatpush1.msra.mxu0 0.0
    %4699 = vmatprep.subr.mxu0 0.0
    %4700 = vmatpush1.msra.mxu0 0.0
    %4701 = vmatprep.subr.mxu0 0.0
    %4702 = vmatpush1.msra.mxu0 0.0
    %4703 = vmatprep.subr.mxu0 0.0
    %4704 = vmatpush1.msra.mxu0 0.0
    %4705 = vmatprep.subr.mxu0 0.0
    %4706 = vmatpush1.msra.mxu0 0.0
    %4707 = vmatprep.subr.mxu0 0.0
    %4708 = vmatpush1.msra.mxu0 0.0
    %4709 = vmatprep.subr.mxu0 0.0
    %4710 = vmatpush1.msra.mxu0 0.0
    %4711 = vmatprep.subr.mxu0 0.0
    %4712 = vmatpush1.msra.mxu0 0.0
    %4713 = vmatprep.subr.mxu0 0.0
    %4714 = vmatpush1.msra.mxu0 0.0
    %4715 = vmatprep.subr.mxu0 0.0
    %4716 = vmatpush1.msra.mxu0 0.0
    %4717 = vmatprep.subr.mxu0 0.0
    %4718 = vmatpush1.msra.mxu0 0.0
    %4719 = vmatprep.subr.mxu0 0.0
    %4720 = vmatpush1.msra.mxu0 0.0
    %4721 = vmatprep.subr.mxu0 0.0
    %4722 = vmatpush1.msra.mxu0 0.0
    %4723 = vmatprep.mubr.f32.mxu0 0.0
    %4724 = vmatmul.mubr.f32.gmra.mrb[0].mxu0 %v4657
    %v4725 = vpop.f32.mrb[0].mxu0
    %v4726 = vadd.f32 0.0, %v4725
    %v4727 = vpop.f32.mrb[0].mxu0
    %4728 = vdwg.mxu0
    %4729 = vrot.lane.b32.xlu0 %v3723, 112
    %v4730 = vpop.permute.xlu0 %4729
    %4731 = vrot.lane.b32.xlu0 %v3719, 80
    %v4732 = vpop.permute.xlu0 %4731
    %v4733 = vsel %vm114, %v4730, 0
    %v4735 = vsel %vm114, %v4732, 0
    %4737 = vmatprep.subr.mxu0 0.0
    %4738 = vmatpush1.xpose.msra.mxu0 %v4735
    %4739 = vmatprep.subr.mxu0 0.0
    %4740 = vmatpush1.xpose.msra.mxu0 0.0
    %4741 = vmatprep.subr.mxu0 0.0
    %4742 = vmatpush1.xpose.msra.mxu0 0.0
    %4743 = vmatprep.subr.mxu0 0.0
    %4744 = vmatpush1.xpose.msra.mxu0 0.0
    %4745 = vmatprep.subr.mxu0 0.0
    %4746 = vmatpush1.xpose.msra.mxu0 0.0
    %4747 = vmatprep.subr.mxu0 0.0
    %4748 = vmatpush1.xpose.msra.mxu0 0.0
    %4749 = vmatprep.subr.mxu0 0.0
    %4750 = vmatpush1.xpose.msra.mxu0 0.0
    %4751 = vmatprep.subr.mxu0 0.0
    %4752 = vmatpush1.xpose.msra.mxu0 0.0
    %4753 = vmatprep.subr.mxu0 0.0
    %4754 = vmatpush1.xpose.msra.mxu0 0.0
    %4755 = vmatprep.subr.mxu0 0.0
    %4756 = vmatpush1.xpose.msra.mxu0 0.0
    %4757 = vmatprep.subr.mxu0 0.0
    %4758 = vmatpush1.xpose.msra.mxu0 0.0
    %4759 = vmatprep.subr.mxu0 0.0
    %4760 = vmatpush1.xpose.msra.mxu0 0.0
    %4761 = vmatprep.subr.mxu0 0.0
    %4762 = vmatpush1.xpose.msra.mxu0 0.0
    %4763 = vmatprep.subr.mxu0 0.0
    %4764 = vmatpush1.xpose.msra.mxu0 0.0
    %4765 = vmatprep.subr.mxu0 0.0
    %4766 = vmatpush1.xpose.msra.mxu0 0.0
    %4767 = vmatprep.subr.mxu0 0.0
    %4768 = vmatpush1.xpose.msra.mxu0 0.0
    %4769 = vmatprep.subr.mxu0 0.0
    %4770 = vmatpush1.xpose.msra.mxu0 0.0
    %4771 = vmatprep.subr.mxu0 0.0
    %4772 = vmatpush1.xpose.msra.mxu0 0.0
    %4773 = vmatprep.subr.mxu0 0.0
    %4774 = vmatpush1.xpose.msra.mxu0 0.0
    %4775 = vmatprep.subr.mxu0 0.0
    %4776 = vmatpush1.xpose.msra.mxu0 0.0
    %4777 = vmatprep.subr.mxu0 0.0
    %4778 = vmatpush1.xpose.msra.mxu0 0.0
    %4779 = vmatprep.subr.mxu0 0.0
    %4780 = vmatpush1.xpose.msra.mxu0 0.0
    %4781 = vmatprep.subr.mxu0 0.0
    %4782 = vmatpush1.xpose.msra.mxu0 0.0
    %4783 = vmatprep.subr.mxu0 0.0
    %4784 = vmatpush1.xpose.msra.mxu0 0.0
    %4785 = vmatprep.subr.mxu0 0.0
    %4786 = vmatpush1.xpose.msra.mxu0 0.0
    %4787 = vmatprep.subr.mxu0 0.0
    %4788 = vmatpush1.xpose.msra.mxu0 0.0
    %4789 = vmatprep.subr.mxu0 0.0
    %4790 = vmatpush1.xpose.msra.mxu0 0.0
    %4791 = vmatprep.subr.mxu0 0.0
    %4792 = vmatpush1.xpose.msra.mxu0 0.0
    %4793 = vmatprep.subr.mxu0 0.0
    %4794 = vmatpush1.xpose.msra.mxu0 0.0
    %4795 = vmatprep.subr.mxu0 0.0
    %4796 = vmatpush1.xpose.msra.mxu0 0.0
    %4797 = vmatprep.subr.mxu0 0.0
    %4798 = vmatpush1.xpose.msra.mxu0 0.0
    %4799 = vmatprep.subr.mxu0 0.0
    %4800 = vmatpush1.xpose.msra.mxu0 0.0
    %4801 = vmatprep.mubr.f32.mxu0 0.0
    %4802 = vmatmul.mubr.f32.gmra.mrb[0].mxu0 %v4733
    %v4803 = vpop.f32.mrb[0].mxu0
    %v4804 = vadd.f32 0.0, %v4803
    %v4805 = vpop.f32.mrb[0].mxu0
    %4806 = vdwg.mxu0
    %v4807 = vsel %vm114, %v4804, -inf
    %4808 = vmax.xlane.f32.xlu0 %v4807
    %v4809 = vpop.xlane.xlu0 %4808
    %v4810 = vsub.f32 %v4804, %v4809
    %v4811 = vmul.f32 %v4810, 1.442695
    %v4812 = vpow.pop %v4811
    %v4813 = vsel %vm114, %v4812, 0.0
    %4814 = vadd.xlane.f32.xlu0 %v4813
    %v4815 = vpop.xlane.xlu0 %4814
    %v4816 = vrcp.pop %v4815
    %v4817 = vmul.f32 %v4812, %v4816
    %4818 = vrot.lane.b32.xlu0 %v3719, 48
    %v4819 = vpop.permute.xlu0 %4818
    %v4822 = vsel %vm114, %v4817, 0
    %4824 = vmatprep.subr.mxu0 0.0
    %4825 = vmatpush1.msra.mxu0 %v4819
    %4826 = vmatprep.subr.mxu0 0.0
    %4827 = vmatpush1.msra.mxu0 0.0
    %4828 = vmatprep.subr.mxu0 0.0
    %4829 = vmatpush1.msra.mxu0 0.0
    %4830 = vmatprep.subr.mxu0 0.0
    %4831 = vmatpush1.msra.mxu0 0.0
    %4832 = vmatprep.subr.mxu0 0.0
    %4833 = vmatpush1.msra.mxu0 0.0
    %4834 = vmatprep.subr.mxu0 0.0
    %4835 = vmatpush1.msra.mxu0 0.0
    %4836 = vmatprep.subr.mxu0 0.0
    %4837 = vmatpush1.msra.mxu0 0.0
    %4838 = vmatprep.subr.mxu0 0.0
    %4839 = vmatpush1.msra.mxu0 0.0
    %4840 = vmatprep.subr.mxu0 0.0
    %4841 = vmatpush1.msra.mxu0 0.0
    %4842 = vmatprep.subr.mxu0 0.0
    %4843 = vmatpush1.msra.mxu0 0.0
    %4844 = vmatprep.subr.mxu0 0.0
    %4845 = vmatpush1.msra.mxu0 0.0
    %4846 = vmatprep.subr.mxu0 0.0
    %4847 = vmatpush1.msra.mxu0 0.0
    %4848 = vmatprep.subr.mxu0 0.0
    %4849 = vmatpush1.msra.mxu0 0.0
    %4850 = vmatprep.subr.mxu0 0.0
    %4851 = vmatpush1.msra.mxu0 0.0
    %4852 = vmatprep.subr.mxu0 0.0
    %4853 = vmatpush1.msra.mxu0 0.0
    %4854 = vmatprep.subr.mxu0 0.0
    %4855 = vmatpush1.msra.mxu0 0.0
    %4856 = vmatprep.subr.mxu0 0.0
    %4857 = vmatpush1.msra.mxu0 0.0
    %4858 = vmatprep.subr.mxu0 0.0
    %4859 = vmatpush1.msra.mxu0 0.0
    %4860 = vmatprep.subr.mxu0 0.0
    %4861 = vmatpush1.msra.mxu0 0.0
    %4862 = vmatprep.subr.mxu0 0.0
    %4863 = vmatpush1.msra.mxu0 0.0
    %4864 = vmatprep.subr.mxu0 0.0
    %4865 = vmatpush1.msra.mxu0 0.0
    %4866 = vmatprep.subr.mxu0 0.0
    %4867 = vmatpush1.msra.mxu0 0.0
    %4868 = vmatprep.subr.mxu0 0.0
    %4869 = vmatpush1.msra.mxu0 0.0
    %4870 = vmatprep.subr.mxu0 0.0
    %4871 = vmatpush1.msra.mxu0 0.0
    %4872 = vmatprep.subr.mxu0 0.0
    %4873 = vmatpush1.msra.mxu0 0.0
    %4874 = vmatprep.subr.mxu0 0.0
    %4875 = vmatpush1.msra.mxu0 0.0
    %4876 = vmatprep.subr.mxu0 0.0
    %4877 = vmatpush1.msra.mxu0 0.0
    %4878 = vmatprep.subr.mxu0 0.0
    %4879 = vmatpush1.msra.mxu0 0.0
    %4880 = vmatprep.subr.mxu0 0.0
    %4881 = vmatpush1.msra.mxu0 0.0
    %4882 = vmatprep.subr.mxu0 0.0
    %4883 = vmatpush1.msra.mxu0 0.0
    %4884 = vmatprep.subr.mxu0 0.0
    %4885 = vmatpush1.msra.mxu0 0.0
    %4886 = vmatprep.subr.mxu0 0.0
    %4887 = vmatpush1.msra.mxu0 0.0
    %4888 = vmatprep.mubr.f32.mxu0 0.0
    %4889 = vmatmul.mubr.f32.gmra.mrb[0].mxu0 %v4822
    %v4890 = vpop.f32.mrb[0].mxu0
    %v4891 = vadd.f32 0.0, %v4890
    %v4892 = vpop.f32.mrb[0].mxu0
    %4893 = vdwg.mxu0
    %4894 = vrot.lane.b32.xlu0 %v3723, 104
    %v4895 = vpop.permute.xlu0 %4894
    %4896 = vrot.lane.b32.xlu0 %v3719, 72
    %v4897 = vpop.permute.xlu0 %4896
    %v4898 = vsel %vm114, %v4895, 0
    %v4900 = vsel %vm114, %v4897, 0
    %4902 = vmatprep.subr.mxu0 0.0
    %4903 = vmatpush1.xpose.msra.mxu0 %v4900
    %4904 = vmatprep.subr.mxu0 0.0
    %4905 = vmatpush1.xpose.msra.mxu0 0.0
    %4906 = vmatprep.subr.mxu0 0.0
    %4907 = vmatpush1.xpose.msra.mxu0 0.0
    %4908 = vmatprep.subr.mxu0 0.0
    %4909 = vmatpush1.xpose.msra.mxu0 0.0
    %4910 = vmatprep.subr.mxu0 0.0
    %4911 = vmatpush1.xpose.msra.mxu0 0.0
    %4912 = vmatprep.subr.mxu0 0.0
    %4913 = vmatpush1.xpose.msra.mxu0 0.0
    %4914 = vmatprep.subr.mxu0 0.0
    %4915 = vmatpush1.xpose.msra.mxu0 0.0
    %4916 = vmatprep.subr.mxu0 0.0
    %4917 = vmatpush1.xpose.msra.mxu0 0.0
    %4918 = vmatprep.subr.mxu0 0.0
    %4919 = vmatpush1.xpose.msra.mxu0 0.0
    %4920 = vmatprep.subr.mxu0 0.0
    %4921 = vmatpush1.xpose.msra.mxu0 0.0
    %4922 = vmatprep.subr.mxu0 0.0
    %4923 = vmatpush1.xpose.msra.mxu0 0.0
    %4924 = vmatprep.subr.mxu0 0.0
    %4925 = vmatpush1.xpose.msra.mxu0 0.0
    %4926 = vmatprep.subr.mxu0 0.0
    %4927 = vmatpush1.xpose.msra.mxu0 0.0
    %4928 = vmatprep.subr.mxu0 0.0
    %4929 = vmatpush1.xpose.msra.mxu0 0.0
    %4930 = vmatprep.subr.mxu0 0.0
    %4931 = vmatpush1.xpose.msra.mxu0 0.0
    %4932 = vmatprep.subr.mxu0 0.0
    %4933 = vmatpush1.xpose.msra.mxu0 0.0
    %4934 = vmatprep.subr.mxu0 0.0
    %4935 = vmatpush1.xpose.msra.mxu0 0.0
    %4936 = vmatprep.subr.mxu0 0.0
    %4937 = vmatpush1.xpose.msra.mxu0 0.0
    %4938 = vmatprep.subr.mxu0 0.0
    %4939 = vmatpush1.xpose.msra.mxu0 0.0
    %4940 = vmatprep.subr.mxu0 0.0
    %4941 = vmatpush1.xpose.msra.mxu0 0.0
    %4942 = vmatprep.subr.mxu0 0.0
    %4943 = vmatpush1.xpose.msra.mxu0 0.0
    %4944 = vmatprep.subr.mxu0 0.0
    %4945 = vmatpush1.xpose.msra.mxu0 0.0
    %4946 = vmatprep.subr.mxu0 0.0
    %4947 = vmatpush1.xpose.msra.mxu0 0.0
    %4948 = vmatprep.subr.mxu0 0.0
    %4949 = vmatpush1.xpose.msra.mxu0 0.0
    %4950 = vmatprep.subr.mxu0 0.0
    %4951 = vmatpush1.xpose.msra.mxu0 0.0
    %4952 = vmatprep.subr.mxu0 0.0
    %4953 = vmatpush1.xpose.msra.mxu0 0.0
    %4954 = vmatprep.subr.mxu0 0.0
    %4955 = vmatpush1.xpose.msra.mxu0 0.0
    %4956 = vmatprep.subr.mxu0 0.0
    %4957 = vmatpush1.xpose.msra.mxu0 0.0
    %4958 = vmatprep.subr.mxu0 0.0
    %4959 = vmatpush1.xpose.msra.mxu0 0.0
    %4960 = vmatprep.subr.mxu0 0.0
    %4961 = vmatpush1.xpose.msra.mxu0 0.0
    %4962 = vmatprep.subr.mxu0 0.0
    %4963 = vmatpush1.xpose.msra.mxu0 0.0
    %4964 = vmatprep.subr.mxu0 0.0
    %4965 = vmatpush1.xpose.msra.mxu0 0.0
    %4966 = vmatprep.mubr.f32.mxu0 0.0
    %4967 = vmatmul.mubr.f32.gmra.mrb[0].mxu0 %v4898
    %v4968 = vpop.f32.mrb[0].mxu0
    %v4969 = vadd.f32 0.0, %v4968
    %v4970 = vpop.f32.mrb[0].mxu0
    %4971 = vdwg.mxu0
    %v4972 = vsel %vm114, %v4969, -inf
    %4973 = vmax.xlane.f32.xlu0 %v4972
    %v4974 = vpop.xlane.xlu0 %4973
    %v4975 = vsub.f32 %v4969, %v4974
    %v4976 = vmul.f32 %v4975, 1.442695
    %v4977 = vpow.pop %v4976
    %v4978 = vsel %vm114, %v4977, 0.0
    %4979 = vadd.xlane.f32.xlu0 %v4978
    %v4980 = vpop.xlane.xlu0 %4979
    %v4981 = vrcp.pop %v4980
    %v4982 = vmul.f32 %v4977, %v4981
    %4983 = vrot.lane.b32.xlu0 %v3719, 40
    %v4984 = vpop.permute.xlu0 %4983
    %v4987 = vsel %vm114, %v4982, 0
    %4989 = vmatprep.subr.mxu0 0.0
    %4990 = vmatpush1.msra.mxu0 %v4984
    %4991 = vmatprep.subr.mxu0 0.0
    %4992 = vmatpush1.msra.mxu0 0.0
    %4993 = vmatprep.subr.mxu0 0.0
    %4994 = vmatpush1.msra.mxu0 0.0
    %4995 = vmatprep.subr.mxu0 0.0
    %4996 = vmatpush1.msra.mxu0 0.0
    %4997 = vmatprep.subr.mxu0 0.0
    %4998 = vmatpush1.msra.mxu0 0.0
    %4999 = vmatprep.subr.mxu0 0.0
    %5000 = vmatpush1.msra.mxu0 0.0
    %5001 = vmatprep.subr.mxu0 0.0
    %5002 = vmatpush1.msra.mxu0 0.0
    %5003 = vmatprep.subr.mxu0 0.0
    %5004 = vmatpush1.msra.mxu0 0.0
    %5005 = vmatprep.subr.mxu0 0.0
    %5006 = vmatpush1.msra.mxu0 0.0
    %5007 = vmatprep.subr.mxu0 0.0
    %5008 = vmatpush1.msra.mxu0 0.0
    %5009 = vmatprep.subr.mxu0 0.0
    %5010 = vmatpush1.msra.mxu0 0.0
    %5011 = vmatprep.subr.mxu0 0.0
    %5012 = vmatpush1.msra.mxu0 0.0
    %5013 = vmatprep.subr.mxu0 0.0
    %5014 = vmatpush1.msra.mxu0 0.0
    %5015 = vmatprep.subr.mxu0 0.0
    %5016 = vmatpush1.msra.mxu0 0.0
    %5017 = vmatprep.subr.mxu0 0.0
    %5018 = vmatpush1.msra.mxu0 0.0
    %5019 = vmatprep.subr.mxu0 0.0
    %5020 = vmatpush1.msra.mxu0 0.0
    %5021 = vmatprep.subr.mxu0 0.0
    %5022 = vmatpush1.msra.mxu0 0.0
    %5023 = vmatprep.subr.mxu0 0.0
    %5024 = vmatpush1.msra.mxu0 0.0
    %5025 = vmatprep.subr.mxu0 0.0
    %5026 = vmatpush1.msra.mxu0 0.0
    %5027 = vmatprep.subr.mxu0 0.0
    %5028 = vmatpush1.msra.mxu0 0.0
    %5029 = vmatprep.subr.mxu0 0.0
    %5030 = vmatpush1.msra.mxu0 0.0
    %5031 = vmatprep.subr.mxu0 0.0
    %5032 = vmatpush1.msra.mxu0 0.0
    %5033 = vmatprep.subr.mxu0 0.0
    %5034 = vmatpush1.msra.mxu0 0.0
    %5035 = vmatprep.subr.mxu0 0.0
    %5036 = vmatpush1.msra.mxu0 0.0
    %5037 = vmatprep.subr.mxu0 0.0
    %5038 = vmatpush1.msra.mxu0 0.0
    %5039 = vmatprep.subr.mxu0 0.0
    %5040 = vmatpush1.msra.mxu0 0.0
    %5041 = vmatprep.subr.mxu0 0.0
    %5042 = vmatpush1.msra.mxu0 0.0
    %5043 = vmatprep.subr.mxu0 0.0
    %5044 = vmatpush1.msra.mxu0 0.0
    %5045 = vmatprep.subr.mxu0 0.0
    %5046 = vmatpush1.msra.mxu0 0.0
    %5047 = vmatprep.subr.mxu0 0.0
    %5048 = vmatpush1.msra.mxu0 0.0
    %5049 = vmatprep.subr.mxu0 0.0
    %5050 = vmatpush1.msra.mxu0 0.0
    %5051 = vmatprep.subr.mxu0 0.0
    %5052 = vmatpush1.msra.mxu0 0.0
    %5053 = vmatprep.mubr.f32.mxu0 0.0
    %5054 = vmatmul.mubr.f32.gmra.mrb[0].mxu0 %v4987
    %v5055 = vpop.f32.mrb[0].mxu0
    %v5056 = vadd.f32 0.0, %v5055
    %v5057 = vpop.f32.mrb[0].mxu0
    %5058 = vdwg.mxu0
    %5060 = vrot.lane.b32.xlu0 %v4726, 8
    %v5061 = vpop.permute.xlu0 %5060
    %5064 = vrot.lane.b32.xlu0 %v4891, 16
    %v5065 = vpop.permute.xlu0 %5064
    %5068 = vrot.lane.b32.xlu0 %v5056, 24
    %v5069 = vpop.permute.xlu0 %5068
    %v5071 = vsel %vm114, %v4561, %v5061
    %v5072 = vsel %vm785, %v5071, %v5065
    %v5073 = vsel %vm787, %v5072, %v5069
    %v5074 = vpack.c.bf16 %v5073, %v4398
    %s5075 = scalar_lea.vmem %s2, 16
    %v5076 = vld [vmem:[%s5075] sm:$0xf]
    %v5077 = vld [vmem:[%s5075 + $0x4] sm:$0xf]
    %v5078 = vld [vmem:[%s5075 + $0x8] sm:$0xf]
    %v5079 = vld [vmem:[%s5075 + $0xc] sm:$0xf]
    %v5080 = vlaneseq
    %v5081 = vshrl.u32 %v5080, 7
    %v5082 = vsub.s32 0, %v5081
    %v5083 = vrot.slane %v3650, %v5082
    %v5088 = vunpack.c.l.b16 %v5076
    %v5089 = vunpack.c.l.b16 %v5077
    %v5090 = vunpack.c.l.b16 %v5078
    %v5091 = vunpack.c.l.b16 %v5079
    %v5092 = vpack.c.b16 %v5089, %v5088
    %v5093 = vpack.c.b16 %v5091, %v5090
    %v5097 = vsel %vm64, %v5074, 0
    %5099 = vmatprep.subr.bf16.mxu0 0
    %5100 = vmatpush1.bf16.msra.mxu0 %v5092
    %5101 = vmatprep.subr.bf16.mxu0 0
    %5102 = vmatpush1.bf16.msra.mxu0 %v5093
    %5103 = vmatprep.subr.bf16.mxu0 0
    %5104 = vmatpush1.bf16.msra.mxu0 0
    %5105 = vmatprep.subr.bf16.mxu0 0
    %5106 = vmatpush1.bf16.msra.mxu0 0
    %5107 = vmatprep.subr.bf16.mxu0 0
    %5108 = vmatpush1.bf16.msra.mxu0 0
    %5109 = vmatprep.subr.bf16.mxu0 0
    %5110 = vmatpush1.bf16.msra.mxu0 0
    %5111 = vmatprep.subr.bf16.mxu0 0
    %5112 = vmatpush1.bf16.msra.mxu0 0
    %5113 = vmatprep.subr.bf16.mxu0 0
    %5114 = vmatpush1.bf16.msra.mxu0 0
    %5115 = vmatprep.subr.bf16.mxu0 0
    %5116 = vmatpush1.bf16.msra.mxu0 0
    %5117 = vmatprep.subr.bf16.mxu0 0
    %5118 = vmatpush1.bf16.msra.mxu0 0
    %5119 = vmatprep.subr.bf16.mxu0 0
    %5120 = vmatpush1.bf16.msra.mxu0 0
    %5121 = vmatprep.subr.bf16.mxu0 0
    %5122 = vmatpush1.bf16.msra.mxu0 0
    %5123 = vmatprep.subr.bf16.mxu0 0
    %5124 = vmatpush1.bf16.msra.mxu0 0
    %5125 = vmatprep.subr.bf16.mxu0 0
    %5126 = vmatpush1.bf16.msra.mxu0 0
    %5127 = vmatprep.subr.bf16.mxu0 0
    %5128 = vmatpush1.bf16.msra.mxu0 0
    %5129 = vmatprep.subr.bf16.mxu0 0
    %5130 = vmatpush1.bf16.msra.mxu0 0
    %5131 = vmatprep.mubr.bf16.mxu0 0
    %5132 = vmatmul.mubr.bf16.gmra.mrb[0].mxu0 %v5097
    %v5133 = vpop.f32.mrb[0].mxu0
    %v5134 = vadd.f32 %v5083, %v5133
    %v5135 = vpop.f32.mrb[0].mxu0
    %v5136 = vpop.f32.mrb[0].mxu0
    %v5137 = vadd.f32 %v5083, %v5136
    %v5138 = vpop.f32.mrb[0].mxu0
    %5139 = vdwg.mxu0
    %v5140 = vadd.f32 %v3646, %v5134
    %v5141 = vadd.f32 %v3647, %v5137
    %v5142 = vsel %vm64, %v5140, 0.0
    %5143 = vadd.xlane.f32.xlu0 %v5142
    %v5144 = vpop.xlane.xlu0 %5143
    %v5145 = vsel %vm64, %v5141, 0.0
    %5146 = vadd.xlane.f32.xlu0 %v5145
    %v5147 = vpop.xlane.xlu0 %5146
    %v5148 = vmul.f32 %v5144, %v1537
    %v5149 = vmul.f32 %v5147, %v1537
    %v5150 = vsub.f32 %v5140, %v5148
    %v5151 = vsub.f32 %v5141, %v5149
    %v5152 = vmul.f32 %v5150, %v5150
    %v5153 = vmul.f32 %v5151, %v5151
    %v5154 = vsel %vm64, %v5152, 0.0
    %5155 = vadd.xlane.f32.xlu0 %v5154
    %v5156 = vpop.xlane.xlu0 %5155
    %v5157 = vsel %vm64, %v5153, 0.0
    %5158 = vadd.xlane.f32.xlu0 %v5157
    %v5159 = vpop.xlane.xlu0 %5158
    %v5160 = vmul.f32 %v5156, %v1537
    %v5161 = vmul.f32 %v5159, %v1537
    %v5162 = vadd.f32 %v5160, 1e-05
    %v5163 = vadd.f32 %v5161, 1e-05
    %v5164 = vrsqrt.pop %v5162
    %v5165 = vrsqrt.pop %v5163
    %v5166 = vmul.f32 %v5150, %v5164
    %v5167 = vmul.f32 %v5151, %v5165
    %v5168 = vlaneseq
    %v5169 = vshrl.u32 %v5168, 7
    %v5170 = vsub.s32 0, %v5169
    %v5171 = vrot.slane %v3652, %v5170
    %v5172 = vmul.f32 %v5166, %v5171
    %v5173 = vmul.f32 %v5167, %v5171
    %v5174 = vlaneseq
    %v5175 = vshrl.u32 %v5174, 7
    %v5176 = vsub.s32 0, %v5175
    %v5177 = vrot.slane %v3653, %v5176
    %v5178 = vadd.f32 %v5172, %v5177
    %v5179 = vadd.f32 %v5173, %v5177
    %v5180 = vpack.c.bf16 %v5179, %v5178
    %s5181 = scalar_lea.vmem %s3, 256
    %v5182 = vld [vmem:[%s5181] sm:$0xff]
    %v5183 = vld [vmem:[%s5181 + $0x8] sm:$0xff]
    %v5184 = vld [vmem:[%s5181 + $0x40] sm:$0xff]
    %v5185 = vld [vmem:[%s5181 + $0x48] sm:$0xff]
    %v5186 = vld [vmem:[%s5181 + $0x80] sm:$0xff]
    %v5187 = vld [vmem:[%s5181 + $0x88] sm:$0xff]
    %v5188 = vld [vmem:[%s5181 + $0xc0] sm:$0xff]
    %v5189 = vld [vmem:[%s5181 + $0xc8] sm:$0xff]
    %s5190 = scalar_lea.vmem %s5, 16
    %v5191 = vld [vmem:[%s5190] sm:$0xf]
    %v5193 = vlaneseq
    %v5194 = vshrl.u32 %v5193, 7
    %v5195 = vsub.s32 0, %v5194
    %v5196 = vrot.slane %v5191, %v5195
    %v5197 = vlaneseq
    %v5198 = vshrl.u32 %v5197, 7
    %v5199 = vsub.s32 1, %v5198
    %v5200 = vrot.slane %v5191, %v5199
    %v5201 = vlaneseq
    %v5202 = vshrl.u32 %v5201, 7
    %v5203 = vsub.s32 2, %v5202
    %v5204 = vrot.slane %v5191, %v5203
    %v5205 = vlaneseq
    %v5206 = vshrl.u32 %v5205, 7
    %v5207 = vsub.s32 3, %v5206
    %v5208 = vrot.slane %v5191, %v5207
    %v5221 = vunpack.c.l.b16 %v5182
    %v5222 = vunpack.c.h.b16 %v5182
    %v5223 = vunpack.c.l.b16 %v5183
    %v5224 = vunpack.c.h.b16 %v5183
    %v5225 = vunpack.c.l.b16 %v5184
    %v5226 = vunpack.c.h.b16 %v5184
    %v5227 = vunpack.c.l.b16 %v5185
    %v5228 = vunpack.c.h.b16 %v5185
    %v5229 = vunpack.c.l.b16 %v5186
    %v5230 = vunpack.c.h.b16 %v5186
    %v5231 = vunpack.c.l.b16 %v5187
    %v5232 = vunpack.c.h.b16 %v5187
    %v5233 = vunpack.c.l.b16 %v5188
    %v5234 = vunpack.c.h.b16 %v5188
    %v5235 = vunpack.c.l.b16 %v5189
    %v5236 = vunpack.c.h.b16 %v5189
    %v5237 = vpack.c.b16 %v5225, %v5221
    %v5238 = vpack.c.b16 %v5226, %v5222
    %v5239 = vpack.c.b16 %v5227, %v5223
    %v5240 = vpack.c.b16 %v5228, %v5224
    %v5241 = vpack.c.b16 %v5233, %v5229
    %v5242 = vpack.c.b16 %v5234, %v5230
    %v5243 = vpack.c.b16 %v5235, %v5231
    %v5244 = vpack.c.b16 %v5236, %v5232
    %v5254 = vsel %vm64, %v5180, 0
    %5256 = vmatprep.subr.bf16.mxu0 %v5238
    %5257 = vmatpush1.bf16.msra.mxu0 %v5237
    %5258 = vmatprep.subr.bf16.mxu0 %v5242
    %5259 = vmatpush1.bf16.msra.mxu0 %v5241
    %5260 = vmatprep.subr.bf16.mxu0 0
    %5261 = vmatpush1.bf16.msra.mxu0 0
    %5262 = vmatprep.subr.bf16.mxu0 0
    %5263 = vmatpush1.bf16.msra.mxu0 0
    %5264 = vmatprep.subr.bf16.mxu0 0
    %5265 = vmatpush1.bf16.msra.mxu0 0
    %5266 = vmatprep.subr.bf16.mxu0 0
    %5267 = vmatpush1.bf16.msra.mxu0 0
    %5268 = vmatprep.subr.bf16.mxu0 0
    %5269 = vmatpush1.bf16.msra.mxu0 0
    %5270 = vmatprep.subr.bf16.mxu0 0
    %5271 = vmatpush1.bf16.msra.mxu0 0
    %5272 = vmatprep.subr.bf16.mxu0 0
    %5273 = vmatpush1.bf16.msra.mxu0 0
    %5274 = vmatprep.subr.bf16.mxu0 0
    %5275 = vmatpush1.bf16.msra.mxu0 0
    %5276 = vmatprep.subr.bf16.mxu0 0
    %5277 = vmatpush1.bf16.msra.mxu0 0
    %5278 = vmatprep.subr.bf16.mxu0 0
    %5279 = vmatpush1.bf16.msra.mxu0 0
    %5280 = vmatprep.subr.bf16.mxu0 0
    %5281 = vmatpush1.bf16.msra.mxu0 0
    %5282 = vmatprep.subr.bf16.mxu0 0
    %5283 = vmatpush1.bf16.msra.mxu0 0
    %5284 = vmatprep.subr.bf16.mxu0 0
    %5285 = vmatpush1.bf16.msra.mxu0 0
    %5286 = vmatprep.subr.bf16.mxu0 0
    %5287 = vmatpush1.bf16.msra.mxu0 0
    %5288 = vmatprep.mubr.bf16.mxu0 0
    %5289 = vmatmul.mubr.bf16.gmra.mrb[0].mxu0 %v5254
    %v5290 = vpop.f32.mrb[0].mxu0
    %v5291 = vadd.f32 %v5196, %v5290
    %v5292 = vpop.f32.mrb[0].mxu0
    %v5293 = vadd.f32 %v5200, %v5292
    %v5294 = vpop.f32.mrb[0].mxu0
    %v5295 = vadd.f32 %v5196, %v5294
    %v5296 = vpop.f32.mrb[0].mxu0
    %v5297 = vadd.f32 %v5200, %v5296
    %5298 = vdwg.mxu0
    %5299 = vmatprep.subr.bf16.mxu0 %v5240
    %5300 = vmatpush1.bf16.msra.mxu0 %v5239
    %5301 = vmatprep.subr.bf16.mxu0 %v5244
    %5302 = vmatpush1.bf16.msra.mxu0 %v5243
    %5303 = vmatprep.subr.bf16.mxu0 0
    %5304 = vmatpush1.bf16.msra.mxu0 0
    %5305 = vmatprep.subr.bf16.mxu0 0
    %5306 = vmatpush1.bf16.msra.mxu0 0
    %5307 = vmatprep.subr.bf16.mxu0 0
    %5308 = vmatpush1.bf16.msra.mxu0 0
    %5309 = vmatprep.subr.bf16.mxu0 0
    %5310 = vmatpush1.bf16.msra.mxu0 0
    %5311 = vmatprep.subr.bf16.mxu0 0
    %5312 = vmatpush1.bf16.msra.mxu0 0
    %5313 = vmatprep.subr.bf16.mxu0 0
    %5314 = vmatpush1.bf16.msra.mxu0 0
    %5315 = vmatprep.subr.bf16.mxu0 0
    %5316 = vmatpush1.bf16.msra.mxu0 0
    %5317 = vmatprep.subr.bf16.mxu0 0
    %5318 = vmatpush1.bf16.msra.mxu0 0
    %5319 = vmatprep.subr.bf16.mxu0 0
    %5320 = vmatpush1.bf16.msra.mxu0 0
    %5321 = vmatprep.subr.bf16.mxu0 0
    %5322 = vmatpush1.bf16.msra.mxu0 0
    %5323 = vmatprep.subr.bf16.mxu0 0
    %5324 = vmatpush1.bf16.msra.mxu0 0
    %5325 = vmatprep.subr.bf16.mxu0 0
    %5326 = vmatpush1.bf16.msra.mxu0 0
    %5327 = vmatprep.subr.bf16.mxu0 0
    %5328 = vmatpush1.bf16.msra.mxu0 0
    %5329 = vmatprep.subr.bf16.mxu0 0
    %5330 = vmatpush1.bf16.msra.mxu0 0
    %5331 = vmatprep.mubr.bf16.mxu0 0
    %5332 = vmatmul.mubr.bf16.gmra.mrb[0].mxu0 %v5254
    %v5333 = vpop.f32.mrb[0].mxu0
    %v5334 = vadd.f32 %v5204, %v5333
    %v5335 = vpop.f32.mrb[0].mxu0
    %v5336 = vadd.f32 %v5208, %v5335
    %v5337 = vpop.f32.mrb[0].mxu0
    %v5338 = vadd.f32 %v5204, %v5337
    %v5339 = vpop.f32.mrb[0].mxu0
    %v5340 = vadd.f32 %v5208, %v5339
    %5341 = vdwg.mxu0
    %v5342 = vmax.f32 %v5291, 0.0
    %v5343 = vmax.f32 %v5293, 0.0
    %v5344 = vmax.f32 %v5334, 0.0
    %v5345 = vmax.f32 %v5336, 0.0
    %v5346 = vmax.f32 %v5295, 0.0
    %v5347 = vmax.f32 %v5297, 0.0
    %v5348 = vmax.f32 %v5338, 0.0
    %v5349 = vmax.f32 %v5340, 0.0
    %v5350 = vpack.c.bf16 %v5346, %v5342
    %v5351 = vpack.c.bf16 %v5347, %v5343
    %v5352 = vpack.c.bf16 %v5348, %v5344
    %v5353 = vpack.c.bf16 %v5349, %v5345
    %s5354 = scalar_lea.vmem %s4, 1024
    %v5355 = vld [vmem:[%s5354] sm:$0xf]
    %v5356 = vld [vmem:[%s5354 + $0x4] sm:$0xf]
    %v5357 = vld [vmem:[%s5354 + $0x8] sm:$0xf]
    %v5358 = vld [vmem:[%s5354 + $0xc] sm:$0xf]
    %v5359 = vld [vmem:[%s5354 + $0x10] sm:$0xf]
    %v5360 = vld [vmem:[%s5354 + $0x14] sm:$0xf]
    %v5361 = vld [vmem:[%s5354 + $0x18] sm:$0xf]
    %v5362 = vld [vmem:[%s5354 + $0x1c] sm:$0xf]
    %v5363 = vld [vmem:[%s5354 + $0x20] sm:$0xf]
    %v5364 = vld [vmem:[%s5354 + $0x24] sm:$0xf]
    %v5365 = vld [vmem:[%s5354 + $0x28] sm:$0xf]
    %v5366 = vld [vmem:[%s5354 + $0x2c] sm:$0xf]
    %v5367 = vld [vmem:[%s5354 + $0x30] sm:$0xf]
    %v5368 = vld [vmem:[%s5354 + $0x34] sm:$0xf]
    %v5369 = vld [vmem:[%s5354 + $0x38] sm:$0xf]
    %v5370 = vld [vmem:[%s5354 + $0x3c] sm:$0xf]
    %v5371 = vld [vmem:[%s5354 + $0x40] sm:$0xf]
    %v5372 = vld [vmem:[%s5354 + $0x44] sm:$0xf]
    %v5373 = vld [vmem:[%s5354 + $0x48] sm:$0xf]
    %v5374 = vld [vmem:[%s5354 + $0x4c] sm:$0xf]
    %v5375 = vld [vmem:[%s5354 + $0x50] sm:$0xf]
    %v5376 = vld [vmem:[%s5354 + $0x54] sm:$0xf]
    %v5377 = vld [vmem:[%s5354 + $0x58] sm:$0xf]
    %v5378 = vld [vmem:[%s5354 + $0x5c] sm:$0xf]
    %v5379 = vld [vmem:[%s5354 + $0x60] sm:$0xf]
    %v5380 = vld [vmem:[%s5354 + $0x64] sm:$0xf]
    %v5381 = vld [vmem:[%s5354 + $0x68] sm:$0xf]
    %v5382 = vld [vmem:[%s5354 + $0x6c] sm:$0xf]
    %v5383 = vld [vmem:[%s5354 + $0x70] sm:$0xf]
    %v5384 = vld [vmem:[%s5354 + $0x74] sm:$0xf]
    %v5385 = vld [vmem:[%s5354 + $0x78] sm:$0xf]
    %v5386 = vld [vmem:[%s5354 + $0x7c] sm:$0xf]
    %v5387 = vld [vmem:[%s5354 + $0x80] sm:$0xf]
    %v5388 = vld [vmem:[%s5354 + $0x84] sm:$0xf]
    %v5389 = vld [vmem:[%s5354 + $0x88] sm:$0xf]
    %v5390 = vld [vmem:[%s5354 + $0x8c] sm:$0xf]
    %v5391 = vld [vmem:[%s5354 + $0x90] sm:$0xf]
    %v5392 = vld [vmem:[%s5354 + $0x94] sm:$0xf]
    %v5393 = vld [vmem:[%s5354 + $0x98] sm:$0xf]
    %v5394 = vld [vmem:[%s5354 + $0x9c] sm:$0xf]
    %v5395 = vld [vmem:[%s5354 + $0xa0] sm:$0xf]
    %v5396 = vld [vmem:[%s5354 + $0xa4] sm:$0xf]
    %v5397 = vld [vmem:[%s5354 + $0xa8] sm:$0xf]
    %v5398 = vld [vmem:[%s5354 + $0xac] sm:$0xf]
    %v5399 = vld [vmem:[%s5354 + $0xb0] sm:$0xf]
    %v5400 = vld [vmem:[%s5354 + $0xb4] sm:$0xf]
    %v5401 = vld [vmem:[%s5354 + $0xb8] sm:$0xf]
    %v5402 = vld [vmem:[%s5354 + $0xbc] sm:$0xf]
    %v5403 = vld [vmem:[%s5354 + $0xc0] sm:$0xf]
    %v5404 = vld [vmem:[%s5354 + $0xc4] sm:$0xf]
    %v5405 = vld [vmem:[%s5354 + $0xc8] sm:$0xf]
    %v5406 = vld [vmem:[%s5354 + $0xcc] sm:$0xf]
    %v5407 = vld [vmem:[%s5354 + $0xd0] sm:$0xf]
    %v5408 = vld [vmem:[%s5354 + $0xd4] sm:$0xf]
    %v5409 = vld [vmem:[%s5354 + $0xd8] sm:$0xf]
    %v5410 = vld [vmem:[%s5354 + $0xdc] sm:$0xf]
    %v5411 = vld [vmem:[%s5354 + $0xe0] sm:$0xf]
    %v5412 = vld [vmem:[%s5354 + $0xe4] sm:$0xf]
    %v5413 = vld [vmem:[%s5354 + $0xe8] sm:$0xf]
    %v5414 = vld [vmem:[%s5354 + $0xec] sm:$0xf]
    %v5415 = vld [vmem:[%s5354 + $0xf0] sm:$0xf]
    %v5416 = vld [vmem:[%s5354 + $0xf4] sm:$0xf]
    %v5417 = vld [vmem:[%s5354 + $0xf8] sm:$0xf]
    %v5418 = vld [vmem:[%s5354 + $0xfc] sm:$0xf]
    %v5419 = vld [vmem:[%s5181 + $0x10] sm:$0xff]
    %v5420 = vld [vmem:[%s5181 + $0x18] sm:$0xff]
    %v5421 = vld [vmem:[%s5181 + $0x50] sm:$0xff]
    %v5422 = vld [vmem:[%s5181 + $0x58] sm:$0xff]
    %v5423 = vld [vmem:[%s5181 + $0x90] sm:$0xff]
    %v5424 = vld [vmem:[%s5181 + $0x98] sm:$0xff]
    %v5425 = vld [vmem:[%s5181 + $0xd0] sm:$0xff]
    %v5426 = vld [vmem:[%s5181 + $0xd8] sm:$0xff]
    %v5427 = vld [vmem:[%s5190 + $0x4] sm:$0xf]
    %v5429 = vlaneseq
    %v5430 = vshrl.u32 %v5429, 7
    %v5431 = vsub.s32 0, %v5430
    %v5432 = vrot.slane %v5427, %v5431
    %v5433 = vlaneseq
    %v5434 = vshrl.u32 %v5433, 7
    %v5435 = vsub.s32 1, %v5434
    %v5436 = vrot.slane %v5427, %v5435
    %v5437 = vlaneseq
    %v5438 = vshrl.u32 %v5437, 7
    %v5439 = vsub.s32 2, %v5438
    %v5440 = vrot.slane %v5427, %v5439
    %v5441 = vlaneseq
    %v5442 = vshrl.u32 %v5441, 7
    %v5443 = vsub.s32 3, %v5442
    %v5444 = vrot.slane %v5427, %v5443
    %v5457 = vunpack.c.l.b16 %v5419
    %v5458 = vunpack.c.h.b16 %v5419
    %v5459 = vunpack.c.l.b16 %v5420
    %v5460 = vunpack.c.h.b16 %v5420
    %v5461 = vunpack.c.l.b16 %v5421
    %v5462 = vunpack.c.h.b16 %v5421
    %v5463 = vunpack.c.l.b16 %v5422
    %v5464 = vunpack.c.h.b16 %v5422
    %v5465 = vunpack.c.l.b16 %v5423
    %v5466 = vunpack.c.h.b16 %v5423
    %v5467 = vunpack.c.l.b16 %v5424
    %v5468 = vunpack.c.h.b16 %v5424
    %v5469 = vunpack.c.l.b16 %v5425
    %v5470 = vunpack.c.h.b16 %v5425
    %v5471 = vunpack.c.l.b16 %v5426
    %v5472 = vunpack.c.h.b16 %v5426
    %v5473 = vpack.c.b16 %v5461, %v5457
    %v5474 = vpack.c.b16 %v5462, %v5458
    %v5475 = vpack.c.b16 %v5463, %v5459
    %v5476 = vpack.c.b16 %v5464, %v5460
    %v5477 = vpack.c.b16 %v5469, %v5465
    %v5478 = vpack.c.b16 %v5470, %v5466
    %v5479 = vpack.c.b16 %v5471, %v5467
    %v5480 = vpack.c.b16 %v5472, %v5468
    %5489 = vmatprep.subr.bf16.mxu0 %v5474
    %5490 = vmatpush1.bf16.msra.mxu0 %v5473
    %5491 = vmatprep.subr.bf16.mxu0 %v5478
    %5492 = vmatpush1.bf16.msra.mxu0 %v5477
    %5493 = vmatprep.subr.bf16.mxu0 0
    %5494 = vmatpush1.bf16.msra.mxu0 0
    %5495 = vmatprep.subr.bf16.mxu0 0
    %5496 = vmatpush1.bf16.msra.mxu0 0
    %5497 = vmatprep.subr.bf16.mxu0 0
    %5498 = vmatpush1.bf16.msra.mxu0 0
    %5499 = vmatprep.subr.bf16.mxu0 0
    %5500 = vmatpush1.bf16.msra.mxu0 0
    %5501 = vmatprep.subr.bf16.mxu0 0
    %5502 = vmatpush1.bf16.msra.mxu0 0
    %5503 = vmatprep.subr.bf16.mxu0 0
    %5504 = vmatpush1.bf16.msra.mxu0 0
    %5505 = vmatprep.subr.bf16.mxu0 0
    %5506 = vmatpush1.bf16.msra.mxu0 0
    %5507 = vmatprep.subr.bf16.mxu0 0
    %5508 = vmatpush1.bf16.msra.mxu0 0
    %5509 = vmatprep.subr.bf16.mxu0 0
    %5510 = vmatpush1.bf16.msra.mxu0 0
    %5511 = vmatprep.subr.bf16.mxu0 0
    %5512 = vmatpush1.bf16.msra.mxu0 0
    %5513 = vmatprep.subr.bf16.mxu0 0
    %5514 = vmatpush1.bf16.msra.mxu0 0
    %5515 = vmatprep.subr.bf16.mxu0 0
    %5516 = vmatpush1.bf16.msra.mxu0 0
    %5517 = vmatprep.subr.bf16.mxu0 0
    %5518 = vmatpush1.bf16.msra.mxu0 0
    %5519 = vmatprep.subr.bf16.mxu0 0
    %5520 = vmatpush1.bf16.msra.mxu0 0
    %5521 = vmatprep.mubr.bf16.mxu0 0
    %5522 = vmatmul.mubr.bf16.gmra.mrb[0].mxu0 %v5254
    %v5523 = vpop.f32.mrb[0].mxu0
    %v5524 = vadd.f32 %v5432, %v5523
    %v5525 = vpop.f32.mrb[0].mxu0
    %v5526 = vadd.f32 %v5436, %v5525
    %v5527 = vpop.f32.mrb[0].mxu0
    %v5528 = vadd.f32 %v5432, %v5527
    %v5529 = vpop.f32.mrb[0].mxu0
    %v5530 = vadd.f32 %v5436, %v5529
    %5531 = vdwg.mxu0
    %5532 = vmatprep.subr.bf16.mxu0 %v5476
    %5533 = vmatpush1.bf16.msra.mxu0 %v5475
    %5534 = vmatprep.subr.bf16.mxu0 %v5480
    %5535 = vmatpush1.bf16.msra.mxu0 %v5479
    %5536 = vmatprep.subr.bf16.mxu0 0
    %5537 = vmatpush1.bf16.msra.mxu0 0
    %5538 = vmatprep.subr.bf16.mxu0 0
    %5539 = vmatpush1.bf16.msra.mxu0 0
    %5540 = vmatprep.subr.bf16.mxu0 0
    %5541 = vmatpush1.bf16.msra.mxu0 0
    %5542 = vmatprep.subr.bf16.mxu0 0
    %5543 = vmatpush1.bf16.msra.mxu0 0
    %5544 = vmatprep.subr.bf16.mxu0 0
    %5545 = vmatpush1.bf16.msra.mxu0 0
    %5546 = vmatprep.subr.bf16.mxu0 0
    %5547 = vmatpush1.bf16.msra.mxu0 0
    %5548 = vmatprep.subr.bf16.mxu0 0
    %5549 = vmatpush1.bf16.msra.mxu0 0
    %5550 = vmatprep.subr.bf16.mxu0 0
    %5551 = vmatpush1.bf16.msra.mxu0 0
    %5552 = vmatprep.subr.bf16.mxu0 0
    %5553 = vmatpush1.bf16.msra.mxu0 0
    %5554 = vmatprep.subr.bf16.mxu0 0
    %5555 = vmatpush1.bf16.msra.mxu0 0
    %5556 = vmatprep.subr.bf16.mxu0 0
    %5557 = vmatpush1.bf16.msra.mxu0 0
    %5558 = vmatprep.subr.bf16.mxu0 0
    %5559 = vmatpush1.bf16.msra.mxu0 0
    %5560 = vmatprep.subr.bf16.mxu0 0
    %5561 = vmatpush1.bf16.msra.mxu0 0
    %5562 = vmatprep.subr.bf16.mxu0 0
    %5563 = vmatpush1.bf16.msra.mxu0 0
    %5564 = vmatprep.mubr.bf16.mxu0 0
    %5565 = vmatmul.mubr.bf16.gmra.mrb[0].mxu0 %v5254
    %v5566 = vpop.f32.mrb[0].mxu0
    %v5567 = vadd.f32 %v5440, %v5566
    %v5568 = vpop.f32.mrb[0].mxu0
    %v5569 = vadd.f32 %v5444, %v5568
    %v5570 = vpop.f32.mrb[0].mxu0
    %v5571 = vadd.f32 %v5440, %v5570
    %v5572 = vpop.f32.mrb[0].mxu0
    %v5573 = vadd.f32 %v5444, %v5572
    %5574 = vdwg.mxu0
    %v5575 = vmax.f32 %v5524, 0.0
    %v5576 = vmax.f32 %v5526, 0.0
    %v5577 = vmax.f32 %v5567, 0.0
    %v5578 = vmax.f32 %v5569, 0.0
    %v5579 = vmax.f32 %v5528, 0.0
    %v5580 = vmax.f32 %v5530, 0.0
    %v5581 = vmax.f32 %v5571, 0.0
    %v5582 = vmax.f32 %v5573, 0.0
    %v5583 = vpack.c.bf16 %v5579, %v5575
    %v5584 = vpack.c.bf16 %v5580, %v5576
    %v5585 = vpack.c.bf16 %v5581, %v5577
    %v5586 = vpack.c.bf16 %v5582, %v5578
    %v5587 = vld [vmem:[%s5354 + $0x100] sm:$0xf]
    %v5588 = vld [vmem:[%s5354 + $0x104] sm:$0xf]
    %v5589 = vld [vmem:[%s5354 + $0x108] sm:$0xf]
    %v5590 = vld [vmem:[%s5354 + $0x10c] sm:$0xf]
    %v5591 = vld [vmem:[%s5354 + $0x110] sm:$0xf]
    %v5592 = vld [vmem:[%s5354 + $0x114] sm:$0xf]
    %v5593 = vld [vmem:[%s5354 + $0x118] sm:$0xf]
    %v5594 = vld [vmem:[%s5354 + $0x11c] sm:$0xf]
    %v5595 = vld [vmem:[%s5354 + $0x120] sm:$0xf]
    %v5596 = vld [vmem:[%s5354 + $0x124] sm:$0xf]
    %v5597 = vld [vmem:[%s5354 + $0x128] sm:$0xf]
    %v5598 = vld [vmem:[%s5354 + $0x12c] sm:$0xf]
    %v5599 = vld [vmem:[%s5354 + $0x130] sm:$0xf]
    %v5600 = vld [vmem:[%s5354 + $0x134] sm:$0xf]
    %v5601 = vld [vmem:[%s5354 + $0x138] sm:$0xf]
    %v5602 = vld [vmem:[%s5354 + $0x13c] sm:$0xf]
    %v5603 = vld [vmem:[%s5354 + $0x140] sm:$0xf]
    %v5604 = vld [vmem:[%s5354 + $0x144] sm:$0xf]
    %v5605 = vld [vmem:[%s5354 + $0x148] sm:$0xf]
    %v5606 = vld [vmem:[%s5354 + $0x14c] sm:$0xf]
    %v5607 = vld [vmem:[%s5354 + $0x150] sm:$0xf]
    %v5608 = vld [vmem:[%s5354 + $0x154] sm:$0xf]
    %v5609 = vld [vmem:[%s5354 + $0x158] sm:$0xf]
    %v5610 = vld [vmem:[%s5354 + $0x15c] sm:$0xf]
    %v5611 = vld [vmem:[%s5354 + $0x160] sm:$0xf]
    %v5612 = vld [vmem:[%s5354 + $0x164] sm:$0xf]
    %v5613 = vld [vmem:[%s5354 + $0x168] sm:$0xf]
    %v5614 = vld [vmem:[%s5354 + $0x16c] sm:$0xf]
    %v5615 = vld [vmem:[%s5354 + $0x170] sm:$0xf]
    %v5616 = vld [vmem:[%s5354 + $0x174] sm:$0xf]
    %v5617 = vld [vmem:[%s5354 + $0x178] sm:$0xf]
    %v5618 = vld [vmem:[%s5354 + $0x17c] sm:$0xf]
    %v5619 = vld [vmem:[%s5354 + $0x180] sm:$0xf]
    %v5620 = vld [vmem:[%s5354 + $0x184] sm:$0xf]
    %v5621 = vld [vmem:[%s5354 + $0x188] sm:$0xf]
    %v5622 = vld [vmem:[%s5354 + $0x18c] sm:$0xf]
    %v5623 = vld [vmem:[%s5354 + $0x190] sm:$0xf]
    %v5624 = vld [vmem:[%s5354 + $0x194] sm:$0xf]
    %v5625 = vld [vmem:[%s5354 + $0x198] sm:$0xf]
    %v5626 = vld [vmem:[%s5354 + $0x19c] sm:$0xf]
    %v5627 = vld [vmem:[%s5354 + $0x1a0] sm:$0xf]
    %v5628 = vld [vmem:[%s5354 + $0x1a4] sm:$0xf]
    %v5629 = vld [vmem:[%s5354 + $0x1a8] sm:$0xf]
    %v5630 = vld [vmem:[%s5354 + $0x1ac] sm:$0xf]
    %v5631 = vld [vmem:[%s5354 + $0x1b0] sm:$0xf]
    %v5632 = vld [vmem:[%s5354 + $0x1b4] sm:$0xf]
    %v5633 = vld [vmem:[%s5354 + $0x1b8] sm:$0xf]
    %v5634 = vld [vmem:[%s5354 + $0x1bc] sm:$0xf]
    %v5635 = vld [vmem:[%s5354 + $0x1c0] sm:$0xf]
    %v5636 = vld [vmem:[%s5354 + $0x1c4] sm:$0xf]
    %v5637 = vld [vmem:[%s5354 + $0x1c8] sm:$0xf]
    %v5638 = vld [vmem:[%s5354 + $0x1cc] sm:$0xf]
    %v5639 = vld [vmem:[%s5354 + $0x1d0] sm:$0xf]
    %v5640 = vld [vmem:[%s5354 + $0x1d4] sm:$0xf]
    %v5641 = vld [vmem:[%s5354 + $0x1d8] sm:$0xf]
    %v5642 = vld [vmem:[%s5354 + $0x1dc] sm:$0xf]
    %v5643 = vld [vmem:[%s5354 + $0x1e0] sm:$0xf]
    %v5644 = vld [vmem:[%s5354 + $0x1e4] sm:$0xf]
    %v5645 = vld [vmem:[%s5354 + $0x1e8] sm:$0xf]
    %v5646 = vld [vmem:[%s5354 + $0x1ec] sm:$0xf]
    %v5647 = vld [vmem:[%s5354 + $0x1f0] sm:$0xf]
    %v5648 = vld [vmem:[%s5354 + $0x1f4] sm:$0xf]
    %v5649 = vld [vmem:[%s5354 + $0x1f8] sm:$0xf]
    %v5650 = vld [vmem:[%s5354 + $0x1fc] sm:$0xf]
    %v5715 = vunpack.c.l.b16 %v5587
    %v5716 = vunpack.c.l.b16 %v5588
    %v5717 = vunpack.c.l.b16 %v5589
    %v5718 = vunpack.c.l.b16 %v5590
    %v5719 = vunpack.c.l.b16 %v5591
    %v5720 = vunpack.c.l.b16 %v5592
    %v5721 = vunpack.c.l.b16 %v5593
    %v5722 = vunpack.c.l.b16 %v5594
    %v5723 = vunpack.c.l.b16 %v5595
    %v5724 = vunpack.c.l.b16 %v5596
    %v5725 = vunpack.c.l.b16 %v5597
    %v5726 = vunpack.c.l.b16 %v5598
    %v5727 = vunpack.c.l.b16 %v5599
    %v5728 = vunpack.c.l.b16 %v5600
    %v5729 = vunpack.c.l.b16 %v5601
    %v5730 = vunpack.c.l.b16 %v5602
    %v5731 = vunpack.c.l.b16 %v5603
    %v5732 = vunpack.c.l.b16 %v5604
    %v5733 = vunpack.c.l.b16 %v5605
    %v5734 = vunpack.c.l.b16 %v5606
    %v5735 = vunpack.c.l.b16 %v5607
    %v5736 = vunpack.c.l.b16 %v5608
    %v5737 = vunpack.c.l.b16 %v5609
    %v5738 = vunpack.c.l.b16 %v5610
    %v5739 = vunpack.c.l.b16 %v5611
    %v5740 = vunpack.c.l.b16 %v5612
    %v5741 = vunpack.c.l.b16 %v5613
    %v5742 = vunpack.c.l.b16 %v5614
    %v5743 = vunpack.c.l.b16 %v5615
    %v5744 = vunpack.c.l.b16 %v5616
    %v5745 = vunpack.c.l.b16 %v5617
    %v5746 = vunpack.c.l.b16 %v5618
    %v5747 = vunpack.c.l.b16 %v5619
    %v5748 = vunpack.c.l.b16 %v5620
    %v5749 = vunpack.c.l.b16 %v5621
    %v5750 = vunpack.c.l.b16 %v5622
    %v5751 = vunpack.c.l.b16 %v5623
    %v5752 = vunpack.c.l.b16 %v5624
    %v5753 = vunpack.c.l.b16 %v5625
    %v5754 = vunpack.c.l.b16 %v5626
    %v5755 = vunpack.c.l.b16 %v5627
    %v5756 = vunpack.c.l.b16 %v5628
    %v5757 = vunpack.c.l.b16 %v5629
    %v5758 = vunpack.c.l.b16 %v5630
    %v5759 = vunpack.c.l.b16 %v5631
    %v5760 = vunpack.c.l.b16 %v5632
    %v5761 = vunpack.c.l.b16 %v5633
    %v5762 = vunpack.c.l.b16 %v5634
    %v5763 = vunpack.c.l.b16 %v5635
    %v5764 = vunpack.c.l.b16 %v5636
    %v5765 = vunpack.c.l.b16 %v5637
    %v5766 = vunpack.c.l.b16 %v5638
    %v5767 = vunpack.c.l.b16 %v5639
    %v5768 = vunpack.c.l.b16 %v5640
    %v5769 = vunpack.c.l.b16 %v5641
    %v5770 = vunpack.c.l.b16 %v5642
    %v5771 = vunpack.c.l.b16 %v5643
    %v5772 = vunpack.c.l.b16 %v5644
    %v5773 = vunpack.c.l.b16 %v5645
    %v5774 = vunpack.c.l.b16 %v5646
    %v5775 = vunpack.c.l.b16 %v5647
    %v5776 = vunpack.c.l.b16 %v5648
    %v5777 = vunpack.c.l.b16 %v5649
    %v5778 = vunpack.c.l.b16 %v5650
    %v5779 = vpack.c.b16 %v5716, %v5715
    %v5780 = vpack.c.b16 %v5718, %v5717
    %v5781 = vpack.c.b16 %v5720, %v5719
    %v5782 = vpack.c.b16 %v5722, %v5721
    %v5783 = vpack.c.b16 %v5724, %v5723
    %v5784 = vpack.c.b16 %v5726, %v5725
    %v5785 = vpack.c.b16 %v5728, %v5727
    %v5786 = vpack.c.b16 %v5730, %v5729
    %v5787 = vpack.c.b16 %v5732, %v5731
    %v5788 = vpack.c.b16 %v5734, %v5733
    %v5789 = vpack.c.b16 %v5736, %v5735
    %v5790 = vpack.c.b16 %v5738, %v5737
    %v5791 = vpack.c.b16 %v5740, %v5739
    %v5792 = vpack.c.b16 %v5742, %v5741
    %v5793 = vpack.c.b16 %v5744, %v5743
    %v5794 = vpack.c.b16 %v5746, %v5745
    %v5795 = vpack.c.b16 %v5748, %v5747
    %v5796 = vpack.c.b16 %v5750, %v5749
    %v5797 = vpack.c.b16 %v5752, %v5751
    %v5798 = vpack.c.b16 %v5754, %v5753
    %v5799 = vpack.c.b16 %v5756, %v5755
    %v5800 = vpack.c.b16 %v5758, %v5757
    %v5801 = vpack.c.b16 %v5760, %v5759
    %v5802 = vpack.c.b16 %v5762, %v5761
    %v5803 = vpack.c.b16 %v5764, %v5763
    %v5804 = vpack.c.b16 %v5766, %v5765
    %v5805 = vpack.c.b16 %v5768, %v5767
    %v5806 = vpack.c.b16 %v5770, %v5769
    %v5807 = vpack.c.b16 %v5772, %v5771
    %v5808 = vpack.c.b16 %v5774, %v5773
    %v5809 = vpack.c.b16 %v5776, %v5775
    %v5810 = vpack.c.b16 %v5778, %v5777
    %5843 = vmatprep.subr.bf16.mxu0 0
    %5844 = vmatpush1.bf16.msra.mxu0 %v5779
    %5845 = vmatprep.subr.bf16.mxu0 0
    %5846 = vmatpush1.bf16.msra.mxu0 %v5780
    %5847 = vmatprep.subr.bf16.mxu0 0
    %5848 = vmatpush1.bf16.msra.mxu0 %v5781
    %5849 = vmatprep.subr.bf16.mxu0 0
    %5850 = vmatpush1.bf16.msra.mxu0 %v5782
    %5851 = vmatprep.subr.bf16.mxu0 0
    %5852 = vmatpush1.bf16.msra.mxu0 %v5783
    %5853 = vmatprep.subr.bf16.mxu0 0
    %5854 = vmatpush1.bf16.msra.mxu0 %v5784
    %5855 = vmatprep.subr.bf16.mxu0 0
    %5856 = vmatpush1.bf16.msra.mxu0 %v5785
    %5857 = vmatprep.subr.bf16.mxu0 0
    %5858 = vmatpush1.bf16.msra.mxu0 %v5786
    %5859 = vmatprep.subr.bf16.mxu0 0
    %5860 = vmatpush1.bf16.msra.mxu0 %v5787
    %5861 = vmatprep.subr.bf16.mxu0 0
    %5862 = vmatpush1.bf16.msra.mxu0 %v5788
    %5863 = vmatprep.subr.bf16.mxu0 0
    %5864 = vmatpush1.bf16.msra.mxu0 %v5789
    %5865 = vmatprep.subr.bf16.mxu0 0
    %5866 = vmatpush1.bf16.msra.mxu0 %v5790
    %5867 = vmatprep.subr.bf16.mxu0 0
    %5868 = vmatpush1.bf16.msra.mxu0 %v5791
    %5869 = vmatprep.subr.bf16.mxu0 0
    %5870 = vmatpush1.bf16.msra.mxu0 %v5792
    %5871 = vmatprep.subr.bf16.mxu0 0
    %5872 = vmatpush1.bf16.msra.mxu0 %v5793
    %5873 = vmatprep.subr.bf16.mxu0 0
    %5874 = vmatpush1.bf16.msra.mxu0 %v5794
    %5875 = vmatprep.mubr.bf16.mxu0 %v5584
    %5876 = vmatmul.mubr.bf16.gmra.mrb[0].mxu0 %v5583
    %v5877 = vpop.f32.mrb[0].mxu0
    %v5878 = vadd.f32 0.0, %v5877
    %v5879 = vpop.f32.mrb[0].mxu0
    %v5880 = vpop.f32.mrb[0].mxu0
    %v5881 = vadd.f32 0.0, %v5880
    %v5882 = vpop.f32.mrb[0].mxu0
    %5883 = vdwg.mxu0
    %5884 = vmatprep.subr.bf16.mxu0 0
    %5885 = vmatpush1.bf16.msra.mxu0 %v5795
    %5886 = vmatprep.subr.bf16.mxu0 0
    %5887 = vmatpush1.bf16.msra.mxu0 %v5796
    %5888 = vmatprep.subr.bf16.mxu0 0
    %5889 = vmatpush1.bf16.msra.mxu0 %v5797
    %5890 = vmatprep.subr.bf16.mxu0 0
    %5891 = vmatpush1.bf16.msra.mxu0 %v5798
    %5892 = vmatprep.subr.bf16.mxu0 0
    %5893 = vmatpush1.bf16.msra.mxu0 %v5799
    %5894 = vmatprep.subr.bf16.mxu0 0
    %5895 = vmatpush1.bf16.msra.mxu0 %v5800
    %5896 = vmatprep.subr.bf16.mxu0 0
    %5897 = vmatpush1.bf16.msra.mxu0 %v5801
    %5898 = vmatprep.subr.bf16.mxu0 0
    %5899 = vmatpush1.bf16.msra.mxu0 %v5802
    %5900 = vmatprep.subr.bf16.mxu0 0
    %5901 = vmatpush1.bf16.msra.mxu0 %v5803
    %5902 = vmatprep.subr.bf16.mxu0 0
    %5903 = vmatpush1.bf16.msra.mxu0 %v5804
    %5904 = vmatprep.subr.bf16.mxu0 0
    %5905 = vmatpush1.bf16.msra.mxu0 %v5805
    %5906 = vmatprep.subr.bf16.mxu0 0
    %5907 = vmatpush1.bf16.msra.mxu0 %v5806
    %5908 = vmatprep.subr.bf16.mxu0 0
    %5909 = vmatpush1.bf16.msra.mxu0 %v5807
    %5910 = vmatprep.subr.bf16.mxu0 0
    %5911 = vmatpush1.bf16.msra.mxu0 %v5808
    %5912 = vmatprep.subr.bf16.mxu0 0
    %5913 = vmatpush1.bf16.msra.mxu0 %v5809
    %5914 = vmatprep.subr.bf16.mxu0 0
    %5915 = vmatpush1.bf16.msra.mxu0 %v5810
    %5916 = vmatprep.mubr.bf16.mxu0 %v5586
    %5917 = vmatmul.mubr.bf16.gmra.mrb[0].mxu0 %v5585
    %v5918 = vpop.f32.mrb[0].mxu0
    %v5919 = vadd.f32 %v5878, %v5918
    %v5920 = vpop.f32.mrb[0].mxu0
    %v5921 = vpop.f32.mrb[0].mxu0
    %v5922 = vadd.f32 %v5881, %v5921
    %v5923 = vpop.f32.mrb[0].mxu0
    %5924 = vdwg.mxu0
    %v5989 = vunpack.c.l.b16 %v5355
    %v5990 = vunpack.c.l.b16 %v5356
    %v5991 = vunpack.c.l.b16 %v5357
    %v5992 = vunpack.c.l.b16 %v5358
    %v5993 = vunpack.c.l.b16 %v5359
    %v5994 = vunpack.c.l.b16 %v5360
    %v5995 = vunpack.c.l.b16 %v5361
    %v5996 = vunpack.c.l.b16 %v5362
    %v5997 = vunpack.c.l.b16 %v5363
    %v5998 = vunpack.c.l.b16 %v5364
    %v5999 = vunpack.c.l.b16 %v5365
    %v6000 = vunpack.c.l.b16 %v5366
    %v6001 = vunpack.c.l.b16 %v5367
    %v6002 = vunpack.c.l.b16 %v5368
    %v6003 = vunpack.c.l.b16 %v5369
    %v6004 = vunpack.c.l.b16 %v5370
    %v6005 = vunpack.c.l.b16 %v5371
    %v6006 = vunpack.c.l.b16 %v5372
    %v6007 = vunpack.c.l.b16 %v5373
    %v6008 = vunpack.c.l.b16 %v5374
    %v6009 = vunpack.c.l.b16 %v5375
    %v6010 = vunpack.c.l.b16 %v5376
    %v6011 = vunpack.c.l.b16 %v5377
    %v6012 = vunpack.c.l.b16 %v5378
    %v6013 = vunpack.c.l.b16 %v5379
    %v6014 = vunpack.c.l.b16 %v5380
    %v6015 = vunpack.c.l.b16 %v5381
    %v6016 = vunpack.c.l.b16 %v5382
    %v6017 = vunpack.c.l.b16 %v5383
    %v6018 = vunpack.c.l.b16 %v5384
    %v6019 = vunpack.c.l.b16 %v5385
    %v6020 = vunpack.c.l.b16 %v5386
    %v6021 = vunpack.c.l.b16 %v5387
    %v6022 = vunpack.c.l.b16 %v5388
    %v6023 = vunpack.c.l.b16 %v5389
    %v6024 = vunpack.c.l.b16 %v5390
    %v6025 = vunpack.c.l.b16 %v5391
    %v6026 = vunpack.c.l.b16 %v5392
    %v6027 = vunpack.c.l.b16 %v5393
    %v6028 = vunpack.c.l.b16 %v5394
    %v6029 = vunpack.c.l.b16 %v5395
    %v6030 = vunpack.c.l.b16 %v5396
    %v6031 = vunpack.c.l.b16 %v5397
    %v6032 = vunpack.c.l.b16 %v5398
    %v6033 = vunpack.c.l.b16 %v5399
    %v6034 = vunpack.c.l.b16 %v5400
    %v6035 = vunpack.c.l.b16 %v5401
    %v6036 = vunpack.c.l.b16 %v5402
    %v6037 = vunpack.c.l.b16 %v5403
    %v6038 = vunpack.c.l.b16 %v5404
    %v6039 = vunpack.c.l.b16 %v5405
    %v6040 = vunpack.c.l.b16 %v5406
    %v6041 = vunpack.c.l.b16 %v5407
    %v6042 = vunpack.c.l.b16 %v5408
    %v6043 = vunpack.c.l.b16 %v5409
    %v6044 = vunpack.c.l.b16 %v5410
    %v6045 = vunpack.c.l.b16 %v5411
    %v6046 = vunpack.c.l.b16 %v5412
    %v6047 = vunpack.c.l.b16 %v5413
    %v6048 = vunpack.c.l.b16 %v5414
    %v6049 = vunpack.c.l.b16 %v5415
    %v6050 = vunpack.c.l.b16 %v5416
    %v6051 = vunpack.c.l.b16 %v5417
    %v6052 = vunpack.c.l.b16 %v5418
    %v6053 = vpack.c.b16 %v5990, %v5989
    %v6054 = vpack.c.b16 %v5992, %v5991
    %v6055 = vpack.c.b16 %v5994, %v5993
    %v6056 = vpack.c.b16 %v5996, %v5995
    %v6057 = vpack.c.b16 %v5998, %v5997
    %v6058 = vpack.c.b16 %v6000, %v5999
    %v6059 = vpack.c.b16 %v6002, %v6001
    %v6060 = vpack.c.b16 %v6004, %v6003
    %v6061 = vpack.c.b16 %v6006, %v6005
    %v6062 = vpack.c.b16 %v6008, %v6007
    %v6063 = vpack.c.b16 %v6010, %v6009
    %v6064 = vpack.c.b16 %v6012, %v6011
    %v6065 = vpack.c.b16 %v6014, %v6013
    %v6066 = vpack.c.b16 %v6016, %v6015
    %v6067 = vpack.c.b16 %v6018, %v6017
    %v6068 = vpack.c.b16 %v6020, %v6019
    %v6069 = vpack.c.b16 %v6022, %v6021
    %v6070 = vpack.c.b16 %v6024, %v6023
    %v6071 = vpack.c.b16 %v6026, %v6025
    %v6072 = vpack.c.b16 %v6028, %v6027
    %v6073 = vpack.c.b16 %v6030, %v6029
    %v6074 = vpack.c.b16 %v6032, %v6031
    %v6075 = vpack.c.b16 %v6034, %v6033
    %v6076 = vpack.c.b16 %v6036, %v6035
    %v6077 = vpack.c.b16 %v6038, %v6037
    %v6078 = vpack.c.b16 %v6040, %v6039
    %v6079 = vpack.c.b16 %v6042, %v6041
    %v6080 = vpack.c.b16 %v6044, %v6043
    %v6081 = vpack.c.b16 %v6046, %v6045
    %v6082 = vpack.c.b16 %v6048, %v6047
    %v6083 = vpack.c.b16 %v6050, %v6049
    %v6084 = vpack.c.b16 %v6052, %v6051
    %6117 = vmatprep.subr.bf16.mxu0 0
    %6118 = vmatpush1.bf16.msra.mxu0 %v6053
    %6119 = vmatprep.subr.bf16.mxu0 0
    %6120 = vmatpush1.bf16.msra.mxu0 %v6054
    %6121 = vmatprep.subr.bf16.mxu0 0
    %6122 = vmatpush1.bf16.msra.mxu0 %v6055
    %6123 = vmatprep.subr.bf16.mxu0 0
    %6124 = vmatpush1.bf16.msra.mxu0 %v6056
    %6125 = vmatprep.subr.bf16.mxu0 0
    %6126 = vmatpush1.bf16.msra.mxu0 %v6057
    %6127 = vmatprep.subr.bf16.mxu0 0
    %6128 = vmatpush1.bf16.msra.mxu0 %v6058
    %6129 = vmatprep.subr.bf16.mxu0 0
    %6130 = vmatpush1.bf16.msra.mxu0 %v6059
    %6131 = vmatprep.subr.bf16.mxu0 0
    %6132 = vmatpush1.bf16.msra.mxu0 %v6060
    %6133 = vmatprep.subr.bf16.mxu0 0
    %6134 = vmatpush1.bf16.msra.mxu0 %v6061
    %6135 = vmatprep.subr.bf16.mxu0 0
    %6136 = vmatpush1.bf16.msra.mxu0 %v6062
    %6137 = vmatprep.subr.bf16.mxu0 0
    %6138 = vmatpush1.bf16.msra.mxu0 %v6063
    %6139 = vmatprep.subr.bf16.mxu0 0
    %6140 = vmatpush1.bf16.msra.mxu0 %v6064
    %6141 = vmatprep.subr.bf16.mxu0 0
    %6142 = vmatpush1.bf16.msra.mxu0 %v6065
    %6143 = vmatprep.subr.bf16.mxu0 0
    %6144 = vmatpush1.bf16.msra.mxu0 %v6066
    %6145 = vmatprep.subr.bf16.mxu0 0
    %6146 = vmatpush1.bf16.msra.mxu0 %v6067
    %6147 = vmatprep.subr.bf16.mxu0 0
    %6148 = vmatpush1.bf16.msra.mxu0 %v6068
    %6149 = vmatprep.mubr.bf16.mxu0 %v5351
    %6150 = vmatmul.mubr.bf16.gmra.mrb[0].mxu0 %v5350
    %v6151 = vpop.f32.mrb[0].mxu0
    %v6152 = vadd.f32 %v5919, %v6151
    %v6153 = vpop.f32.mrb[0].mxu0
    %v6154 = vpop.f32.mrb[0].mxu0
    %v6155 = vadd.f32 %v5922, %v6154
    %v6156 = vpop.f32.mrb[0].mxu0
    %6157 = vdwg.mxu0
    %6158 = vmatprep.subr.bf16.mxu0 0
    %6159 = vmatpush1.bf16.msra.mxu0 %v6069
    %6160 = vmatprep.subr.bf16.mxu0 0
    %6161 = vmatpush1.bf16.msra.mxu0 %v6070
    %6162 = vmatprep.subr.bf16.mxu0 0
    %6163 = vmatpush1.bf16.msra.mxu0 %v6071
    %6164 = vmatprep.subr.bf16.mxu0 0
    %6165 = vmatpush1.bf16.msra.mxu0 %v6072
    %6166 = vmatprep.subr.bf16.mxu0 0
    %6167 = vmatpush1.bf16.msra.mxu0 %v6073
    %6168 = vmatprep.subr.bf16.mxu0 0
    %6169 = vmatpush1.bf16.msra.mxu0 %v6074
    %6170 = vmatprep.subr.bf16.mxu0 0
    %6171 = vmatpush1.bf16.msra.mxu0 %v6075
    %6172 = vmatprep.subr.bf16.mxu0 0
    %6173 = vmatpush1.bf16.msra.mxu0 %v6076
    %6174 = vmatprep.subr.bf16.mxu0 0
    %6175 = vmatpush1.bf16.msra.mxu0 %v6077
    %6176 = vmatprep.subr.bf16.mxu0 0
    %6177 = vmatpush1.bf16.msra.mxu0 %v6078
    %6178 = vmatprep.subr.bf16.mxu0 0
    %6179 = vmatpush1.bf16.msra.mxu0 %v6079
    %6180 = vmatprep.subr.bf16.mxu0 0
    %6181 = vmatpush1.bf16.msra.mxu0 %v6080
    %6182 = vmatprep.subr.bf16.mxu0 0
    %6183 = vmatpush1.bf16.msra.mxu0 %v6081
    %6184 = vmatprep.subr.bf16.mxu0 0
    %6185 = vmatpush1.bf16.msra.mxu0 %v6082
    %6186 = vmatprep.subr.bf16.mxu0 0
    %6187 = vmatpush1.bf16.msra.mxu0 %v6083
    %6188 = vmatprep.subr.bf16.mxu0 0
    %6189 = vmatpush1.bf16.msra.mxu0 %v6084
    %6190 = vmatprep.mubr.bf16.mxu0 %v5353
    %6191 = vmatmul.mubr.bf16.gmra.mrb[0].mxu0 %v5352
    %v6192 = vpop.f32.mrb[0].mxu0
    %v6193 = vadd.f32 %v6152, %v6192
    %v6194 = vpop.f32.mrb[0].mxu0
    %v6195 = vpop.f32.mrb[0].mxu0
    %v6196 = vadd.f32 %v6155, %v6195
    %v6197 = vpop.f32.mrb[0].mxu0
    %6198 = vdwg.mxu0
    %v6199 = vld [vmem:[%s5181 + $0x20] sm:$0xff]
    %v6200 = vld [vmem:[%s5181 + $0x28] sm:$0xff]
    %v6201 = vld [vmem:[%s5181 + $0x60] sm:$0xff]
    %v6202 = vld [vmem:[%s5181 + $0x68] sm:$0xff]
    %v6203 = vld [vmem:[%s5181 + $0xa0] sm:$0xff]
    %v6204 = vld [vmem:[%s5181 + $0xa8] sm:$0xff]
    %v6205 = vld [vmem:[%s5181 + $0xe0] sm:$0xff]
    %v6206 = vld [vmem:[%s5181 + $0xe8] sm:$0xff]
    %v6207 = vld [vmem:[%s5190 + $0x8] sm:$0xf]
    %v6209 = vlaneseq
    %v6210 = vshrl.u32 %v6209, 7
    %v6211 = vsub.s32 0, %v6210
    %v6212 = vrot.slane %v6207, %v6211
    %v6213 = vlaneseq
    %v6214 = vshrl.u32 %v6213, 7
    %v6215 = vsub.s32 1, %v6214
    %v6216 = vrot.slane %v6207, %v6215
    %v6217 = vlaneseq
    %v6218 = vshrl.u32 %v6217, 7
    %v6219 = vsub.s32 2, %v6218
    %v6220 = vrot.slane %v6207, %v6219
    %v6221 = vlaneseq
    %v6222 = vshrl.u32 %v6221, 7
    %v6223 = vsub.s32 3, %v6222
    %v6224 = vrot.slane %v6207, %v6223
    %v6237 = vunpack.c.l.b16 %v6199
    %v6238 = vunpack.c.h.b16 %v6199
    %v6239 = vunpack.c.l.b16 %v6200
    %v6240 = vunpack.c.h.b16 %v6200
    %v6241 = vunpack.c.l.b16 %v6201
    %v6242 = vunpack.c.h.b16 %v6201
    %v6243 = vunpack.c.l.b16 %v6202
    %v6244 = vunpack.c.h.b16 %v6202
    %v6245 = vunpack.c.l.b16 %v6203
    %v6246 = vunpack.c.h.b16 %v6203
    %v6247 = vunpack.c.l.b16 %v6204
    %v6248 = vunpack.c.h.b16 %v6204
    %v6249 = vunpack.c.l.b16 %v6205
    %v6250 = vunpack.c.h.b16 %v6205
    %v6251 = vunpack.c.l.b16 %v6206
    %v6252 = vunpack.c.h.b16 %v6206
    %v6253 = vpack.c.b16 %v6241, %v6237
    %v6254 = vpack.c.b16 %v6242, %v6238
    %v6255 = vpack.c.b16 %v6243, %v6239
    %v6256 = vpack.c.b16 %v6244, %v6240
    %v6257 = vpack.c.b16 %v6249, %v6245
    %v6258 = vpack.c.b16 %v6250, %v6246
    %v6259 = vpack.c.b16 %v6251, %v6247
    %v6260 = vpack.c.b16 %v6252, %v6248
    %6269 = vmatprep.subr.bf16.mxu0 %v6254
    %6270 = vmatpush1.bf16.msra.mxu0 %v6253
    %6271 = vmatprep.subr.bf16.mxu0 %v6258
    %6272 = vmatpush1.bf16.msra.mxu0 %v6257
    %6273 = vmatprep.subr.bf16.mxu0 0
    %6274 = vmatpush1.bf16.msra.mxu0 0
    %6275 = vmatprep.subr.bf16.mxu0 0
    %6276 = vmatpush1.bf16.msra.mxu0 0
    %6277 = vmatprep.subr.bf16.mxu0 0
    %6278 = vmatpush1.bf16.msra.mxu0 0
    %6279 = vmatprep.subr.bf16.mxu0 0
    %6280 = vmatpush1.bf16.msra.mxu0 0
    %6281 = vmatprep.subr.bf16.mxu0 0
    %6282 = vmatpush1.bf16.msra.mxu0 0
    %6283 = vmatprep.subr.bf16.mxu0 0
    %6284 = vmatpush1.bf16.msra.mxu0 0
    %6285 = vmatprep.subr.bf16.mxu0 0
    %6286 = vmatpush1.bf16.msra.mxu0 0
    %6287 = vmatprep.subr.bf16.mxu0 0
    %6288 = vmatpush1.bf16.msra.mxu0 0
    %6289 = vmatprep.subr.bf16.mxu0 0
    %6290 = vmatpush1.bf16.msra.mxu0 0
    %6291 = vmatprep.subr.bf16.mxu0 0
    %6292 = vmatpush1.bf16.msra.mxu0 0
    %6293 = vmatprep.subr.bf16.mxu0 0
    %6294 = vmatpush1.bf16.msra.mxu0 0
    %6295 = vmatprep.subr.bf16.mxu0 0
    %6296 = vmatpush1.bf16.msra.mxu0 0
    %6297 = vmatprep.subr.bf16.mxu0 0
    %6298 = vmatpush1.bf16.msra.mxu0 0
    %6299 = vmatprep.subr.bf16.mxu0 0
    %6300 = vmatpush1.bf16.msra.mxu0 0
    %6301 = vmatprep.mubr.bf16.mxu0 0
    %6302 = vmatmul.mubr.bf16.gmra.mrb[0].mxu0 %v5254
    %v6303 = vpop.f32.mrb[0].mxu0
    %v6304 = vadd.f32 %v6212, %v6303
    %v6305 = vpop.f32.mrb[0].mxu0
    %v6306 = vadd.f32 %v6216, %v6305
    %v6307 = vpop.f32.mrb[0].mxu0
    %v6308 = vadd.f32 %v6212, %v6307
    %v6309 = vpop.f32.mrb[0].mxu0
    %v6310 = vadd.f32 %v6216, %v6309
    %6311 = vdwg.mxu0
    %6312 = vmatprep.subr.bf16.mxu0 %v6256
    %6313 = vmatpush1.bf16.msra.mxu0 %v6255
    %6314 = vmatprep.subr.bf16.mxu0 %v6260
    %6315 = vmatpush1.bf16.msra.mxu0 %v6259
    %6316 = vmatprep.subr.bf16.mxu0 0
    %6317 = vmatpush1.bf16.msra.mxu0 0
    %6318 = vmatprep.subr.bf16.mxu0 0
    %6319 = vmatpush1.bf16.msra.mxu0 0
    %6320 = vmatprep.subr.bf16.mxu0 0
    %6321 = vmatpush1.bf16.msra.mxu0 0
    %6322 = vmatprep.subr.bf16.mxu0 0
    %6323 = vmatpush1.bf16.msra.mxu0 0
    %6324 = vmatprep.subr.bf16.mxu0 0
    %6325 = vmatpush1.bf16.msra.mxu0 0
    %6326 = vmatprep.subr.bf16.mxu0 0
    %6327 = vmatpush1.bf16.msra.mxu0 0
    %6328 = vmatprep.subr.bf16.mxu0 0
    %6329 = vmatpush1.bf16.msra.mxu0 0
    %6330 = vmatprep.subr.bf16.mxu0 0
    %6331 = vmatpush1.bf16.msra.mxu0 0
    %6332 = vmatprep.subr.bf16.mxu0 0
    %6333 = vmatpush1.bf16.msra.mxu0 0
    %6334 = vmatprep.subr.bf16.mxu0 0
    %6335 = vmatpush1.bf16.msra.mxu0 0
    %6336 = vmatprep.subr.bf16.mxu0 0
    %6337 = vmatpush1.bf16.msra.mxu0 0
    %6338 = vmatprep.subr.bf16.mxu0 0
    %6339 = vmatpush1.bf16.msra.mxu0 0
    %6340 = vmatprep.subr.bf16.mxu0 0
    %6341 = vmatpush1.bf16.msra.mxu0 0
    %6342 = vmatprep.subr.bf16.mxu0 0
    %6343 = vmatpush1.bf16.msra.mxu0 0
    %6344 = vmatprep.mubr.bf16.mxu0 0
    %6345 = vmatmul.mubr.bf16.gmra.mrb[0].mxu0 %v5254
    %v6346 = vpop.f32.mrb[0].mxu0
    %v6347 = vadd.f32 %v6220, %v6346
    %v6348 = vpop.f32.mrb[0].mxu0
    %v6349 = vadd.f32 %v6224, %v6348
    %v6350 = vpop.f32.mrb[0].mxu0
    %v6351 = vadd.f32 %v6220, %v6350
    %v6352 = vpop.f32.mrb[0].mxu0
    %v6353 = vadd.f32 %v6224, %v6352
    %6354 = vdwg.mxu0
    %v6355 = vmax.f32 %v6304, 0.0
    %v6356 = vmax.f32 %v6306, 0.0
    %v6357 = vmax.f32 %v6347, 0.0
    %v6358 = vmax.f32 %v6349, 0.0
    %v6359 = vmax.f32 %v6308, 0.0
    %v6360 = vmax.f32 %v6310, 0.0
    %v6361 = vmax.f32 %v6351, 0.0
    %v6362 = vmax.f32 %v6353, 0.0
    %v6363 = vpack.c.bf16 %v6359, %v6355
    %v6364 = vpack.c.bf16 %v6360, %v6356
    %v6365 = vpack.c.bf16 %v6361, %v6357
    %v6366 = vpack.c.bf16 %v6362, %v6358
    %v6367 = vld [vmem:[%s5354 + $0x200] sm:$0xf]
    %v6368 = vld [vmem:[%s5354 + $0x204] sm:$0xf]
    %v6369 = vld [vmem:[%s5354 + $0x208] sm:$0xf]
    %v6370 = vld [vmem:[%s5354 + $0x20c] sm:$0xf]
    %v6371 = vld [vmem:[%s5354 + $0x210] sm:$0xf]
    %v6372 = vld [vmem:[%s5354 + $0x214] sm:$0xf]
    %v6373 = vld [vmem:[%s5354 + $0x218] sm:$0xf]
    %v6374 = vld [vmem:[%s5354 + $0x21c] sm:$0xf]
    %v6375 = vld [vmem:[%s5354 + $0x220] sm:$0xf]
    %v6376 = vld [vmem:[%s5354 + $0x224] sm:$0xf]
    %v6377 = vld [vmem:[%s5354 + $0x228] sm:$0xf]
    %v6378 = vld [vmem:[%s5354 + $0x22c] sm:$0xf]
    %v6379 = vld [vmem:[%s5354 + $0x230] sm:$0xf]
    %v6380 = vld [vmem:[%s5354 + $0x234] sm:$0xf]
    %v6381 = vld [vmem:[%s5354 + $0x238] sm:$0xf]
    %v6382 = vld [vmem:[%s5354 + $0x23c] sm:$0xf]
    %v6383 = vld [vmem:[%s5354 + $0x240] sm:$0xf]
    %v6384 = vld [vmem:[%s5354 + $0x244] sm:$0xf]
    %v6385 = vld [vmem:[%s5354 + $0x248] sm:$0xf]
    %v6386 = vld [vmem:[%s5354 + $0x24c] sm:$0xf]
    %v6387 = vld [vmem:[%s5354 + $0x250] sm:$0xf]
    %v6388 = vld [vmem:[%s5354 + $0x254] sm:$0xf]
    %v6389 = vld [vmem:[%s5354 + $0x258] sm:$0xf]
    %v6390 = vld [vmem:[%s5354 + $0x25c] sm:$0xf]
    %v6391 = vld [vmem:[%s5354 + $0x260] sm:$0xf]
    %v6392 = vld [vmem:[%s5354 + $0x264] sm:$0xf]
    %v6393 = vld [vmem:[%s5354 + $0x268] sm:$0xf]
    %v6394 = vld [vmem:[%s5354 + $0x26c] sm:$0xf]
    %v6395 = vld [vmem:[%s5354 + $0x270] sm:$0xf]
    %v6396 = vld [vmem:[%s5354 + $0x274] sm:$0xf]
    %v6397 = vld [vmem:[%s5354 + $0x278] sm:$0xf]
    %v6398 = vld [vmem:[%s5354 + $0x27c] sm:$0xf]
    %v6399 = vld [vmem:[%s5354 + $0x280] sm:$0xf]
    %v6400 = vld [vmem:[%s5354 + $0x284] sm:$0xf]
    %v6401 = vld [vmem:[%s5354 + $0x288] sm:$0xf]
    %v6402 = vld [vmem:[%s5354 + $0x28c] sm:$0xf]
    %v6403 = vld [vmem:[%s5354 + $0x290] sm:$0xf]
    %v6404 = vld [vmem:[%s5354 + $0x294] sm:$0xf]
    %v6405 = vld [vmem:[%s5354 + $0x298] sm:$0xf]
    %v6406 = vld [vmem:[%s5354 + $0x29c] sm:$0xf]
    %v6407 = vld [vmem:[%s5354 + $0x2a0] sm:$0xf]
    %v6408 = vld [vmem:[%s5354 + $0x2a4] sm:$0xf]
    %v6409 = vld [vmem:[%s5354 + $0x2a8] sm:$0xf]
    %v6410 = vld [vmem:[%s5354 + $0x2ac] sm:$0xf]
    %v6411 = vld [vmem:[%s5354 + $0x2b0] sm:$0xf]
    %v6412 = vld [vmem:[%s5354 + $0x2b4] sm:$0xf]
    %v6413 = vld [vmem:[%s5354 + $0x2b8] sm:$0xf]
    %v6414 = vld [vmem:[%s5354 + $0x2bc] sm:$0xf]
    %v6415 = vld [vmem:[%s5354 + $0x2c0] sm:$0xf]
    %v6416 = vld [vmem:[%s5354 + $0x2c4] sm:$0xf]
    %v6417 = vld [vmem:[%s5354 + $0x2c8] sm:$0xf]
    %v6418 = vld [vmem:[%s5354 + $0x2cc] sm:$0xf]
    %v6419 = vld [vmem:[%s5354 + $0x2d0] sm:$0xf]
    %v6420 = vld [vmem:[%s5354 + $0x2d4] sm:$0xf]
    %v6421 = vld [vmem:[%s5354 + $0x2d8] sm:$0xf]
    %v6422 = vld [vmem:[%s5354 + $0x2dc] sm:$0xf]
    %v6423 = vld [vmem:[%s5354 + $0x2e0] sm:$0xf]
    %v6424 = vld [vmem:[%s5354 + $0x2e4] sm:$0xf]
    %v6425 = vld [vmem:[%s5354 + $0x2e8] sm:$0xf]
    %v6426 = vld [vmem:[%s5354 + $0x2ec] sm:$0xf]
    %v6427 = vld [vmem:[%s5354 + $0x2f0] sm:$0xf]
    %v6428 = vld [vmem:[%s5354 + $0x2f4] sm:$0xf]
    %v6429 = vld [vmem:[%s5354 + $0x2f8] sm:$0xf]
    %v6430 = vld [vmem:[%s5354 + $0x2fc] sm:$0xf]
    %v6495 = vunpack.c.l.b16 %v6367
    %v6496 = vunpack.c.l.b16 %v6368
    %v6497 = vunpack.c.l.b16 %v6369
    %v6498 = vunpack.c.l.b16 %v6370
    %v6499 = vunpack.c.l.b16 %v6371
    %v6500 = vunpack.c.l.b16 %v6372
    %v6501 = vunpack.c.l.b16 %v6373
    %v6502 = vunpack.c.l.b16 %v6374
    %v6503 = vunpack.c.l.b16 %v6375
    %v6504 = vunpack.c.l.b16 %v6376
    %v6505 = vunpack.c.l.b16 %v6377
    %v6506 = vunpack.c.l.b16 %v6378
    %v6507 = vunpack.c.l.b16 %v6379
    %v6508 = vunpack.c.l.b16 %v6380
    %v6509 = vunpack.c.l.b16 %v6381
    %v6510 = vunpack.c.l.b16 %v6382
    %v6511 = vunpack.c.l.b16 %v6383
    %v6512 = vunpack.c.l.b16 %v6384
    %v6513 = vunpack.c.l.b16 %v6385
    %v6514 = vunpack.c.l.b16 %v6386
    %v6515 = vunpack.c.l.b16 %v6387
    %v6516 = vunpack.c.l.b16 %v6388
    %v6517 = vunpack.c.l.b16 %v6389
    %v6518 = vunpack.c.l.b16 %v6390
    %v6519 = vunpack.c.l.b16 %v6391
    %v6520 = vunpack.c.l.b16 %v6392
    %v6521 = vunpack.c.l.b16 %v6393
    %v6522 = vunpack.c.l.b16 %v6394
    %v6523 = vunpack.c.l.b16 %v6395
    %v6524 = vunpack.c.l.b16 %v6396
    %v6525 = vunpack.c.l.b16 %v6397
    %v6526 = vunpack.c.l.b16 %v6398
    %v6527 = vunpack.c.l.b16 %v6399
    %v6528 = vunpack.c.l.b16 %v6400
    %v6529 = vunpack.c.l.b16 %v6401
    %v6530 = vunpack.c.l.b16 %v6402
    %v6531 = vunpack.c.l.b16 %v6403
    %v6532 = vunpack.c.l.b16 %v6404
    %v6533 = vunpack.c.l.b16 %v6405
    %v6534 = vunpack.c.l.b16 %v6406
    %v6535 = vunpack.c.l.b16 %v6407
    %v6536 = vunpack.c.l.b16 %v6408
    %v6537 = vunpack.c.l.b16 %v6409
    %v6538 = vunpack.c.l.b16 %v6410
    %v6539 = vunpack.c.l.b16 %v6411
    %v6540 = vunpack.c.l.b16 %v6412
    %v6541 = vunpack.c.l.b16 %v6413
    %v6542 = vunpack.c.l.b16 %v6414
    %v6543 = vunpack.c.l.b16 %v6415
    %v6544 = vunpack.c.l.b16 %v6416
    %v6545 = vunpack.c.l.b16 %v6417
    %v6546 = vunpack.c.l.b16 %v6418
    %v6547 = vunpack.c.l.b16 %v6419
    %v6548 = vunpack.c.l.b16 %v6420
    %v6549 = vunpack.c.l.b16 %v6421
    %v6550 = vunpack.c.l.b16 %v6422
    %v6551 = vunpack.c.l.b16 %v6423
    %v6552 = vunpack.c.l.b16 %v6424
    %v6553 = vunpack.c.l.b16 %v6425
    %v6554 = vunpack.c.l.b16 %v6426
    %v6555 = vunpack.c.l.b16 %v6427
    %v6556 = vunpack.c.l.b16 %v6428
    %v6557 = vunpack.c.l.b16 %v6429
    %v6558 = vunpack.c.l.b16 %v6430
    %v6559 = vpack.c.b16 %v6496, %v6495
    %v6560 = vpack.c.b16 %v6498, %v6497
    %v6561 = vpack.c.b16 %v6500, %v6499
    %v6562 = vpack.c.b16 %v6502, %v6501
    %v6563 = vpack.c.b16 %v6504, %v6503
    %v6564 = vpack.c.b16 %v6506, %v6505
    %v6565 = vpack.c.b16 %v6508, %v6507
    %v6566 = vpack.c.b16 %v6510, %v6509
    %v6567 = vpack.c.b16 %v6512, %v6511
    %v6568 = vpack.c.b16 %v6514, %v6513
    %v6569 = vpack.c.b16 %v6516, %v6515
    %v6570 = vpack.c.b16 %v6518, %v6517
    %v6571 = vpack.c.b16 %v6520, %v6519
    %v6572 = vpack.c.b16 %v6522, %v6521
    %v6573 = vpack.c.b16 %v6524, %v6523
    %v6574 = vpack.c.b16 %v6526, %v6525
    %v6575 = vpack.c.b16 %v6528, %v6527
    %v6576 = vpack.c.b16 %v6530, %v6529
    %v6577 = vpack.c.b16 %v6532, %v6531
    %v6578 = vpack.c.b16 %v6534, %v6533
    %v6579 = vpack.c.b16 %v6536, %v6535
    %v6580 = vpack.c.b16 %v6538, %v6537
    %v6581 = vpack.c.b16 %v6540, %v6539
    %v6582 = vpack.c.b16 %v6542, %v6541
    %v6583 = vpack.c.b16 %v6544, %v6543
    %v6584 = vpack.c.b16 %v6546, %v6545
    %v6585 = vpack.c.b16 %v6548, %v6547
    %v6586 = vpack.c.b16 %v6550, %v6549
    %v6587 = vpack.c.b16 %v6552, %v6551
    %v6588 = vpack.c.b16 %v6554, %v6553
    %v6589 = vpack.c.b16 %v6556, %v6555
    %v6590 = vpack.c.b16 %v6558, %v6557
    %6623 = vmatprep.subr.bf16.mxu0 0
    %6624 = vmatpush1.bf16.msra.mxu0 %v6559
    %6625 = vmatprep.subr.bf16.mxu0 0
    %6626 = vmatpush1.bf16.msra.mxu0 %v6560
    %6627 = vmatprep.subr.bf16.mxu0 0
    %6628 = vmatpush1.bf16.msra.mxu0 %v6561
    %6629 = vmatprep.subr.bf16.mxu0 0
    %6630 = vmatpush1.bf16.msra.mxu0 %v6562
    %6631 = vmatprep.subr.bf16.mxu0 0
    %6632 = vmatpush1.bf16.msra.mxu0 %v6563
    %6633 = vmatprep.subr.bf16.mxu0 0
    %6634 = vmatpush1.bf16.msra.mxu0 %v6564
    %6635 = vmatprep.subr.bf16.mxu0 0
    %6636 = vmatpush1.bf16.msra.mxu0 %v6565
    %6637 = vmatprep.subr.bf16.mxu0 0
    %6638 = vmatpush1.bf16.msra.mxu0 %v6566
    %6639 = vmatprep.subr.bf16.mxu0 0
    %6640 = vmatpush1.bf16.msra.mxu0 %v6567
    %6641 = vmatprep.subr.bf16.mxu0 0
    %6642 = vmatpush1.bf16.msra.mxu0 %v6568
    %6643 = vmatprep.subr.bf16.mxu0 0
    %6644 = vmatpush1.bf16.msra.mxu0 %v6569
    %6645 = vmatprep.subr.bf16.mxu0 0
    %6646 = vmatpush1.bf16.msra.mxu0 %v6570
    %6647 = vmatprep.subr.bf16.mxu0 0
    %6648 = vmatpush1.bf16.msra.mxu0 %v6571
    %6649 = vmatprep.subr.bf16.mxu0 0
    %6650 = vmatpush1.bf16.msra.mxu0 %v6572
    %6651 = vmatprep.subr.bf16.mxu0 0
    %6652 = vmatpush1.bf16.msra.mxu0 %v6573
    %6653 = vmatprep.subr.bf16.mxu0 0
    %6654 = vmatpush1.bf16.msra.mxu0 %v6574
    %6655 = vmatprep.mubr.bf16.mxu0 %v6364
    %6656 = vmatmul.mubr.bf16.gmra.mrb[0].mxu0 %v6363
    %v6657 = vpop.f32.mrb[0].mxu0
    %v6658 = vadd.f32 0.0, %v6657
    %v6659 = vpop.f32.mrb[0].mxu0
    %v6660 = vpop.f32.mrb[0].mxu0
    %v6661 = vadd.f32 0.0, %v6660
    %v6662 = vpop.f32.mrb[0].mxu0
    %6663 = vdwg.mxu0
    %6664 = vmatprep.subr.bf16.mxu0 0
    %6665 = vmatpush1.bf16.msra.mxu0 %v6575
    %6666 = vmatprep.subr.bf16.mxu0 0
    %6667 = vmatpush1.bf16.msra.mxu0 %v6576
    %6668 = vmatprep.subr.bf16.mxu0 0
    %6669 = vmatpush1.bf16.msra.mxu0 %v6577
    %6670 = vmatprep.subr.bf16.mxu0 0
    %6671 = vmatpush1.bf16.msra.mxu0 %v6578
    %6672 = vmatprep.subr.bf16.mxu0 0
    %6673 = vmatpush1.bf16.msra.mxu0 %v6579
    %6674 = vmatprep.subr.bf16.mxu0 0
    %6675 = vmatpush1.bf16.msra.mxu0 %v6580
    %6676 = vmatprep.subr.bf16.mxu0 0
    %6677 = vmatpush1.bf16.msra.mxu0 %v6581
    %6678 = vmatprep.subr.bf16.mxu0 0
    %6679 = vmatpush1.bf16.msra.mxu0 %v6582
    %6680 = vmatprep.subr.bf16.mxu0 0
    %6681 = vmatpush1.bf16.msra.mxu0 %v6583
    %6682 = vmatprep.subr.bf16.mxu0 0
    %6683 = vmatpush1.bf16.msra.mxu0 %v6584
    %6684 = vmatprep.subr.bf16.mxu0 0
    %6685 = vmatpush1.bf16.msra.mxu0 %v6585
    %6686 = vmatprep.subr.bf16.mxu0 0
    %6687 = vmatpush1.bf16.msra.mxu0 %v6586
    %6688 = vmatprep.subr.bf16.mxu0 0
    %6689 = vmatpush1.bf16.msra.mxu0 %v6587
    %6690 = vmatprep.subr.bf16.mxu0 0
    %6691 = vmatpush1.bf16.msra.mxu0 %v6588
    %6692 = vmatprep.subr.bf16.mxu0 0
    %6693 = vmatpush1.bf16.msra.mxu0 %v6589
    %6694 = vmatprep.subr.bf16.mxu0 0
    %6695 = vmatpush1.bf16.msra.mxu0 %v6590
    %6696 = vmatprep.mubr.bf16.mxu0 %v6366
    %6697 = vmatmul.mubr.bf16.gmra.mrb[0].mxu0 %v6365
    %v6698 = vpop.f32.mrb[0].mxu0
    %v6699 = vadd.f32 %v6658, %v6698
    %v6700 = vpop.f32.mrb[0].mxu0
    %v6701 = vpop.f32.mrb[0].mxu0
    %v6702 = vadd.f32 %v6661, %v6701
    %v6703 = vpop.f32.mrb[0].mxu0
    %6704 = vdwg.mxu0
    %v6705 = vadd.f32 %v6193, %v6699
    %v6706 = vadd.f32 %v6196, %v6702
    %v6707 = vld [vmem:[%s5181 + $0x30] sm:$0xff]
    %v6708 = vld [vmem:[%s5181 + $0x38] sm:$0xff]
    %v6709 = vld [vmem:[%s5181 + $0x70] sm:$0xff]
    %v6710 = vld [vmem:[%s5181 + $0x78] sm:$0xff]
    %v6711 = vld [vmem:[%s5181 + $0xb0] sm:$0xff]
    %v6712 = vld [vmem:[%s5181 + $0xb8] sm:$0xff]
    %v6713 = vld [vmem:[%s5181 + $0xf0] sm:$0xff]
    %v6714 = vld [vmem:[%s5181 + $0xf8] sm:$0xff]
    %v6715 = vld [vmem:[%s5190 + $0xc] sm:$0xf]
    %v6717 = vlaneseq
    %v6718 = vshrl.u32 %v6717, 7
    %v6719 = vsub.s32 0, %v6718
    %v6720 = vrot.slane %v6715, %v6719
    %v6721 = vlaneseq
    %v6722 = vshrl.u32 %v6721, 7
    %v6723 = vsub.s32 1, %v6722
    %v6724 = vrot.slane %v6715, %v6723
    %v6725 = vlaneseq
    %v6726 = vshrl.u32 %v6725, 7
    %v6727 = vsub.s32 2, %v6726
    %v6728 = vrot.slane %v6715, %v6727
    %v6729 = vlaneseq
    %v6730 = vshrl.u32 %v6729, 7
    %v6731 = vsub.s32 3, %v6730
    %v6732 = vrot.slane %v6715, %v6731
    %v6745 = vunpack.c.l.b16 %v6707
    %v6746 = vunpack.c.h.b16 %v6707
    %v6747 = vunpack.c.l.b16 %v6708
    %v6748 = vunpack.c.h.b16 %v6708
    %v6749 = vunpack.c.l.b16 %v6709
    %v6750 = vunpack.c.h.b16 %v6709
    %v6751 = vunpack.c.l.b16 %v6710
    %v6752 = vunpack.c.h.b16 %v6710
    %v6753 = vunpack.c.l.b16 %v6711
    %v6754 = vunpack.c.h.b16 %v6711
    %v6755 = vunpack.c.l.b16 %v6712
    %v6756 = vunpack.c.h.b16 %v6712
    %v6757 = vunpack.c.l.b16 %v6713
    %v6758 = vunpack.c.h.b16 %v6713
    %v6759 = vunpack.c.l.b16 %v6714
    %v6760 = vunpack.c.h.b16 %v6714
    %v6761 = vpack.c.b16 %v6749, %v6745
    %v6762 = vpack.c.b16 %v6750, %v6746
    %v6763 = vpack.c.b16 %v6751, %v6747
    %v6764 = vpack.c.b16 %v6752, %v6748
    %v6765 = vpack.c.b16 %v6757, %v6753
    %v6766 = vpack.c.b16 %v6758, %v6754
    %v6767 = vpack.c.b16 %v6759, %v6755
    %v6768 = vpack.c.b16 %v6760, %v6756
    %6777 = vmatprep.subr.bf16.mxu0 %v6762
    %6778 = vmatpush1.bf16.msra.mxu0 %v6761
    %6779 = vmatprep.subr.bf16.mxu0 %v6766
    %6780 = vmatpush1.bf16.msra.mxu0 %v6765
    %6781 = vmatprep.subr.bf16.mxu0 0
    %6782 = vmatpush1.bf16.msra.mxu0 0
    %6783 = vmatprep.subr.bf16.mxu0 0
    %6784 = vmatpush1.bf16.msra.mxu0 0
    %6785 = vmatprep.subr.bf16.mxu0 0
    %6786 = vmatpush1.bf16.msra.mxu0 0
    %6787 = vmatprep.subr.bf16.mxu0 0
    %6788 = vmatpush1.bf16.msra.mxu0 0
    %6789 = vmatprep.subr.bf16.mxu0 0
    %6790 = vmatpush1.bf16.msra.mxu0 0
    %6791 = vmatprep.subr.bf16.mxu0 0
    %6792 = vmatpush1.bf16.msra.mxu0 0
    %6793 = vmatprep.subr.bf16.mxu0 0
    %6794 = vmatpush1.bf16.msra.mxu0 0
    %6795 = vmatprep.subr.bf16.mxu0 0
    %6796 = vmatpush1.bf16.msra.mxu0 0
    %6797 = vmatprep.subr.bf16.mxu0 0
    %6798 = vmatpush1.bf16.msra.mxu0 0
    %6799 = vmatprep.subr.bf16.mxu0 0
    %6800 = vmatpush1.bf16.msra.mxu0 0
    %6801 = vmatprep.subr.bf16.mxu0 0
    %6802 = vmatpush1.bf16.msra.mxu0 0
    %6803 = vmatprep.subr.bf16.mxu0 0
    %6804 = vmatpush1.bf16.msra.mxu0 0
    %6805 = vmatprep.subr.bf16.mxu0 0
    %6806 = vmatpush1.bf16.msra.mxu0 0
    %6807 = vmatprep.subr.bf16.mxu0 0
    %6808 = vmatpush1.bf16.msra.mxu0 0
    %6809 = vmatprep.mubr.bf16.mxu0 0
    %6810 = vmatmul.mubr.bf16.gmra.mrb[0].mxu0 %v5254
    %v6811 = vpop.f32.mrb[0].mxu0
    %v6812 = vadd.f32 %v6720, %v6811
    %v6813 = vpop.f32.mrb[0].mxu0
    %v6814 = vadd.f32 %v6724, %v6813
    %v6815 = vpop.f32.mrb[0].mxu0
    %v6816 = vadd.f32 %v6720, %v6815
    %v6817 = vpop.f32.mrb[0].mxu0
    %v6818 = vadd.f32 %v6724, %v6817
    %6819 = vdwg.mxu0
    %6820 = vmatprep.subr.bf16.mxu0 %v6764
    %6821 = vmatpush1.bf16.msra.mxu0 %v6763
    %6822 = vmatprep.subr.bf16.mxu0 %v6768
    %6823 = vmatpush1.bf16.msra.mxu0 %v6767
    %6824 = vmatprep.subr.bf16.mxu0 0
    %6825 = vmatpush1.bf16.msra.mxu0 0
    %6826 = vmatprep.subr.bf16.mxu0 0
    %6827 = vmatpush1.bf16.msra.mxu0 0
    %6828 = vmatprep.subr.bf16.mxu0 0
    %6829 = vmatpush1.bf16.msra.mxu0 0
    %6830 = vmatprep.subr.bf16.mxu0 0
    %6831 = vmatpush1.bf16.msra.mxu0 0
    %6832 = vmatprep.subr.bf16.mxu0 0
    %6833 = vmatpush1.bf16.msra.mxu0 0
    %6834 = vmatprep.subr.bf16.mxu0 0
    %6835 = vmatpush1.bf16.msra.mxu0 0
    %6836 = vmatprep.subr.bf16.mxu0 0
    %6837 = vmatpush1.bf16.msra.mxu0 0
    %6838 = vmatprep.subr.bf16.mxu0 0
    %6839 = vmatpush1.bf16.msra.mxu0 0
    %6840 = vmatprep.subr.bf16.mxu0 0
    %6841 = vmatpush1.bf16.msra.mxu0 0
    %6842 = vmatprep.subr.bf16.mxu0 0
    %6843 = vmatpush1.bf16.msra.mxu0 0
    %6844 = vmatprep.subr.bf16.mxu0 0
    %6845 = vmatpush1.bf16.msra.mxu0 0
    %6846 = vmatprep.subr.bf16.mxu0 0
    %6847 = vmatpush1.bf16.msra.mxu0 0
    %6848 = vmatprep.subr.bf16.mxu0 0
    %6849 = vmatpush1.bf16.msra.mxu0 0
    %6850 = vmatprep.subr.bf16.mxu0 0
    %6851 = vmatpush1.bf16.msra.mxu0 0
    %6852 = vmatprep.mubr.bf16.mxu0 0
    %6853 = vmatmul.mubr.bf16.gmra.mrb[0].mxu0 %v5254
    %v6854 = vpop.f32.mrb[0].mxu0
    %v6855 = vadd.f32 %v6728, %v6854
    %v6856 = vpop.f32.mrb[0].mxu0
    %v6857 = vadd.f32 %v6732, %v6856
    %v6858 = vpop.f32.mrb[0].mxu0
    %v6859 = vadd.f32 %v6728, %v6858
    %v6860 = vpop.f32.mrb[0].mxu0
    %v6861 = vadd.f32 %v6732, %v6860
    %6862 = vdwg.mxu0
    %v6863 = vmax.f32 %v6812, 0.0
    %v6864 = vmax.f32 %v6814, 0.0
    %v6865 = vmax.f32 %v6855, 0.0
    %v6866 = vmax.f32 %v6857, 0.0
    %v6867 = vmax.f32 %v6816, 0.0
    %v6868 = vmax.f32 %v6818, 0.0
    %v6869 = vmax.f32 %v6859, 0.0
    %v6870 = vmax.f32 %v6861, 0.0
    %v6871 = vpack.c.bf16 %v6867, %v6863
    %v6872 = vpack.c.bf16 %v6868, %v6864
    %v6873 = vpack.c.bf16 %v6869, %v6865
    %v6874 = vpack.c.bf16 %v6870, %v6866
    %v6875 = vld [vmem:[%s5354 + $0x300] sm:$0xf]
    %v6876 = vld [vmem:[%s5354 + $0x304] sm:$0xf]
    %v6877 = vld [vmem:[%s5354 + $0x308] sm:$0xf]
    %v6878 = vld [vmem:[%s5354 + $0x30c] sm:$0xf]
    %v6879 = vld [vmem:[%s5354 + $0x310] sm:$0xf]
    %v6880 = vld [vmem:[%s5354 + $0x314] sm:$0xf]
    %v6881 = vld [vmem:[%s5354 + $0x318] sm:$0xf]
    %v6882 = vld [vmem:[%s5354 + $0x31c] sm:$0xf]
    %v6883 = vld [vmem:[%s5354 + $0x320] sm:$0xf]
    %v6884 = vld [vmem:[%s5354 + $0x324] sm:$0xf]
    %v6885 = vld [vmem:[%s5354 + $0x328] sm:$0xf]
    %v6886 = vld [vmem:[%s5354 + $0x32c] sm:$0xf]
    %v6887 = vld [vmem:[%s5354 + $0x330] sm:$0xf]
    %v6888 = vld [vmem:[%s5354 + $0x334] sm:$0xf]
    %v6889 = vld [vmem:[%s5354 + $0x338] sm:$0xf]
    %v6890 = vld [vmem:[%s5354 + $0x33c] sm:$0xf]
    %v6891 = vld [vmem:[%s5354 + $0x340] sm:$0xf]
    %v6892 = vld [vmem:[%s5354 + $0x344] sm:$0xf]
    %v6893 = vld [vmem:[%s5354 + $0x348] sm:$0xf]
    %v6894 = vld [vmem:[%s5354 + $0x34c] sm:$0xf]
    %v6895 = vld [vmem:[%s5354 + $0x350] sm:$0xf]
    %v6896 = vld [vmem:[%s5354 + $0x354] sm:$0xf]
    %v6897 = vld [vmem:[%s5354 + $0x358] sm:$0xf]
    %v6898 = vld [vmem:[%s5354 + $0x35c] sm:$0xf]
    %v6899 = vld [vmem:[%s5354 + $0x360] sm:$0xf]
    %v6900 = vld [vmem:[%s5354 + $0x364] sm:$0xf]
    %v6901 = vld [vmem:[%s5354 + $0x368] sm:$0xf]
    %v6902 = vld [vmem:[%s5354 + $0x36c] sm:$0xf]
    %v6903 = vld [vmem:[%s5354 + $0x370] sm:$0xf]
    %v6904 = vld [vmem:[%s5354 + $0x374] sm:$0xf]
    %v6905 = vld [vmem:[%s5354 + $0x378] sm:$0xf]
    %v6906 = vld [vmem:[%s5354 + $0x37c] sm:$0xf]
    %v6907 = vld [vmem:[%s5354 + $0x380] sm:$0xf]
    %v6908 = vld [vmem:[%s5354 + $0x384] sm:$0xf]
    %v6909 = vld [vmem:[%s5354 + $0x388] sm:$0xf]
    %v6910 = vld [vmem:[%s5354 + $0x38c] sm:$0xf]
    %v6911 = vld [vmem:[%s5354 + $0x390] sm:$0xf]
    %v6912 = vld [vmem:[%s5354 + $0x394] sm:$0xf]
    %v6913 = vld [vmem:[%s5354 + $0x398] sm:$0xf]
    %v6914 = vld [vmem:[%s5354 + $0x39c] sm:$0xf]
    %v6915 = vld [vmem:[%s5354 + $0x3a0] sm:$0xf]
    %v6916 = vld [vmem:[%s5354 + $0x3a4] sm:$0xf]
    %v6917 = vld [vmem:[%s5354 + $0x3a8] sm:$0xf]
    %v6918 = vld [vmem:[%s5354 + $0x3ac] sm:$0xf]
    %v6919 = vld [vmem:[%s5354 + $0x3b0] sm:$0xf]
    %v6920 = vld [vmem:[%s5354 + $0x3b4] sm:$0xf]
    %v6921 = vld [vmem:[%s5354 + $0x3b8] sm:$0xf]
    %v6922 = vld [vmem:[%s5354 + $0x3bc] sm:$0xf]
    %v6923 = vld [vmem:[%s5354 + $0x3c0] sm:$0xf]
    %v6924 = vld [vmem:[%s5354 + $0x3c4] sm:$0xf]
    %v6925 = vld [vmem:[%s5354 + $0x3c8] sm:$0xf]
    %v6926 = vld [vmem:[%s5354 + $0x3cc] sm:$0xf]
    %v6927 = vld [vmem:[%s5354 + $0x3d0] sm:$0xf]
    %v6928 = vld [vmem:[%s5354 + $0x3d4] sm:$0xf]
    %v6929 = vld [vmem:[%s5354 + $0x3d8] sm:$0xf]
    %v6930 = vld [vmem:[%s5354 + $0x3dc] sm:$0xf]
    %v6931 = vld [vmem:[%s5354 + $0x3e0] sm:$0xf]
    %v6932 = vld [vmem:[%s5354 + $0x3e4] sm:$0xf]
    %v6933 = vld [vmem:[%s5354 + $0x3e8] sm:$0xf]
    %v6934 = vld [vmem:[%s5354 + $0x3ec] sm:$0xf]
    %v6935 = vld [vmem:[%s5354 + $0x3f0] sm:$0xf]
    %v6936 = vld [vmem:[%s5354 + $0x3f4] sm:$0xf]
    %v6937 = vld [vmem:[%s5354 + $0x3f8] sm:$0xf]
    %v6938 = vld [vmem:[%s5354 + $0x3fc] sm:$0xf]
    %v7003 = vunpack.c.l.b16 %v6875
    %v7004 = vunpack.c.l.b16 %v6876
    %v7005 = vunpack.c.l.b16 %v6877
    %v7006 = vunpack.c.l.b16 %v6878
    %v7007 = vunpack.c.l.b16 %v6879
    %v7008 = vunpack.c.l.b16 %v6880
    %v7009 = vunpack.c.l.b16 %v6881
    %v7010 = vunpack.c.l.b16 %v6882
    %v7011 = vunpack.c.l.b16 %v6883
    %v7012 = vunpack.c.l.b16 %v6884
    %v7013 = vunpack.c.l.b16 %v6885
    %v7014 = vunpack.c.l.b16 %v6886
    %v7015 = vunpack.c.l.b16 %v6887
    %v7016 = vunpack.c.l.b16 %v6888
    %v7017 = vunpack.c.l.b16 %v6889
    %v7018 = vunpack.c.l.b16 %v6890
    %v7019 = vunpack.c.l.b16 %v6891
    %v7020 = vunpack.c.l.b16 %v6892
    %v7021 = vunpack.c.l.b16 %v6893
    %v7022 = vunpack.c.l.b16 %v6894
    %v7023 = vunpack.c.l.b16 %v6895
    %v7024 = vunpack.c.l.b16 %v6896
    %v7025 = vunpack.c.l.b16 %v6897
    %v7026 = vunpack.c.l.b16 %v6898
    %v7027 = vunpack.c.l.b16 %v6899
    %v7028 = vunpack.c.l.b16 %v6900
    %v7029 = vunpack.c.l.b16 %v6901
    %v7030 = vunpack.c.l.b16 %v6902
    %v7031 = vunpack.c.l.b16 %v6903
    %v7032 = vunpack.c.l.b16 %v6904
    %v7033 = vunpack.c.l.b16 %v6905
    %v7034 = vunpack.c.l.b16 %v6906
    %v7035 = vunpack.c.l.b16 %v6907
    %v7036 = vunpack.c.l.b16 %v6908
    %v7037 = vunpack.c.l.b16 %v6909
    %v7038 = vunpack.c.l.b16 %v6910
    %v7039 = vunpack.c.l.b16 %v6911
    %v7040 = vunpack.c.l.b16 %v6912
    %v7041 = vunpack.c.l.b16 %v6913
    %v7042 = vunpack.c.l.b16 %v6914
    %v7043 = vunpack.c.l.b16 %v6915
    %v7044 = vunpack.c.l.b16 %v6916
    %v7045 = vunpack.c.l.b16 %v6917
    %v7046 = vunpack.c.l.b16 %v6918
    %v7047 = vunpack.c.l.b16 %v6919
    %v7048 = vunpack.c.l.b16 %v6920
    %v7049 = vunpack.c.l.b16 %v6921
    %v7050 = vunpack.c.l.b16 %v6922
    %v7051 = vunpack.c.l.b16 %v6923
    %v7052 = vunpack.c.l.b16 %v6924
    %v7053 = vunpack.c.l.b16 %v6925
    %v7054 = vunpack.c.l.b16 %v6926
    %v7055 = vunpack.c.l.b16 %v6927
    %v7056 = vunpack.c.l.b16 %v6928
    %v7057 = vunpack.c.l.b16 %v6929
    %v7058 = vunpack.c.l.b16 %v6930
    %v7059 = vunpack.c.l.b16 %v6931
    %v7060 = vunpack.c.l.b16 %v6932
    %v7061 = vunpack.c.l.b16 %v6933
    %v7062 = vunpack.c.l.b16 %v6934
    %v7063 = vunpack.c.l.b16 %v6935
    %v7064 = vunpack.c.l.b16 %v6936
    %v7065 = vunpack.c.l.b16 %v6937
    %v7066 = vunpack.c.l.b16 %v6938
    %v7067 = vpack.c.b16 %v7004, %v7003
    %v7068 = vpack.c.b16 %v7006, %v7005
    %v7069 = vpack.c.b16 %v7008, %v7007
    %v7070 = vpack.c.b16 %v7010, %v7009
    %v7071 = vpack.c.b16 %v7012, %v7011
    %v7072 = vpack.c.b16 %v7014, %v7013
    %v7073 = vpack.c.b16 %v7016, %v7015
    %v7074 = vpack.c.b16 %v7018, %v7017
    %v7075 = vpack.c.b16 %v7020, %v7019
    %v7076 = vpack.c.b16 %v7022, %v7021
    %v7077 = vpack.c.b16 %v7024, %v7023
    %v7078 = vpack.c.b16 %v7026, %v7025
    %v7079 = vpack.c.b16 %v7028, %v7027
    %v7080 = vpack.c.b16 %v7030, %v7029
    %v7081 = vpack.c.b16 %v7032, %v7031
    %v7082 = vpack.c.b16 %v7034, %v7033
    %v7083 = vpack.c.b16 %v7036, %v7035
    %v7084 = vpack.c.b16 %v7038, %v7037
    %v7085 = vpack.c.b16 %v7040, %v7039
    %v7086 = vpack.c.b16 %v7042, %v7041
    %v7087 = vpack.c.b16 %v7044, %v7043
    %v7088 = vpack.c.b16 %v7046, %v7045
    %v7089 = vpack.c.b16 %v7048, %v7047
    %v7090 = vpack.c.b16 %v7050, %v7049
    %v7091 = vpack.c.b16 %v7052, %v7051
    %v7092 = vpack.c.b16 %v7054, %v7053
    %v7093 = vpack.c.b16 %v7056, %v7055
    %v7094 = vpack.c.b16 %v7058, %v7057
    %v7095 = vpack.c.b16 %v7060, %v7059
    %v7096 = vpack.c.b16 %v7062, %v7061
    %v7097 = vpack.c.b16 %v7064, %v7063
    %v7098 = vpack.c.b16 %v7066, %v7065
    %7131 = vmatprep.subr.bf16.mxu0 0
    %7132 = vmatpush1.bf16.msra.mxu0 %v7067
    %7133 = vmatprep.subr.bf16.mxu0 0
    %7134 = vmatpush1.bf16.msra.mxu0 %v7068
    %7135 = vmatprep.subr.bf16.mxu0 0
    %7136 = vmatpush1.bf16.msra.mxu0 %v7069
    %7137 = vmatprep.subr.bf16.mxu0 0
    %7138 = vmatpush1.bf16.msra.mxu0 %v7070
    %7139 = vmatprep.subr.bf16.mxu0 0
    %7140 = vmatpush1.bf16.msra.mxu0 %v7071
    %7141 = vmatprep.subr.bf16.mxu0 0
    %7142 = vmatpush1.bf16.msra.mxu0 %v7072
    %7143 = vmatprep.subr.bf16.mxu0 0
    %7144 = vmatpush1.bf16.msra.mxu0 %v7073
    %7145 = vmatprep.subr.bf16.mxu0 0
    %7146 = vmatpush1.bf16.msra.mxu0 %v7074
    %7147 = vmatprep.subr.bf16.mxu0 0
    %7148 = vmatpush1.bf16.msra.mxu0 %v7075
    %7149 = vmatprep.subr.bf16.mxu0 0
    %7150 = vmatpush1.bf16.msra.mxu0 %v7076
    %7151 = vmatprep.subr.bf16.mxu0 0
    %7152 = vmatpush1.bf16.msra.mxu0 %v7077
    %7153 = vmatprep.subr.bf16.mxu0 0
    %7154 = vmatpush1.bf16.msra.mxu0 %v7078
    %7155 = vmatprep.subr.bf16.mxu0 0
    %7156 = vmatpush1.bf16.msra.mxu0 %v7079
    %7157 = vmatprep.subr.bf16.mxu0 0
    %7158 = vmatpush1.bf16.msra.mxu0 %v7080
    %7159 = vmatprep.subr.bf16.mxu0 0
    %7160 = vmatpush1.bf16.msra.mxu0 %v7081
    %7161 = vmatprep.subr.bf16.mxu0 0
    %7162 = vmatpush1.bf16.msra.mxu0 %v7082
    %7163 = vmatprep.mubr.bf16.mxu0 %v6872
    %7164 = vmatmul.mubr.bf16.gmra.mrb[0].mxu0 %v6871
    %v7165 = vpop.f32.mrb[0].mxu0
    %v7166 = vadd.f32 0.0, %v7165
    %v7167 = vpop.f32.mrb[0].mxu0
    %v7168 = vpop.f32.mrb[0].mxu0
    %v7169 = vadd.f32 0.0, %v7168
    %v7170 = vpop.f32.mrb[0].mxu0
    %7171 = vdwg.mxu0
    %7172 = vmatprep.subr.bf16.mxu0 0
    %7173 = vmatpush1.bf16.msra.mxu0 %v7083
    %7174 = vmatprep.subr.bf16.mxu0 0
    %7175 = vmatpush1.bf16.msra.mxu0 %v7084
    %7176 = vmatprep.subr.bf16.mxu0 0
    %7177 = vmatpush1.bf16.msra.mxu0 %v7085
    %7178 = vmatprep.subr.bf16.mxu0 0
    %7179 = vmatpush1.bf16.msra.mxu0 %v7086
    %7180 = vmatprep.subr.bf16.mxu0 0
    %7181 = vmatpush1.bf16.msra.mxu0 %v7087
    %7182 = vmatprep.subr.bf16.mxu0 0
    %7183 = vmatpush1.bf16.msra.mxu0 %v7088
    %7184 = vmatprep.subr.bf16.mxu0 0
    %7185 = vmatpush1.bf16.msra.mxu0 %v7089
    %7186 = vmatprep.subr.bf16.mxu0 0
    %7187 = vmatpush1.bf16.msra.mxu0 %v7090
    %7188 = vmatprep.subr.bf16.mxu0 0
    %7189 = vmatpush1.bf16.msra.mxu0 %v7091
    %7190 = vmatprep.subr.bf16.mxu0 0
    %7191 = vmatpush1.bf16.msra.mxu0 %v7092
    %7192 = vmatprep.subr.bf16.mxu0 0
    %7193 = vmatpush1.bf16.msra.mxu0 %v7093
    %7194 = vmatprep.subr.bf16.mxu0 0
    %7195 = vmatpush1.bf16.msra.mxu0 %v7094
    %7196 = vmatprep.subr.bf16.mxu0 0
    %7197 = vmatpush1.bf16.msra.mxu0 %v7095
    %7198 = vmatprep.subr.bf16.mxu0 0
    %7199 = vmatpush1.bf16.msra.mxu0 %v7096
    %7200 = vmatprep.subr.bf16.mxu0 0
    %7201 = vmatpush1.bf16.msra.mxu0 %v7097
    %7202 = vmatprep.subr.bf16.mxu0 0
    %7203 = vmatpush1.bf16.msra.mxu0 %v7098
    %7204 = vmatprep.mubr.bf16.mxu0 %v6874
    %7205 = vmatmul.mubr.bf16.gmra.mrb[0].mxu0 %v6873
    %v7206 = vpop.f32.mrb[0].mxu0
    %v7207 = vadd.f32 %v7166, %v7206
    %v7208 = vpop.f32.mrb[0].mxu0
    %v7209 = vpop.f32.mrb[0].mxu0
    %v7210 = vadd.f32 %v7169, %v7209
    %v7211 = vpop.f32.mrb[0].mxu0
    %7212 = vdwg.mxu0
    %v7213 = vadd.f32 %v6705, %v7207
    %v7214 = vadd.f32 %v6706, %v7210
    %v7215 = vlaneseq
    %v7216 = vshrl.u32 %v7215, 7
    %v7217 = vsub.s32 0, %v7216
    %v7218 = vrot.slane %v3651, %v7217
    %v7219 = vadd.f32 %v7213, %v7218
    %v7220 = vadd.f32 %v7214, %v7218
    %v7221 = vadd.f32 %v5178, %v7219
    %v7222 = vadd.f32 %v5179, %v7220
    %v7223 = vsel %vm64, %v7221, 0.0
    %7224 = vadd.xlane.f32.xlu0 %v7223
    %v7225 = vpop.xlane.xlu0 %7224
    %v7226 = vsel %vm64, %v7222, 0.0
    %7227 = vadd.xlane.f32.xlu0 %v7226
    %v7228 = vpop.xlane.xlu0 %7227
    %v7229 = vmul.f32 %v7225, %v1537
    %v7230 = vmul.f32 %v7228, %v1537
    %v7231 = vsub.f32 %v7221, %v7229
    %v7232 = vsub.f32 %v7222, %v7230
    %v7233 = vmul.f32 %v7231, %v7231
    %v7234 = vmul.f32 %v7232, %v7232
    %v7235 = vsel %vm64, %v7233, 0.0
    %7236 = vadd.xlane.f32.xlu0 %v7235
    %v7237 = vpop.xlane.xlu0 %7236
    %v7238 = vsel %vm64, %v7234, 0.0
    %7239 = vadd.xlane.f32.xlu0 %v7238
    %v7240 = vpop.xlane.xlu0 %7239
    %v7241 = vmul.f32 %v7237, %v1537
    %v7242 = vmul.f32 %v7240, %v1537
    %v7243 = vadd.f32 %v7241, 1e-05
    %v7244 = vadd.f32 %v7242, 1e-05
    %v7245 = vrsqrt.pop %v7243
    %v7246 = vrsqrt.pop %v7244
    %v7247 = vmul.f32 %v7231, %v7245
    %v7248 = vmul.f32 %v7232, %v7246
    %v7249 = vlaneseq
    %v7250 = vshrl.u32 %v7249, 7
    %v7251 = vsub.s32 0, %v7250
    %v7252 = vrot.slane %v3654, %v7251
    %v7253 = vmul.f32 %v7247, %v7252
    %v7254 = vmul.f32 %v7248, %v7252
    %v7255 = vlaneseq
    %v7256 = vshrl.u32 %v7255, 7
    %v7257 = vsub.s32 0, %v7256
    %v7258 = vrot.slane %v3655, %v7257
    %v7259 = vadd.f32 %v7253, %v7258
    %v7260 = vadd.f32 %v7254, %v7258
    %v7261 = vpack.c.bf16 %v7260, %v7259
    %v7262 = vld [vmem:[%s7] sm:$0xf]
    %v7263 = vld [vmem:[%s7 + $0x4] sm:$0xf]
    %v7264 = vld [vmem:[%s7 + $0x8] sm:$0xf]
    %v7265 = vld [vmem:[%s7 + $0xc] sm:$0xf]
    %v7266 = vld [vmem:[%s8] sm:$0x1]
    %v7268 = vlaneseq
    %v7269 = vshrl.u32 %v7268, 7
    %v7270 = vsub.s32 0, %v7269
    %v7271 = vrot.slane %v7266, %v7270
    %v7277 = vunpack.c.l.b16 %v7262
    %v7278 = vunpack.c.l.b16 %v7263
    %v7279 = vunpack.c.l.b16 %v7264
    %v7280 = vunpack.c.l.b16 %v7265
    %v7281 = vpack.c.b16 %v7278, %v7277
    %v7282 = vpack.c.b16 %v7280, %v7279
    %v7286 = vsel %vm64, %v7261, 0
    %7288 = vmatprep.subr.bf16.mxu0 0
    %7289 = vmatpush1.bf16.msra.mxu0 %v7281
    %7290 = vmatprep.subr.bf16.mxu0 0
    %7291 = vmatpush1.bf16.msra.mxu0 %v7282
    %7292 = vmatprep.subr.bf16.mxu0 0
    %7293 = vmatpush1.bf16.msra.mxu0 0
    %7294 = vmatprep.subr.bf16.mxu0 0
    %7295 = vmatpush1.bf16.msra.mxu0 0
    %7296 = vmatprep.subr.bf16.mxu0 0
    %7297 = vmatpush1.bf16.msra.mxu0 0
    %7298 = vmatprep.subr.bf16.mxu0 0
    %7299 = vmatpush1.bf16.msra.mxu0 0
    %7300 = vmatprep.subr.bf16.mxu0 0
    %7301 = vmatpush1.bf16.msra.mxu0 0
    %7302 = vmatprep.subr.bf16.mxu0 0
    %7303 = vmatpush1.bf16.msra.mxu0 0
    %7304 = vmatprep.subr.bf16.mxu0 0
    %7305 = vmatpush1.bf16.msra.mxu0 0
    %7306 = vmatprep.subr.bf16.mxu0 0
    %7307 = vmatpush1.bf16.msra.mxu0 0
    %7308 = vmatprep.subr.bf16.mxu0 0
    %7309 = vmatpush1.bf16.msra.mxu0 0
    %7310 = vmatprep.subr.bf16.mxu0 0
    %7311 = vmatpush1.bf16.msra.mxu0 0
    %7312 = vmatprep.subr.bf16.mxu0 0
    %7313 = vmatpush1.bf16.msra.mxu0 0
    %7314 = vmatprep.subr.bf16.mxu0 0
    %7315 = vmatpush1.bf16.msra.mxu0 0
    %7316 = vmatprep.subr.bf16.mxu0 0
    %7317 = vmatpush1.bf16.msra.mxu0 0
    %7318 = vmatprep.subr.bf16.mxu0 0
    %7319 = vmatpush1.bf16.msra.mxu0 0
    %7320 = vmatprep.mubr.bf16.mxu0 0
    %7321 = vmatmul.mubr.bf16.gmra.mrb[0].mxu0 %v7286
    %v7322 = vpop.f32.mrb[0].mxu0
    %v7323 = vadd.f32 %v7271, %v7322
    %v7324 = vpop.f32.mrb[0].mxu0
    %v7325 = vpop.f32.mrb[0].mxu0
    %v7326 = vadd.f32 %v7271, %v7325
    %v7327 = vpop.f32.mrb[0].mxu0
    %7328 = vdwg.mxu0
    %vm7329 = vcmask 523264
    %7330 = vst.msk [vmem:[#allocation2] sm:$0xff] %vm7329, %v7323
    %7331 = vst.msk [vmem:[#allocation2 + $0x8] sm:$0xff] %vm7329, %v7326
    // Predicated region
    $region38: #{tpu_custom_call.1} parent=1 // pred_check
      _
    $region39: #{tpu_custom_call.1} parent=1 // pred_check_branch
      %7333 = sbr.rel (0) target = $region41
    $region40: #{tpu_custom_call.1} parent=1 // pred_region
      %s7335 = ssub.s32 256, 256
      %7336 = vsyncadd [#allocation3], %s7335
      %s7337 = sshll.u32 [#allocation2], 4
      %s7338 = int_to_ptr.vmem [resolvable:$true] %s7337
      %7343 = dma.vmem_to_hbm [thread:$0]  %s7338, 256, %s9, [#allocation3], 128, 128, 8
    $region41: #{tpu_custom_call.1} parent=1 // pred_fallthru
      _
    // Predicated region
    $region42: #{tpu_custom_call.1} parent=1 // pred_check
      _
    $region43: #{tpu_custom_call.1} parent=1 // pred_check_branch
      %7345 = sbr.rel (0) target = $region45
    $region44: #{tpu_custom_call.1} parent=1 // pred_region
      %7346 = dma.done [#allocation3], 256
    $region45: #{tpu_custom_call.1} parent=1 // pred_fallthru
      _
    %7347 = vsyncpa [#allocation3], 1

</llo_original>
